<compile_context>
chip_gen: v6e
topology: v6e:2x2x1
jax: 0.10.0
libtpu: 0.0.40
codegen_flags: <defaults>
</compile_context>

<pallas_src>
import functools

import jax
import jax.numpy as jnp
from jax import lax
from jax.experimental import pallas as pl
from jax.experimental.pallas import tpu as pltpu

_VMEM_LIMIT = 32 * 1024 * 1024  # safe on v5e/v6e (128 MiB) and v7x (64 MiB)


def _elu(x):
    # ELU(alpha=1): x if x > 0 else exp(x) - 1   (clamp arg to avoid inf lanes)
    return jnp.where(x > 0, x, jnp.exp(jnp.minimum(x, 0.0)) - 1.0)


def _round_up(x, m):
    return (x + m - 1) // m * m


# ---------------------------------------------------------------------------
# Fused NCDHW read + AvgPool3d(2,2,2).
#
# The NCDHW f32 input is viewed (free, row-major) as (N*C, D/2, 2*H/2, 2*W):
#   * first H/2 rows of the 2*(H/2) axis = depth parity 0, last H/2 = parity 1
#   * the 2W minor axis holds [row 2j | row 2j+1] of the original W axis
# Per (n, d2) grid step the kernel adds the two depth halves in f32, merges
# (C, H/2) rows and multiplies by a (2W, W/2) pooling matrix (entries 0.125)
# on the MXU, which performs the remaining height+width 4-way sum and the /8.
# Output is bf16 (N, D/2, C, H/2, W/2).
# ---------------------------------------------------------------------------
def _avgpool_kernel(x_ref, pm_ref, o_ref):
    c, hh, _ = x_ref.shape
    h2 = hh // 2
    s = x_ref[:, :h2, :] + x_ref[:, h2:, :]          # depth pair, f32 sum
    s = s.reshape(c * h2, s.shape[-1])               # merge leading dims (free)
    y = jnp.dot(s, pm_ref[...], preferred_element_type=jnp.float32)
    o_ref[...] = y.reshape(c, h2, -1).astype(o_ref.dtype)


def _pool_matrix(w, dtype=jnp.float32):
    # (2W, W/2) matrix: column j sums inputs {2j, 2j+1, W+2j, W+2j+1} * 0.125
    w2 = w // 2
    k = jnp.arange(2 * w)
    col = jnp.where(k < w, k // 2, (k - w) // 2)
    return ((col[:, None] == jnp.arange(w2)[None, :]).astype(dtype) * 0.125)


def _avgpool3d_ncdhw(x):
    n, c, d, h, w = x.shape
    assert d % 2 == 0 and h % 2 == 0 and w % 2 == 0
    d2, h2, w2 = d // 2, h // 2, w // 2
    xv = x.reshape(n * c, d2, 2 * h2, 2 * w)          # free row-major view
    pm = _pool_matrix(w).astype(x.dtype)
    out = pl.pallas_call(
        _avgpool_kernel,
        out_shape=jax.ShapeDtypeStruct((n * d2, c, h2, w2), jnp.bfloat16),
        grid=(n, d2),
        in_specs=[
            pl.BlockSpec((c, None, 2 * h2, 2 * w), lambda nn, dd: (nn, dd, 0, 0)),
            pl.BlockSpec((2 * w, w2), lambda nn, dd: (0, 0)),
        ],
        out_specs=pl.BlockSpec((None, c, h2, w2),
                               lambda nn, dd: (nn * d2 + dd, 0, 0, 0)),
        compiler_params=pltpu.CompilerParams(
            dimension_semantics=("parallel", "parallel"),
            vmem_limit_bytes=_VMEM_LIMIT),
    )(xv, pm)
    return out.reshape(n, d2, c, h2, w2)


# ---------------------------------------------------------------------------
# Conv3d (3x3x3, stride 1, padding 1) + bias + ELU on padded flattened planes.
#
# Activations live as (N, D, P, C) bf16 where one plane P = (H+3)*(W+2) rows is
# the spatially padded (H, W) slab (top pad 1, bottom pad 2, left/right pad 1),
# flattened row-major.  Per (n, d) grid step the kernel reads the three depth
# planes d-1, d, d+1 (clamped index maps; edge contributions skipped with
# pl.when -> no depth padding in HBM), builds one (M, 9*Cin) im2col block per
# plane from 9 shifted slices and does a single K=9*Cin MXU dot, accumulating
# in an f32 VMEM scratch.  The epilogue adds bias, applies ELU, zeroes the two
# wrap ("junk") columns and either writes the clean (M, Cout) block or emits
# the full padded plane of the NEXT conv (halo rows/cols zero-filled) so no
# XLA slice/re-pad pass is needed between conv1 and conv2.
# ---------------------------------------------------------------------------
def _conv_kernel(xm_ref, xc_ref, xn_ref, w_ref, b_ref, o_ref, acc_ref, *,
                 wpad, m_out, w_out, p_in, emit_padded):
    dd = pl.program_id(1)
    nd = pl.num_programs(1)

    def lhs_from(plane_ref):
        parts = [plane_ref[kh * wpad + kw: kh * wpad + kw + m_out, :]
                 for kh in range(3) for kw in range(3)]
        return jnp.concatenate(parts, axis=-1)        # (m_out, 9*cin) bf16

    # centre depth plane (always valid)
    acc_ref[...] = jnp.dot(lhs_from(xc_ref), w_ref[1],
                           preferred_element_type=jnp.float32)

    @pl.when(dd > 0)                                  # previous depth plane
    def _():
        acc_ref[...] += jnp.dot(lhs_from(xm_ref), w_ref[0],
                                preferred_element_type=jnp.float32)

    @pl.when(dd < nd - 1)                             # next depth plane
    def _():
        acc_ref[...] += jnp.dot(lhs_from(xn_ref), w_ref[2],
                                preferred_element_type=jnp.float32)

    y = _elu(acc_ref[...] + b_ref[...])
    cout = y.shape[-1]
    col = lax.broadcasted_iota(jnp.int32, (m_out, cout), 0) % wpad
    y = jnp.where(col < w_out, y, 0.0).astype(o_ref.dtype)   # zero wrap cols

    if emit_padded:
        # write the next conv's padded plane: zero head (top pad row + first
        # left pad), shifted data, zero tail (rest of bottom pad rows)
        head = jnp.zeros((wpad + 1, cout), o_ref.dtype)
        tail = jnp.zeros((p_in - m_out - wpad - 1, cout), o_ref.dtype)
        o_ref[...] = jnp.concatenate([head, y, tail], axis=0)
    else:
        o_ref[...] = y


def _conv3d_elu(x, w_packed, bias, h, w, emit_padded):
    # x: (N, D, P, Cin) bf16 padded planes; w_packed: (3, 9*Cin, Cout) bf16
    # (K order per depth group = (kh, kw, cin)); bias: (1, Cout) f32.
    n, d, p_in, cin = x.shape
    assert w_packed.shape[1] == 9 * cin, (w_packed.shape, cin)
    cout = w_packed.shape[-1]
    wpad = w + 2
    m_out = h * wpad
    assert p_in == (h + 3) * wpad, (p_in, h, w)
    out_rows = p_in if emit_padded else m_out

    return pl.pallas_call(
        functools.partial(_conv_kernel, wpad=wpad, m_out=m_out, w_out=w,
                          p_in=p_in, emit_padded=emit_padded),
        out_shape=jax.ShapeDtypeStruct((n, d, out_rows, cout), jnp.bfloat16),
        grid=(n, d),
        in_specs=[
            pl.BlockSpec((None, None, p_in, cin),
                         lambda nn, dd: (nn, jnp.maximum(dd - 1, 0), 0, 0)),
            pl.BlockSpec((None, None, p_in, cin),
                         lambda nn, dd: (nn, dd, 0, 0)),
            pl.BlockSpec((None, None, p_in, cin),
                         lambda nn, dd: (nn, jnp.minimum(dd + 1, d - 1), 0, 0)),
            pl.BlockSpec((3, 9 * cin, cout), lambda nn, dd: (0, 0, 0)),
            pl.BlockSpec((1, cout), lambda nn, dd: (0, 0)),
        ],
        out_specs=pl.BlockSpec((None, None, out_rows, cout),
                               lambda nn, dd: (nn, dd, 0, 0)),
        scratch_shapes=[pltpu.VMEM((m_out, cout), jnp.float32)],
        compiler_params=pltpu.CompilerParams(
            dimension_semantics=("parallel", "parallel"),
            vmem_limit_bytes=_VMEM_LIMIT),
    )(x, x, x, w_packed, bias)


# ---------------------------------------------------------------------------
# MaxPool3d(2,2,2) on the small bf16 conv2 output (plain XLA reshape+max).
# ---------------------------------------------------------------------------
def _maxpool3d(x):
    n, d, h, w, c = x.shape
    return x.reshape(n, d // 2, 2, h // 2, 2, w // 2, 2, c).max(axis=(2, 4, 6))


# ---------------------------------------------------------------------------
# Classifier: Linear(K->32)+ELU + Linear(32->num_classes)+Sigmoid.
# bf16 activations/weights on the long K axis (tiled over the grid, f32 VMEM
# accumulator); the tiny second layer + sigmoid run in f32 on the last step.
# ---------------------------------------------------------------------------
def _classifier_kernel(x_ref, w1_ref, b1_ref, w2_ref, b2_ref, o_ref, acc_ref):
    k = pl.program_id(0)

    @pl.when(k == 0)
    def _():
        acc_ref[...] = jnp.zeros_like(acc_ref)

    acc_ref[...] += jnp.dot(x_ref[...], w1_ref[...],
                            preferred_element_type=jnp.float32)

    @pl.when(k == pl.num_programs(0) - 1)
    def _():
        hid = _elu(acc_ref[...] + b1_ref[...])
        y = jnp.dot(hid, w2_ref[...], preferred_element_type=jnp.float32)
        y = y + b2_ref[...]
        o_ref[...] = 1.0 / (1.0 + jnp.exp(-y))


def _classifier(x_flat, w1, b1, w2, b2):
    n, k = x_flat.shape
    nh = w1.shape[-1]
    ncls = w2.shape[-1]
    tk = min(32768, _round_up(k, 128))
    kp = _round_up(k, tk)
    if kp != k:                      # zero-pad contraction axis (no-op math)
        x_flat = jnp.pad(x_flat, ((0, 0), (0, kp - k)))
        w1 = jnp.pad(w1, ((0, kp - k), (0, 0)))
    return pl.pallas_call(
        _classifier_kernel,
        out_shape=jax.ShapeDtypeStruct((n, ncls), jnp.float32),
        grid=(kp // tk,),
        in_specs=[
            pl.BlockSpec((n, tk), lambda kk: (0, kk)),
            pl.BlockSpec((tk, nh), lambda kk: (kk, 0)),
            pl.BlockSpec((1, nh), lambda kk: (0, 0)),
            pl.BlockSpec((nh, ncls), lambda kk: (0, 0)),
            pl.BlockSpec((1, ncls), lambda kk: (0, 0)),
        ],
        out_specs=pl.BlockSpec((n, ncls), lambda kk: (0, 0)),
        scratch_shapes=[pltpu.VMEM((n, nh), jnp.float32)],
        compiler_params=pltpu.CompilerParams(
            dimension_semantics=("arbitrary",),
            vmem_limit_bytes=_VMEM_LIMIT),
    )(x_flat, w1, b1, w2, b2)


# ---------------------------------------------------------------------------
# Full forward pass (NCDHW input like the PyTorch module).
# ---------------------------------------------------------------------------
def forward(x, params):
    n, cin, d, h, w = x.shape
    cpad = params["w1"].shape[1] // 9          # conv1's (lane-dense) padded Cin
    assert cpad >= cin

    # fused NCDHW read + AvgPool3d(2): (N, D/2, C, H/2, W/2) bf16
    pooled = _avgpool3d_ncdhw(x)
    d2, h2, w2 = d // 2, h // 2, w // 2

    # cheap layout glue on the pooled (16x smaller, bf16) tensor:
    # NDHWC + spatial pad (1,2)/(1,1) + channel pad -> flattened padded planes
    t = jnp.transpose(pooled, (0, 1, 3, 4, 2))
    t = jnp.pad(t, ((0, 0), (0, 0), (1, 2), (1, 1), (0, cpad - cin)))
    p_in = (h2 + 3) * (w2 + 2)
    x1 = t.reshape(n, d2, p_in, cpad)

    # Conv1 + ELU: emits conv2's padded-plane layout directly (bf16)
    x2 = _conv3d_elu(x1, params["w1"], params["b1"], h2, w2, emit_padded=True)
    # Conv2 + ELU: clean flattened rows (junk cols zeroed) (bf16)
    x3 = _conv3d_elu(x2, params["w2"], params["b2"], h2, w2, emit_padded=False)

    x3 = x3.reshape(n, d2, h2, w2 + 2, -1)[:, :, :, :w2, :]   # drop wrap cols
    x3 = _maxpool3d(x3)                                       # bf16, tiny
    d4, h4, w4, c2 = x3.shape[1:]
    # flatten in PyTorch order (N, C, D, H, W)
    x_flat = jnp.transpose(x3, (0, 4, 1, 2, 3)).reshape(n, c2 * d4 * h4 * w4)
    return _classifier(x_flat, params["fw1"], params["fb1"],
                       params["fw2"], params["fb2"])


def init_params(key, num_classes, fin, cin=116, c1=128, c2=32, cin_pad=128):
    assert cin_pad >= cin
    ks = jax.random.split(key, 8)
    # PyTorch-layout parameters (deterministic synthetic init), then repacked.
    w1_pt = jax.random.normal(ks[0], (c1, cin, 3, 3, 3), jnp.float32) / (cin * 27) ** 0.5
    b1 = jax.random.normal(ks[1], (c1,), jnp.float32) * 0.01
    w2_pt = jax.random.normal(ks[2], (c2, c1, 3, 3, 3), jnp.float32) / (c1 * 27) ** 0.5
    b2 = jax.random.normal(ks[3], (c2,), jnp.float32) * 0.01
    fw1_pt = jax.random.normal(ks[4], (32, fin), jnp.float32) / fin ** 0.5
    fb1 = jax.random.normal(ks[5], (32,), jnp.float32) * 0.01
    fw2_pt = jax.random.normal(ks[6], (num_classes, 32), jnp.float32) / 32 ** 0.5
    fb2 = jax.random.normal(ks[7], (num_classes,), jnp.float32) * 0.01

    def conv_packed(w_pt, pad_cin_to=None):
        # (Cout, Cin, 3,3,3) -> (3, 9*Cin_pad, Cout); per depth group the K
        # axis is ordered (kh, kw, cin) to match the kernel's im2col concat.
        t = jnp.transpose(w_pt, (2, 3, 4, 1, 0))          # (kd, kh, kw, cin, cout)
        if pad_cin_to is not None and pad_cin_to > t.shape[3]:
            t = jnp.pad(t, ((0, 0), (0, 0), (0, 0),
                            (0, pad_cin_to - t.shape[3]), (0, 0)))
        kd, kh, kw, ci, co = t.shape
        return t.reshape(kd, kh * kw * ci, co).astype(jnp.bfloat16)

    return {
        "w1": conv_packed(w1_pt, pad_cin_to=cin_pad), "b1": b1.reshape(1, -1),
        "w2": conv_packed(w2_pt), "b2": b2.reshape(1, -1),
        "fw1": fw1_pt.T.astype(jnp.bfloat16), "fb1": fb1.reshape(1, -1),
        "fw2": fw2_pt.T, "fb2": fb2.reshape(1, -1),
    }


if __name__ == "__main__":
    num_classes = 2
    key = jax.random.PRNGKey(0)
    kx, kp = jax.random.split(key)
    # Small shapes consistent with the module: NCDHW input, AvgPool/2 ->
    # Conv(116->128)+ELU -> Conv(128->32)+ELU -> MaxPool/2 -> Linear+ELU ->
    # Linear+Sigmoid.  The module's 32*15*18*15 classifier fan-in is just
    # 32 * (pooled spatial volume); for this 8^3 test volume that is 32*2*2*2.
    # The same kernels work unchanged at the full (B,116,60,72,60) size.
    B, CIN, D, H, W = 2, 116, 8, 8, 8
    fin = 32 * (D // 4) * (H // 4) * (W // 4)
    x = jax.random.normal(kx, (B, CIN, D, H, W), jnp.float32)
    params = init_params(kp, num_classes, fin=fin, cin=CIN)

    out = jax.block_until_ready(jax.jit(forward)(x, params))

    assert out.shape == (B, num_classes), out.shape
    assert bool(jnp.all(jnp.isfinite(out)))
    assert bool(jnp.all((out >= 0.0) & (out <= 1.0)))  # sigmoid range
    print("KERNEL_OK")
</pallas_src>

<mosaic_0001>
module attributes {stable_mosaic.version = 11 : i64} {
  func.func @_avgpool_kernel(%arg0: i32, %arg1: i32, %arg2: memref<116x1x8x16xf32, #tpu.memory_space<vmem>>, %arg3: memref<16x4xf32, #tpu.memory_space<vmem>>, %arg4: memref<1x116x4x4xbf16, #tpu.memory_space<vmem>>) attributes {dimension_semantics = [#tpu.dimension_semantics<parallel>, #tpu.dimension_semantics<parallel>], iteration_bounds = array<i64: 2, 4>, scalar_prefetch = 0 : i64, scratch_operands = 0 : i64, tpu.core_type = #tpu.core_type<tc>, window_params = [{transform_indices = @transform_0, window_bounds = array<i64: 116, 1, 8, 16>}, {pipeline_mode = #tpu.pipeline_mode<synchronous>, transform_indices = @transform_1, window_bounds = array<i64: 16, 4>}, {transform_indices = @transform_2, window_bounds = array<i64: 1, 116, 4, 4>}]} {
    %c0 = arith.constant 0 : index
    %c0_0 = arith.constant 0 : index
    %c0_1 = arith.constant 0 : index
    %c0_2 = arith.constant 0 : index
    %0 = vector.load %arg2[%c0, %c0_0, %c0_1, %c0_2] : memref<116x1x8x16xf32, #tpu.memory_space<vmem>>, vector<116x1x4x16xf32>
    %1 = vector.shape_cast %0 : vector<116x1x4x16xf32> to vector<116x4x16xf32>
    %c0_3 = arith.constant 0 : index
    %c0_4 = arith.constant 0 : index
    %c4 = arith.constant 4 : index
    %c0_5 = arith.constant 0 : index
    %2 = vector.load %arg2[%c0_3, %c0_4, %c4, %c0_5] : memref<116x1x8x16xf32, #tpu.memory_space<vmem>>, vector<116x1x4x16xf32>
    %3 = vector.shape_cast %2 : vector<116x1x4x16xf32> to vector<116x4x16xf32>
    %4 = arith.addf %1, %3 : vector<116x4x16xf32>
    %5 = vector.shape_cast %4 : vector<116x4x16xf32> to vector<464x16xf32>
    %c0_6 = arith.constant 0 : index
    %c0_7 = arith.constant 0 : index
    %6 = vector.load %arg3[%c0_6, %c0_7] : memref<16x4xf32, #tpu.memory_space<vmem>>, vector<16x4xf32>
    %cst = arith.constant dense<0.000000e+00> : vector<464x4xf32>
    %7 = tpu.matmul %5, %6, %cst {dimension_numbers = #tpu.dot_dimension_numbers<[1], [0], [0], [1], [0, 0, 1, 1], [], []>} : vector<464x16xf32>, vector<16x4xf32>, vector<464x4xf32> -> vector<464x4xf32>
    %8 = vector.shape_cast %7 : vector<464x4xf32> to vector<116x4x4xf32>
    %9 = arith.truncf %8 : vector<116x4x4xf32> to vector<116x4x4xbf16>
    %c0_8 = arith.constant 0 : index
    %c0_9 = arith.constant 0 : index
    %c0_10 = arith.constant 0 : index
    %c0_11 = arith.constant 0 : index
    %10 = vector.load %arg4[%c0_8, %c0_9, %c0_10, %c0_11] : memref<1x116x4x4xbf16, #tpu.memory_space<vmem>>, vector<1x116x4x4xbf16>
    %11 = vector.shape_cast %10 : vector<1x116x4x4xbf16> to vector<116x4x4xbf16>
    %12 = vector.shape_cast %9 : vector<116x4x4xbf16> to vector<1x116x4x4xbf16>
    tpu.vector_store %arg4[%c0_8, %c0_9, %c0_10, %c0_11], %12 {strides = array<i32>} : memref<1x116x4x4xbf16, #tpu.memory_space<vmem>>, vector<1x116x4x4xbf16>,
    return
  }
  func.func @transform_0(%arg0: i32, %arg1: i32) -> (i32, i32, i32, i32) {
    %c0_i32 = arith.constant 0 : i32
    %c0_i32_0 = arith.constant 0 : i32
    %c0_i32_1 = arith.constant 0 : i32
    return %arg0, %arg1, %c0_i32, %c0_i32_0 : i32, i32, i32, i32
  }
  func.func @transform_1(%arg0: i32, %arg1: i32) -> (i32, i32) {
    %c0_i32 = arith.constant 0 : i32
    %c0_i32_0 = arith.constant 0 : i32
    %c0_i32_1 = arith.constant 0 : i32
    return %c0_i32, %c0_i32_0 : i32, i32
  }
  func.func @transform_2(%arg0: i32, %arg1: i32) -> (i32, i32, i32, i32) {
    %c4_i32 = arith.constant 4 : i32
    %0 = arith.muli %arg0, %c4_i32 : i32
    %1 = arith.addi %0, %arg1 : i32
    %c0_i32 = arith.constant 0 : i32
    %c0_i32_0 = arith.constant 0 : i32
    %c0_i32_1 = arith.constant 0 : i32
    %c0_i32_2 = arith.constant 0 : i32
    return %1, %c0_i32, %c0_i32_0, %c0_i32_1 : i32, i32, i32, i32
  }
}

module attributes {stable_mosaic.version = 11 : i64} {
  func.func @_conv_kernel(%arg0: i32, %arg1: i32, %arg2: memref<1x1x42x128xbf16, #tpu.memory_space<vmem>>, %arg3: memref<1x1x42x128xbf16, #tpu.memory_space<vmem>>, %arg4: memref<1x1x42x128xbf16, #tpu.memory_space<vmem>>, %arg5: memref<3x1152x128xbf16, #tpu.memory_space<vmem>>, %arg6: memref<1x128xf32, #tpu.memory_space<vmem>>, %arg7: memref<1x1x42x128xbf16, #tpu.memory_space<vmem>>, %arg8: memref<24x128xf32, #tpu.memory_space<vmem>>) attributes {dimension_semantics = [#tpu.dimension_semantics<parallel>, #tpu.dimension_semantics<parallel>], iteration_bounds = array<i64: 2, 4>, scalar_prefetch = 0 : i64, scratch_operands = 1 : i64, tpu.core_type = #tpu.core_type<tc>, window_params = [{transform_indices = @transform_0, window_bounds = array<i64: 1, 1, 42, 128>}, {transform_indices = @transform_1, window_bounds = array<i64: 1, 1, 42, 128>}, {transform_indices = @transform_2, window_bounds = array<i64: 1, 1, 42, 128>}, {pipeline_mode = #tpu.pipeline_mode<synchronous>, transform_indices = @transform_3, window_bounds = array<i64: 3, 1152, 128>}, {pipeline_mode = #tpu.pipeline_mode<synchronous>, transform_indices = @transform_4, window_bounds = array<i64: 1, 128>}, {transform_indices = @transform_5, window_bounds = array<i64: 1, 1, 42, 128>}]} {
    %c0 = arith.constant 0 : index
    %c0_0 = arith.constant 0 : index
    %c0_1 = arith.constant 0 : index
    %c0_2 = arith.constant 0 : index
    %0 = vector.load %arg3[%c0, %c0_0, %c0_1, %c0_2] : memref<1x1x42x128xbf16, #tpu.memory_space<vmem>>, vector<1x1x24x128xbf16>
    %1 = vector.shape_cast %0 : vector<1x1x24x128xbf16> to vector<24x128xbf16>
    %c0_3 = arith.constant 0 : index
    %c0_4 = arith.constant 0 : index
    %c1 = arith.constant 1 : index
    %c0_5 = arith.constant 0 : index
    %2 = vector.load %arg3[%c0_3, %c0_4, %c1, %c0_5] : memref<1x1x42x128xbf16, #tpu.memory_space<vmem>>, vector<1x1x24x128xbf16>
    %3 = vector.shape_cast %2 : vector<1x1x24x128xbf16> to vector<24x128xbf16>
    %c0_6 = arith.constant 0 : index
    %c0_7 = arith.constant 0 : index
    %c2 = arith.constant 2 : index
    %c0_8 = arith.constant 0 : index
    %4 = vector.load %arg3[%c0_6, %c0_7, %c2, %c0_8] : memref<1x1x42x128xbf16, #tpu.memory_space<vmem>>, vector<1x1x24x128xbf16>
    %5 = vector.shape_cast %4 : vector<1x1x24x128xbf16> to vector<24x128xbf16>
    %c0_9 = arith.constant 0 : index
    %c0_10 = arith.constant 0 : index
    %c6 = arith.constant 6 : index
    %c0_11 = arith.constant 0 : index
    %6 = vector.load %arg3[%c0_9, %c0_10, %c6, %c0_11] : memref<1x1x42x128xbf16, #tpu.memory_space<vmem>>, vector<1x1x24x128xbf16>
    %7 = vector.shape_cast %6 : vector<1x1x24x128xbf16> to vector<24x128xbf16>
    %c0_12 = arith.constant 0 : index
    %c0_13 = arith.constant 0 : index
    %c7 = arith.constant 7 : index
    %c0_14 = arith.constant 0 : index
    %8 = vector.load %arg3[%c0_12, %c0_13, %c7, %c0_14] : memref<1x1x42x128xbf16, #tpu.memory_space<vmem>>, vector<1x1x24x128xbf16>
    %9 = vector.shape_cast %8 : vector<1x1x24x128xbf16> to vector<24x128xbf16>
    %c0_15 = arith.constant 0 : index
    %c0_16 = arith.constant 0 : index
    %c8 = arith.constant 8 : index
    %c0_17 = arith.constant 0 : index
    %10 = vector.load %arg3[%c0_15, %c0_16, %c8, %c0_17] : memref<1x1x42x128xbf16, #tpu.memory_space<vmem>>, vector<1x1x24x128xbf16>
    %11 = vector.shape_cast %10 : vector<1x1x24x128xbf16> to vector<24x128xbf16>
    %c0_18 = arith.constant 0 : index
    %c0_19 = arith.constant 0 : index
    %c12 = arith.constant 12 : index
    %c0_20 = arith.constant 0 : index
    %12 = vector.load %arg3[%c0_18, %c0_19, %c12, %c0_20] : memref<1x1x42x128xbf16, #tpu.memory_space<vmem>>, vector<1x1x24x128xbf16>
    %13 = vector.shape_cast %12 : vector<1x1x24x128xbf16> to vector<24x128xbf16>
    %c0_21 = arith.constant 0 : index
    %c0_22 = arith.constant 0 : index
    %c13 = arith.constant 13 : index
    %c0_23 = arith.constant 0 : index
    %14 = vector.load %arg3[%c0_21, %c0_22, %c13, %c0_23] : memref<1x1x42x128xbf16, #tpu.memory_space<vmem>>, vector<1x1x24x128xbf16>
    %15 = vector.shape_cast %14 : vector<1x1x24x128xbf16> to vector<24x128xbf16>
    %c0_24 = arith.constant 0 : index
    %c0_25 = arith.constant 0 : index
    %c14 = arith.constant 14 : index
    %c0_26 = arith.constant 0 : index
    %16 = vector.load %arg3[%c0_24, %c0_25, %c14, %c0_26] : memref<1x1x42x128xbf16, #tpu.memory_space<vmem>>, vector<1x1x24x128xbf16>
    %17 = vector.shape_cast %16 : vector<1x1x24x128xbf16> to vector<24x128xbf16>
    %18 = tpu.concatenate %1, %3, %5, %7, %9, %11, %13, %15, %17 in 1 : vector<24x128xbf16>, vector<24x128xbf16>, vector<24x128xbf16>, vector<24x128xbf16>, vector<24x128xbf16>, vector<24x128xbf16>, vector<24x128xbf16>, vector<24x128xbf16>, vector<24x128xbf16> -> vector<24x1152xbf16>
    %c1_27 = arith.constant 1 : index
    %c0_28 = arith.constant 0 : index
    %c0_29 = arith.constant 0 : index
    %19 = vector.load %arg5[%c1_27, %c0_28, %c0_29] : memref<3x1152x128xbf16, #tpu.memory_space<vmem>>, vector<1x1152x128xbf16>
    %20 = vector.shape_cast %19 : vector<1x1152x128xbf16> to vector<1152x128xbf16>
    %cst = arith.constant dense<0.000000e+00> : vector<24x128xf32>
    %21 = tpu.matmul %18, %20, %cst {dimension_numbers = #tpu.dot_dimension_numbers<[1], [0], [0], [1], [0, 0, 1, 1], [], []>} : vector<24x1152xbf16>, vector<1152x128xbf16>, vector<24x128xf32> -> vector<24x128xf32>
    %c0_30 = arith.constant 0 : index
    %c0_31 = arith.constant 0 : index
    %22 = vector.load %arg8[%c0_30, %c0_31] : memref<24x128xf32, #tpu.memory_space<vmem>>, vector<24x128xf32>
    tpu.vector_store %arg8[%c0_30, %c0_31], %21 {strides = array<i32>} : memref<24x128xf32, #tpu.memory_space<vmem>>, vector<24x128xf32>,
    %c0_i32 = arith.constant 0 : i32
    %23 = arith.cmpi sgt, %arg1, %c0_i32 : i32
    %24 = arith.extui %23 : i1 to i32
    %c0_i32_32 = arith.constant 0 : i32
    %25 = arith.cmpi ne, %24, %c0_i32_32 : i32
    scf.if %25 {
      %c0_52 = arith.constant 0 : index
      %c0_53 = arith.constant 0 : index
      %69 = vector.load %arg8[%c0_52, %c0_53] : memref<24x128xf32, #tpu.memory_space<vmem>>, vector<24x128xf32>
      %c0_54 = arith.constant 0 : index
      %c0_55 = arith.constant 0 : index
      %c0_56 = arith.constant 0 : index
      %c0_57 = arith.constant 0 : index
      %70 = vector.load %arg2[%c0_54, %c0_55, %c0_56, %c0_57] : memref<1x1x42x128xbf16, #tpu.memory_space<vmem>>, vector<1x1x24x128xbf16>
      %71 = vector.shape_cast %70 : vector<1x1x24x128xbf16> to vector<24x128xbf16>
      %c0_58 = arith.constant 0 : index
      %c0_59 = arith.constant 0 : index
      %c1_60 = arith.constant 1 : index
      %c0_61 = arith.constant 0 : index
      %72 = vector.load %arg2[%c0_58, %c0_59, %c1_60, %c0_61] : memref<1x1x42x128xbf16, #tpu.memory_space<vmem>>, vector<1x1x24x128xbf16>
      %73 = vector.shape_cast %72 : vector<1x1x24x128xbf16> to vector<24x128xbf16>
      %c0_62 = arith.constant 0 : index
      %c0_63 = arith.constant 0 : index
      %c2_64 = arith.constant 2 : index
      %c0_65 = arith.constant 0 : index
      %74 = vector.load %arg2[%c0_62, %c0_63, %c2_64, %c0_65] : memref<1x1x42x128xbf16, #tpu.memory_space<vmem>>, vector<1x1x24x128xbf16>
      %75 = vector.shape_cast %74 : vector<1x1x24x128xbf16> to vector<24x128xbf16>
      %c0_66 = arith.constant 0 : index
      %c0_67 = arith.constant 0 : index
      %c6_68 = arith.constant 6 : index
      %c0_69 = arith.constant 0 : index
      %76 = vector.load %arg2[%c0_66, %c0_67, %c6_68, %c0_69] : memref<1x1x42x128xbf16, #tpu.memory_space<vmem>>, vector<1x1x24x128xbf16>
      %77 = vector.shape_cast %76 : vector<1x1x24x128xbf16> to vector<24x128xbf16>
      %c0_70 = arith.constant 0 : index
      %c0_71 = arith.constant 0 : index
      %c7_72 = arith.constant 7 : index
      %c0_73 = arith.constant 0 : index
      %78 = vector.load %arg2[%c0_70, %c0_71, %c7_72, %c0_73] : memref<1x1x42x128xbf16, #tpu.memory_space<vmem>>, vector<1x1x24x128xbf16>
      %79 = vector.shape_cast %78 : vector<1x1x24x128xbf16> to vector<24x128xbf16>
      %c0_74 = arith.constant 0 : index
      %c0_75 = arith.constant 0 : index
      %c8_76 = arith.constant 8 : index
      %c0_77 = arith.constant 0 : index
      %80 = vector.load %arg2[%c0_74, %c0_75, %c8_76, %c0_77] : memref<1x1x42x128xbf16, #tpu.memory_space<vmem>>, vector<1x1x24x128xbf16>
      %81 = vector.shape_cast %80 : vector<1x1x24x128xbf16> to vector<24x128xbf16>
      %c0_78 = arith.constant 0 : index
      %c0_79 = arith.constant 0 : index
      %c12_80 = arith.constant 12 : index
      %c0_81 = arith.constant 0 : index
      %82 = vector.load %arg2[%c0_78, %c0_79, %c12_80, %c0_81] : memref<1x1x42x128xbf16, #tpu.memory_space<vmem>>, vector<1x1x24x128xbf16>
      %83 = vector.shape_cast %82 : vector<1x1x24x128xbf16> to vector<24x128xbf16>
      %c0_82 = arith.constant 0 : index
      %c0_83 = arith.constant 0 : index
      %c13_84 = arith.constant 13 : index
      %c0_85 = arith.constant 0 : index
      %84 = vector.load %arg2[%c0_82, %c0_83, %c13_84, %c0_85] : memref<1x1x42x128xbf16, #tpu.memory_space<vmem>>, vector<1x1x24x128xbf16>
      %85 = vector.shape_cast %84 : vector<1x1x24x128xbf16> to vector<24x128xbf16>
      %c0_86 = arith.constant 0 : index
      %c0_87 = arith.constant 0 : index
      %c14_88 = arith.constant 14 : index
      %c0_89 = arith.constant 0 : index
      %86 = vector.load %arg2[%c0_86, %c0_87, %c14_88, %c0_89] : memref<1x1x42x128xbf16, #tpu.memory_space<vmem>>, vector<1x1x24x128xbf16>
      %87 = vector.shape_cast %86 : vector<1x1x24x128xbf16> to vector<24x128xbf16>
      %88 = tpu.concatenate %71, %73, %75, %77, %79, %81, %83, %85, %87 in 1 : vector<24x128xbf16>, vector<24x128xbf16>, vector<24x128xbf16>, vector<24x128xbf16>, vector<24x128xbf16>, vector<24x128xbf16>, vector<24x128xbf16>, vector<24x128xbf16>, vector<24x128xbf16> -> vector<24x1152xbf16>
      %c0_90 = arith.constant 0 : index
      %c0_91 = arith.constant 0 : index
      %c0_92 = arith.constant 0 : index
      %89 = vector.load %arg5[%c0_90, %c0_91, %c0_92] : memref<3x1152x128xbf16, #tpu.memory_space<vmem>>, vector<1x1152x128xbf16>
      %90 = vector.shape_cast %89 : vector<1x1152x128xbf16> to vector<1152x128xbf16>
      %cst_93 = arith.constant dense<0.000000e+00> : vector<24x128xf32>
      %91 = tpu.matmul %88, %90, %cst_93 {dimension_numbers = #tpu.dot_dimension_numbers<[1], [0], [0], [1], [0, 0, 1, 1], [], []>} : vector<24x1152xbf16>, vector<1152x128xbf16>, vector<24x128xf32> -> vector<24x128xf32>
      %92 = arith.addf %69, %91 : vector<24x128xf32>
      %c0_94 = arith.constant 0 : index
      %c0_95 = arith.constant 0 : index
      %93 = vector.load %arg8[%c0_94, %c0_95] : memref<24x128xf32, #tpu.memory_space<vmem>>, vector<24x128xf32>
      tpu.vector_store %arg8[%c0_94, %c0_95], %92 {strides = array<i32>} : memref<24x128xf32, #tpu.memory_space<vmem>>, vector<24x128xf32>,
    } else {
    }
    %c3_i32 = arith.constant 3 : i32
    %26 = arith.cmpi slt, %arg1, %c3_i32 : i32
    %27 = arith.extui %26 : i1 to i32
    %c0_i32_33 = arith.constant 0 : i32
    %28 = arith.cmpi ne, %27, %c0_i32_33 : i32
    scf.if %28 {
      %c0_52 = arith.constant 0 : index
      %c0_53 = arith.constant 0 : index
      %69 = vector.load %arg8[%c0_52, %c0_53] : memref<24x128xf32, #tpu.memory_space<vmem>>, vector<24x128xf32>
      %c0_54 = arith.constant 0 : index
      %c0_55 = arith.constant 0 : index
      %c0_56 = arith.constant 0 : index
      %c0_57 = arith.constant 0 : index
      %70 = vector.load %arg4[%c0_54, %c0_55, %c0_56, %c0_57] : memref<1x1x42x128xbf16, #tpu.memory_space<vmem>>, vector<1x1x24x128xbf16>
      %71 = vector.shape_cast %70 : vector<1x1x24x128xbf16> to vector<24x128xbf16>
      %c0_58 = arith.constant 0 : index
      %c0_59 = arith.constant 0 : index
      %c1_60 = arith.constant 1 : index
      %c0_61 = arith.constant 0 : index
      %72 = vector.load %arg4[%c0_58, %c0_59, %c1_60, %c0_61] : memref<1x1x42x128xbf16, #tpu.memory_space<vmem>>, vector<1x1x24x128xbf16>
      %73 = vector.shape_cast %72 : vector<1x1x24x128xbf16> to vector<24x128xbf16>
      %c0_62 = arith.constant 0 : index
      %c0_63 = arith.constant 0 : index
      %c2_64 = arith.constant 2 : index
      %c0_65 = arith.constant 0 : index
      %74 = vector.load %arg4[%c0_62, %c0_63, %c2_64, %c0_65] : memref<1x1x42x128xbf16, #tpu.memory_space<vmem>>, vector<1x1x24x128xbf16>
      %75 = vector.shape_cast %74 : vector<1x1x24x128xbf16> to vector<24x128xbf16>
      %c0_66 = arith.constant 0 : index
      %c0_67 = arith.constant 0 : index
      %c6_68 = arith.constant 6 : index
      %c0_69 = arith.constant 0 : index
      %76 = vector.load %arg4[%c0_66, %c0_67, %c6_68, %c0_69] : memref<1x1x42x128xbf16, #tpu.memory_space<vmem>>, vector<1x1x24x128xbf16>
      %77 = vector.shape_cast %76 : vector<1x1x24x128xbf16> to vector<24x128xbf16>
      %c0_70 = arith.constant 0 : index
      %c0_71 = arith.constant 0 : index
      %c7_72 = arith.constant 7 : index
      %c0_73 = arith.constant 0 : index
      %78 = vector.load %arg4[%c0_70, %c0_71, %c7_72, %c0_73] : memref<1x1x42x128xbf16, #tpu.memory_space<vmem>>, vector<1x1x24x128xbf16>
      %79 = vector.shape_cast %78 : vector<1x1x24x128xbf16> to vector<24x128xbf16>
      %c0_74 = arith.constant 0 : index
      %c0_75 = arith.constant 0 : index
      %c8_76 = arith.constant 8 : index
      %c0_77 = arith.constant 0 : index
      %80 = vector.load %arg4[%c0_74, %c0_75, %c8_76, %c0_77] : memref<1x1x42x128xbf16, #tpu.memory_space<vmem>>, vector<1x1x24x128xbf16>
      %81 = vector.shape_cast %80 : vector<1x1x24x128xbf16> to vector<24x128xbf16>
      %c0_78 = arith.constant 0 : index
      %c0_79 = arith.constant 0 : index
      %c12_80 = arith.constant 12 : index
      %c0_81 = arith.constant 0 : index
      %82 = vector.load %arg4[%c0_78, %c0_79, %c12_80, %c0_81] : memref<1x1x42x128xbf16, #tpu.memory_space<vmem>>, vector<1x1x24x128xbf16>
      %83 = vector.shape_cast %82 : vector<1x1x24x128xbf16> to vector<24x128xbf16>
      %c0_82 = arith.constant 0 : index
      %c0_83 = arith.constant 0 : index
      %c13_84 = arith.constant 13 : index
      %c0_85 = arith.constant 0 : index
      %84 = vector.load %arg4[%c0_82, %c0_83, %c13_84, %c0_85] : memref<1x1x42x128xbf16, #tpu.memory_space<vmem>>, vector<1x1x24x128xbf16>
      %85 = vector.shape_cast %84 : vector<1x1x24x128xbf16> to vector<24x128xbf16>
      %c0_86 = arith.constant 0 : index
      %c0_87 = arith.constant 0 : index
      %c14_88 = arith.constant 14 : index
      %c0_89 = arith.constant 0 : index
      %86 = vector.load %arg4[%c0_86, %c0_87, %c14_88, %c0_89] : memref<1x1x42x128xbf16, #tpu.memory_space<vmem>>, vector<1x1x24x128xbf16>
      %87 = vector.shape_cast %86 : vector<1x1x24x128xbf16> to vector<24x128xbf16>
      %88 = tpu.concatenate %71, %73, %75, %77, %79, %81, %83, %85, %87 in 1 : vector<24x128xbf16>, vector<24x128xbf16>, vector<24x128xbf16>, vector<24x128xbf16>, vector<24x128xbf16>, vector<24x128xbf16>, vector<24x128xbf16>, vector<24x128xbf16>, vector<24x128xbf16> -> vector<24x1152xbf16>
      %c2_90 = arith.constant 2 : index
      %c0_91 = arith.constant 0 : index
      %c0_92 = arith.constant 0 : index
      %89 = vector.load %arg5[%c2_90, %c0_91, %c0_92] : memref<3x1152x128xbf16, #tpu.memory_space<vmem>>, vector<1x1152x128xbf16>
      %90 = vector.shape_cast %89 : vector<1x1152x128xbf16> to vector<1152x128xbf16>
      %cst_93 = arith.constant dense<0.000000e+00> : vector<24x128xf32>
      %91 = tpu.matmul %88, %90, %cst_93 {dimension_numbers = #tpu.dot_dimension_numbers<[1], [0], [0], [1], [0, 0, 1, 1], [], []>} : vector<24x1152xbf16>, vector<1152x128xbf16>, vector<24x128xf32> -> vector<24x128xf32>
      %92 = arith.addf %69, %91 : vector<24x128xf32>
      %c0_94 = arith.constant 0 : index
      %c0_95 = arith.constant 0 : index
      %93 = vector.load %arg8[%c0_94, %c0_95] : memref<24x128xf32, #tpu.memory_space<vmem>>, vector<24x128xf32>
      tpu.vector_store %arg8[%c0_94, %c0_95], %92 {strides = array<i32>} : memref<24x128xf32, #tpu.memory_space<vmem>>, vector<24x128xf32>,
    } else {
    }
    %c0_34 = arith.constant 0 : index
    %c0_35 = arith.constant 0 : index
    %29 = vector.load %arg8[%c0_34, %c0_35] : memref<24x128xf32, #tpu.memory_space<vmem>>, vector<24x128xf32>
    %c0_36 = arith.constant 0 : index
    %c0_37 = arith.constant 0 : index
    %30 = vector.load %arg6[%c0_36, %c0_37] : memref<1x128xf32, #tpu.memory_space<vmem>>, vector<1x128xf32>
    %31 = vector.broadcast %30 : vector<1x128xf32> to vector<24x128xf32>
    %32 = arith.addf %29, %31 : vector<24x128xf32>
    %cst_38 = arith.constant 0.000000e+00 : f32
    %33 = vector.broadcast %cst_38 : f32 to vector<24x128xf32>
    %34 = arith.cmpf ogt, %32, %33 : vector<24x128xf32>
    %cst_39 = arith.constant 0.000000e+00 : f32
    %35 = vector.broadcast %cst_39 : f32 to vector<24x128xf32>
    %36 = arith.minimumf %32, %35 : vector<24x128xf32>
    %37 = math.exp %36 : vector<24x128xf32>
    %cst_40 = arith.constant 1.000000e+00 : f32
    %38 = vector.broadcast %cst_40 : f32 to vector<24x128xf32>
    %39 = arith.subf %37, %38 : vector<24x128xf32>
    %40 = arith.select %34, %32, %39 : vector<24x128xi1>, vector<24x128xf32>
    %41 = tpu.iota {dimensions = array<i32: 0>} : vector<24x128xi32>
    %c6_i32 = arith.constant 6 : i32
    %c0_i32_41 = arith.constant 0 : i32
    %42 = arith.cmpi eq, %c6_i32, %c0_i32_41 : i32
    %c1_i32 = arith.constant 1 : i32
    %43 = arith.select %42, %c1_i32, %c6_i32 : i32
    %44 = vector.broadcast %43 : i32 to vector<24x128xi32>
    %45 = arith.remsi %41, %44 : vector<24x128xi32>
    %c0_i32_42 = arith.constant 0 : i32
    %46 = vector.broadcast %c0_i32_42 : i32 to vector<24x128xi32>
    %47 = arith.cmpi ne, %45, %46 : vector<24x128xi32>
    %c0_i32_43 = arith.constant 0 : i32
    %48 = vector.broadcast %c0_i32_43 : i32 to vector<24x128xi32>
    %49 = arith.cmpi slt, %45, %48 : vector<24x128xi32>
    %c0_i32_44 = arith.constant 0 : i32
    %50 = arith.cmpi slt, %43, %c0_i32_44 : i32
    %51 = vector.broadcast %50 : i1 to vector<24x128xi1>
    %52 = vector.broadcast %51 : vector<24x128xi1> to vector<24x128xi1>
    %53 = arith.xori %49, %52 : vector<24x128xi1>
    %54 = arith.andi %53, %47 : vector<24x128xi1>
    %55 = vector.broadcast %43 : i32 to vector<24x128xi32>
    %56 = arith.addi %45, %55 : vector<24x128xi32>
    %57 = arith.select %54, %56, %45 : vector<24x128xi1>, vector<24x128xi32>
    %c4_i32 = arith.constant 4 : i32
    %58 = vector.broadcast %c4_i32 : i32 to vector<24x128xi32>
    %59 = arith.cmpi slt, %57, %58 : vector<24x128xi32>
    %cst_45 = arith.constant 0.000000e+00 : f32
    %60 = vector.broadcast %cst_45 : f32 to vector<24x128xf32>
    %61 = arith.select %59, %40, %60 : vector<24x128xi1>, vector<24x128xf32>
    %62 = arith.truncf %61 : vector<24x128xf32> to vector<24x128xbf16>
    %cst_46 = arith.constant 0.000000e+00 : bf16
    %63 = vector.broadcast %cst_46 : bf16 to vector<7x128xbf16>
    %cst_47 = arith.constant 0.000000e+00 : bf16
    %64 = vector.broadcast %cst_47 : bf16 to vector<11x128xbf16>
    %65 = tpu.concatenate %63, %62, %64 in 0 : vector<7x128xbf16>, vector<24x128xbf16>, vector<11x128xbf16> -> vector<42x128xbf16>
    %c0_48 = arith.constant 0 : index
    %c0_49 = arith.constant 0 : index
    %c0_50 = arith.constant 0 : index
    %c0_51 = arith.constant 0 : index
    %66 = vector.load %arg7[%c0_48, %c0_49, %c0_50, %c0_51] : memref<1x1x42x128xbf16, #tpu.memory_space<vmem>>, vector<1x1x42x128xbf16>
    %67 = vector.shape_cast %66 : vector<1x1x42x128xbf16> to vector<42x128xbf16>
    %68 = vector.shape_cast %65 : vector<42x128xbf16> to vector<1x1x42x128xbf16>
    tpu.vector_store %arg7[%c0_48, %c0_49, %c0_50, %c0_51], %68 {strides = array<i32>} : memref<1x1x42x128xbf16, #tpu.memory_space<vmem>>, vector<1x1x42x128xbf16>,
    return
  }
  func.func @transform_0(%arg0: i32, %arg1: i32) -> (i32, i32, i32, i32) {
    %c1_i32 = arith.constant 1 : i32
    %0 = arith.subi %arg1, %c1_i32 : i32
    %c0_i32 = arith.constant 0 : i32
    %1 = arith.maxsi %0, %c0_i32 : i32
    %c0_i32_0 = arith.constant 0 : i32
    %c0_i32_1 = arith.constant 0 : i32
    %c0_i32_2 = arith.constant 0 : i32
    return %arg0, %1, %c0_i32_0, %c0_i32_1 : i32, i32, i32, i32
  }
  func.func @transform_1(%arg0: i32, %arg1: i32) -> (i32, i32, i32, i32) {
    %c0_i32 = arith.constant 0 : i32
    %c0_i32_0 = arith.constant 0 : i32
    %c0_i32_1 = arith.constant 0 : i32
    return %arg0, %arg1, %c0_i32, %c0_i32_0 : i32, i32, i32, i32
  }
  func.func @transform_2(%arg0: i32, %arg1: i32) -> (i32, i32, i32, i32) {
    %c1_i32 = arith.constant 1 : i32
    %0 = arith.addi %arg1, %c1_i32 : i32
    %c3_i32 = arith.constant 3 : i32
    %1 = arith.minsi %0, %c3_i32 : i32
    %c0_i32 = arith.constant 0 : i32
    %c0_i32_0 = arith.constant 0 : i32
    %c0_i32_1 = arith.constant 0 : i32
    return %arg0, %1, %c0_i32, %c0_i32_0 : i32, i32, i32, i32
  }
  func.func @transform_3(%arg0: i32, %arg1: i32) -> (i32, i32, i32) {
    %c0_i32 = arith.constant 0 : i32
    %c0_i32_0 = arith.constant 0 : i32
    %c0_i32_1 = arith.constant 0 : i32
    %c0_i32_2 = arith.constant 0 : i32
    return %c0_i32, %c0_i32_0, %c0_i32_1 : i32, i32, i32
  }
  func.func @transform_4(%arg0: i32, %arg1: i32) -> (i32, i32) {
    %c0_i32 = arith.constant 0 : i32
    %c0_i32_0 = arith.constant 0 : i32
    %c0_i32_1 = arith.constant 0 : i32
    return %c0_i32, %c0_i32_0 : i32, i32
  }
  func.func @transform_5(%arg0: i32, %arg1: i32) -> (i32, i32, i32, i32) {
    %c0_i32 = arith.constant 0 : i32
    %c0_i32_0 = arith.constant 0 : i32
    %c0_i32_1 = arith.constant 0 : i32
    return %arg0, %arg1, %c0_i32, %c0_i32_0 : i32, i32, i32, i32
  }
}

module attributes {stable_mosaic.version = 11 : i64} {
  func.func @_conv_kernel(%arg0: i32, %arg1: i32, %arg2: memref<1x1x42x128xbf16, #tpu.memory_space<vmem>>, %arg3: memref<1x1x42x128xbf16, #tpu.memory_space<vmem>>, %arg4: memref<1x1x42x128xbf16, #tpu.memory_space<vmem>>, %arg5: memref<3x1152x32xbf16, #tpu.memory_space<vmem>>, %arg6: memref<1x32xf32, #tpu.memory_space<vmem>>, %arg7: memref<1x1x24x32xbf16, #tpu.memory_space<vmem>>, %arg8: memref<24x32xf32, #tpu.memory_space<vmem>>) attributes {dimension_semantics = [#tpu.dimension_semantics<parallel>, #tpu.dimension_semantics<parallel>], iteration_bounds = array<i64: 2, 4>, scalar_prefetch = 0 : i64, scratch_operands = 1 : i64, tpu.core_type = #tpu.core_type<tc>, window_params = [{transform_indices = @transform_0, window_bounds = array<i64: 1, 1, 42, 128>}, {transform_indices = @transform_1, window_bounds = array<i64: 1, 1, 42, 128>}, {transform_indices = @transform_2, window_bounds = array<i64: 1, 1, 42, 128>}, {pipeline_mode = #tpu.pipeline_mode<synchronous>, transform_indices = @transform_3, window_bounds = array<i64: 3, 1152, 32>}, {pipeline_mode = #tpu.pipeline_mode<synchronous>, transform_indices = @transform_4, window_bounds = array<i64: 1, 32>}, {transform_indices = @transform_5, window_bounds = array<i64: 1, 1, 24, 32>}]} {
    %c0 = arith.constant 0 : index
    %c0_0 = arith.constant 0 : index
    %c0_1 = arith.constant 0 : index
    %c0_2 = arith.constant 0 : index
    %0 = vector.load %arg3[%c0, %c0_0, %c0_1, %c0_2] : memref<1x1x42x128xbf16, #tpu.memory_space<vmem>>, vector<1x1x24x128xbf16>
    %1 = vector.shape_cast %0 : vector<1x1x24x128xbf16> to vector<24x128xbf16>
    %c0_3 = arith.constant 0 : index
    %c0_4 = arith.constant 0 : index
    %c1 = arith.constant 1 : index
    %c0_5 = arith.constant 0 : index
    %2 = vector.load %arg3[%c0_3, %c0_4, %c1, %c0_5] : memref<1x1x42x128xbf16, #tpu.memory_space<vmem>>, vector<1x1x24x128xbf16>
    %3 = vector.shape_cast %2 : vector<1x1x24x128xbf16> to vector<24x128xbf16>
    %c0_6 = arith.constant 0 : index
    %c0_7 = arith.constant 0 : index
    %c2 = arith.constant 2 : index
    %c0_8 = arith.constant 0 : index
    %4 = vector.load %arg3[%c0_6, %c0_7, %c2, %c0_8] : memref<1x1x42x128xbf16, #tpu.memory_space<vmem>>, vector<1x1x24x128xbf16>
    %5 = vector.shape_cast %4 : vector<1x1x24x128xbf16> to vector<24x128xbf16>
    %c0_9 = arith.constant 0 : index
    %c0_10 = arith.constant 0 : index
    %c6 = arith.constant 6 : index
    %c0_11 = arith.constant 0 : index
    %6 = vector.load %arg3[%c0_9, %c0_10, %c6, %c0_11] : memref<1x1x42x128xbf16, #tpu.memory_space<vmem>>, vector<1x1x24x128xbf16>
    %7 = vector.shape_cast %6 : vector<1x1x24x128xbf16> to vector<24x128xbf16>
    %c0_12 = arith.constant 0 : index
    %c0_13 = arith.constant 0 : index
    %c7 = arith.constant 7 : index
    %c0_14 = arith.constant 0 : index
    %8 = vector.load %arg3[%c0_12, %c0_13, %c7, %c0_14] : memref<1x1x42x128xbf16, #tpu.memory_space<vmem>>, vector<1x1x24x128xbf16>
    %9 = vector.shape_cast %8 : vector<1x1x24x128xbf16> to vector<24x128xbf16>
    %c0_15 = arith.constant 0 : index
    %c0_16 = arith.constant 0 : index
    %c8 = arith.constant 8 : index
    %c0_17 = arith.constant 0 : index
    %10 = vector.load %arg3[%c0_15, %c0_16, %c8, %c0_17] : memref<1x1x42x128xbf16, #tpu.memory_space<vmem>>, vector<1x1x24x128xbf16>
    %11 = vector.shape_cast %10 : vector<1x1x24x128xbf16> to vector<24x128xbf16>
    %c0_18 = arith.constant 0 : index
    %c0_19 = arith.constant 0 : index
    %c12 = arith.constant 12 : index
    %c0_20 = arith.constant 0 : index
    %12 = vector.load %arg3[%c0_18, %c0_19, %c12, %c0_20] : memref<1x1x42x128xbf16, #tpu.memory_space<vmem>>, vector<1x1x24x128xbf16>
    %13 = vector.shape_cast %12 : vector<1x1x24x128xbf16> to vector<24x128xbf16>
    %c0_21 = arith.constant 0 : index
    %c0_22 = arith.constant 0 : index
    %c13 = arith.constant 13 : index
    %c0_23 = arith.constant 0 : index
    %14 = vector.load %arg3[%c0_21, %c0_22, %c13, %c0_23] : memref<1x1x42x128xbf16, #tpu.memory_space<vmem>>, vector<1x1x24x128xbf16>
    %15 = vector.shape_cast %14 : vector<1x1x24x128xbf16> to vector<24x128xbf16>
    %c0_24 = arith.constant 0 : index
    %c0_25 = arith.constant 0 : index
    %c14 = arith.constant 14 : index
    %c0_26 = arith.constant 0 : index
    %16 = vector.load %arg3[%c0_24, %c0_25, %c14, %c0_26] : memref<1x1x42x128xbf16, #tpu.memory_space<vmem>>, vector<1x1x24x128xbf16>
    %17 = vector.shape_cast %16 : vector<1x1x24x128xbf16> to vector<24x128xbf16>
    %18 = tpu.concatenate %1, %3, %5, %7, %9, %11, %13, %15, %17 in 1 : vector<24x128xbf16>, vector<24x128xbf16>, vector<24x128xbf16>, vector<24x128xbf16>, vector<24x128xbf16>, vector<24x128xbf16>, vector<24x128xbf16>, vector<24x128xbf16>, vector<24x128xbf16> -> vector<24x1152xbf16>
    %c1_27 = arith.constant 1 : index
    %c0_28 = arith.constant 0 : index
    %c0_29 = arith.constant 0 : index
    %19 = vector.load %arg5[%c1_27, %c0_28, %c0_29] : memref<3x1152x32xbf16, #tpu.memory_space<vmem>>, vector<1x1152x32xbf16>
    %20 = vector.shape_cast %19 : vector<1x1152x32xbf16> to vector<1152x32xbf16>
    %cst = arith.constant dense<0.000000e+00> : vector<24x32xf32>
    %21 = tpu.matmul %18, %20, %cst {dimension_numbers = #tpu.dot_dimension_numbers<[1], [0], [0], [1], [0, 0, 1, 1], [], []>} : vector<24x1152xbf16>, vector<1152x32xbf16>, vector<24x32xf32> -> vector<24x32xf32>
    %c0_30 = arith.constant 0 : index
    %c0_31 = arith.constant 0 : index
    %22 = vector.load %arg8[%c0_30, %c0_31] : memref<24x32xf32, #tpu.memory_space<vmem>>, vector<24x32xf32>
    tpu.vector_store %arg8[%c0_30, %c0_31], %21 {strides = array<i32>} : memref<24x32xf32, #tpu.memory_space<vmem>>, vector<24x32xf32>,
    %c0_i32 = arith.constant 0 : i32
    %23 = arith.cmpi sgt, %arg1, %c0_i32 : i32
    %24 = arith.extui %23 : i1 to i32
    %c0_i32_32 = arith.constant 0 : i32
    %25 = arith.cmpi ne, %24, %c0_i32_32 : i32
    scf.if %25 {
      %c0_50 = arith.constant 0 : index
      %c0_51 = arith.constant 0 : index
      %66 = vector.load %arg8[%c0_50, %c0_51] : memref<24x32xf32, #tpu.memory_space<vmem>>, vector<24x32xf32>
      %c0_52 = arith.constant 0 : index
      %c0_53 = arith.constant 0 : index
      %c0_54 = arith.constant 0 : index
      %c0_55 = arith.constant 0 : index
      %67 = vector.load %arg2[%c0_52, %c0_53, %c0_54, %c0_55] : memref<1x1x42x128xbf16, #tpu.memory_space<vmem>>, vector<1x1x24x128xbf16>
      %68 = vector.shape_cast %67 : vector<1x1x24x128xbf16> to vector<24x128xbf16>
      %c0_56 = arith.constant 0 : index
      %c0_57 = arith.constant 0 : index
      %c1_58 = arith.constant 1 : index
      %c0_59 = arith.constant 0 : index
      %69 = vector.load %arg2[%c0_56, %c0_57, %c1_58, %c0_59] : memref<1x1x42x128xbf16, #tpu.memory_space<vmem>>, vector<1x1x24x128xbf16>
      %70 = vector.shape_cast %69 : vector<1x1x24x128xbf16> to vector<24x128xbf16>
      %c0_60 = arith.constant 0 : index
      %c0_61 = arith.constant 0 : index
      %c2_62 = arith.constant 2 : index
      %c0_63 = arith.constant 0 : index
      %71 = vector.load %arg2[%c0_60, %c0_61, %c2_62, %c0_63] : memref<1x1x42x128xbf16, #tpu.memory_space<vmem>>, vector<1x1x24x128xbf16>
      %72 = vector.shape_cast %71 : vector<1x1x24x128xbf16> to vector<24x128xbf16>
      %c0_64 = arith.constant 0 : index
      %c0_65 = arith.constant 0 : index
      %c6_66 = arith.constant 6 : index
      %c0_67 = arith.constant 0 : index
      %73 = vector.load %arg2[%c0_64, %c0_65, %c6_66, %c0_67] : memref<1x1x42x128xbf16, #tpu.memory_space<vmem>>, vector<1x1x24x128xbf16>
      %74 = vector.shape_cast %73 : vector<1x1x24x128xbf16> to vector<24x128xbf16>
      %c0_68 = arith.constant 0 : index
      %c0_69 = arith.constant 0 : index
      %c7_70 = arith.constant 7 : index
      %c0_71 = arith.constant 0 : index
      %75 = vector.load %arg2[%c0_68, %c0_69, %c7_70, %c0_71] : memref<1x1x42x128xbf16, #tpu.memory_space<vmem>>, vector<1x1x24x128xbf16>
      %76 = vector.shape_cast %75 : vector<1x1x24x128xbf16> to vector<24x128xbf16>
      %c0_72 = arith.constant 0 : index
      %c0_73 = arith.constant 0 : index
      %c8_74 = arith.constant 8 : index
      %c0_75 = arith.constant 0 : index
      %77 = vector.load %arg2[%c0_72, %c0_73, %c8_74, %c0_75] : memref<1x1x42x128xbf16, #tpu.memory_space<vmem>>, vector<1x1x24x128xbf16>
      %78 = vector.shape_cast %77 : vector<1x1x24x128xbf16> to vector<24x128xbf16>
      %c0_76 = arith.constant 0 : index
      %c0_77 = arith.constant 0 : index
      %c12_78 = arith.constant 12 : index
      %c0_79 = arith.constant 0 : index
      %79 = vector.load %arg2[%c0_76, %c0_77, %c12_78, %c0_79] : memref<1x1x42x128xbf16, #tpu.memory_space<vmem>>, vector<1x1x24x128xbf16>
      %80 = vector.shape_cast %79 : vector<1x1x24x128xbf16> to vector<24x128xbf16>
      %c0_80 = arith.constant 0 : index
      %c0_81 = arith.constant 0 : index
      %c13_82 = arith.constant 13 : index
      %c0_83 = arith.constant 0 : index
      %81 = vector.load %arg2[%c0_80, %c0_81, %c13_82, %c0_83] : memref<1x1x42x128xbf16, #tpu.memory_space<vmem>>, vector<1x1x24x128xbf16>
      %82 = vector.shape_cast %81 : vector<1x1x24x128xbf16> to vector<24x128xbf16>
      %c0_84 = arith.constant 0 : index
      %c0_85 = arith.constant 0 : index
      %c14_86 = arith.constant 14 : index
      %c0_87 = arith.constant 0 : index
      %83 = vector.load %arg2[%c0_84, %c0_85, %c14_86, %c0_87] : memref<1x1x42x128xbf16, #tpu.memory_space<vmem>>, vector<1x1x24x128xbf16>
      %84 = vector.shape_cast %83 : vector<1x1x24x128xbf16> to vector<24x128xbf16>
      %85 = tpu.concatenate %68, %70, %72, %74, %76, %78, %80, %82, %84 in 1 : vector<24x128xbf16>, vector<24x128xbf16>, vector<24x128xbf16>, vector<24x128xbf16>, vector<24x128xbf16>, vector<24x128xbf16>, vector<24x128xbf16>, vector<24x128xbf16>, vector<24x128xbf16> -> vector<24x1152xbf16>
      %c0_88 = arith.constant 0 : index
      %c0_89 = arith.constant 0 : index
      %c0_90 = arith.constant 0 : index
      %86 = vector.load %arg5[%c0_88, %c0_89, %c0_90] : memref<3x1152x32xbf16, #tpu.memory_space<vmem>>, vector<1x1152x32xbf16>
      %87 = vector.shape_cast %86 : vector<1x1152x32xbf16> to vector<1152x32xbf16>
      %cst_91 = arith.constant dense<0.000000e+00> : vector<24x32xf32>
      %88 = tpu.matmul %85, %87, %cst_91 {dimension_numbers = #tpu.dot_dimension_numbers<[1], [0], [0], [1], [0, 0, 1, 1], [], []>} : vector<24x1152xbf16>, vector<1152x32xbf16>, vector<24x32xf32> -> vector<24x32xf32>
      %89 = arith.addf %66, %88 : vector<24x32xf32>
      %c0_92 = arith.constant 0 : index
      %c0_93 = arith.constant 0 : index
      %90 = vector.load %arg8[%c0_92, %c0_93] : memref<24x32xf32, #tpu.memory_space<vmem>>, vector<24x32xf32>
      tpu.vector_store %arg8[%c0_92, %c0_93], %89 {strides = array<i32>} : memref<24x32xf32, #tpu.memory_space<vmem>>, vector<24x32xf32>,
    } else {
    }
    %c3_i32 = arith.constant 3 : i32
    %26 = arith.cmpi slt, %arg1, %c3_i32 : i32
    %27 = arith.extui %26 : i1 to i32
    %c0_i32_33 = arith.constant 0 : i32
    %28 = arith.cmpi ne, %27, %c0_i32_33 : i32
    scf.if %28 {
      %c0_50 = arith.constant 0 : index
      %c0_51 = arith.constant 0 : index
      %66 = vector.load %arg8[%c0_50, %c0_51] : memref<24x32xf32, #tpu.memory_space<vmem>>, vector<24x32xf32>
      %c0_52 = arith.constant 0 : index
      %c0_53 = arith.constant 0 : index
      %c0_54 = arith.constant 0 : index
      %c0_55 = arith.constant 0 : index
      %67 = vector.load %arg4[%c0_52, %c0_53, %c0_54, %c0_55] : memref<1x1x42x128xbf16, #tpu.memory_space<vmem>>, vector<1x1x24x128xbf16>
      %68 = vector.shape_cast %67 : vector<1x1x24x128xbf16> to vector<24x128xbf16>
      %c0_56 = arith.constant 0 : index
      %c0_57 = arith.constant 0 : index
      %c1_58 = arith.constant 1 : index
      %c0_59 = arith.constant 0 : index
      %69 = vector.load %arg4[%c0_56, %c0_57, %c1_58, %c0_59] : memref<1x1x42x128xbf16, #tpu.memory_space<vmem>>, vector<1x1x24x128xbf16>
      %70 = vector.shape_cast %69 : vector<1x1x24x128xbf16> to vector<24x128xbf16>
      %c0_60 = arith.constant 0 : index
      %c0_61 = arith.constant 0 : index
      %c2_62 = arith.constant 2 : index
      %c0_63 = arith.constant 0 : index
      %71 = vector.load %arg4[%c0_60, %c0_61, %c2_62, %c0_63] : memref<1x1x42x128xbf16, #tpu.memory_space<vmem>>, vector<1x1x24x128xbf16>
      %72 = vector.shape_cast %71 : vector<1x1x24x128xbf16> to vector<24x128xbf16>
      %c0_64 = arith.constant 0 : index
      %c0_65 = arith.constant 0 : index
      %c6_66 = arith.constant 6 : index
      %c0_67 = arith.constant 0 : index
      %73 = vector.load %arg4[%c0_64, %c0_65, %c6_66, %c0_67] : memref<1x1x42x128xbf16, #tpu.memory_space<vmem>>, vector<1x1x24x128xbf16>
      %74 = vector.shape_cast %73 : vector<1x1x24x128xbf16> to vector<24x128xbf16>
      %c0_68 = arith.constant 0 : index
      %c0_69 = arith.constant 0 : index
      %c7_70 = arith.constant 7 : index
      %c0_71 = arith.constant 0 : index
      %75 = vector.load %arg4[%c0_68, %c0_69, %c7_70, %c0_71] : memref<1x1x42x128xbf16, #tpu.memory_space<vmem>>, vector<1x1x24x128xbf16>
      %76 = vector.shape_cast %75 : vector<1x1x24x128xbf16> to vector<24x128xbf16>
      %c0_72 = arith.constant 0 : index
      %c0_73 = arith.constant 0 : index
      %c8_74 = arith.constant 8 : index
      %c0_75 = arith.constant 0 : index
      %77 = vector.load %arg4[%c0_72, %c0_73, %c8_74, %c0_75] : memref<1x1x42x128xbf16, #tpu.memory_space<vmem>>, vector<1x1x24x128xbf16>
      %78 = vector.shape_cast %77 : vector<1x1x24x128xbf16> to vector<24x128xbf16>
      %c0_76 = arith.constant 0 : index
      %c0_77 = arith.constant 0 : index
      %c12_78 = arith.constant 12 : index
      %c0_79 = arith.constant 0 : index
      %79 = vector.load %arg4[%c0_76, %c0_77, %c12_78, %c0_79] : memref<1x1x42x128xbf16, #tpu.memory_space<vmem>>, vector<1x1x24x128xbf16>
      %80 = vector.shape_cast %79 : vector<1x1x24x128xbf16> to vector<24x128xbf16>
      %c0_80 = arith.constant 0 : index
      %c0_81 = arith.constant 0 : index
      %c13_82 = arith.constant 13 : index
      %c0_83 = arith.constant 0 : index
      %81 = vector.load %arg4[%c0_80, %c0_81, %c13_82, %c0_83] : memref<1x1x42x128xbf16, #tpu.memory_space<vmem>>, vector<1x1x24x128xbf16>
      %82 = vector.shape_cast %81 : vector<1x1x24x128xbf16> to vector<24x128xbf16>
      %c0_84 = arith.constant 0 : index
      %c0_85 = arith.constant 0 : index
      %c14_86 = arith.constant 14 : index
      %c0_87 = arith.constant 0 : index
      %83 = vector.load %arg4[%c0_84, %c0_85, %c14_86, %c0_87] : memref<1x1x42x128xbf16, #tpu.memory_space<vmem>>, vector<1x1x24x128xbf16>
      %84 = vector.shape_cast %83 : vector<1x1x24x128xbf16> to vector<24x128xbf16>
      %85 = tpu.concatenate %68, %70, %72, %74, %76, %78, %80, %82, %84 in 1 : vector<24x128xbf16>, vector<24x128xbf16>, vector<24x128xbf16>, vector<24x128xbf16>, vector<24x128xbf16>, vector<24x128xbf16>, vector<24x128xbf16>, vector<24x128xbf16>, vector<24x128xbf16> -> vector<24x1152xbf16>
      %c2_88 = arith.constant 2 : index
      %c0_89 = arith.constant 0 : index
      %c0_90 = arith.constant 0 : index
      %86 = vector.load %arg5[%c2_88, %c0_89, %c0_90] : memref<3x1152x32xbf16, #tpu.memory_space<vmem>>, vector<1x1152x32xbf16>
      %87 = vector.shape_cast %86 : vector<1x1152x32xbf16> to vector<1152x32xbf16>
      %cst_91 = arith.constant dense<0.000000e+00> : vector<24x32xf32>
      %88 = tpu.matmul %85, %87, %cst_91 {dimension_numbers = #tpu.dot_dimension_numbers<[1], [0], [0], [1], [0, 0, 1, 1], [], []>} : vector<24x1152xbf16>, vector<1152x32xbf16>, vector<24x32xf32> -> vector<24x32xf32>
      %89 = arith.addf %66, %88 : vector<24x32xf32>
      %c0_92 = arith.constant 0 : index
      %c0_93 = arith.constant 0 : index
      %90 = vector.load %arg8[%c0_92, %c0_93] : memref<24x32xf32, #tpu.memory_space<vmem>>, vector<24x32xf32>
      tpu.vector_store %arg8[%c0_92, %c0_93], %89 {strides = array<i32>} : memref<24x32xf32, #tpu.memory_space<vmem>>, vector<24x32xf32>,
    } else {
    }
    %c0_34 = arith.constant 0 : index
    %c0_35 = arith.constant 0 : index
    %29 = vector.load %arg8[%c0_34, %c0_35] : memref<24x32xf32, #tpu.memory_space<vmem>>, vector<24x32xf32>
    %c0_36 = arith.constant 0 : index
    %c0_37 = arith.constant 0 : index
    %30 = vector.load %arg6[%c0_36, %c0_37] : memref<1x32xf32, #tpu.memory_space<vmem>>, vector<1x32xf32>
    %31 = vector.broadcast %30 : vector<1x32xf32> to vector<24x32xf32>
    %32 = arith.addf %29, %31 : vector<24x32xf32>
    %cst_38 = arith.constant 0.000000e+00 : f32
    %33 = vector.broadcast %cst_38 : f32 to vector<24x32xf32>
    %34 = arith.cmpf ogt, %32, %33 : vector<24x32xf32>
    %cst_39 = arith.constant 0.000000e+00 : f32
    %35 = vector.broadcast %cst_39 : f32 to vector<24x32xf32>
    %36 = arith.minimumf %32, %35 : vector<24x32xf32>
    %37 = math.exp %36 : vector<24x32xf32>
    %cst_40 = arith.constant 1.000000e+00 : f32
    %38 = vector.broadcast %cst_40 : f32 to vector<24x32xf32>
    %39 = arith.subf %37, %38 : vector<24x32xf32>
    %40 = arith.select %34, %32, %39 : vector<24x32xi1>, vector<24x32xf32>
    %41 = tpu.iota {dimensions = array<i32: 0>} : vector<24x32xi32>
    %c6_i32 = arith.constant 6 : i32
    %c0_i32_41 = arith.constant 0 : i32
    %42 = arith.cmpi eq, %c6_i32, %c0_i32_41 : i32
    %c1_i32 = arith.constant 1 : i32
    %43 = arith.select %42, %c1_i32, %c6_i32 : i32
    %44 = vector.broadcast %43 : i32 to vector<24x32xi32>
    %45 = arith.remsi %41, %44 : vector<24x32xi32>
    %c0_i32_42 = arith.constant 0 : i32
    %46 = vector.broadcast %c0_i32_42 : i32 to vector<24x32xi32>
    %47 = arith.cmpi ne, %45, %46 : vector<24x32xi32>
    %c0_i32_43 = arith.constant 0 : i32
    %48 = vector.broadcast %c0_i32_43 : i32 to vector<24x32xi32>
    %49 = arith.cmpi slt, %45, %48 : vector<24x32xi32>
    %c0_i32_44 = arith.constant 0 : i32
    %50 = arith.cmpi slt, %43, %c0_i32_44 : i32
    %51 = vector.broadcast %50 : i1 to vector<24x32xi1>
    %52 = vector.broadcast %51 : vector<24x32xi1> to vector<24x32xi1>
    %53 = arith.xori %49, %52 : vector<24x32xi1>
    %54 = arith.andi %53, %47 : vector<24x32xi1>
    %55 = vector.broadcast %43 : i32 to vector<24x32xi32>
    %56 = arith.addi %45, %55 : vector<24x32xi32>
    %57 = arith.select %54, %56, %45 : vector<24x32xi1>, vector<24x32xi32>
    %c4_i32 = arith.constant 4 : i32
    %58 = vector.broadcast %c4_i32 : i32 to vector<24x32xi32>
    %59 = arith.cmpi slt, %57, %58 : vector<24x32xi32>
    %cst_45 = arith.constant 0.000000e+00 : f32
    %60 = vector.broadcast %cst_45 : f32 to vector<24x32xf32>
    %61 = arith.select %59, %40, %60 : vector<24x32xi1>, vector<24x32xf32>
    %62 = arith.truncf %61 : vector<24x32xf32> to vector<24x32xbf16>
    %c0_46 = arith.constant 0 : index
    %c0_47 = arith.constant 0 : index
    %c0_48 = arith.constant 0 : index
    %c0_49 = arith.constant 0 : index
    %63 = vector.load %arg7[%c0_46, %c0_47, %c0_48, %c0_49] : memref<1x1x24x32xbf16, #tpu.memory_space<vmem>>, vector<1x1x24x32xbf16>
    %64 = vector.shape_cast %63 : vector<1x1x24x32xbf16> to vector<24x32xbf16>
    %65 = vector.shape_cast %62 : vector<24x32xbf16> to vector<1x1x24x32xbf16>
    tpu.vector_store %arg7[%c0_46, %c0_47, %c0_48, %c0_49], %65 {strides = array<i32>} : memref<1x1x24x32xbf16, #tpu.memory_space<vmem>>, vector<1x1x24x32xbf16>,
    return
  }
  func.func @transform_0(%arg0: i32, %arg1: i32) -> (i32, i32, i32, i32) {
    %c1_i32 = arith.constant 1 : i32
    %0 = arith.subi %arg1, %c1_i32 : i32
    %c0_i32 = arith.constant 0 : i32
    %1 = arith.maxsi %0, %c0_i32 : i32
    %c0_i32_0 = arith.constant 0 : i32
    %c0_i32_1 = arith.constant 0 : i32
    %c0_i32_2 = arith.constant 0 : i32
    return %arg0, %1, %c0_i32_0, %c0_i32_1 : i32, i32, i32, i32
  }
  func.func @transform_1(%arg0: i32, %arg1: i32) -> (i32, i32, i32, i32) {
    %c0_i32 = arith.constant 0 : i32
    %c0_i32_0 = arith.constant 0 : i32
    %c0_i32_1 = arith.constant 0 : i32
    return %arg0, %arg1, %c0_i32, %c0_i32_0 : i32, i32, i32, i32
  }
  func.func @transform_2(%arg0: i32, %arg1: i32) -> (i32, i32, i32, i32) {
    %c1_i32 = arith.constant 1 : i32
    %0 = arith.addi %arg1, %c1_i32 : i32
    %c3_i32 = arith.constant 3 : i32
    %1 = arith.minsi %0, %c3_i32 : i32
    %c0_i32 = arith.constant 0 : i32
    %c0_i32_0 = arith.constant 0 : i32
    %c0_i32_1 = arith.constant 0 : i32
    return %arg0, %1, %c0_i32, %c0_i32_0 : i32, i32, i32, i32
  }
  func.func @transform_3(%arg0: i32, %arg1: i32) -> (i32, i32, i32) {
    %c0_i32 = arith.constant 0 : i32
    %c0_i32_0 = arith.constant 0 : i32
    %c0_i32_1 = arith.constant 0 : i32
    %c0_i32_2 = arith.constant 0 : i32
    return %c0_i32, %c0_i32_0, %c0_i32_1 : i32, i32, i32
  }
  func.func @transform_4(%arg0: i32, %arg1: i32) -> (i32, i32) {
    %c0_i32 = arith.constant 0 : i32
    %c0_i32_0 = arith.constant 0 : i32
    %c0_i32_1 = arith.constant 0 : i32
    return %c0_i32, %c0_i32_0 : i32, i32
  }
  func.func @transform_5(%arg0: i32, %arg1: i32) -> (i32, i32, i32, i32) {
    %c0_i32 = arith.constant 0 : i32
    %c0_i32_0 = arith.constant 0 : i32
    %c0_i32_1 = arith.constant 0 : i32
    return %arg0, %arg1, %c0_i32, %c0_i32_0 : i32, i32, i32, i32
  }
}

module attributes {stable_mosaic.version = 11 : i64} {
  func.func @_classifier_kernel(%arg0: i32, %arg1: memref<2x256xbf16, #tpu.memory_space<vmem>>, %arg2: memref<256x32xbf16, #tpu.memory_space<vmem>>, %arg3: memref<1x32xf32, #tpu.memory_space<vmem>>, %arg4: memref<32x2xf32, #tpu.memory_space<vmem>>, %arg5: memref<1x2xf32, #tpu.memory_space<vmem>>, %arg6: memref<2x2xf32, #tpu.memory_space<vmem>>, %arg7: memref<2x32xf32, #tpu.memory_space<vmem>>) attributes {dimension_semantics = [#tpu.dimension_semantics<arbitrary>], iteration_bounds = array<i64: 1>, scalar_prefetch = 0 : i64, scratch_operands = 1 : i64, tpu.core_type = #tpu.core_type<tc>, window_params = [{transform_indices = @transform_0, window_bounds = array<i64: 2, 256>}, {transform_indices = @transform_1, window_bounds = array<i64: 256, 32>}, {pipeline_mode = #tpu.pipeline_mode<synchronous>, transform_indices = @transform_2, window_bounds = array<i64: 1, 32>}, {pipeline_mode = #tpu.pipeline_mode<synchronous>, transform_indices = @transform_3, window_bounds = array<i64: 32, 2>}, {pipeline_mode = #tpu.pipeline_mode<synchronous>, transform_indices = @transform_4, window_bounds = array<i64: 1, 2>}, {pipeline_mode = #tpu.pipeline_mode<synchronous>, transform_indices = @transform_5, window_bounds = array<i64: 2, 2>}]} {
    %c0_i32 = arith.constant 0 : i32
    %0 = arith.cmpi eq, %arg0, %c0_i32 : i32
    %1 = arith.extui %0 : i1 to i32
    %c0_i32_0 = arith.constant 0 : i32
    %2 = arith.cmpi ne, %1, %c0_i32_0 : i32
    scf.if %2 {
      %cst_10 = arith.constant 0.000000e+00 : f32
      %12 = vector.broadcast %cst_10 : f32 to vector<2x32xf32>
      %c0_11 = arith.constant 0 : index
      %c0_12 = arith.constant 0 : index
      %13 = vector.load %arg7[%c0_11, %c0_12] : memref<2x32xf32, #tpu.memory_space<vmem>>, vector<2x32xf32>
      tpu.vector_store %arg7[%c0_11, %c0_12], %12 {strides = array<i32>} : memref<2x32xf32, #tpu.memory_space<vmem>>, vector<2x32xf32>,
    } else {
    }
    %c0 = arith.constant 0 : index
    %c0_1 = arith.constant 0 : index
    %3 = vector.load %arg7[%c0, %c0_1] : memref<2x32xf32, #tpu.memory_space<vmem>>, vector<2x32xf32>
    %c0_2 = arith.constant 0 : index
    %c0_3 = arith.constant 0 : index
    %4 = vector.load %arg1[%c0_2, %c0_3] : memref<2x256xbf16, #tpu.memory_space<vmem>>, vector<2x256xbf16>
    %c0_4 = arith.constant 0 : index
    %c0_5 = arith.constant 0 : index
    %5 = vector.load %arg2[%c0_4, %c0_5] : memref<256x32xbf16, #tpu.memory_space<vmem>>, vector<256x32xbf16>
    %cst = arith.constant dense<0.000000e+00> : vector<2x32xf32>
    %6 = tpu.matmul %4, %5, %cst {dimension_numbers = #tpu.dot_dimension_numbers<[1], [0], [0], [1], [0, 0, 1, 1], [], []>} : vector<2x256xbf16>, vector<256x32xbf16>, vector<2x32xf32> -> vector<2x32xf32>
    %7 = arith.addf %3, %6 : vector<2x32xf32>
    %c0_6 = arith.constant 0 : index
    %c0_7 = arith.constant 0 : index
    %8 = vector.load %arg7[%c0_6, %c0_7] : memref<2x32xf32, #tpu.memory_space<vmem>>, vector<2x32xf32>
    tpu.vector_store %arg7[%c0_6, %c0_7], %7 {strides = array<i32>} : memref<2x32xf32, #tpu.memory_space<vmem>>, vector<2x32xf32>,
    %c0_i32_8 = arith.constant 0 : i32
    %9 = arith.cmpi eq, %arg0, %c0_i32_8 : i32
    %10 = arith.extui %9 : i1 to i32
    %c0_i32_9 = arith.constant 0 : i32
    %11 = arith.cmpi ne, %10, %c0_i32_9 : i32
    scf.if %11 {
      %c0_10 = arith.constant 0 : index
      %c0_11 = arith.constant 0 : index
      %12 = vector.load %arg7[%c0_10, %c0_11] : memref<2x32xf32, #tpu.memory_space<vmem>>, vector<2x32xf32>
      %c0_12 = arith.constant 0 : index
      %c0_13 = arith.constant 0 : index
      %13 = vector.load %arg3[%c0_12, %c0_13] : memref<1x32xf32, #tpu.memory_space<vmem>>, vector<1x32xf32>
      %14 = vector.broadcast %13 : vector<1x32xf32> to vector<2x32xf32>
      %15 = arith.addf %12, %14 : vector<2x32xf32>
      %cst_14 = arith.constant 0.000000e+00 : f32
      %16 = vector.broadcast %cst_14 : f32 to vector<2x32xf32>
      %17 = arith.cmpf ogt, %15, %16 : vector<2x32xf32>
      %cst_15 = arith.constant 0.000000e+00 : f32
      %18 = vector.broadcast %cst_15 : f32 to vector<2x32xf32>
      %19 = arith.minimumf %15, %18 : vector<2x32xf32>
      %20 = math.exp %19 : vector<2x32xf32>
      %cst_16 = arith.constant 1.000000e+00 : f32
      %21 = vector.broadcast %cst_16 : f32 to vector<2x32xf32>
      %22 = arith.subf %20, %21 : vector<2x32xf32>
      %23 = arith.select %17, %15, %22 : vector<2x32xi1>, vector<2x32xf32>
      %c0_17 = arith.constant 0 : index
      %c0_18 = arith.constant 0 : index
      %24 = vector.load %arg4[%c0_17, %c0_18] : memref<32x2xf32, #tpu.memory_space<vmem>>, vector<32x2xf32>
      %cst_19 = arith.constant dense<0.000000e+00> : vector<2x2xf32>
      %25 = tpu.matmul %23, %24, %cst_19 {dimension_numbers = #tpu.dot_dimension_numbers<[1], [0], [0], [1], [0, 0, 1, 1], [], []>} : vector<2x32xf32>, vector<32x2xf32>, vector<2x2xf32> -> vector<2x2xf32>
      %c0_20 = arith.constant 0 : index
      %c0_21 = arith.constant 0 : index
      %26 = vector.load %arg5[%c0_20, %c0_21] : memref<1x2xf32, #tpu.memory_space<vmem>>, vector<1x2xf32>
      %27 = vector.broadcast %26 : vector<1x2xf32> to vector<2x2xf32>
      %28 = arith.addf %25, %27 : vector<2x2xf32>
      %cst_22 = arith.constant 0.000000e+00 : f32
      %29 = vector.broadcast %cst_22 : f32 to vector<2x2xf32>
      %30 = arith.subf %29, %28 : vector<2x2xf32>
      %31 = math.exp %30 : vector<2x2xf32>
      %cst_23 = arith.constant 1.000000e+00 : f32
      %32 = vector.broadcast %cst_23 : f32 to vector<2x2xf32>
      %33 = arith.addf %32, %31 : vector<2x2xf32>
      %cst_24 = arith.constant 1.000000e+00 : f32
      %34 = vector.broadcast %cst_24 : f32 to vector<2x2xf32>
      %35 = arith.divf %34, %33 : vector<2x2xf32>
      %c0_25 = arith.constant 0 : index
      %c0_26 = arith.constant 0 : index
      %36 = vector.load %arg6[%c0_25, %c0_26] : memref<2x2xf32, #tpu.memory_space<vmem>>, vector<2x2xf32>
      tpu.vector_store %arg6[%c0_25, %c0_26], %35 {strides = array<i32>} : memref<2x2xf32, #tpu.memory_space<vmem>>, vector<2x2xf32>,
    } else {
    }
    return
  }
  func.func @transform_0(%arg0: i32) -> (i32, i32) {
    %c0_i32 = arith.constant 0 : i32
    %c0_i32_0 = arith.constant 0 : i32
    return %c0_i32, %arg0 : i32, i32
  }
  func.func @transform_1(%arg0: i32) -> (i32, i32) {
    %c0_i32 = arith.constant 0 : i32
    %c0_i32_0 = arith.constant 0 : i32
    return %arg0, %c0_i32 : i32, i32
  }
  func.func @transform_2(%arg0: i32) -> (i32, i32) {
    %c0_i32 = arith.constant 0 : i32
    %c0_i32_0 = arith.constant 0 : i32
    %c0_i32_1 = arith.constant 0 : i32
    return %c0_i32, %c0_i32_0 : i32, i32
  }
  func.func @transform_3(%arg0: i32) -> (i32, i32) {
    %c0_i32 = arith.constant 0 : i32
    %c0_i32_0 = arith.constant 0 : i32
    %c0_i32_1 = arith.constant 0 : i32
    return %c0_i32, %c0_i32_0 : i32, i32
  }
  func.func @transform_4(%arg0: i32) -> (i32, i32) {
    %c0_i32 = arith.constant 0 : i32
    %c0_i32_0 = arith.constant 0 : i32
    %c0_i32_1 = arith.constant 0 : i32
    return %c0_i32, %c0_i32_0 : i32, i32
  }
  func.func @transform_5(%arg0: i32) -> (i32, i32) {
    %c0_i32 = arith.constant 0 : i32
    %c0_i32_0 = arith.constant 0 : i32
    %c0_i32_1 = arith.constant 0 : i32
    return %c0_i32, %c0_i32_0 : i32, i32
  }
}

</mosaic_0001>

<llo_original>
// kernel: forward.4
$region0: #{forward.4}
  #allocation0 [shape = 'u32[]', space=smem, size = 0x4, offset = 0x4, fixed_abs, tag = 'smem constant byte address 0x4 - core index']
  #allocation1 [shape = 'u32[144,128]{1,0:T(1,128)}', space=vmem, size = 0x12000, scoped, tag = 'internal scratch']
  %s0 = inlined_call_operand.vmem [shape: f32[232,4,8,16], index: 0, kind: input, shape index: {}]
  %s1 = inlined_call_operand.vmem [shape: f32[16,4], index: 1, kind: input, shape index: {}]
  %s2 = inlined_call_operand.vmem [shape: bf16[8,116,4,4], index: 2, kind: output, shape index: {}]
  %s3 = sld [smem:[#allocation0]]
  $region79: #{forward.4} parent=0
    _
  %s5 = ssub.s32 1, %s3
  %s6 = scalar_select 0, %s5, %s3
  $region1: #{forward.4} parent=0
    #allocation2 [shape = 'u8[950272]{0}', space=vmem, size = 0xe8000, scoped, tag = 'input window, operand 0']
    loop: start=0, step=1, limit=10
    $region2: #{forward.4} parent=1 // loop_pre_header
      _
    $region3: #{forward.4} parent=1 // loop_header
      %s8 = sphi 0, %s12
      %p9 = scmp.ge.s32.totalorder %s8, 10
      %s15 = sphi 0, %s27
      %s16 = sphi 0, %s23
      %s17 = sphi 0, %s15
      %s18 = sphi 0, %s16
      %s19 = sphi 0, %s17
      %s20 = sphi 0, %s18
      %s32 = sphi 0, %s34
      %s35 = sphi 0, %s32
      %s36 = sphi 0, %s35
      %s52 = sphi 0, %s36
      %s56 = sphi 0, %s56
      %s58 = sphi 0, %s56
      %s59 = sphi 0, %s58
      %s73 = sphi 0, %s59
      %s83 = sphi 0, %s85
      %s86 = sphi 0, %s83
      %s87 = sphi 0, %s86
      %s103 = sphi 0, %s87
    $region4: #{forward.4} parent=1 // loop_header_branch
      %11 = sbr.rel (%p9) target = $region8
    $region5: #{forward.4} parent=1 // loop_body
      %s13 = ssub.s32 %s8, 1
      %s14 = ssub.s32 %s8, 2
      %s21 = sadd.s32 1, %s16
      %p22 = scmp.ge.s32.totalorder %s21, 4
      %s23 = scalar_select %p22, 0, %s21
      %s24 = sadd.s32 1, %s15
      %s25 = scalar_select %p22, %s24, %s15
      %p26 = scmp.ge.s32.totalorder %s25, 2
      %s27 = scalar_select %p26, 0, %s25
      %s28 = ssub.s32 %s15, %s27
      %s29 = ssub.s32 %s16, %s23
      %s30 = sor.u32 %s28, %s29
      %p31 = scmp.eq.s32.totalorder %s30, 0
      %s33 = sadd.s32 %s32, 1
      %s34 = scalar_select %p31, %s32, %s33
      %p37 = pneg %p31
      %p38 = scmp.eq.s32.totalorder %s8, 7
      %p39 = por %p37, %p38
      %p40 = scmp.ne.s32.totalorder %s32, %s35
      %p41 = scmp.eq.s32.totalorder %s8, 0
      %p42 = por %p40, %p41
      %p43 = scmp.ne.s32.totalorder %s32, %s35
      %p44 = scmp.eq.s32.totalorder %s13, 7
      %p45 = por %p43, %p44
      %p46 = scmp.ne.s32.totalorder %s35, %s36
      %p47 = scmp.eq.s32.totalorder %s13, 0
      %p48 = por %p46, %p47
      %p49 = scmp.ne.s32.totalorder %s35, %s36
      %p50 = scmp.eq.s32.totalorder %s14, 7
      %p51 = por %p49, %p50
      %p53 = scmp.ne.s32.totalorder %s36, %s52
      %p54 = scmp.eq.s32.totalorder %s14, 0
      %p55 = por %p53, %p54
      %s57 = sadd.s32 %s56, 1
      %p60 = scmp.eq.s32.totalorder %s8, 7
      %p61 = scmp.ne.s32.totalorder %s56, %s58
      %p62 = scmp.eq.s32.totalorder %s8, 0
      %p63 = por %p61, %p62
      %p64 = scmp.ne.s32.totalorder %s56, %s58
      %p65 = scmp.eq.s32.totalorder %s13, 7
      %p66 = por %p64, %p65
      %p67 = scmp.ne.s32.totalorder %s58, %s59
      %p68 = scmp.eq.s32.totalorder %s13, 0
      %p69 = por %p67, %p68
      %p70 = scmp.ne.s32.totalorder %s58, %s59
      %p71 = scmp.eq.s32.totalorder %s14, 7
      %p72 = por %p70, %p71
      %p74 = scmp.ne.s32.totalorder %s59, %s73
      %p75 = scmp.eq.s32.totalorder %s14, 0
      %p76 = por %p74, %p75
      %s77 = smul.u32 %s15, 4
      %s78 = sadd.s32 %s77, %s16
      %s79 = smul.u32 %s27, 4
      %s80 = sadd.s32 %s79, %s23
      %s81 = ssub.s32 %s78, %s80
      %p82 = scmp.eq.s32.totalorder %s81, 0
      %s84 = sadd.s32 %s83, 1
      %s85 = scalar_select %p82, %s83, %s84
      %p88 = pneg %p82
      %p89 = scmp.eq.s32.totalorder %s8, 7
      %p90 = por %p88, %p89
      %p91 = scmp.ne.s32.totalorder %s83, %s86
      %p92 = scmp.eq.s32.totalorder %s8, 0
      %p93 = por %p91, %p92
      %p94 = scmp.ne.s32.totalorder %s83, %s86
      %p95 = scmp.eq.s32.totalorder %s13, 7
      %p96 = por %p94, %p95
      %p97 = scmp.ne.s32.totalorder %s86, %s87
      %p98 = scmp.eq.s32.totalorder %s13, 0
      %p99 = por %p97, %p98
      %p100 = scmp.ne.s32.totalorder %s86, %s87
      %p101 = scmp.eq.s32.totalorder %s14, 7
      %p102 = por %p100, %p101
      %p104 = scmp.ne.s32.totalorder %s87, %s103
      %p105 = scmp.eq.s32.totalorder %s14, 0
      %p106 = por %p104, %p105
      %p107 = scmp.le.s32.totalorder 1, %s8
      %p108 = scmp.lt.s32.totalorder %s8, 9
      %p109 = pnand %p107, %p108
      %p110 = pneg %p109
      // Predicated region
      $region9: #{forward.4} parent=5 // pred_check
        _
      $region10: #{forward.4} parent=5 // pred_check_branch
        %112 = sbr.rel (%p109) target = $region12
      $region11: #{forward.4} parent=5 // pred_region
        %s113 = ssub.s32 %s8, 1
        // Predicated region
        $region13: #{forward.4} parent=11 // pred_check
          %p114 = pneg %p69
        $region14: #{forward.4} parent=11 // pred_check_branch
          %116 = sbr.rel (%p114) target = $region16
        $region15: #{forward.4} parent=11 // pred_region
          _
        $region16: #{forward.4} parent=11 // pred_fallthru
          _
      $region12: #{forward.4} parent=5 // pred_fallthru
        _
      %p117 = scmp.lt.s32.totalorder %s8, 8
      // Predicated region
      $region17: #{forward.4} parent=5 // pred_check
        %p118 = pneg %p117
      $region18: #{forward.4} parent=5 // pred_check_branch
        %120 = sbr.rel (%p118) target = $region20
      $region19: #{forward.4} parent=5 // pred_region
        // Predicated region
        $region21: #{forward.4} parent=19 // pred_check
          %p121 = pneg %p42
        $region22: #{forward.4} parent=19 // pred_check_branch
          %123 = sbr.rel (%p121) target = $region24
        $region23: #{forward.4} parent=19 // pred_region
          %s124 = sand.u32 %s32, 1
          %s125 = sand.u32 %s32, 1
          %s126 = smul.addr %s125, 928
          %s127 = scalar_lea.vmem [#allocation2], %s126
          %s128 = smul.u32 116, %s15
          %s129 = smul.addr %s128, 4
          %s130 = sadd.s32 %s16, %s129
          %s131 = smul.addr %s130, 8
          %s132 = scalar_lea.vmem %s0, %s131
          // Predicated region
          $region25: #{forward.4} parent=23 // pred_check
            _
          $region26: #{forward.4} parent=23 // pred_check_branch
            %134 = sbr.rel (0) target = $region28
          $region27: #{forward.4} parent=23 // pred_region
            // Predicated region
            $region29: #{forward.4} parent=27 // pred_check
              _
            $region30: #{forward.4} parent=27 // pred_check_branch
              %136 = sbr.rel (0) target = $region32
            $region31: #{forward.4} parent=27 // pred_region
              // Predicated region
              $region44: #{forward.4} parent=31 // pred_check
                _
              $region45: #{forward.4} parent=31 // pred_check_branch
                %382 = sbr.rel (0) target = $region47
              $region46: #{forward.4} parent=31 // pred_region
                loop: start=0, step=1, limit=1
                $region48: #{forward.4} parent=46 // loop_pre_header
                  _
                $region49: #{forward.4} parent=46 // loop_header
                  %s384 = sphi 0, %s388
                  %p385 = scmp.ge.s32.totalorder %s384, 1
                  %s389 = sphi %s132, %s132
                  %s390 = sphi %s127, %s127
                $region50: #{forward.4} parent=46 // loop_header_branch
                  %387 = sbr.rel (%p385) target = $region54
                $region51: #{forward.4} parent=46 // loop_body
                  %v391 = vld [vmem:[%s389] sm:$0xff]
                  %392 = vst [vmem:[%s390] sm:$0xff] %v391
                  %v393 = vld [vmem:[%s389 + $0x20] sm:$0xff]
                  %394 = vst [vmem:[%s390 + $0x8] sm:$0xff] %v393
                  %v395 = vld [vmem:[%s389 + $0x40] sm:$0xff]
                  %396 = vst [vmem:[%s390 + $0x10] sm:$0xff] %v395
                  %v397 = vld [vmem:[%s389 + $0x60] sm:$0xff]
                  %398 = vst [vmem:[%s390 + $0x18] sm:$0xff] %v397
                  %v399 = vld [vmem:[%s389 + $0x80] sm:$0xff]
                  %400 = vst [vmem:[%s390 + $0x20] sm:$0xff] %v399
                  %v401 = vld [vmem:[%s389 + $0xa0] sm:$0xff]
                  %402 = vst [vmem:[%s390 + $0x28] sm:$0xff] %v401
                  %v403 = vld [vmem:[%s389 + $0xc0] sm:$0xff]
                  %404 = vst [vmem:[%s390 + $0x30] sm:$0xff] %v403
                  %v405 = vld [vmem:[%s389 + $0xe0] sm:$0xff]
                  %406 = vst [vmem:[%s390 + $0x38] sm:$0xff] %v405
                  %v407 = vld [vmem:[%s389 + $0x100] sm:$0xff]
                  %408 = vst [vmem:[%s390 + $0x40] sm:$0xff] %v407
                  %v409 = vld [vmem:[%s389 + $0x120] sm:$0xff]
                  %410 = vst [vmem:[%s390 + $0x48] sm:$0xff] %v409
                  %v411 = vld [vmem:[%s389 + $0x140] sm:$0xff]
                  %412 = vst [vmem:[%s390 + $0x50] sm:$0xff] %v411
                  %v413 = vld [vmem:[%s389 + $0x160] sm:$0xff]
                  %414 = vst [vmem:[%s390 + $0x58] sm:$0xff] %v413
                  %v415 = vld [vmem:[%s389 + $0x180] sm:$0xff]
                  %416 = vst [vmem:[%s390 + $0x60] sm:$0xff] %v415
                  %v417 = vld [vmem:[%s389 + $0x1a0] sm:$0xff]
                  %418 = vst [vmem:[%s390 + $0x68] sm:$0xff] %v417
                  %v419 = vld [vmem:[%s389 + $0x1c0] sm:$0xff]
                  %420 = vst [vmem:[%s390 + $0x70] sm:$0xff] %v419
                  %v421 = vld [vmem:[%s389 + $0x1e0] sm:$0xff]
                  %422 = vst [vmem:[%s390 + $0x78] sm:$0xff] %v421
                  %v423 = vld [vmem:[%s389 + $0x200] sm:$0xff]
                  %424 = vst [vmem:[%s390 + $0x80] sm:$0xff] %v423
                  %v425 = vld [vmem:[%s389 + $0x220] sm:$0xff]
                  %426 = vst [vmem:[%s390 + $0x88] sm:$0xff] %v425
                  %v427 = vld [vmem:[%s389 + $0x240] sm:$0xff]
                  %428 = vst [vmem:[%s390 + $0x90] sm:$0xff] %v427
                  %v429 = vld [vmem:[%s389 + $0x260] sm:$0xff]
                  %430 = vst [vmem:[%s390 + $0x98] sm:$0xff] %v429
                  %v431 = vld [vmem:[%s389 + $0x280] sm:$0xff]
                  %432 = vst [vmem:[%s390 + $0xa0] sm:$0xff] %v431
                  %v433 = vld [vmem:[%s389 + $0x2a0] sm:$0xff]
                  %434 = vst [vmem:[%s390 + $0xa8] sm:$0xff] %v433
                  %v435 = vld [vmem:[%s389 + $0x2c0] sm:$0xff]
                  %436 = vst [vmem:[%s390 + $0xb0] sm:$0xff] %v435
                  %v437 = vld [vmem:[%s389 + $0x2e0] sm:$0xff]
                  %438 = vst [vmem:[%s390 + $0xb8] sm:$0xff] %v437
                  %v439 = vld [vmem:[%s389 + $0x300] sm:$0xff]
                  %440 = vst [vmem:[%s390 + $0xc0] sm:$0xff] %v439
                  %v441 = vld [vmem:[%s389 + $0x320] sm:$0xff]
                  %442 = vst [vmem:[%s390 + $0xc8] sm:$0xff] %v441
                  %v443 = vld [vmem:[%s389 + $0x340] sm:$0xff]
                  %444 = vst [vmem:[%s390 + $0xd0] sm:$0xff] %v443
                  %v445 = vld [vmem:[%s389 + $0x360] sm:$0xff]
                  %446 = vst [vmem:[%s390 + $0xd8] sm:$0xff] %v445
                  %v447 = vld [vmem:[%s389 + $0x380] sm:$0xff]
                  %448 = vst [vmem:[%s390 + $0xe0] sm:$0xff] %v447
                  %v449 = vld [vmem:[%s389 + $0x3a0] sm:$0xff]
                  %450 = vst [vmem:[%s390 + $0xe8] sm:$0xff] %v449
                  %v451 = vld [vmem:[%s389 + $0x3c0] sm:$0xff]
                  %452 = vst [vmem:[%s390 + $0xf0] sm:$0xff] %v451
                  %v453 = vld [vmem:[%s389 + $0x3e0] sm:$0xff]
                  %454 = vst [vmem:[%s390 + $0xf8] sm:$0xff] %v453
                  %v455 = vld [vmem:[%s389 + $0x400] sm:$0xff]
                  %456 = vst [vmem:[%s390 + $0x100] sm:$0xff] %v455
                  %v457 = vld [vmem:[%s389 + $0x420] sm:$0xff]
                  %458 = vst [vmem:[%s390 + $0x108] sm:$0xff] %v457
                  %v459 = vld [vmem:[%s389 + $0x440] sm:$0xff]
                  %460 = vst [vmem:[%s390 + $0x110] sm:$0xff] %v459
                  %v461 = vld [vmem:[%s389 + $0x460] sm:$0xff]
                  %462 = vst [vmem:[%s390 + $0x118] sm:$0xff] %v461
                  %v463 = vld [vmem:[%s389 + $0x480] sm:$0xff]
                  %464 = vst [vmem:[%s390 + $0x120] sm:$0xff] %v463
                  %v465 = vld [vmem:[%s389 + $0x4a0] sm:$0xff]
                  %466 = vst [vmem:[%s390 + $0x128] sm:$0xff] %v465
                  %v467 = vld [vmem:[%s389 + $0x4c0] sm:$0xff]
                  %468 = vst [vmem:[%s390 + $0x130] sm:$0xff] %v467
                  %v469 = vld [vmem:[%s389 + $0x4e0] sm:$0xff]
                  %470 = vst [vmem:[%s390 + $0x138] sm:$0xff] %v469
                  %v471 = vld [vmem:[%s389 + $0x500] sm:$0xff]
                  %472 = vst [vmem:[%s390 + $0x140] sm:$0xff] %v471
                  %v473 = vld [vmem:[%s389 + $0x520] sm:$0xff]
                  %474 = vst [vmem:[%s390 + $0x148] sm:$0xff] %v473
                  %v475 = vld [vmem:[%s389 + $0x540] sm:$0xff]
                  %476 = vst [vmem:[%s390 + $0x150] sm:$0xff] %v475
                  %v477 = vld [vmem:[%s389 + $0x560] sm:$0xff]
                  %478 = vst [vmem:[%s390 + $0x158] sm:$0xff] %v477
                  %v479 = vld [vmem:[%s389 + $0x580] sm:$0xff]
                  %480 = vst [vmem:[%s390 + $0x160] sm:$0xff] %v479
                  %v481 = vld [vmem:[%s389 + $0x5a0] sm:$0xff]
                  %482 = vst [vmem:[%s390 + $0x168] sm:$0xff] %v481
                  %v483 = vld [vmem:[%s389 + $0x5c0] sm:$0xff]
                  %484 = vst [vmem:[%s390 + $0x170] sm:$0xff] %v483
                  %v485 = vld [vmem:[%s389 + $0x5e0] sm:$0xff]
                  %486 = vst [vmem:[%s390 + $0x178] sm:$0xff] %v485
                  %v487 = vld [vmem:[%s389 + $0x600] sm:$0xff]
                  %488 = vst [vmem:[%s390 + $0x180] sm:$0xff] %v487
                  %v489 = vld [vmem:[%s389 + $0x620] sm:$0xff]
                  %490 = vst [vmem:[%s390 + $0x188] sm:$0xff] %v489
                  %v491 = vld [vmem:[%s389 + $0x640] sm:$0xff]
                  %492 = vst [vmem:[%s390 + $0x190] sm:$0xff] %v491
                  %v493 = vld [vmem:[%s389 + $0x660] sm:$0xff]
                  %494 = vst [vmem:[%s390 + $0x198] sm:$0xff] %v493
                  %v495 = vld [vmem:[%s389 + $0x680] sm:$0xff]
                  %496 = vst [vmem:[%s390 + $0x1a0] sm:$0xff] %v495
                  %v497 = vld [vmem:[%s389 + $0x6a0] sm:$0xff]
                  %498 = vst [vmem:[%s390 + $0x1a8] sm:$0xff] %v497
                  %v499 = vld [vmem:[%s389 + $0x6c0] sm:$0xff]
                  %500 = vst [vmem:[%s390 + $0x1b0] sm:$0xff] %v499
                  %v501 = vld [vmem:[%s389 + $0x6e0] sm:$0xff]
                  %502 = vst [vmem:[%s390 + $0x1b8] sm:$0xff] %v501
                  %v503 = vld [vmem:[%s389 + $0x700] sm:$0xff]
                  %504 = vst [vmem:[%s390 + $0x1c0] sm:$0xff] %v503
                  %v505 = vld [vmem:[%s389 + $0x720] sm:$0xff]
                  %506 = vst [vmem:[%s390 + $0x1c8] sm:$0xff] %v505
                  %v507 = vld [vmem:[%s389 + $0x740] sm:$0xff]
                  %508 = vst [vmem:[%s390 + $0x1d0] sm:$0xff] %v507
                  %v509 = vld [vmem:[%s389 + $0x760] sm:$0xff]
                  %510 = vst [vmem:[%s390 + $0x1d8] sm:$0xff] %v509
                  %v511 = vld [vmem:[%s389 + $0x780] sm:$0xff]
                  %512 = vst [vmem:[%s390 + $0x1e0] sm:$0xff] %v511
                  %v513 = vld [vmem:[%s389 + $0x7a0] sm:$0xff]
                  %514 = vst [vmem:[%s390 + $0x1e8] sm:$0xff] %v513
                  %v515 = vld [vmem:[%s389 + $0x7c0] sm:$0xff]
                  %516 = vst [vmem:[%s390 + $0x1f0] sm:$0xff] %v515
                  %v517 = vld [vmem:[%s389 + $0x7e0] sm:$0xff]
                  %518 = vst [vmem:[%s390 + $0x1f8] sm:$0xff] %v517
                  %v519 = vld [vmem:[%s389 + $0x800] sm:$0xff]
                  %520 = vst [vmem:[%s390 + $0x200] sm:$0xff] %v519
                  %v521 = vld [vmem:[%s389 + $0x820] sm:$0xff]
                  %522 = vst [vmem:[%s390 + $0x208] sm:$0xff] %v521
                  %v523 = vld [vmem:[%s389 + $0x840] sm:$0xff]
                  %524 = vst [vmem:[%s390 + $0x210] sm:$0xff] %v523
                  %v525 = vld [vmem:[%s389 + $0x860] sm:$0xff]
                  %526 = vst [vmem:[%s390 + $0x218] sm:$0xff] %v525
                  %v527 = vld [vmem:[%s389 + $0x880] sm:$0xff]
                  %528 = vst [vmem:[%s390 + $0x220] sm:$0xff] %v527
                  %v529 = vld [vmem:[%s389 + $0x8a0] sm:$0xff]
                  %530 = vst [vmem:[%s390 + $0x228] sm:$0xff] %v529
                  %v531 = vld [vmem:[%s389 + $0x8c0] sm:$0xff]
                  %532 = vst [vmem:[%s390 + $0x230] sm:$0xff] %v531
                  %v533 = vld [vmem:[%s389 + $0x8e0] sm:$0xff]
                  %534 = vst [vmem:[%s390 + $0x238] sm:$0xff] %v533
                  %v535 = vld [vmem:[%s389 + $0x900] sm:$0xff]
                  %536 = vst [vmem:[%s390 + $0x240] sm:$0xff] %v535
                  %v537 = vld [vmem:[%s389 + $0x920] sm:$0xff]
                  %538 = vst [vmem:[%s390 + $0x248] sm:$0xff] %v537
                  %v539 = vld [vmem:[%s389 + $0x940] sm:$0xff]
                  %540 = vst [vmem:[%s390 + $0x250] sm:$0xff] %v539
                  %v541 = vld [vmem:[%s389 + $0x960] sm:$0xff]
                  %542 = vst [vmem:[%s390 + $0x258] sm:$0xff] %v541
                  %v543 = vld [vmem:[%s389 + $0x980] sm:$0xff]
                  %544 = vst [vmem:[%s390 + $0x260] sm:$0xff] %v543
                  %v545 = vld [vmem:[%s389 + $0x9a0] sm:$0xff]
                  %546 = vst [vmem:[%s390 + $0x268] sm:$0xff] %v545
                  %v547 = vld [vmem:[%s389 + $0x9c0] sm:$0xff]
                  %548 = vst [vmem:[%s390 + $0x270] sm:$0xff] %v547
                  %v549 = vld [vmem:[%s389 + $0x9e0] sm:$0xff]
                  %550 = vst [vmem:[%s390 + $0x278] sm:$0xff] %v549
                  %v551 = vld [vmem:[%s389 + $0xa00] sm:$0xff]
                  %552 = vst [vmem:[%s390 + $0x280] sm:$0xff] %v551
                  %v553 = vld [vmem:[%s389 + $0xa20] sm:$0xff]
                  %554 = vst [vmem:[%s390 + $0x288] sm:$0xff] %v553
                  %v555 = vld [vmem:[%s389 + $0xa40] sm:$0xff]
                  %556 = vst [vmem:[%s390 + $0x290] sm:$0xff] %v555
                  %v557 = vld [vmem:[%s389 + $0xa60] sm:$0xff]
                  %558 = vst [vmem:[%s390 + $0x298] sm:$0xff] %v557
                  %v559 = vld [vmem:[%s389 + $0xa80] sm:$0xff]
                  %560 = vst [vmem:[%s390 + $0x2a0] sm:$0xff] %v559
                  %v561 = vld [vmem:[%s389 + $0xaa0] sm:$0xff]
                  %562 = vst [vmem:[%s390 + $0x2a8] sm:$0xff] %v561
                  %v563 = vld [vmem:[%s389 + $0xac0] sm:$0xff]
                  %564 = vst [vmem:[%s390 + $0x2b0] sm:$0xff] %v563
                  %v565 = vld [vmem:[%s389 + $0xae0] sm:$0xff]
                  %566 = vst [vmem:[%s390 + $0x2b8] sm:$0xff] %v565
                  %v567 = vld [vmem:[%s389 + $0xb00] sm:$0xff]
                  %568 = vst [vmem:[%s390 + $0x2c0] sm:$0xff] %v567
                  %v569 = vld [vmem:[%s389 + $0xb20] sm:$0xff]
                  %570 = vst [vmem:[%s390 + $0x2c8] sm:$0xff] %v569
                  %v571 = vld [vmem:[%s389 + $0xb40] sm:$0xff]
                  %572 = vst [vmem:[%s390 + $0x2d0] sm:$0xff] %v571
                  %v573 = vld [vmem:[%s389 + $0xb60] sm:$0xff]
                  %574 = vst [vmem:[%s390 + $0x2d8] sm:$0xff] %v573
                  %v575 = vld [vmem:[%s389 + $0xb80] sm:$0xff]
                  %576 = vst [vmem:[%s390 + $0x2e0] sm:$0xff] %v575
                  %v577 = vld [vmem:[%s389 + $0xba0] sm:$0xff]
                  %578 = vst [vmem:[%s390 + $0x2e8] sm:$0xff] %v577
                  %v579 = vld [vmem:[%s389 + $0xbc0] sm:$0xff]
                  %580 = vst [vmem:[%s390 + $0x2f0] sm:$0xff] %v579
                  %v581 = vld [vmem:[%s389 + $0xbe0] sm:$0xff]
                  %582 = vst [vmem:[%s390 + $0x2f8] sm:$0xff] %v581
                  %v583 = vld [vmem:[%s389 + $0xc00] sm:$0xff]
                  %584 = vst [vmem:[%s390 + $0x300] sm:$0xff] %v583
                  %v585 = vld [vmem:[%s389 + $0xc20] sm:$0xff]
                  %586 = vst [vmem:[%s390 + $0x308] sm:$0xff] %v585
                  %v587 = vld [vmem:[%s389 + $0xc40] sm:$0xff]
                  %588 = vst [vmem:[%s390 + $0x310] sm:$0xff] %v587
                  %v589 = vld [vmem:[%s389 + $0xc60] sm:$0xff]
                  %590 = vst [vmem:[%s390 + $0x318] sm:$0xff] %v589
                  %v591 = vld [vmem:[%s389 + $0xc80] sm:$0xff]
                  %592 = vst [vmem:[%s390 + $0x320] sm:$0xff] %v591
                  %v593 = vld [vmem:[%s389 + $0xca0] sm:$0xff]
                  %594 = vst [vmem:[%s390 + $0x328] sm:$0xff] %v593
                  %v595 = vld [vmem:[%s389 + $0xcc0] sm:$0xff]
                  %596 = vst [vmem:[%s390 + $0x330] sm:$0xff] %v595
                  %v597 = vld [vmem:[%s389 + $0xce0] sm:$0xff]
                  %598 = vst [vmem:[%s390 + $0x338] sm:$0xff] %v597
                  %v599 = vld [vmem:[%s389 + $0xd00] sm:$0xff]
                  %600 = vst [vmem:[%s390 + $0x340] sm:$0xff] %v599
                  %v601 = vld [vmem:[%s389 + $0xd20] sm:$0xff]
                  %602 = vst [vmem:[%s390 + $0x348] sm:$0xff] %v601
                  %v603 = vld [vmem:[%s389 + $0xd40] sm:$0xff]
                  %604 = vst [vmem:[%s390 + $0x350] sm:$0xff] %v603
                  %v605 = vld [vmem:[%s389 + $0xd60] sm:$0xff]
                  %606 = vst [vmem:[%s390 + $0x358] sm:$0xff] %v605
                  %v607 = vld [vmem:[%s389 + $0xd80] sm:$0xff]
                  %608 = vst [vmem:[%s390 + $0x360] sm:$0xff] %v607
                  %v609 = vld [vmem:[%s389 + $0xda0] sm:$0xff]
                  %610 = vst [vmem:[%s390 + $0x368] sm:$0xff] %v609
                  %v611 = vld [vmem:[%s389 + $0xdc0] sm:$0xff]
                  %612 = vst [vmem:[%s390 + $0x370] sm:$0xff] %v611
                  %v613 = vld [vmem:[%s389 + $0xde0] sm:$0xff]
                  %614 = vst [vmem:[%s390 + $0x378] sm:$0xff] %v613
                  %v615 = vld [vmem:[%s389 + $0xe00] sm:$0xff]
                  %616 = vst [vmem:[%s390 + $0x380] sm:$0xff] %v615
                  %v617 = vld [vmem:[%s389 + $0xe20] sm:$0xff]
                  %618 = vst [vmem:[%s390 + $0x388] sm:$0xff] %v617
                  %v619 = vld [vmem:[%s389 + $0xe40] sm:$0xff]
                  %620 = vst [vmem:[%s390 + $0x390] sm:$0xff] %v619
                  %v621 = vld [vmem:[%s389 + $0xe60] sm:$0xff]
                  %622 = vst [vmem:[%s390 + $0x398] sm:$0xff] %v621
                $region52: #{forward.4} parent=46 // loop_footer
                  %s388 = sadd.s32 1, %s384
                $region53: #{forward.4} parent=46 // loop_footer_branch
                  %383 = sbr.rel target = $region49
                $region54: #{forward.4} parent=46 // loop_exit
                  _
              $region47: #{forward.4} parent=31 // pred_fallthru
                _
              // Predicated region
              $region55: #{forward.4} parent=31 // pred_check
                _
              $region56: #{forward.4} parent=31 // pred_check_branch
                %624 = sbr.rel target = $region58
              $region57: #{forward.4} parent=31 // pred_region
                _
              $region58: #{forward.4} parent=31 // pred_fallthru
                _
            $region32: #{forward.4} parent=27 // pred_fallthru
              _
            // Predicated region
            $region33: #{forward.4} parent=27 // pred_check
              _
            $region34: #{forward.4} parent=27 // pred_check_branch
              %138 = sbr.rel target = $region36
            $region35: #{forward.4} parent=27 // pred_region
              %s140 = ssub.s32 256, 1
              loop: start=0, step=1, limit=1
              $region37: #{forward.4} parent=35 // loop_pre_header
                _
              $region38: #{forward.4} parent=35 // loop_header
                %s142 = sphi 0, %s146
                %p143 = scmp.ge.s32.totalorder %s142, 1
                %s147 = sphi %s132, %s132
                %s148 = sphi %s127, %s127
              $region39: #{forward.4} parent=35 // loop_header_branch
                %145 = sbr.rel (%p143) target = $region43
              $region40: #{forward.4} parent=35 // loop_body
                %v149 = vld [vmem:[%s147] sm:%s140]
                %150 = vst [vmem:[%s148] sm:%s140] %v149
                %v151 = vld [vmem:[%s147 + $0x20] sm:%s140]
                %152 = vst [vmem:[%s148 + $0x8] sm:%s140] %v151
                %v153 = vld [vmem:[%s147 + $0x40] sm:%s140]
                %154 = vst [vmem:[%s148 + $0x10] sm:%s140] %v153
                %v155 = vld [vmem:[%s147 + $0x60] sm:%s140]
                %156 = vst [vmem:[%s148 + $0x18] sm:%s140] %v155
                %v157 = vld [vmem:[%s147 + $0x80] sm:%s140]
                %158 = vst [vmem:[%s148 + $0x20] sm:%s140] %v157
                %v159 = vld [vmem:[%s147 + $0xa0] sm:%s140]
                %160 = vst [vmem:[%s148 + $0x28] sm:%s140] %v159
                %v161 = vld [vmem:[%s147 + $0xc0] sm:%s140]
                %162 = vst [vmem:[%s148 + $0x30] sm:%s140] %v161
                %v163 = vld [vmem:[%s147 + $0xe0] sm:%s140]
                %164 = vst [vmem:[%s148 + $0x38] sm:%s140] %v163
                %v165 = vld [vmem:[%s147 + $0x100] sm:%s140]
                %166 = vst [vmem:[%s148 + $0x40] sm:%s140] %v165
                %v167 = vld [vmem:[%s147 + $0x120] sm:%s140]
                %168 = vst [vmem:[%s148 + $0x48] sm:%s140] %v167
                %v169 = vld [vmem:[%s147 + $0x140] sm:%s140]
                %170 = vst [vmem:[%s148 + $0x50] sm:%s140] %v169
                %v171 = vld [vmem:[%s147 + $0x160] sm:%s140]
                %172 = vst [vmem:[%s148 + $0x58] sm:%s140] %v171
                %v173 = vld [vmem:[%s147 + $0x180] sm:%s140]
                %174 = vst [vmem:[%s148 + $0x60] sm:%s140] %v173
                %v175 = vld [vmem:[%s147 + $0x1a0] sm:%s140]
                %176 = vst [vmem:[%s148 + $0x68] sm:%s140] %v175
                %v177 = vld [vmem:[%s147 + $0x1c0] sm:%s140]
                %178 = vst [vmem:[%s148 + $0x70] sm:%s140] %v177
                %v179 = vld [vmem:[%s147 + $0x1e0] sm:%s140]
                %180 = vst [vmem:[%s148 + $0x78] sm:%s140] %v179
                %v181 = vld [vmem:[%s147 + $0x200] sm:%s140]
                %182 = vst [vmem:[%s148 + $0x80] sm:%s140] %v181
                %v183 = vld [vmem:[%s147 + $0x220] sm:%s140]
                %184 = vst [vmem:[%s148 + $0x88] sm:%s140] %v183
                %v185 = vld [vmem:[%s147 + $0x240] sm:%s140]
                %186 = vst [vmem:[%s148 + $0x90] sm:%s140] %v185
                %v187 = vld [vmem:[%s147 + $0x260] sm:%s140]
                %188 = vst [vmem:[%s148 + $0x98] sm:%s140] %v187
                %v189 = vld [vmem:[%s147 + $0x280] sm:%s140]
                %190 = vst [vmem:[%s148 + $0xa0] sm:%s140] %v189
                %v191 = vld [vmem:[%s147 + $0x2a0] sm:%s140]
                %192 = vst [vmem:[%s148 + $0xa8] sm:%s140] %v191
                %v193 = vld [vmem:[%s147 + $0x2c0] sm:%s140]
                %194 = vst [vmem:[%s148 + $0xb0] sm:%s140] %v193
                %v195 = vld [vmem:[%s147 + $0x2e0] sm:%s140]
                %196 = vst [vmem:[%s148 + $0xb8] sm:%s140] %v195
                %v197 = vld [vmem:[%s147 + $0x300] sm:%s140]
                %198 = vst [vmem:[%s148 + $0xc0] sm:%s140] %v197
                %v199 = vld [vmem:[%s147 + $0x320] sm:%s140]
                %200 = vst [vmem:[%s148 + $0xc8] sm:%s140] %v199
                %v201 = vld [vmem:[%s147 + $0x340] sm:%s140]
                %202 = vst [vmem:[%s148 + $0xd0] sm:%s140] %v201
                %v203 = vld [vmem:[%s147 + $0x360] sm:%s140]
                %204 = vst [vmem:[%s148 + $0xd8] sm:%s140] %v203
                %v205 = vld [vmem:[%s147 + $0x380] sm:%s140]
                %206 = vst [vmem:[%s148 + $0xe0] sm:%s140] %v205
                %v207 = vld [vmem:[%s147 + $0x3a0] sm:%s140]
                %208 = vst [vmem:[%s148 + $0xe8] sm:%s140] %v207
                %v209 = vld [vmem:[%s147 + $0x3c0] sm:%s140]
                %210 = vst [vmem:[%s148 + $0xf0] sm:%s140] %v209
                %v211 = vld [vmem:[%s147 + $0x3e0] sm:%s140]
                %212 = vst [vmem:[%s148 + $0xf8] sm:%s140] %v211
                %v213 = vld [vmem:[%s147 + $0x400] sm:%s140]
                %214 = vst [vmem:[%s148 + $0x100] sm:%s140] %v213
                %v215 = vld [vmem:[%s147 + $0x420] sm:%s140]
                %216 = vst [vmem:[%s148 + $0x108] sm:%s140] %v215
                %v217 = vld [vmem:[%s147 + $0x440] sm:%s140]
                %218 = vst [vmem:[%s148 + $0x110] sm:%s140] %v217
                %v219 = vld [vmem:[%s147 + $0x460] sm:%s140]
                %220 = vst [vmem:[%s148 + $0x118] sm:%s140] %v219
                %v221 = vld [vmem:[%s147 + $0x480] sm:%s140]
                %222 = vst [vmem:[%s148 + $0x120] sm:%s140] %v221
                %v223 = vld [vmem:[%s147 + $0x4a0] sm:%s140]
                %224 = vst [vmem:[%s148 + $0x128] sm:%s140] %v223
                %v225 = vld [vmem:[%s147 + $0x4c0] sm:%s140]
                %226 = vst [vmem:[%s148 + $0x130] sm:%s140] %v225
                %v227 = vld [vmem:[%s147 + $0x4e0] sm:%s140]
                %228 = vst [vmem:[%s148 + $0x138] sm:%s140] %v227
                %v229 = vld [vmem:[%s147 + $0x500] sm:%s140]
                %230 = vst [vmem:[%s148 + $0x140] sm:%s140] %v229
                %v231 = vld [vmem:[%s147 + $0x520] sm:%s140]
                %232 = vst [vmem:[%s148 + $0x148] sm:%s140] %v231
                %v233 = vld [vmem:[%s147 + $0x540] sm:%s140]
                %234 = vst [vmem:[%s148 + $0x150] sm:%s140] %v233
                %v235 = vld [vmem:[%s147 + $0x560] sm:%s140]
                %236 = vst [vmem:[%s148 + $0x158] sm:%s140] %v235
                %v237 = vld [vmem:[%s147 + $0x580] sm:%s140]
                %238 = vst [vmem:[%s148 + $0x160] sm:%s140] %v237
                %v239 = vld [vmem:[%s147 + $0x5a0] sm:%s140]
                %240 = vst [vmem:[%s148 + $0x168] sm:%s140] %v239
                %v241 = vld [vmem:[%s147 + $0x5c0] sm:%s140]
                %242 = vst [vmem:[%s148 + $0x170] sm:%s140] %v241
                %v243 = vld [vmem:[%s147 + $0x5e0] sm:%s140]
                %244 = vst [vmem:[%s148 + $0x178] sm:%s140] %v243
                %v245 = vld [vmem:[%s147 + $0x600] sm:%s140]
                %246 = vst [vmem:[%s148 + $0x180] sm:%s140] %v245
                %v247 = vld [vmem:[%s147 + $0x620] sm:%s140]
                %248 = vst [vmem:[%s148 + $0x188] sm:%s140] %v247
                %v249 = vld [vmem:[%s147 + $0x640] sm:%s140]
                %250 = vst [vmem:[%s148 + $0x190] sm:%s140] %v249
                %v251 = vld [vmem:[%s147 + $0x660] sm:%s140]
                %252 = vst [vmem:[%s148 + $0x198] sm:%s140] %v251
                %v253 = vld [vmem:[%s147 + $0x680] sm:%s140]
                %254 = vst [vmem:[%s148 + $0x1a0] sm:%s140] %v253
                %v255 = vld [vmem:[%s147 + $0x6a0] sm:%s140]
                %256 = vst [vmem:[%s148 + $0x1a8] sm:%s140] %v255
                %v257 = vld [vmem:[%s147 + $0x6c0] sm:%s140]
                %258 = vst [vmem:[%s148 + $0x1b0] sm:%s140] %v257
                %v259 = vld [vmem:[%s147 + $0x6e0] sm:%s140]
                %260 = vst [vmem:[%s148 + $0x1b8] sm:%s140] %v259
                %v261 = vld [vmem:[%s147 + $0x700] sm:%s140]
                %262 = vst [vmem:[%s148 + $0x1c0] sm:%s140] %v261
                %v263 = vld [vmem:[%s147 + $0x720] sm:%s140]
                %264 = vst [vmem:[%s148 + $0x1c8] sm:%s140] %v263
                %v265 = vld [vmem:[%s147 + $0x740] sm:%s140]
                %266 = vst [vmem:[%s148 + $0x1d0] sm:%s140] %v265
                %v267 = vld [vmem:[%s147 + $0x760] sm:%s140]
                %268 = vst [vmem:[%s148 + $0x1d8] sm:%s140] %v267
                %v269 = vld [vmem:[%s147 + $0x780] sm:%s140]
                %270 = vst [vmem:[%s148 + $0x1e0] sm:%s140] %v269
                %v271 = vld [vmem:[%s147 + $0x7a0] sm:%s140]
                %272 = vst [vmem:[%s148 + $0x1e8] sm:%s140] %v271
                %v273 = vld [vmem:[%s147 + $0x7c0] sm:%s140]
                %274 = vst [vmem:[%s148 + $0x1f0] sm:%s140] %v273
                %v275 = vld [vmem:[%s147 + $0x7e0] sm:%s140]
                %276 = vst [vmem:[%s148 + $0x1f8] sm:%s140] %v275
                %v277 = vld [vmem:[%s147 + $0x800] sm:%s140]
                %278 = vst [vmem:[%s148 + $0x200] sm:%s140] %v277
                %v279 = vld [vmem:[%s147 + $0x820] sm:%s140]
                %280 = vst [vmem:[%s148 + $0x208] sm:%s140] %v279
                %v281 = vld [vmem:[%s147 + $0x840] sm:%s140]
                %282 = vst [vmem:[%s148 + $0x210] sm:%s140] %v281
                %v283 = vld [vmem:[%s147 + $0x860] sm:%s140]
                %284 = vst [vmem:[%s148 + $0x218] sm:%s140] %v283
                %v285 = vld [vmem:[%s147 + $0x880] sm:%s140]
                %286 = vst [vmem:[%s148 + $0x220] sm:%s140] %v285
                %v287 = vld [vmem:[%s147 + $0x8a0] sm:%s140]
                %288 = vst [vmem:[%s148 + $0x228] sm:%s140] %v287
                %v289 = vld [vmem:[%s147 + $0x8c0] sm:%s140]
                %290 = vst [vmem:[%s148 + $0x230] sm:%s140] %v289
                %v291 = vld [vmem:[%s147 + $0x8e0] sm:%s140]
                %292 = vst [vmem:[%s148 + $0x238] sm:%s140] %v291
                %v293 = vld [vmem:[%s147 + $0x900] sm:%s140]
                %294 = vst [vmem:[%s148 + $0x240] sm:%s140] %v293
                %v295 = vld [vmem:[%s147 + $0x920] sm:%s140]
                %296 = vst [vmem:[%s148 + $0x248] sm:%s140] %v295
                %v297 = vld [vmem:[%s147 + $0x940] sm:%s140]
                %298 = vst [vmem:[%s148 + $0x250] sm:%s140] %v297
                %v299 = vld [vmem:[%s147 + $0x960] sm:%s140]
                %300 = vst [vmem:[%s148 + $0x258] sm:%s140] %v299
                %v301 = vld [vmem:[%s147 + $0x980] sm:%s140]
                %302 = vst [vmem:[%s148 + $0x260] sm:%s140] %v301
                %v303 = vld [vmem:[%s147 + $0x9a0] sm:%s140]
                %304 = vst [vmem:[%s148 + $0x268] sm:%s140] %v303
                %v305 = vld [vmem:[%s147 + $0x9c0] sm:%s140]
                %306 = vst [vmem:[%s148 + $0x270] sm:%s140] %v305
                %v307 = vld [vmem:[%s147 + $0x9e0] sm:%s140]
                %308 = vst [vmem:[%s148 + $0x278] sm:%s140] %v307
                %v309 = vld [vmem:[%s147 + $0xa00] sm:%s140]
                %310 = vst [vmem:[%s148 + $0x280] sm:%s140] %v309
                %v311 = vld [vmem:[%s147 + $0xa20] sm:%s140]
                %312 = vst [vmem:[%s148 + $0x288] sm:%s140] %v311
                %v313 = vld [vmem:[%s147 + $0xa40] sm:%s140]
                %314 = vst [vmem:[%s148 + $0x290] sm:%s140] %v313
                %v315 = vld [vmem:[%s147 + $0xa60] sm:%s140]
                %316 = vst [vmem:[%s148 + $0x298] sm:%s140] %v315
                %v317 = vld [vmem:[%s147 + $0xa80] sm:%s140]
                %318 = vst [vmem:[%s148 + $0x2a0] sm:%s140] %v317
                %v319 = vld [vmem:[%s147 + $0xaa0] sm:%s140]
                %320 = vst [vmem:[%s148 + $0x2a8] sm:%s140] %v319
                %v321 = vld [vmem:[%s147 + $0xac0] sm:%s140]
                %322 = vst [vmem:[%s148 + $0x2b0] sm:%s140] %v321
                %v323 = vld [vmem:[%s147 + $0xae0] sm:%s140]
                %324 = vst [vmem:[%s148 + $0x2b8] sm:%s140] %v323
                %v325 = vld [vmem:[%s147 + $0xb00] sm:%s140]
                %326 = vst [vmem:[%s148 + $0x2c0] sm:%s140] %v325
                %v327 = vld [vmem:[%s147 + $0xb20] sm:%s140]
                %328 = vst [vmem:[%s148 + $0x2c8] sm:%s140] %v327
                %v329 = vld [vmem:[%s147 + $0xb40] sm:%s140]
                %330 = vst [vmem:[%s148 + $0x2d0] sm:%s140] %v329
                %v331 = vld [vmem:[%s147 + $0xb60] sm:%s140]
                %332 = vst [vmem:[%s148 + $0x2d8] sm:%s140] %v331
                %v333 = vld [vmem:[%s147 + $0xb80] sm:%s140]
                %334 = vst [vmem:[%s148 + $0x2e0] sm:%s140] %v333
                %v335 = vld [vmem:[%s147 + $0xba0] sm:%s140]
                %336 = vst [vmem:[%s148 + $0x2e8] sm:%s140] %v335
                %v337 = vld [vmem:[%s147 + $0xbc0] sm:%s140]
                %338 = vst [vmem:[%s148 + $0x2f0] sm:%s140] %v337
                %v339 = vld [vmem:[%s147 + $0xbe0] sm:%s140]
                %340 = vst [vmem:[%s148 + $0x2f8] sm:%s140] %v339
                %v341 = vld [vmem:[%s147 + $0xc00] sm:%s140]
                %342 = vst [vmem:[%s148 + $0x300] sm:%s140] %v341
                %v343 = vld [vmem:[%s147 + $0xc20] sm:%s140]
                %344 = vst [vmem:[%s148 + $0x308] sm:%s140] %v343
                %v345 = vld [vmem:[%s147 + $0xc40] sm:%s140]
                %346 = vst [vmem:[%s148 + $0x310] sm:%s140] %v345
                %v347 = vld [vmem:[%s147 + $0xc60] sm:%s140]
                %348 = vst [vmem:[%s148 + $0x318] sm:%s140] %v347
                %v349 = vld [vmem:[%s147 + $0xc80] sm:%s140]
                %350 = vst [vmem:[%s148 + $0x320] sm:%s140] %v349
                %v351 = vld [vmem:[%s147 + $0xca0] sm:%s140]
                %352 = vst [vmem:[%s148 + $0x328] sm:%s140] %v351
                %v353 = vld [vmem:[%s147 + $0xcc0] sm:%s140]
                %354 = vst [vmem:[%s148 + $0x330] sm:%s140] %v353
                %v355 = vld [vmem:[%s147 + $0xce0] sm:%s140]
                %356 = vst [vmem:[%s148 + $0x338] sm:%s140] %v355
                %v357 = vld [vmem:[%s147 + $0xd00] sm:%s140]
                %358 = vst [vmem:[%s148 + $0x340] sm:%s140] %v357
                %v359 = vld [vmem:[%s147 + $0xd20] sm:%s140]
                %360 = vst [vmem:[%s148 + $0x348] sm:%s140] %v359
                %v361 = vld [vmem:[%s147 + $0xd40] sm:%s140]
                %362 = vst [vmem:[%s148 + $0x350] sm:%s140] %v361
                %v363 = vld [vmem:[%s147 + $0xd60] sm:%s140]
                %364 = vst [vmem:[%s148 + $0x358] sm:%s140] %v363
                %v365 = vld [vmem:[%s147 + $0xd80] sm:%s140]
                %366 = vst [vmem:[%s148 + $0x360] sm:%s140] %v365
                %v367 = vld [vmem:[%s147 + $0xda0] sm:%s140]
                %368 = vst [vmem:[%s148 + $0x368] sm:%s140] %v367
                %v369 = vld [vmem:[%s147 + $0xdc0] sm:%s140]
                %370 = vst [vmem:[%s148 + $0x370] sm:%s140] %v369
                %v371 = vld [vmem:[%s147 + $0xde0] sm:%s140]
                %372 = vst [vmem:[%s148 + $0x378] sm:%s140] %v371
                %v373 = vld [vmem:[%s147 + $0xe00] sm:%s140]
                %374 = vst [vmem:[%s148 + $0x380] sm:%s140] %v373
                %v375 = vld [vmem:[%s147 + $0xe20] sm:%s140]
                %376 = vst [vmem:[%s148 + $0x388] sm:%s140] %v375
                %v377 = vld [vmem:[%s147 + $0xe40] sm:%s140]
                %378 = vst [vmem:[%s148 + $0x390] sm:%s140] %v377
                %v379 = vld [vmem:[%s147 + $0xe60] sm:%s140]
                %380 = vst [vmem:[%s148 + $0x398] sm:%s140] %v379
              $region41: #{forward.4} parent=35 // loop_footer
                %s146 = sadd.s32 1, %s142
              $region42: #{forward.4} parent=35 // loop_footer_branch
                %141 = sbr.rel target = $region38
              $region43: #{forward.4} parent=35 // loop_exit
                _
            $region36: #{forward.4} parent=27 // pred_fallthru
              _
          $region28: #{forward.4} parent=23 // pred_fallthru
            _
          %625 = vnop
        $region24: #{forward.4} parent=19 // pred_fallthru
          _
      $region20: #{forward.4} parent=5 // pred_fallthru
        _
      %p626 = scmp.le.s32.totalorder 1, %s8
      %p627 = scmp.lt.s32.totalorder %s8, 9
      %p628 = pnand %p626, %p627
      %p629 = pneg %p628
      // Predicated region
      $region59: #{forward.4} parent=5 // pred_check
        _
      $region60: #{forward.4} parent=5 // pred_check_branch
        %631 = sbr.rel (%p628) target = $region62
      $region61: #{forward.4} parent=5 // pred_region
        %s632 = ssub.s32 %s8, 1
        %s633 = sand.u32 %s35, 1
        %s634 = sand.u32 %s35, 1
        %s635 = smul.addr %s634, 928
        %s636 = scalar_lea.vmem [#allocation2], %s635
        // Predicated region
        $region63: #{forward.4} parent=61 // pred_check
          %p637 = pneg %p48
        $region64: #{forward.4} parent=61 // pred_check_branch
          %639 = sbr.rel (%p637) target = $region66
        $region65: #{forward.4} parent=61 // pred_region
          _
        $region66: #{forward.4} parent=61 // pred_fallthru
          _
        %s640 = sand.u32 %s35, 1
        %s641 = sand.u32 %s35, 1
        %s642 = smul.addr %s641, 928
        %s643 = scalar_lea.vmem [#allocation2], %s642
        %p644 = pneg %p48
        %p645 = pneg %p45
        %p646 = pneg %p69
        %p647 = pneg %p66
        %p648 = pneg %p99
        %p649 = pneg %p96
        %s650 = smul.u32 %s17, 4
        %s651 = sadd.s32 %s650, %s18
        %p652 = scmp.lt.s32.totalorder %s651, 7
        %s653 = scalar_select %p652, %s651, 7
        %s654 = smul.addr %s653, 116
        %s655 = smul.addr %s654, 2
        %s656 = scalar_lea.vmem %s2, %s655
        %s657 = smul.u32 116, %s17
        %s658 = smul.u32 %s17, 4
        %s659 = sadd.s32 %s658, %s18
        %p660 = scmp.lt.s32.totalorder %s659, 7
        %s661 = scalar_select %p660, %s659, 7
        %s662 = smul.addr %s661, 116
        %s663 = smul.addr %s662, 2
        %s664 = scalar_lea.vmem %s2, %s663
        %s665 = smul.u32 %s17, 4
        %s666 = sadd.s32 %s665, %s18
        %v667 = vld [vmem:[%s636] sm:$0xf]
        %v668 = vld [vmem:[%s636 + $0x8] sm:$0xf]
        %v669 = vld [vmem:[%s636 + $0x10] sm:$0xf]
        %v670 = vld [vmem:[%s636 + $0x18] sm:$0xf]
        %v671 = vld [vmem:[%s636 + $0x20] sm:$0xf]
        %v672 = vld [vmem:[%s636 + $0x28] sm:$0xf]
        %v673 = vld [vmem:[%s636 + $0x30] sm:$0xf]
        %v674 = vld [vmem:[%s636 + $0x38] sm:$0xf]
        %v675 = vld [vmem:[%s636 + $0x40] sm:$0xf]
        %v676 = vld [vmem:[%s636 + $0x48] sm:$0xf]
        %v677 = vld [vmem:[%s636 + $0x50] sm:$0xf]
        %v678 = vld [vmem:[%s636 + $0x58] sm:$0xf]
        %v679 = vld [vmem:[%s636 + $0x60] sm:$0xf]
        %v680 = vld [vmem:[%s636 + $0x68] sm:$0xf]
        %v681 = vld [vmem:[%s636 + $0x70] sm:$0xf]
        %v682 = vld [vmem:[%s636 + $0x78] sm:$0xf]
        %v683 = vld [vmem:[%s636 + $0x80] sm:$0xf]
        %v684 = vld [vmem:[%s636 + $0x88] sm:$0xf]
        %v685 = vld [vmem:[%s636 + $0x90] sm:$0xf]
        %v686 = vld [vmem:[%s636 + $0x98] sm:$0xf]
        %v687 = vld [vmem:[%s636 + $0xa0] sm:$0xf]
        %v688 = vld [vmem:[%s636 + $0xa8] sm:$0xf]
        %v689 = vld [vmem:[%s636 + $0xb0] sm:$0xf]
        %v690 = vld [vmem:[%s636 + $0xb8] sm:$0xf]
        %v691 = vld [vmem:[%s636 + $0xc0] sm:$0xf]
        %v692 = vld [vmem:[%s636 + $0xc8] sm:$0xf]
        %v693 = vld [vmem:[%s636 + $0xd0] sm:$0xf]
        %v694 = vld [vmem:[%s636 + $0xd8] sm:$0xf]
        %v695 = vld [vmem:[%s636 + $0xe0] sm:$0xf]
        %v696 = vld [vmem:[%s636 + $0xe8] sm:$0xf]
        %v697 = vld [vmem:[%s636 + $0xf0] sm:$0xf]
        %v698 = vld [vmem:[%s636 + $0xf8] sm:$0xf]
        %v699 = vld [vmem:[%s636 + $0x100] sm:$0xf]
        %v700 = vld [vmem:[%s636 + $0x108] sm:$0xf]
        %v701 = vld [vmem:[%s636 + $0x110] sm:$0xf]
        %v702 = vld [vmem:[%s636 + $0x118] sm:$0xf]
        %v703 = vld [vmem:[%s636 + $0x120] sm:$0xf]
        %v704 = vld [vmem:[%s636 + $0x128] sm:$0xf]
        %v705 = vld [vmem:[%s636 + $0x130] sm:$0xf]
        %v706 = vld [vmem:[%s636 + $0x138] sm:$0xf]
        %v707 = vld [vmem:[%s636 + $0x140] sm:$0xf]
        %v708 = vld [vmem:[%s636 + $0x148] sm:$0xf]
        %v709 = vld [vmem:[%s636 + $0x150] sm:$0xf]
        %v710 = vld [vmem:[%s636 + $0x158] sm:$0xf]
        %v711 = vld [vmem:[%s636 + $0x160] sm:$0xf]
        %v712 = vld [vmem:[%s636 + $0x168] sm:$0xf]
        %v713 = vld [vmem:[%s636 + $0x170] sm:$0xf]
        %v714 = vld [vmem:[%s636 + $0x178] sm:$0xf]
        %v715 = vld [vmem:[%s636 + $0x180] sm:$0xf]
        %v716 = vld [vmem:[%s636 + $0x188] sm:$0xf]
        %v717 = vld [vmem:[%s636 + $0x190] sm:$0xf]
        %v718 = vld [vmem:[%s636 + $0x198] sm:$0xf]
        %v719 = vld [vmem:[%s636 + $0x1a0] sm:$0xf]
        %v720 = vld [vmem:[%s636 + $0x1a8] sm:$0xf]
        %v721 = vld [vmem:[%s636 + $0x1b0] sm:$0xf]
        %v722 = vld [vmem:[%s636 + $0x1b8] sm:$0xf]
        %v723 = vld [vmem:[%s636 + $0x1c0] sm:$0xf]
        %v724 = vld [vmem:[%s636 + $0x1c8] sm:$0xf]
        %v725 = vld [vmem:[%s636 + $0x1d0] sm:$0xf]
        %v726 = vld [vmem:[%s636 + $0x1d8] sm:$0xf]
        %v727 = vld [vmem:[%s636 + $0x1e0] sm:$0xf]
        %v728 = vld [vmem:[%s636 + $0x1e8] sm:$0xf]
        %v729 = vld [vmem:[%s636 + $0x1f0] sm:$0xf]
        %v730 = vld [vmem:[%s636 + $0x1f8] sm:$0xf]
        %v731 = vld [vmem:[%s636 + $0x200] sm:$0xf]
        %v732 = vld [vmem:[%s636 + $0x208] sm:$0xf]
        %v733 = vld [vmem:[%s636 + $0x210] sm:$0xf]
        %v734 = vld [vmem:[%s636 + $0x218] sm:$0xf]
        %v735 = vld [vmem:[%s636 + $0x220] sm:$0xf]
        %v736 = vld [vmem:[%s636 + $0x228] sm:$0xf]
        %v737 = vld [vmem:[%s636 + $0x230] sm:$0xf]
        %v738 = vld [vmem:[%s636 + $0x238] sm:$0xf]
        %v739 = vld [vmem:[%s636 + $0x240] sm:$0xf]
        %v740 = vld [vmem:[%s636 + $0x248] sm:$0xf]
        %v741 = vld [vmem:[%s636 + $0x250] sm:$0xf]
        %v742 = vld [vmem:[%s636 + $0x258] sm:$0xf]
        %v743 = vld [vmem:[%s636 + $0x260] sm:$0xf]
        %v744 = vld [vmem:[%s636 + $0x268] sm:$0xf]
        %v745 = vld [vmem:[%s636 + $0x270] sm:$0xf]
        %v746 = vld [vmem:[%s636 + $0x278] sm:$0xf]
        %v747 = vld [vmem:[%s636 + $0x280] sm:$0xf]
        %v748 = vld [vmem:[%s636 + $0x288] sm:$0xf]
        %v749 = vld [vmem:[%s636 + $0x290] sm:$0xf]
        %v750 = vld [vmem:[%s636 + $0x298] sm:$0xf]
        %v751 = vld [vmem:[%s636 + $0x2a0] sm:$0xf]
        %v752 = vld [vmem:[%s636 + $0x2a8] sm:$0xf]
        %v753 = vld [vmem:[%s636 + $0x2b0] sm:$0xf]
        %v754 = vld [vmem:[%s636 + $0x2b8] sm:$0xf]
        %v755 = vld [vmem:[%s636 + $0x2c0] sm:$0xf]
        %v756 = vld [vmem:[%s636 + $0x2c8] sm:$0xf]
        %v757 = vld [vmem:[%s636 + $0x2d0] sm:$0xf]
        %v758 = vld [vmem:[%s636 + $0x2d8] sm:$0xf]
        %v759 = vld [vmem:[%s636 + $0x2e0] sm:$0xf]
        %v760 = vld [vmem:[%s636 + $0x2e8] sm:$0xf]
        %v761 = vld [vmem:[%s636 + $0x2f0] sm:$0xf]
        %v762 = vld [vmem:[%s636 + $0x2f8] sm:$0xf]
        %v763 = vld [vmem:[%s636 + $0x300] sm:$0xf]
        %v764 = vld [vmem:[%s636 + $0x308] sm:$0xf]
        %v765 = vld [vmem:[%s636 + $0x310] sm:$0xf]
        %v766 = vld [vmem:[%s636 + $0x318] sm:$0xf]
        %v767 = vld [vmem:[%s636 + $0x320] sm:$0xf]
        %v768 = vld [vmem:[%s636 + $0x328] sm:$0xf]
        %v769 = vld [vmem:[%s636 + $0x330] sm:$0xf]
        %v770 = vld [vmem:[%s636 + $0x338] sm:$0xf]
        %v771 = vld [vmem:[%s636 + $0x340] sm:$0xf]
        %v772 = vld [vmem:[%s636 + $0x348] sm:$0xf]
        %v773 = vld [vmem:[%s636 + $0x350] sm:$0xf]
        %v774 = vld [vmem:[%s636 + $0x358] sm:$0xf]
        %v775 = vld [vmem:[%s636 + $0x360] sm:$0xf]
        %v776 = vld [vmem:[%s636 + $0x368] sm:$0xf]
        %v777 = vld [vmem:[%s636 + $0x370] sm:$0xf]
        %v778 = vld [vmem:[%s636 + $0x378] sm:$0xf]
        %v779 = vld [vmem:[%s636 + $0x380] sm:$0xf]
        %v780 = vld [vmem:[%s636 + $0x388] sm:$0xf]
        %v781 = vld [vmem:[%s636 + $0x390] sm:$0xf]
        %v782 = vld [vmem:[%s636 + $0x398] sm:$0xf]
        %v783 = vld [vmem:[%s636 + $0x4] sm:$0xf]
        %v784 = vld [vmem:[%s636 + $0xc] sm:$0xf]
        %v785 = vld [vmem:[%s636 + $0x14] sm:$0xf]
        %v786 = vld [vmem:[%s636 + $0x1c] sm:$0xf]
        %v787 = vld [vmem:[%s636 + $0x24] sm:$0xf]
        %v788 = vld [vmem:[%s636 + $0x2c] sm:$0xf]
        %v789 = vld [vmem:[%s636 + $0x34] sm:$0xf]
        %v790 = vld [vmem:[%s636 + $0x3c] sm:$0xf]
        %v791 = vld [vmem:[%s636 + $0x44] sm:$0xf]
        %v792 = vld [vmem:[%s636 + $0x4c] sm:$0xf]
        %v793 = vld [vmem:[%s636 + $0x54] sm:$0xf]
        %v794 = vld [vmem:[%s636 + $0x5c] sm:$0xf]
        %v795 = vld [vmem:[%s636 + $0x64] sm:$0xf]
        %v796 = vld [vmem:[%s636 + $0x6c] sm:$0xf]
        %v797 = vld [vmem:[%s636 + $0x74] sm:$0xf]
        %v798 = vld [vmem:[%s636 + $0x7c] sm:$0xf]
        %v799 = vld [vmem:[%s636 + $0x84] sm:$0xf]
        %v800 = vld [vmem:[%s636 + $0x8c] sm:$0xf]
        %v801 = vld [vmem:[%s636 + $0x94] sm:$0xf]
        %v802 = vld [vmem:[%s636 + $0x9c] sm:$0xf]
        %v803 = vld [vmem:[%s636 + $0xa4] sm:$0xf]
        %v804 = vld [vmem:[%s636 + $0xac] sm:$0xf]
        %v805 = vld [vmem:[%s636 + $0xb4] sm:$0xf]
        %v806 = vld [vmem:[%s636 + $0xbc] sm:$0xf]
        %v807 = vld [vmem:[%s636 + $0xc4] sm:$0xf]
        %v808 = vld [vmem:[%s636 + $0xcc] sm:$0xf]
        %v809 = vld [vmem:[%s636 + $0xd4] sm:$0xf]
        %v810 = vld [vmem:[%s636 + $0xdc] sm:$0xf]
        %v811 = vld [vmem:[%s636 + $0xe4] sm:$0xf]
        %v812 = vld [vmem:[%s636 + $0xec] sm:$0xf]
        %v813 = vld [vmem:[%s636 + $0xf4] sm:$0xf]
        %v814 = vld [vmem:[%s636 + $0xfc] sm:$0xf]
        %v815 = vld [vmem:[%s636 + $0x104] sm:$0xf]
        %v816 = vld [vmem:[%s636 + $0x10c] sm:$0xf]
        %v817 = vld [vmem:[%s636 + $0x114] sm:$0xf]
        %v818 = vld [vmem:[%s636 + $0x11c] sm:$0xf]
        %v819 = vld [vmem:[%s636 + $0x124] sm:$0xf]
        %v820 = vld [vmem:[%s636 + $0x12c] sm:$0xf]
        %v821 = vld [vmem:[%s636 + $0x134] sm:$0xf]
        %v822 = vld [vmem:[%s636 + $0x13c] sm:$0xf]
        %v823 = vld [vmem:[%s636 + $0x144] sm:$0xf]
        %v824 = vld [vmem:[%s636 + $0x14c] sm:$0xf]
        %v825 = vld [vmem:[%s636 + $0x154] sm:$0xf]
        %v826 = vld [vmem:[%s636 + $0x15c] sm:$0xf]
        %v827 = vld [vmem:[%s636 + $0x164] sm:$0xf]
        %v828 = vld [vmem:[%s636 + $0x16c] sm:$0xf]
        %v829 = vld [vmem:[%s636 + $0x174] sm:$0xf]
        %v830 = vld [vmem:[%s636 + $0x17c] sm:$0xf]
        %v831 = vld [vmem:[%s636 + $0x184] sm:$0xf]
        %v832 = vld [vmem:[%s636 + $0x18c] sm:$0xf]
        %v833 = vld [vmem:[%s636 + $0x194] sm:$0xf]
        %v834 = vld [vmem:[%s636 + $0x19c] sm:$0xf]
        %v835 = vld [vmem:[%s636 + $0x1a4] sm:$0xf]
        %v836 = vld [vmem:[%s636 + $0x1ac] sm:$0xf]
        %v837 = vld [vmem:[%s636 + $0x1b4] sm:$0xf]
        %v838 = vld [vmem:[%s636 + $0x1bc] sm:$0xf]
        %v839 = vld [vmem:[%s636 + $0x1c4] sm:$0xf]
        %v840 = vld [vmem:[%s636 + $0x1cc] sm:$0xf]
        %v841 = vld [vmem:[%s636 + $0x1d4] sm:$0xf]
        %v842 = vld [vmem:[%s636 + $0x1dc] sm:$0xf]
        %v843 = vld [vmem:[%s636 + $0x1e4] sm:$0xf]
        %v844 = vld [vmem:[%s636 + $0x1ec] sm:$0xf]
        %v845 = vld [vmem:[%s636 + $0x1f4] sm:$0xf]
        %v846 = vld [vmem:[%s636 + $0x1fc] sm:$0xf]
        %v847 = vld [vmem:[%s636 + $0x204] sm:$0xf]
        %v848 = vld [vmem:[%s636 + $0x20c] sm:$0xf]
        %v849 = vld [vmem:[%s636 + $0x214] sm:$0xf]
        %v850 = vld [vmem:[%s636 + $0x21c] sm:$0xf]
        %v851 = vld [vmem:[%s636 + $0x224] sm:$0xf]
        %v852 = vld [vmem:[%s636 + $0x22c] sm:$0xf]
        %v853 = vld [vmem:[%s636 + $0x234] sm:$0xf]
        %v854 = vld [vmem:[%s636 + $0x23c] sm:$0xf]
        %v855 = vld [vmem:[%s636 + $0x244] sm:$0xf]
        %v856 = vld [vmem:[%s636 + $0x24c] sm:$0xf]
        %v857 = vld [vmem:[%s636 + $0x254] sm:$0xf]
        %v858 = vld [vmem:[%s636 + $0x25c] sm:$0xf]
        %v859 = vld [vmem:[%s636 + $0x264] sm:$0xf]
        %v860 = vld [vmem:[%s636 + $0x26c] sm:$0xf]
        %v861 = vld [vmem:[%s636 + $0x274] sm:$0xf]
        %v862 = vld [vmem:[%s636 + $0x27c] sm:$0xf]
        %v863 = vld [vmem:[%s636 + $0x284] sm:$0xf]
        %v864 = vld [vmem:[%s636 + $0x28c] sm:$0xf]
        %v865 = vld [vmem:[%s636 + $0x294] sm:$0xf]
        %v866 = vld [vmem:[%s636 + $0x29c] sm:$0xf]
        %v867 = vld [vmem:[%s636 + $0x2a4] sm:$0xf]
        %v868 = vld [vmem:[%s636 + $0x2ac] sm:$0xf]
        %v869 = vld [vmem:[%s636 + $0x2b4] sm:$0xf]
        %v870 = vld [vmem:[%s636 + $0x2bc] sm:$0xf]
        %v871 = vld [vmem:[%s636 + $0x2c4] sm:$0xf]
        %v872 = vld [vmem:[%s636 + $0x2cc] sm:$0xf]
        %v873 = vld [vmem:[%s636 + $0x2d4] sm:$0xf]
        %v874 = vld [vmem:[%s636 + $0x2dc] sm:$0xf]
        %v875 = vld [vmem:[%s636 + $0x2e4] sm:$0xf]
        %v876 = vld [vmem:[%s636 + $0x2ec] sm:$0xf]
        %v877 = vld [vmem:[%s636 + $0x2f4] sm:$0xf]
        %v878 = vld [vmem:[%s636 + $0x2fc] sm:$0xf]
        %v879 = vld [vmem:[%s636 + $0x304] sm:$0xf]
        %v880 = vld [vmem:[%s636 + $0x30c] sm:$0xf]
        %v881 = vld [vmem:[%s636 + $0x314] sm:$0xf]
        %v882 = vld [vmem:[%s636 + $0x31c] sm:$0xf]
        %v883 = vld [vmem:[%s636 + $0x324] sm:$0xf]
        %v884 = vld [vmem:[%s636 + $0x32c] sm:$0xf]
        %v885 = vld [vmem:[%s636 + $0x334] sm:$0xf]
        %v886 = vld [vmem:[%s636 + $0x33c] sm:$0xf]
        %v887 = vld [vmem:[%s636 + $0x344] sm:$0xf]
        %v888 = vld [vmem:[%s636 + $0x34c] sm:$0xf]
        %v889 = vld [vmem:[%s636 + $0x354] sm:$0xf]
        %v890 = vld [vmem:[%s636 + $0x35c] sm:$0xf]
        %v891 = vld [vmem:[%s636 + $0x364] sm:$0xf]
        %v892 = vld [vmem:[%s636 + $0x36c] sm:$0xf]
        %v893 = vld [vmem:[%s636 + $0x374] sm:$0xf]
        %v894 = vld [vmem:[%s636 + $0x37c] sm:$0xf]
        %v895 = vld [vmem:[%s636 + $0x384] sm:$0xf]
        %v896 = vld [vmem:[%s636 + $0x38c] sm:$0xf]
        %v897 = vld [vmem:[%s636 + $0x394] sm:$0xf]
        %v898 = vld [vmem:[%s636 + $0x39c] sm:$0xf]
        %v899 = vadd.f32 %v667, %v783
        %v900 = vadd.f32 %v668, %v784
        %v901 = vadd.f32 %v669, %v785
        %v902 = vadd.f32 %v670, %v786
        %v903 = vadd.f32 %v671, %v787
        %v904 = vadd.f32 %v672, %v788
        %v905 = vadd.f32 %v673, %v789
        %v906 = vadd.f32 %v674, %v790
        %v907 = vadd.f32 %v675, %v791
        %v908 = vadd.f32 %v676, %v792
        %v909 = vadd.f32 %v677, %v793
        %v910 = vadd.f32 %v678, %v794
        %v911 = vadd.f32 %v679, %v795
        %v912 = vadd.f32 %v680, %v796
        %v913 = vadd.f32 %v681, %v797
        %v914 = vadd.f32 %v682, %v798
        %v915 = vadd.f32 %v683, %v799
        %v916 = vadd.f32 %v684, %v800
        %v917 = vadd.f32 %v685, %v801
        %v918 = vadd.f32 %v686, %v802
        %v919 = vadd.f32 %v687, %v803
        %v920 = vadd.f32 %v688, %v804
        %v921 = vadd.f32 %v689, %v805
        %v922 = vadd.f32 %v690, %v806
        %v923 = vadd.f32 %v691, %v807
        %v924 = vadd.f32 %v692, %v808
        %v925 = vadd.f32 %v693, %v809
        %v926 = vadd.f32 %v694, %v810
        %v927 = vadd.f32 %v695, %v811
        %v928 = vadd.f32 %v696, %v812
        %v929 = vadd.f32 %v697, %v813
        %v930 = vadd.f32 %v698, %v814
        %v931 = vadd.f32 %v699, %v815
        %v932 = vadd.f32 %v700, %v816
        %v933 = vadd.f32 %v701, %v817
        %v934 = vadd.f32 %v702, %v818
        %v935 = vadd.f32 %v703, %v819
        %v936 = vadd.f32 %v704, %v820
        %v937 = vadd.f32 %v705, %v821
        %v938 = vadd.f32 %v706, %v822
        %v939 = vadd.f32 %v707, %v823
        %v940 = vadd.f32 %v708, %v824
        %v941 = vadd.f32 %v709, %v825
        %v942 = vadd.f32 %v710, %v826
        %v943 = vadd.f32 %v711, %v827
        %v944 = vadd.f32 %v712, %v828
        %v945 = vadd.f32 %v713, %v829
        %v946 = vadd.f32 %v714, %v830
        %v947 = vadd.f32 %v715, %v831
        %v948 = vadd.f32 %v716, %v832
        %v949 = vadd.f32 %v717, %v833
        %v950 = vadd.f32 %v718, %v834
        %v951 = vadd.f32 %v719, %v835
        %v952 = vadd.f32 %v720, %v836
        %v953 = vadd.f32 %v721, %v837
        %v954 = vadd.f32 %v722, %v838
        %v955 = vadd.f32 %v723, %v839
        %v956 = vadd.f32 %v724, %v840
        %v957 = vadd.f32 %v725, %v841
        %v958 = vadd.f32 %v726, %v842
        %v959 = vadd.f32 %v727, %v843
        %v960 = vadd.f32 %v728, %v844
        %v961 = vadd.f32 %v729, %v845
        %v962 = vadd.f32 %v730, %v846
        %v963 = vadd.f32 %v731, %v847
        %v964 = vadd.f32 %v732, %v848
        %v965 = vadd.f32 %v733, %v849
        %v966 = vadd.f32 %v734, %v850
        %v967 = vadd.f32 %v735, %v851
        %v968 = vadd.f32 %v736, %v852
        %v969 = vadd.f32 %v737, %v853
        %v970 = vadd.f32 %v738, %v854
        %v971 = vadd.f32 %v739, %v855
        %v972 = vadd.f32 %v740, %v856
        %v973 = vadd.f32 %v741, %v857
        %v974 = vadd.f32 %v742, %v858
        %v975 = vadd.f32 %v743, %v859
        %v976 = vadd.f32 %v744, %v860
        %v977 = vadd.f32 %v745, %v861
        %v978 = vadd.f32 %v746, %v862
        %v979 = vadd.f32 %v747, %v863
        %v980 = vadd.f32 %v748, %v864
        %v981 = vadd.f32 %v749, %v865
        %v982 = vadd.f32 %v750, %v866
        %v983 = vadd.f32 %v751, %v867
        %v984 = vadd.f32 %v752, %v868
        %v985 = vadd.f32 %v753, %v869
        %v986 = vadd.f32 %v754, %v870
        %v987 = vadd.f32 %v755, %v871
        %v988 = vadd.f32 %v756, %v872
        %v989 = vadd.f32 %v757, %v873
        %v990 = vadd.f32 %v758, %v874
        %v991 = vadd.f32 %v759, %v875
        %v992 = vadd.f32 %v760, %v876
        %v993 = vadd.f32 %v761, %v877
        %v994 = vadd.f32 %v762, %v878
        %v995 = vadd.f32 %v763, %v879
        %v996 = vadd.f32 %v764, %v880
        %v997 = vadd.f32 %v765, %v881
        %v998 = vadd.f32 %v766, %v882
        %v999 = vadd.f32 %v767, %v883
        %v1000 = vadd.f32 %v768, %v884
        %v1001 = vadd.f32 %v769, %v885
        %v1002 = vadd.f32 %v770, %v886
        %v1003 = vadd.f32 %v771, %v887
        %v1004 = vadd.f32 %v772, %v888
        %v1005 = vadd.f32 %v773, %v889
        %v1006 = vadd.f32 %v774, %v890
        %v1007 = vadd.f32 %v775, %v891
        %v1008 = vadd.f32 %v776, %v892
        %v1009 = vadd.f32 %v777, %v893
        %v1010 = vadd.f32 %v778, %v894
        %v1011 = vadd.f32 %v779, %v895
        %v1012 = vadd.f32 %v780, %v896
        %v1013 = vadd.f32 %v781, %v897
        %v1014 = vadd.f32 %v782, %v898
        %v1015 = vld [vmem:[%s1] sm:$0xff]
        %v1016 = vld [vmem:[%s1 + $0x8] sm:$0xff]
        %v1133 = vcombine.low %v899, %v900
        %v1134 = vcombine.low %v901, %v902
        %v1135 = vcombine.low %v903, %v904
        %v1136 = vcombine.low %v905, %v906
        %v1137 = vcombine.low %v907, %v908
        %v1138 = vcombine.low %v909, %v910
        %v1139 = vcombine.low %v911, %v912
        %v1140 = vcombine.low %v913, %v914
        %v1141 = vcombine.low %v915, %v916
        %v1142 = vcombine.low %v917, %v918
        %v1143 = vcombine.low %v919, %v920
        %v1144 = vcombine.low %v921, %v922
        %v1145 = vcombine.low %v923, %v924
        %v1146 = vcombine.low %v925, %v926
        %v1147 = vcombine.low %v927, %v928
        %v1148 = vcombine.low %v929, %v930
        %v1149 = vcombine.low %v931, %v932
        %v1150 = vcombine.low %v933, %v934
        %v1151 = vcombine.low %v935, %v936
        %v1152 = vcombine.low %v937, %v938
        %v1153 = vcombine.low %v939, %v940
        %v1154 = vcombine.low %v941, %v942
        %v1155 = vcombine.low %v943, %v944
        %v1156 = vcombine.low %v945, %v946
        %v1157 = vcombine.low %v947, %v948
        %v1158 = vcombine.low %v949, %v950
        %v1159 = vcombine.low %v951, %v952
        %v1160 = vcombine.low %v953, %v954
        %v1161 = vcombine.low %v955, %v956
        %v1162 = vcombine.low %v957, %v958
        %v1163 = vcombine.low %v959, %v960
        %v1164 = vcombine.low %v961, %v962
        %v1165 = vcombine.low %v963, %v964
        %v1166 = vcombine.low %v965, %v966
        %v1167 = vcombine.low %v967, %v968
        %v1168 = vcombine.low %v969, %v970
        %v1169 = vcombine.low %v971, %v972
        %v1170 = vcombine.low %v973, %v974
        %v1171 = vcombine.low %v975, %v976
        %v1172 = vcombine.low %v977, %v978
        %v1173 = vcombine.low %v979, %v980
        %v1174 = vcombine.low %v981, %v982
        %v1175 = vcombine.low %v983, %v984
        %v1176 = vcombine.low %v985, %v986
        %v1177 = vcombine.low %v987, %v988
        %v1178 = vcombine.low %v989, %v990
        %v1179 = vcombine.low %v991, %v992
        %v1180 = vcombine.low %v993, %v994
        %v1181 = vcombine.low %v995, %v996
        %v1182 = vcombine.low %v997, %v998
        %v1183 = vcombine.low %v999, %v1000
        %v1184 = vcombine.low %v1001, %v1002
        %v1185 = vcombine.low %v1003, %v1004
        %v1186 = vcombine.low %v1005, %v1006
        %v1187 = vcombine.low %v1007, %v1008
        %v1188 = vcombine.low %v1009, %v1010
        %v1189 = vcombine.low %v1011, %v1012
        %v1190 = vcombine.low %v1013, %v1014
        %vm1191 = vcmask 130048
        %v1192 = vsel %vm1191, %v1133, 0
        %v1194 = vsel %vm1191, %v1134, 0
        %v1196 = vsel %vm1191, %v1135, 0
        %v1198 = vsel %vm1191, %v1136, 0
        %v1200 = vsel %vm1191, %v1137, 0
        %v1202 = vsel %vm1191, %v1138, 0
        %v1204 = vsel %vm1191, %v1139, 0
        %v1206 = vsel %vm1191, %v1140, 0
        %v1208 = vsel %vm1191, %v1141, 0
        %v1210 = vsel %vm1191, %v1142, 0
        %v1212 = vsel %vm1191, %v1143, 0
        %v1214 = vsel %vm1191, %v1144, 0
        %v1216 = vsel %vm1191, %v1145, 0
        %v1218 = vsel %vm1191, %v1146, 0
        %v1220 = vsel %vm1191, %v1147, 0
        %v1222 = vsel %vm1191, %v1148, 0
        %v1224 = vsel %vm1191, %v1149, 0
        %v1226 = vsel %vm1191, %v1150, 0
        %v1228 = vsel %vm1191, %v1151, 0
        %v1230 = vsel %vm1191, %v1152, 0
        %v1232 = vsel %vm1191, %v1153, 0
        %v1234 = vsel %vm1191, %v1154, 0
        %v1236 = vsel %vm1191, %v1155, 0
        %v1238 = vsel %vm1191, %v1156, 0
        %v1240 = vsel %vm1191, %v1157, 0
        %v1242 = vsel %vm1191, %v1158, 0
        %v1244 = vsel %vm1191, %v1159, 0
        %v1246 = vsel %vm1191, %v1160, 0
        %v1248 = vsel %vm1191, %v1161, 0
        %v1250 = vsel %vm1191, %v1162, 0
        %v1252 = vsel %vm1191, %v1163, 0
        %v1254 = vsel %vm1191, %v1164, 0
        %v1256 = vsel %vm1191, %v1165, 0
        %v1258 = vsel %vm1191, %v1166, 0
        %v1260 = vsel %vm1191, %v1167, 0
        %v1262 = vsel %vm1191, %v1168, 0
        %v1264 = vsel %vm1191, %v1169, 0
        %v1266 = vsel %vm1191, %v1170, 0
        %v1268 = vsel %vm1191, %v1171, 0
        %v1270 = vsel %vm1191, %v1172, 0
        %v1272 = vsel %vm1191, %v1173, 0
        %v1274 = vsel %vm1191, %v1174, 0
        %v1276 = vsel %vm1191, %v1175, 0
        %v1278 = vsel %vm1191, %v1176, 0
        %v1280 = vsel %vm1191, %v1177, 0
        %v1282 = vsel %vm1191, %v1178, 0
        %v1284 = vsel %vm1191, %v1179, 0
        %v1286 = vsel %vm1191, %v1180, 0
        %v1288 = vsel %vm1191, %v1181, 0
        %v1290 = vsel %vm1191, %v1182, 0
        %v1292 = vsel %vm1191, %v1183, 0
        %v1294 = vsel %vm1191, %v1184, 0
        %v1296 = vsel %vm1191, %v1185, 0
        %v1298 = vsel %vm1191, %v1186, 0
        %v1300 = vsel %vm1191, %v1187, 0
        %v1302 = vsel %vm1191, %v1188, 0
        %v1304 = vsel %vm1191, %v1189, 0
        %v1306 = vsel %vm1191, %v1190, 0
        %1308 = vmatprep.subr.mxu0 0.0
        %1309 = vmatpush1.msra.mxu0 0.0
        %1310 = vmatprep.subr.mxu0 0.0
        %1311 = vmatpush1.msra.mxu0 0.0
        %1312 = vmatprep.subr.mxu0 0.0
        %1313 = vmatpush1.msra.mxu0 0.0
        %1314 = vmatprep.subr.mxu0 0.0
        %1315 = vmatpush1.msra.mxu0 0.0
        %1316 = vmatprep.subr.mxu0 0.0
        %1317 = vmatpush1.msra.mxu0 0.0
        %1318 = vmatprep.subr.mxu0 0.0
        %1319 = vmatpush1.msra.mxu0 0.0
        %1320 = vmatprep.subr.mxu0 0.0
        %1321 = vmatpush1.msra.mxu0 0.0
        %1322 = vmatprep.subr.mxu0 0.0
        %1323 = vmatpush1.msra.mxu0 0.0
        %1324 = vmatprep.subr.mxu0 0.0
        %1325 = vmatpush1.msra.mxu0 0.0
        %1326 = vmatprep.subr.mxu0 0.0
        %1327 = vmatpush1.msra.mxu0 0.0
        %1328 = vmatprep.subr.mxu0 0.0
        %1329 = vmatpush1.msra.mxu0 0.0
        %1330 = vmatprep.subr.mxu0 0.0
        %1331 = vmatpush1.msra.mxu0 0.0
        %1332 = vmatprep.subr.mxu0 0.0
        %1333 = vmatpush1.msra.mxu0 0.0
        %1334 = vmatprep.subr.mxu0 0.0
        %1335 = vmatpush1.msra.mxu0 0.0
        %1336 = vmatprep.subr.mxu0 0.0
        %1337 = vmatpush1.msra.mxu0 %v1016
        %1338 = vmatprep.subr.mxu0 0.0
        %1339 = vmatpush1.msra.mxu0 %v1015
        %1340 = vmatprep.subr.mxu0 0.0
        %1341 = vmatpush2.msra.mxu0 0.0
        %1342 = vmatprep.subr.mxu0 0.0
        %1343 = vmatpush2.msra.mxu0 0.0
        %1344 = vmatprep.subr.mxu0 0.0
        %1345 = vmatpush2.msra.mxu0 0.0
        %1346 = vmatprep.subr.mxu0 0.0
        %1347 = vmatpush2.msra.mxu0 0.0
        %1348 = vmatprep.subr.mxu0 0.0
        %1349 = vmatpush2.msra.mxu0 0.0
        %1350 = vmatprep.subr.mxu0 0.0
        %1351 = vmatpush2.msra.mxu0 0.0
        %1352 = vmatprep.subr.mxu0 0.0
        %1353 = vmatpush2.msra.mxu0 0.0
        %1354 = vmatprep.subr.mxu0 0.0
        %1355 = vmatpush2.msra.mxu0 0.0
        %1356 = vmatprep.subr.mxu0 0.0
        %1357 = vmatpush2.msra.mxu0 0.0
        %1358 = vmatprep.subr.mxu0 0.0
        %1359 = vmatpush2.msra.mxu0 0.0
        %1360 = vmatprep.subr.mxu0 0.0
        %1361 = vmatpush2.msra.mxu0 0.0
        %1362 = vmatprep.subr.mxu0 0.0
        %1363 = vmatpush2.msra.mxu0 0.0
        %1364 = vmatprep.subr.mxu0 0.0
        %1365 = vmatpush2.msra.mxu0 0.0
        %1366 = vmatprep.subr.mxu0 0.0
        %1367 = vmatpush2.msra.mxu0 0.0
        %1368 = vmatprep.subr.mxu0 0.0
        %1369 = vmatpush2.msra.mxu0 0.0
        %1370 = vmatprep.subr.mxu0 0.0
        %1371 = vmatpush2.msra.mxu0 0.0
        %1372 = vmatprep.mubr.f32.mxu0 0.0
        %1373 = vmatmul.mubr.f32.gmra.mxu0 %v1192
        %v1374 = vpop.f32.mrf.mxu0
        %v1375 = vadd.f32 0.0, %v1374
        %v1376 = vpop.f32.mrf.mxu0
        %1377 = vmatprep.mubr.f32.mxu0 0.0
        %1378 = vmatmul.mubr.f32.gmra.mxu0 %v1194
        %v1379 = vpop.f32.mrf.mxu0
        %v1380 = vadd.f32 0.0, %v1379
        %v1381 = vpop.f32.mrf.mxu0
        %1382 = vmatprep.mubr.f32.mxu0 0.0
        %1383 = vmatmul.mubr.f32.gmra.mxu0 %v1196
        %v1384 = vpop.f32.mrf.mxu0
        %v1385 = vadd.f32 0.0, %v1384
        %v1386 = vpop.f32.mrf.mxu0
        %1387 = vmatprep.mubr.f32.mxu0 0.0
        %1388 = vmatmul.mubr.f32.gmra.mxu0 %v1198
        %v1389 = vpop.f32.mrf.mxu0
        %v1390 = vadd.f32 0.0, %v1389
        %v1391 = vpop.f32.mrf.mxu0
        %1392 = vmatprep.mubr.f32.mxu0 0.0
        %1393 = vmatmul.mubr.f32.gmra.mxu0 %v1200
        %v1394 = vpop.f32.mrf.mxu0
        %v1395 = vadd.f32 0.0, %v1394
        %v1396 = vpop.f32.mrf.mxu0
        %1397 = vmatprep.mubr.f32.mxu0 0.0
        %1398 = vmatmul.mubr.f32.gmra.mxu0 %v1202
        %v1399 = vpop.f32.mrf.mxu0
        %v1400 = vadd.f32 0.0, %v1399
        %v1401 = vpop.f32.mrf.mxu0
        %1402 = vmatprep.mubr.f32.mxu0 0.0
        %1403 = vmatmul.mubr.f32.gmra.mxu0 %v1204
        %v1404 = vpop.f32.mrf.mxu0
        %v1405 = vadd.f32 0.0, %v1404
        %v1406 = vpop.f32.mrf.mxu0
        %1407 = vmatprep.mubr.f32.mxu0 0.0
        %1408 = vmatmul.mubr.f32.gmra.mxu0 %v1206
        %v1409 = vpop.f32.mrf.mxu0
        %v1410 = vadd.f32 0.0, %v1409
        %v1411 = vpop.f32.mrf.mxu0
        %1412 = vmatprep.mubr.f32.mxu0 0.0
        %1413 = vmatmul.mubr.f32.gmra.mxu0 %v1208
        %v1414 = vpop.f32.mrf.mxu0
        %v1415 = vadd.f32 0.0, %v1414
        %v1416 = vpop.f32.mrf.mxu0
        %1417 = vmatprep.mubr.f32.mxu0 0.0
        %1418 = vmatmul.mubr.f32.gmra.mxu0 %v1210
        %v1419 = vpop.f32.mrf.mxu0
        %v1420 = vadd.f32 0.0, %v1419
        %v1421 = vpop.f32.mrf.mxu0
        %1422 = vmatprep.mubr.f32.mxu0 0.0
        %1423 = vmatmul.mubr.f32.gmra.mxu0 %v1212
        %v1424 = vpop.f32.mrf.mxu0
        %v1425 = vadd.f32 0.0, %v1424
        %v1426 = vpop.f32.mrf.mxu0
        %1427 = vmatprep.mubr.f32.mxu0 0.0
        %1428 = vmatmul.mubr.f32.gmra.mxu0 %v1214
        %v1429 = vpop.f32.mrf.mxu0
        %v1430 = vadd.f32 0.0, %v1429
        %v1431 = vpop.f32.mrf.mxu0
        %1432 = vmatprep.mubr.f32.mxu0 0.0
        %1433 = vmatmul.mubr.f32.gmra.mxu0 %v1216
        %v1434 = vpop.f32.mrf.mxu0
        %v1435 = vadd.f32 0.0, %v1434
        %v1436 = vpop.f32.mrf.mxu0
        %1437 = vmatprep.mubr.f32.mxu0 0.0
        %1438 = vmatmul.mubr.f32.gmra.mxu0 %v1218
        %v1439 = vpop.f32.mrf.mxu0
        %v1440 = vadd.f32 0.0, %v1439
        %v1441 = vpop.f32.mrf.mxu0
        %1442 = vmatprep.mubr.f32.mxu0 0.0
        %1443 = vmatmul.mubr.f32.gmra.mxu0 %v1220
        %v1444 = vpop.f32.mrf.mxu0
        %v1445 = vadd.f32 0.0, %v1444
        %v1446 = vpop.f32.mrf.mxu0
        %1447 = vmatprep.mubr.f32.mxu0 0.0
        %1448 = vmatmul.mubr.f32.gmra.mxu0 %v1222
        %v1449 = vpop.f32.mrf.mxu0
        %v1450 = vadd.f32 0.0, %v1449
        %v1451 = vpop.f32.mrf.mxu0
        %1452 = vmatprep.mubr.f32.mxu0 0.0
        %1453 = vmatmul.mubr.f32.gmra.mxu0 %v1224
        %v1454 = vpop.f32.mrf.mxu0
        %v1455 = vadd.f32 0.0, %v1454
        %v1456 = vpop.f32.mrf.mxu0
        %1457 = vmatprep.mubr.f32.mxu0 0.0
        %1458 = vmatmul.mubr.f32.gmra.mxu0 %v1226
        %v1459 = vpop.f32.mrf.mxu0
        %v1460 = vadd.f32 0.0, %v1459
        %v1461 = vpop.f32.mrf.mxu0
        %1462 = vmatprep.mubr.f32.mxu0 0.0
        %1463 = vmatmul.mubr.f32.gmra.mxu0 %v1228
        %v1464 = vpop.f32.mrf.mxu0
        %v1465 = vadd.f32 0.0, %v1464
        %v1466 = vpop.f32.mrf.mxu0
        %1467 = vmatprep.mubr.f32.mxu0 0.0
        %1468 = vmatmul.mubr.f32.gmra.mxu0 %v1230
        %v1469 = vpop.f32.mrf.mxu0
        %v1470 = vadd.f32 0.0, %v1469
        %v1471 = vpop.f32.mrf.mxu0
        %1472 = vmatprep.mubr.f32.mxu0 0.0
        %1473 = vmatmul.mubr.f32.gmra.mxu0 %v1232
        %v1474 = vpop.f32.mrf.mxu0
        %v1475 = vadd.f32 0.0, %v1474
        %v1476 = vpop.f32.mrf.mxu0
        %1477 = vmatprep.mubr.f32.mxu0 0.0
        %1478 = vmatmul.mubr.f32.gmra.mxu0 %v1234
        %v1479 = vpop.f32.mrf.mxu0
        %v1480 = vadd.f32 0.0, %v1479
        %v1481 = vpop.f32.mrf.mxu0
        %1482 = vmatprep.mubr.f32.mxu0 0.0
        %1483 = vmatmul.mubr.f32.gmra.mxu0 %v1236
        %v1484 = vpop.f32.mrf.mxu0
        %v1485 = vadd.f32 0.0, %v1484
        %v1486 = vpop.f32.mrf.mxu0
        %1487 = vmatprep.mubr.f32.mxu0 0.0
        %1488 = vmatmul.mubr.f32.gmra.mxu0 %v1238
        %v1489 = vpop.f32.mrf.mxu0
        %v1490 = vadd.f32 0.0, %v1489
        %v1491 = vpop.f32.mrf.mxu0
        %1492 = vmatprep.mubr.f32.mxu0 0.0
        %1493 = vmatmul.mubr.f32.gmra.mxu0 %v1240
        %v1494 = vpop.f32.mrf.mxu0
        %v1495 = vadd.f32 0.0, %v1494
        %v1496 = vpop.f32.mrf.mxu0
        %1497 = vmatprep.mubr.f32.mxu0 0.0
        %1498 = vmatmul.mubr.f32.gmra.mxu0 %v1242
        %v1499 = vpop.f32.mrf.mxu0
        %v1500 = vadd.f32 0.0, %v1499
        %v1501 = vpop.f32.mrf.mxu0
        %1502 = vmatprep.mubr.f32.mxu0 0.0
        %1503 = vmatmul.mubr.f32.gmra.mxu0 %v1244
        %v1504 = vpop.f32.mrf.mxu0
        %v1505 = vadd.f32 0.0, %v1504
        %v1506 = vpop.f32.mrf.mxu0
        %1507 = vmatprep.mubr.f32.mxu0 0.0
        %1508 = vmatmul.mubr.f32.gmra.mxu0 %v1246
        %v1509 = vpop.f32.mrf.mxu0
        %v1510 = vadd.f32 0.0, %v1509
        %v1511 = vpop.f32.mrf.mxu0
        %1512 = vmatprep.mubr.f32.mxu0 0.0
        %1513 = vmatmul.mubr.f32.gmra.mxu0 %v1248
        %v1514 = vpop.f32.mrf.mxu0
        %v1515 = vadd.f32 0.0, %v1514
        %v1516 = vpop.f32.mrf.mxu0
        %1517 = vmatprep.mubr.f32.mxu0 0.0
        %1518 = vmatmul.mubr.f32.gmra.mxu0 %v1250
        %v1519 = vpop.f32.mrf.mxu0
        %v1520 = vadd.f32 0.0, %v1519
        %v1521 = vpop.f32.mrf.mxu0
        %1522 = vmatprep.mubr.f32.mxu0 0.0
        %1523 = vmatmul.mubr.f32.gmra.mxu0 %v1252
        %v1524 = vpop.f32.mrf.mxu0
        %v1525 = vadd.f32 0.0, %v1524
        %v1526 = vpop.f32.mrf.mxu0
        %1527 = vmatprep.mubr.f32.mxu0 0.0
        %1528 = vmatmul.mubr.f32.gmra.mxu0 %v1254
        %v1529 = vpop.f32.mrf.mxu0
        %v1530 = vadd.f32 0.0, %v1529
        %v1531 = vpop.f32.mrf.mxu0
        %1532 = vmatprep.mubr.f32.mxu0 0.0
        %1533 = vmatmul.mubr.f32.gmra.mxu0 %v1256
        %v1534 = vpop.f32.mrf.mxu0
        %v1535 = vadd.f32 0.0, %v1534
        %v1536 = vpop.f32.mrf.mxu0
        %1537 = vmatprep.mubr.f32.mxu0 0.0
        %1538 = vmatmul.mubr.f32.gmra.mxu0 %v1258
        %v1539 = vpop.f32.mrf.mxu0
        %v1540 = vadd.f32 0.0, %v1539
        %v1541 = vpop.f32.mrf.mxu0
        %1542 = vmatprep.mubr.f32.mxu0 0.0
        %1543 = vmatmul.mubr.f32.gmra.mxu0 %v1260
        %v1544 = vpop.f32.mrf.mxu0
        %v1545 = vadd.f32 0.0, %v1544
        %v1546 = vpop.f32.mrf.mxu0
        %1547 = vmatprep.mubr.f32.mxu0 0.0
        %1548 = vmatmul.mubr.f32.gmra.mxu0 %v1262
        %v1549 = vpop.f32.mrf.mxu0
        %v1550 = vadd.f32 0.0, %v1549
        %v1551 = vpop.f32.mrf.mxu0
        %1552 = vmatprep.mubr.f32.mxu0 0.0
        %1553 = vmatmul.mubr.f32.gmra.mxu0 %v1264
        %v1554 = vpop.f32.mrf.mxu0
        %v1555 = vadd.f32 0.0, %v1554
        %v1556 = vpop.f32.mrf.mxu0
        %1557 = vmatprep.mubr.f32.mxu0 0.0
        %1558 = vmatmul.mubr.f32.gmra.mxu0 %v1266
        %v1559 = vpop.f32.mrf.mxu0
        %v1560 = vadd.f32 0.0, %v1559
        %v1561 = vpop.f32.mrf.mxu0
        %1562 = vmatprep.mubr.f32.mxu0 0.0
        %1563 = vmatmul.mubr.f32.gmra.mxu0 %v1268
        %v1564 = vpop.f32.mrf.mxu0
        %v1565 = vadd.f32 0.0, %v1564
        %v1566 = vpop.f32.mrf.mxu0
        %1567 = vmatprep.mubr.f32.mxu0 0.0
        %1568 = vmatmul.mubr.f32.gmra.mxu0 %v1270
        %v1569 = vpop.f32.mrf.mxu0
        %v1570 = vadd.f32 0.0, %v1569
        %v1571 = vpop.f32.mrf.mxu0
        %1572 = vmatprep.mubr.f32.mxu0 0.0
        %1573 = vmatmul.mubr.f32.gmra.mxu0 %v1272
        %v1574 = vpop.f32.mrf.mxu0
        %v1575 = vadd.f32 0.0, %v1574
        %v1576 = vpop.f32.mrf.mxu0
        %1577 = vmatprep.mubr.f32.mxu0 0.0
        %1578 = vmatmul.mubr.f32.gmra.mxu0 %v1274
        %v1579 = vpop.f32.mrf.mxu0
        %v1580 = vadd.f32 0.0, %v1579
        %v1581 = vpop.f32.mrf.mxu0
        %1582 = vmatprep.mubr.f32.mxu0 0.0
        %1583 = vmatmul.mubr.f32.gmra.mxu0 %v1276
        %v1584 = vpop.f32.mrf.mxu0
        %v1585 = vadd.f32 0.0, %v1584
        %v1586 = vpop.f32.mrf.mxu0
        %1587 = vmatprep.mubr.f32.mxu0 0.0
        %1588 = vmatmul.mubr.f32.gmra.mxu0 %v1278
        %v1589 = vpop.f32.mrf.mxu0
        %v1590 = vadd.f32 0.0, %v1589
        %v1591 = vpop.f32.mrf.mxu0
        %1592 = vmatprep.mubr.f32.mxu0 0.0
        %1593 = vmatmul.mubr.f32.gmra.mxu0 %v1280
        %v1594 = vpop.f32.mrf.mxu0
        %v1595 = vadd.f32 0.0, %v1594
        %v1596 = vpop.f32.mrf.mxu0
        %1597 = vmatprep.mubr.f32.mxu0 0.0
        %1598 = vmatmul.mubr.f32.gmra.mxu0 %v1282
        %v1599 = vpop.f32.mrf.mxu0
        %v1600 = vadd.f32 0.0, %v1599
        %v1601 = vpop.f32.mrf.mxu0
        %1602 = vmatprep.mubr.f32.mxu0 0.0
        %1603 = vmatmul.mubr.f32.gmra.mxu0 %v1284
        %v1604 = vpop.f32.mrf.mxu0
        %v1605 = vadd.f32 0.0, %v1604
        %v1606 = vpop.f32.mrf.mxu0
        %1607 = vmatprep.mubr.f32.mxu0 0.0
        %1608 = vmatmul.mubr.f32.gmra.mxu0 %v1286
        %v1609 = vpop.f32.mrf.mxu0
        %v1610 = vadd.f32 0.0, %v1609
        %v1611 = vpop.f32.mrf.mxu0
        %1612 = vmatprep.mubr.f32.mxu0 0.0
        %1613 = vmatmul.mubr.f32.gmra.mxu0 %v1288
        %v1614 = vpop.f32.mrf.mxu0
        %v1615 = vadd.f32 0.0, %v1614
        %v1616 = vpop.f32.mrf.mxu0
        %1617 = vmatprep.mubr.f32.mxu0 0.0
        %1618 = vmatmul.mubr.f32.gmra.mxu0 %v1290
        %v1619 = vpop.f32.mrf.mxu0
        %v1620 = vadd.f32 0.0, %v1619
        %v1621 = vpop.f32.mrf.mxu0
        %1622 = vmatprep.mubr.f32.mxu0 0.0
        %1623 = vmatmul.mubr.f32.gmra.mxu0 %v1292
        %v1624 = vpop.f32.mrf.mxu0
        %v1625 = vadd.f32 0.0, %v1624
        %v1626 = vpop.f32.mrf.mxu0
        %1627 = vmatprep.mubr.f32.mxu0 0.0
        %1628 = vmatmul.mubr.f32.gmra.mxu0 %v1294
        %v1629 = vpop.f32.mrf.mxu0
        %v1630 = vadd.f32 0.0, %v1629
        %v1631 = vpop.f32.mrf.mxu0
        %1632 = vmatprep.mubr.f32.mxu0 0.0
        %1633 = vmatmul.mubr.f32.gmra.mxu0 %v1296
        %v1634 = vpop.f32.mrf.mxu0
        %v1635 = vadd.f32 0.0, %v1634
        %v1636 = vpop.f32.mrf.mxu0
        %1637 = vmatprep.mubr.f32.mxu0 0.0
        %1638 = vmatmul.mubr.f32.gmra.mxu0 %v1298
        %v1639 = vpop.f32.mrf.mxu0
        %v1640 = vadd.f32 0.0, %v1639
        %v1641 = vpop.f32.mrf.mxu0
        %1642 = vmatprep.mubr.f32.mxu0 0.0
        %1643 = vmatmul.mubr.f32.gmra.mxu0 %v1300
        %v1644 = vpop.f32.mrf.mxu0
        %v1645 = vadd.f32 0.0, %v1644
        %v1646 = vpop.f32.mrf.mxu0
        %1647 = vmatprep.mubr.f32.mxu0 0.0
        %1648 = vmatmul.mubr.f32.gmra.mxu0 %v1302
        %v1649 = vpop.f32.mrf.mxu0
        %v1650 = vadd.f32 0.0, %v1649
        %v1651 = vpop.f32.mrf.mxu0
        %1652 = vmatprep.mubr.f32.mxu0 0.0
        %1653 = vmatmul.mubr.f32.gmra.mxu0 %v1304
        %v1654 = vpop.f32.mrf.mxu0
        %v1655 = vadd.f32 0.0, %v1654
        %v1656 = vpop.f32.mrf.mxu0
        %1657 = vmatprep.mubr.f32.mxu0 0.0
        %1658 = vmatmul.mubr.f32.gmra.mxu0 %v1306
        %v1659 = vpop.f32.mrf.mxu0
        %v1660 = vadd.f32 0.0, %v1659
        %v1661 = vpop.f32.mrf.mxu0
        %1662 = vdwg.mxu0
        %v1721 = vcombine.high %v1375, %v1375
        %v1722 = vcombine.high %v1380, %v1380
        %v1723 = vcombine.high %v1385, %v1385
        %v1724 = vcombine.high %v1390, %v1390
        %v1725 = vcombine.high %v1395, %v1395
        %v1726 = vcombine.high %v1400, %v1400
        %v1727 = vcombine.high %v1405, %v1405
        %v1728 = vcombine.high %v1410, %v1410
        %v1729 = vcombine.high %v1415, %v1415
        %v1730 = vcombine.high %v1420, %v1420
        %v1731 = vcombine.high %v1425, %v1425
        %v1732 = vcombine.high %v1430, %v1430
        %v1733 = vcombine.high %v1435, %v1435
        %v1734 = vcombine.high %v1440, %v1440
        %v1735 = vcombine.high %v1445, %v1445
        %v1736 = vcombine.high %v1450, %v1450
        %v1737 = vcombine.high %v1455, %v1455
        %v1738 = vcombine.high %v1460, %v1460
        %v1739 = vcombine.high %v1465, %v1465
        %v1740 = vcombine.high %v1470, %v1470
        %v1741 = vcombine.high %v1475, %v1475
        %v1742 = vcombine.high %v1480, %v1480
        %v1743 = vcombine.high %v1485, %v1485
        %v1744 = vcombine.high %v1490, %v1490
        %v1745 = vcombine.high %v1495, %v1495
        %v1746 = vcombine.high %v1500, %v1500
        %v1747 = vcombine.high %v1505, %v1505
        %v1748 = vcombine.high %v1510, %v1510
        %v1749 = vcombine.high %v1515, %v1515
        %v1750 = vcombine.high %v1520, %v1520
        %v1751 = vcombine.high %v1525, %v1525
        %v1752 = vcombine.high %v1530, %v1530
        %v1753 = vcombine.high %v1535, %v1535
        %v1754 = vcombine.high %v1540, %v1540
        %v1755 = vcombine.high %v1545, %v1545
        %v1756 = vcombine.high %v1550, %v1550
        %v1757 = vcombine.high %v1555, %v1555
        %v1758 = vcombine.high %v1560, %v1560
        %v1759 = vcombine.high %v1565, %v1565
        %v1760 = vcombine.high %v1570, %v1570
        %v1761 = vcombine.high %v1575, %v1575
        %v1762 = vcombine.high %v1580, %v1580
        %v1763 = vcombine.high %v1585, %v1585
        %v1764 = vcombine.high %v1590, %v1590
        %v1765 = vcombine.high %v1595, %v1595
        %v1766 = vcombine.high %v1600, %v1600
        %v1767 = vcombine.high %v1605, %v1605
        %v1768 = vcombine.high %v1610, %v1610
        %v1769 = vcombine.high %v1615, %v1615
        %v1770 = vcombine.high %v1620, %v1620
        %v1771 = vcombine.high %v1625, %v1625
        %v1772 = vcombine.high %v1630, %v1630
        %v1773 = vcombine.high %v1635, %v1635
        %v1774 = vcombine.high %v1640, %v1640
        %v1775 = vcombine.high %v1645, %v1645
        %v1776 = vcombine.high %v1650, %v1650
        %v1777 = vcombine.high %v1655, %v1655
        %v1778 = vcombine.high %v1660, %v1660
        %v1837 = vpack.c.bf16 %v1375, %v1375
        %v1838 = vpack.c.bf16 %v1721, %v1721
        %v1839 = vpack.c.bf16 %v1380, %v1380
        %v1840 = vpack.c.bf16 %v1722, %v1722
        %v1841 = vpack.c.bf16 %v1385, %v1385
        %v1842 = vpack.c.bf16 %v1723, %v1723
        %v1843 = vpack.c.bf16 %v1390, %v1390
        %v1844 = vpack.c.bf16 %v1724, %v1724
        %v1845 = vpack.c.bf16 %v1395, %v1395
        %v1846 = vpack.c.bf16 %v1725, %v1725
        %v1847 = vpack.c.bf16 %v1400, %v1400
        %v1848 = vpack.c.bf16 %v1726, %v1726
        %v1849 = vpack.c.bf16 %v1405, %v1405
        %v1850 = vpack.c.bf16 %v1727, %v1727
        %v1851 = vpack.c.bf16 %v1410, %v1410
        %v1852 = vpack.c.bf16 %v1728, %v1728
        %v1853 = vpack.c.bf16 %v1415, %v1415
        %v1854 = vpack.c.bf16 %v1729, %v1729
        %v1855 = vpack.c.bf16 %v1420, %v1420
        %v1856 = vpack.c.bf16 %v1730, %v1730
        %v1857 = vpack.c.bf16 %v1425, %v1425
        %v1858 = vpack.c.bf16 %v1731, %v1731
        %v1859 = vpack.c.bf16 %v1430, %v1430
        %v1860 = vpack.c.bf16 %v1732, %v1732
        %v1861 = vpack.c.bf16 %v1435, %v1435
        %v1862 = vpack.c.bf16 %v1733, %v1733
        %v1863 = vpack.c.bf16 %v1440, %v1440
        %v1864 = vpack.c.bf16 %v1734, %v1734
        %v1865 = vpack.c.bf16 %v1445, %v1445
        %v1866 = vpack.c.bf16 %v1735, %v1735
        %v1867 = vpack.c.bf16 %v1450, %v1450
        %v1868 = vpack.c.bf16 %v1736, %v1736
        %v1869 = vpack.c.bf16 %v1455, %v1455
        %v1870 = vpack.c.bf16 %v1737, %v1737
        %v1871 = vpack.c.bf16 %v1460, %v1460
        %v1872 = vpack.c.bf16 %v1738, %v1738
        %v1873 = vpack.c.bf16 %v1465, %v1465
        %v1874 = vpack.c.bf16 %v1739, %v1739
        %v1875 = vpack.c.bf16 %v1470, %v1470
        %v1876 = vpack.c.bf16 %v1740, %v1740
        %v1877 = vpack.c.bf16 %v1475, %v1475
        %v1878 = vpack.c.bf16 %v1741, %v1741
        %v1879 = vpack.c.bf16 %v1480, %v1480
        %v1880 = vpack.c.bf16 %v1742, %v1742
        %v1881 = vpack.c.bf16 %v1485, %v1485
        %v1882 = vpack.c.bf16 %v1743, %v1743
        %v1883 = vpack.c.bf16 %v1490, %v1490
        %v1884 = vpack.c.bf16 %v1744, %v1744
        %v1885 = vpack.c.bf16 %v1495, %v1495
        %v1886 = vpack.c.bf16 %v1745, %v1745
        %v1887 = vpack.c.bf16 %v1500, %v1500
        %v1888 = vpack.c.bf16 %v1746, %v1746
        %v1889 = vpack.c.bf16 %v1505, %v1505
        %v1890 = vpack.c.bf16 %v1747, %v1747
        %v1891 = vpack.c.bf16 %v1510, %v1510
        %v1892 = vpack.c.bf16 %v1748, %v1748
        %v1893 = vpack.c.bf16 %v1515, %v1515
        %v1894 = vpack.c.bf16 %v1749, %v1749
        %v1895 = vpack.c.bf16 %v1520, %v1520
        %v1896 = vpack.c.bf16 %v1750, %v1750
        %v1897 = vpack.c.bf16 %v1525, %v1525
        %v1898 = vpack.c.bf16 %v1751, %v1751
        %v1899 = vpack.c.bf16 %v1530, %v1530
        %v1900 = vpack.c.bf16 %v1752, %v1752
        %v1901 = vpack.c.bf16 %v1535, %v1535
        %v1902 = vpack.c.bf16 %v1753, %v1753
        %v1903 = vpack.c.bf16 %v1540, %v1540
        %v1904 = vpack.c.bf16 %v1754, %v1754
        %v1905 = vpack.c.bf16 %v1545, %v1545
        %v1906 = vpack.c.bf16 %v1755, %v1755
        %v1907 = vpack.c.bf16 %v1550, %v1550
        %v1908 = vpack.c.bf16 %v1756, %v1756
        %v1909 = vpack.c.bf16 %v1555, %v1555
        %v1910 = vpack.c.bf16 %v1757, %v1757
        %v1911 = vpack.c.bf16 %v1560, %v1560
        %v1912 = vpack.c.bf16 %v1758, %v1758
        %v1913 = vpack.c.bf16 %v1565, %v1565
        %v1914 = vpack.c.bf16 %v1759, %v1759
        %v1915 = vpack.c.bf16 %v1570, %v1570
        %v1916 = vpack.c.bf16 %v1760, %v1760
        %v1917 = vpack.c.bf16 %v1575, %v1575
        %v1918 = vpack.c.bf16 %v1761, %v1761
        %v1919 = vpack.c.bf16 %v1580, %v1580
        %v1920 = vpack.c.bf16 %v1762, %v1762
        %v1921 = vpack.c.bf16 %v1585, %v1585
        %v1922 = vpack.c.bf16 %v1763, %v1763
        %v1923 = vpack.c.bf16 %v1590, %v1590
        %v1924 = vpack.c.bf16 %v1764, %v1764
        %v1925 = vpack.c.bf16 %v1595, %v1595
        %v1926 = vpack.c.bf16 %v1765, %v1765
        %v1927 = vpack.c.bf16 %v1600, %v1600
        %v1928 = vpack.c.bf16 %v1766, %v1766
        %v1929 = vpack.c.bf16 %v1605, %v1605
        %v1930 = vpack.c.bf16 %v1767, %v1767
        %v1931 = vpack.c.bf16 %v1610, %v1610
        %v1932 = vpack.c.bf16 %v1768, %v1768
        %v1933 = vpack.c.bf16 %v1615, %v1615
        %v1934 = vpack.c.bf16 %v1769, %v1769
        %v1935 = vpack.c.bf16 %v1620, %v1620
        %v1936 = vpack.c.bf16 %v1770, %v1770
        %v1937 = vpack.c.bf16 %v1625, %v1625
        %v1938 = vpack.c.bf16 %v1771, %v1771
        %v1939 = vpack.c.bf16 %v1630, %v1630
        %v1940 = vpack.c.bf16 %v1772, %v1772
        %v1941 = vpack.c.bf16 %v1635, %v1635
        %v1942 = vpack.c.bf16 %v1773, %v1773
        %v1943 = vpack.c.bf16 %v1640, %v1640
        %v1944 = vpack.c.bf16 %v1774, %v1774
        %v1945 = vpack.c.bf16 %v1645, %v1645
        %v1946 = vpack.c.bf16 %v1775, %v1775
        %v1947 = vpack.c.bf16 %v1650, %v1650
        %v1948 = vpack.c.bf16 %v1776, %v1776
        %v1949 = vpack.c.bf16 %v1655, %v1655
        %v1950 = vpack.c.bf16 %v1777, %v1777
        %v1951 = vpack.c.bf16 %v1660, %v1660
        %v1952 = vpack.c.bf16 %v1778, %v1778
        %vm1953 = vcmask 25600
        %1954 = vst.msk [vmem:[%s664] sm:$0x3] %vm1953, %v1837
        %1955 = vst.msk [vmem:[%s664 + $0x2] sm:$0x3] %vm1953, %v1838
        %1956 = vst.msk [vmem:[%s664 + $0x4] sm:$0x3] %vm1953, %v1839
        %1957 = vst.msk [vmem:[%s664 + $0x6] sm:$0x3] %vm1953, %v1840
        %1958 = vst.msk [vmem:[%s664 + $0x8] sm:$0x3] %vm1953, %v1841
        %1959 = vst.msk [vmem:[%s664 + $0xa] sm:$0x3] %vm1953, %v1842
        %1960 = vst.msk [vmem:[%s664 + $0xc] sm:$0x3] %vm1953, %v1843
        %1961 = vst.msk [vmem:[%s664 + $0xe] sm:$0x3] %vm1953, %v1844
        %1962 = vst.msk [vmem:[%s664 + $0x10] sm:$0x3] %vm1953, %v1845
        %1963 = vst.msk [vmem:[%s664 + $0x12] sm:$0x3] %vm1953, %v1846
        %1964 = vst.msk [vmem:[%s664 + $0x14] sm:$0x3] %vm1953, %v1847
        %1965 = vst.msk [vmem:[%s664 + $0x16] sm:$0x3] %vm1953, %v1848
        %1966 = vst.msk [vmem:[%s664 + $0x18] sm:$0x3] %vm1953, %v1849
        %1967 = vst.msk [vmem:[%s664 + $0x1a] sm:$0x3] %vm1953, %v1850
        %1968 = vst.msk [vmem:[%s664 + $0x1c] sm:$0x3] %vm1953, %v1851
        %1969 = vst.msk [vmem:[%s664 + $0x1e] sm:$0x3] %vm1953, %v1852
        %1970 = vst.msk [vmem:[%s664 + $0x20] sm:$0x3] %vm1953, %v1853
        %1971 = vst.msk [vmem:[%s664 + $0x22] sm:$0x3] %vm1953, %v1854
        %1972 = vst.msk [vmem:[%s664 + $0x24] sm:$0x3] %vm1953, %v1855
        %1973 = vst.msk [vmem:[%s664 + $0x26] sm:$0x3] %vm1953, %v1856
        %1974 = vst.msk [vmem:[%s664 + $0x28] sm:$0x3] %vm1953, %v1857
        %1975 = vst.msk [vmem:[%s664 + $0x2a] sm:$0x3] %vm1953, %v1858
        %1976 = vst.msk [vmem:[%s664 + $0x2c] sm:$0x3] %vm1953, %v1859
        %1977 = vst.msk [vmem:[%s664 + $0x2e] sm:$0x3] %vm1953, %v1860
        %1978 = vst.msk [vmem:[%s664 + $0x30] sm:$0x3] %vm1953, %v1861
        %1979 = vst.msk [vmem:[%s664 + $0x32] sm:$0x3] %vm1953, %v1862
        %1980 = vst.msk [vmem:[%s664 + $0x34] sm:$0x3] %vm1953, %v1863
        %1981 = vst.msk [vmem:[%s664 + $0x36] sm:$0x3] %vm1953, %v1864
        %1982 = vst.msk [vmem:[%s664 + $0x38] sm:$0x3] %vm1953, %v1865
        %1983 = vst.msk [vmem:[%s664 + $0x3a] sm:$0x3] %vm1953, %v1866
        %1984 = vst.msk [vmem:[%s664 + $0x3c] sm:$0x3] %vm1953, %v1867
        %1985 = vst.msk [vmem:[%s664 + $0x3e] sm:$0x3] %vm1953, %v1868
        %1986 = vst.msk [vmem:[%s664 + $0x40] sm:$0x3] %vm1953, %v1869
        %1987 = vst.msk [vmem:[%s664 + $0x42] sm:$0x3] %vm1953, %v1870
        %1988 = vst.msk [vmem:[%s664 + $0x44] sm:$0x3] %vm1953, %v1871
        %1989 = vst.msk [vmem:[%s664 + $0x46] sm:$0x3] %vm1953, %v1872
        %1990 = vst.msk [vmem:[%s664 + $0x48] sm:$0x3] %vm1953, %v1873
        %1991 = vst.msk [vmem:[%s664 + $0x4a] sm:$0x3] %vm1953, %v1874
        %1992 = vst.msk [vmem:[%s664 + $0x4c] sm:$0x3] %vm1953, %v1875
        %1993 = vst.msk [vmem:[%s664 + $0x4e] sm:$0x3] %vm1953, %v1876
        %1994 = vst.msk [vmem:[%s664 + $0x50] sm:$0x3] %vm1953, %v1877
        %1995 = vst.msk [vmem:[%s664 + $0x52] sm:$0x3] %vm1953, %v1878
        %1996 = vst.msk [vmem:[%s664 + $0x54] sm:$0x3] %vm1953, %v1879
        %1997 = vst.msk [vmem:[%s664 + $0x56] sm:$0x3] %vm1953, %v1880
        %1998 = vst.msk [vmem:[%s664 + $0x58] sm:$0x3] %vm1953, %v1881
        %1999 = vst.msk [vmem:[%s664 + $0x5a] sm:$0x3] %vm1953, %v1882
        %2000 = vst.msk [vmem:[%s664 + $0x5c] sm:$0x3] %vm1953, %v1883
        %2001 = vst.msk [vmem:[%s664 + $0x5e] sm:$0x3] %vm1953, %v1884
        %2002 = vst.msk [vmem:[%s664 + $0x60] sm:$0x3] %vm1953, %v1885
        %2003 = vst.msk [vmem:[%s664 + $0x62] sm:$0x3] %vm1953, %v1886
        %2004 = vst.msk [vmem:[%s664 + $0x64] sm:$0x3] %vm1953, %v1887
        %2005 = vst.msk [vmem:[%s664 + $0x66] sm:$0x3] %vm1953, %v1888
        %2006 = vst.msk [vmem:[%s664 + $0x68] sm:$0x3] %vm1953, %v1889
        %2007 = vst.msk [vmem:[%s664 + $0x6a] sm:$0x3] %vm1953, %v1890
        %2008 = vst.msk [vmem:[%s664 + $0x6c] sm:$0x3] %vm1953, %v1891
        %2009 = vst.msk [vmem:[%s664 + $0x6e] sm:$0x3] %vm1953, %v1892
        %2010 = vst.msk [vmem:[%s664 + $0x70] sm:$0x3] %vm1953, %v1893
        %2011 = vst.msk [vmem:[%s664 + $0x72] sm:$0x3] %vm1953, %v1894
        %2012 = vst.msk [vmem:[%s664 + $0x74] sm:$0x3] %vm1953, %v1895
        %2013 = vst.msk [vmem:[%s664 + $0x76] sm:$0x3] %vm1953, %v1896
        %2014 = vst.msk [vmem:[%s664 + $0x78] sm:$0x3] %vm1953, %v1897
        %2015 = vst.msk [vmem:[%s664 + $0x7a] sm:$0x3] %vm1953, %v1898
        %2016 = vst.msk [vmem:[%s664 + $0x7c] sm:$0x3] %vm1953, %v1899
        %2017 = vst.msk [vmem:[%s664 + $0x7e] sm:$0x3] %vm1953, %v1900
        %2018 = vst.msk [vmem:[%s664 + $0x80] sm:$0x3] %vm1953, %v1901
        %2019 = vst.msk [vmem:[%s664 + $0x82] sm:$0x3] %vm1953, %v1902
        %2020 = vst.msk [vmem:[%s664 + $0x84] sm:$0x3] %vm1953, %v1903
        %2021 = vst.msk [vmem:[%s664 + $0x86] sm:$0x3] %vm1953, %v1904
        %2022 = vst.msk [vmem:[%s664 + $0x88] sm:$0x3] %vm1953, %v1905
        %2023 = vst.msk [vmem:[%s664 + $0x8a] sm:$0x3] %vm1953, %v1906
        %2024 = vst.msk [vmem:[%s664 + $0x8c] sm:$0x3] %vm1953, %v1907
        %2025 = vst.msk [vmem:[%s664 + $0x8e] sm:$0x3] %vm1953, %v1908
        %2026 = vst.msk [vmem:[%s664 + $0x90] sm:$0x3] %vm1953, %v1909
        %2027 = vst.msk [vmem:[%s664 + $0x92] sm:$0x3] %vm1953, %v1910
        %2028 = vst.msk [vmem:[%s664 + $0x94] sm:$0x3] %vm1953, %v1911
        %2029 = vst.msk [vmem:[%s664 + $0x96] sm:$0x3] %vm1953, %v1912
        %2030 = vst.msk [vmem:[%s664 + $0x98] sm:$0x3] %vm1953, %v1913
        %2031 = vst.msk [vmem:[%s664 + $0x9a] sm:$0x3] %vm1953, %v1914
        %2032 = vst.msk [vmem:[%s664 + $0x9c] sm:$0x3] %vm1953, %v1915
        %2033 = vst.msk [vmem:[%s664 + $0x9e] sm:$0x3] %vm1953, %v1916
        %2034 = vst.msk [vmem:[%s664 + $0xa0] sm:$0x3] %vm1953, %v1917
        %2035 = vst.msk [vmem:[%s664 + $0xa2] sm:$0x3] %vm1953, %v1918
        %2036 = vst.msk [vmem:[%s664 + $0xa4] sm:$0x3] %vm1953, %v1919
        %2037 = vst.msk [vmem:[%s664 + $0xa6] sm:$0x3] %vm1953, %v1920
        %2038 = vst.msk [vmem:[%s664 + $0xa8] sm:$0x3] %vm1953, %v1921
        %2039 = vst.msk [vmem:[%s664 + $0xaa] sm:$0x3] %vm1953, %v1922
        %2040 = vst.msk [vmem:[%s664 + $0xac] sm:$0x3] %vm1953, %v1923
        %2041 = vst.msk [vmem:[%s664 + $0xae] sm:$0x3] %vm1953, %v1924
        %2042 = vst.msk [vmem:[%s664 + $0xb0] sm:$0x3] %vm1953, %v1925
        %2043 = vst.msk [vmem:[%s664 + $0xb2] sm:$0x3] %vm1953, %v1926
        %2044 = vst.msk [vmem:[%s664 + $0xb4] sm:$0x3] %vm1953, %v1927
        %2045 = vst.msk [vmem:[%s664 + $0xb6] sm:$0x3] %vm1953, %v1928
        %2046 = vst.msk [vmem:[%s664 + $0xb8] sm:$0x3] %vm1953, %v1929
        %2047 = vst.msk [vmem:[%s664 + $0xba] sm:$0x3] %vm1953, %v1930
        %2048 = vst.msk [vmem:[%s664 + $0xbc] sm:$0x3] %vm1953, %v1931
        %2049 = vst.msk [vmem:[%s664 + $0xbe] sm:$0x3] %vm1953, %v1932
        %2050 = vst.msk [vmem:[%s664 + $0xc0] sm:$0x3] %vm1953, %v1933
        %2051 = vst.msk [vmem:[%s664 + $0xc2] sm:$0x3] %vm1953, %v1934
        %2052 = vst.msk [vmem:[%s664 + $0xc4] sm:$0x3] %vm1953, %v1935
        %2053 = vst.msk [vmem:[%s664 + $0xc6] sm:$0x3] %vm1953, %v1936
        %2054 = vst.msk [vmem:[%s664 + $0xc8] sm:$0x3] %vm1953, %v1937
        %2055 = vst.msk [vmem:[%s664 + $0xca] sm:$0x3] %vm1953, %v1938
        %2056 = vst.msk [vmem:[%s664 + $0xcc] sm:$0x3] %vm1953, %v1939
        %2057 = vst.msk [vmem:[%s664 + $0xce] sm:$0x3] %vm1953, %v1940
        %2058 = vst.msk [vmem:[%s664 + $0xd0] sm:$0x3] %vm1953, %v1941
        %2059 = vst.msk [vmem:[%s664 + $0xd2] sm:$0x3] %vm1953, %v1942
        %2060 = vst.msk [vmem:[%s664 + $0xd4] sm:$0x3] %vm1953, %v1943
        %2061 = vst.msk [vmem:[%s664 + $0xd6] sm:$0x3] %vm1953, %v1944
        %2062 = vst.msk [vmem:[%s664 + $0xd8] sm:$0x3] %vm1953, %v1945
        %2063 = vst.msk [vmem:[%s664 + $0xda] sm:$0x3] %vm1953, %v1946
        %2064 = vst.msk [vmem:[%s664 + $0xdc] sm:$0x3] %vm1953, %v1947
        %2065 = vst.msk [vmem:[%s664 + $0xde] sm:$0x3] %vm1953, %v1948
        %2066 = vst.msk [vmem:[%s664 + $0xe0] sm:$0x3] %vm1953, %v1949
        %2067 = vst.msk [vmem:[%s664 + $0xe2] sm:$0x3] %vm1953, %v1950
        %2068 = vst.msk [vmem:[%s664 + $0xe4] sm:$0x3] %vm1953, %v1951
        %2069 = vst.msk [vmem:[%s664 + $0xe6] sm:$0x3] %vm1953, %v1952
        %s2070 = smul.u32 %s17, 4
        %s2071 = sadd.s32 %s2070, %s18
        %p2072 = scmp.lt.s32.totalorder %s2071, 7
        %s2073 = scalar_select %p2072, %s2071, 7
        %s2074 = smul.addr %s2073, 116
        %s2075 = smul.addr %s2074, 2
        %s2076 = scalar_lea.vmem %s2, %s2075
        // Predicated region
        $region67: #{forward.4} parent=61 // pred_check
          %p2077 = pneg %p96
        $region68: #{forward.4} parent=61 // pred_check_branch
          %2079 = sbr.rel (%p2077) target = $region70
        $region69: #{forward.4} parent=61 // pred_region
          %s2080 = smul.u32 %s17, 4
          %s2081 = sadd.s32 %s2080, %s18
        $region70: #{forward.4} parent=61 // pred_fallthru
          _
      $region62: #{forward.4} parent=5 // pred_fallthru
        _
      %p2082 = scmp.le.s32.totalorder 2, %s8
      // Predicated region
      $region71: #{forward.4} parent=5 // pred_check
        %p2083 = pneg %p2082
      $region72: #{forward.4} parent=5 // pred_check_branch
        %2085 = sbr.rel (%p2083) target = $region74
      $region73: #{forward.4} parent=5 // pred_region
        %s2086 = ssub.s32 %s8, 2
        // Predicated region
        $region75: #{forward.4} parent=73 // pred_check
          %p2087 = pneg %p102
        $region76: #{forward.4} parent=73 // pred_check_branch
          %2089 = sbr.rel (%p2087) target = $region78
        $region77: #{forward.4} parent=73 // pred_region
          %s2090 = smul.u32 %s19, 4
          %s2091 = sadd.s32 %s2090, %s20
          %p2092 = scmp.lt.s32.totalorder %s2091, 7
          %s2093 = scalar_select %p2092, %s2091, 7
          %s2094 = smul.addr %s2093, 116
          %s2095 = smul.addr %s2094, 2
          %s2096 = scalar_lea.vmem %s2, %s2095
        $region78: #{forward.4} parent=73 // pred_fallthru
          _
      $region74: #{forward.4} parent=5 // pred_fallthru
        _
    $region6: #{forward.4} parent=1 // loop_footer
      %s12 = sadd.s32 1, %s8
    $region7: #{forward.4} parent=1 // loop_footer_branch
      %7 = sbr.rel target = $region3
    $region8: #{forward.4} parent=1 // loop_exit
      _

// kernel: forward.5
$region0: #{forward.5}
  #allocation0 [shape = 'u32[]', space=smem, size = 0x4, offset = 0x4, fixed_abs, tag = 'smem constant byte address 0x4 - core index']
  #allocation1 [shape = 'u32[144,128]{1,0:T(1,128)}', space=vmem, size = 0x12000, scoped, tag = 'internal scratch']
  #allocation2 [shape = 'f32[24,128]{1,0:T(8,128)}', space=vmem, size = 0x3000, scoped, tag = 'scratch operand']
  %s0 = inlined_call_operand.vmem [shape: bf16[2,4,42,128], index: 0, kind: input, shape index: {}, may-alias: {0,1,2}]
  %s1 = inlined_call_operand.vmem [shape: bf16[2,4,42,128], index: 1, kind: input, shape index: {}, may-alias: {0,1,2}]
  %s2 = inlined_call_operand.vmem [shape: bf16[2,4,42,128], index: 2, kind: input, shape index: {}, may-alias: {0,1,2}]
  %s3 = inlined_call_operand.vmem [shape: bf16[3,1152,128], index: 3, kind: input, shape index: {}]
  %s4 = inlined_call_operand.vmem [shape: f32[1,128], index: 4, kind: input, shape index: {}]
  %s5 = inlined_call_operand.vmem [shape: bf16[2,4,42,128], index: 5, kind: output, shape index: {}]
  %s6 = sld [smem:[#allocation0]]
  $region61: #{forward.5} parent=0
    _
  %s8 = ssub.s32 1, %s6
  %s9 = scalar_select 0, %s8, %s6
  loop: start=0, step=1, limit=10
  $region2: #{forward.5} parent=0 // loop_pre_header
    _
  $region3: #{forward.5} parent=0 // loop_header
    %s11 = sphi 0, %s15
    %p12 = scmp.ge.s32.totalorder %s11, 10
    %s18 = sphi 0, %s30
    %s19 = sphi 0, %s26
    %s20 = sphi 0, %s18
    %s21 = sphi 0, %s19
    %s22 = sphi 0, %s20
    %s23 = sphi 0, %s21
    %s41 = sphi 0, %s43
    %s44 = sphi 0, %s41
    %s45 = sphi 0, %s44
    %s61 = sphi 0, %s45
    %s69 = sphi 0, %s71
    %s72 = sphi 0, %s69
    %s73 = sphi 0, %s72
    %s89 = sphi 0, %s73
    %s103 = sphi 0, %s105
    %s106 = sphi 0, %s103
    %s107 = sphi 0, %s106
    %s123 = sphi 0, %s107
    %s127 = sphi 0, %s127
    %s129 = sphi 0, %s127
    %s130 = sphi 0, %s129
    %s144 = sphi 0, %s130
    %s148 = sphi 0, %s148
    %s150 = sphi 0, %s148
    %s151 = sphi 0, %s150
    %s165 = sphi 0, %s151
    %s173 = sphi 0, %s175
    %s176 = sphi 0, %s173
    %s177 = sphi 0, %s176
    %s193 = sphi 0, %s177
  $region4: #{forward.5} parent=0 // loop_header_branch
    %14 = sbr.rel (%p12) target = $region8
  $region5: #{forward.5} parent=0 // loop_body
    %s16 = ssub.s32 %s11, 1
    %s17 = ssub.s32 %s11, 2
    %s24 = sadd.s32 1, %s19
    %p25 = scmp.ge.s32.totalorder %s24, 4
    %s26 = scalar_select %p25, 0, %s24
    %s27 = sadd.s32 1, %s18
    %s28 = scalar_select %p25, %s27, %s18
    %p29 = scmp.ge.s32.totalorder %s28, 2
    %s30 = scalar_select %p29, 0, %s28
    %s31 = ssub.s32 %s19, 1
    %p32 = scmp.gt.s32.totalorder %s31, 0
    %s33 = scalar_select %p32, %s31, 0
    %s34 = ssub.s32 %s26, 1
    %p35 = scmp.gt.s32.totalorder %s34, 0
    %s36 = scalar_select %p35, %s34, 0
    %s37 = ssub.s32 %s18, %s30
    %s38 = ssub.s32 %s33, %s36
    %s39 = sor.u32 %s37, %s38
    %p40 = scmp.eq.s32.totalorder %s39, 0
    %s42 = sadd.s32 %s41, 1
    %s43 = scalar_select %p40, %s41, %s42
    %p46 = pneg %p40
    %p47 = scmp.eq.s32.totalorder %s11, 7
    %p48 = por %p46, %p47
    %p49 = scmp.ne.s32.totalorder %s41, %s44
    %p50 = scmp.eq.s32.totalorder %s11, 0
    %p51 = por %p49, %p50
    %p52 = scmp.ne.s32.totalorder %s41, %s44
    %p53 = scmp.eq.s32.totalorder %s16, 7
    %p54 = por %p52, %p53
    %p55 = scmp.ne.s32.totalorder %s44, %s45
    %p56 = scmp.eq.s32.totalorder %s16, 0
    %p57 = por %p55, %p56
    %p58 = scmp.ne.s32.totalorder %s44, %s45
    %p59 = scmp.eq.s32.totalorder %s17, 7
    %p60 = por %p58, %p59
    %p62 = scmp.ne.s32.totalorder %s45, %s61
    %p63 = scmp.eq.s32.totalorder %s17, 0
    %p64 = por %p62, %p63
    %s65 = ssub.s32 %s18, %s30
    %s66 = ssub.s32 %s19, %s26
    %s67 = sor.u32 %s65, %s66
    %p68 = scmp.eq.s32.totalorder %s67, 0
    %s70 = sadd.s32 %s69, 1
    %s71 = scalar_select %p68, %s69, %s70
    %p74 = pneg %p68
    %p75 = scmp.eq.s32.totalorder %s11, 7
    %p76 = por %p74, %p75
    %p77 = scmp.ne.s32.totalorder %s69, %s72
    %p78 = scmp.eq.s32.totalorder %s11, 0
    %p79 = por %p77, %p78
    %p80 = scmp.ne.s32.totalorder %s69, %s72
    %p81 = scmp.eq.s32.totalorder %s16, 7
    %p82 = por %p80, %p81
    %p83 = scmp.ne.s32.totalorder %s72, %s73
    %p84 = scmp.eq.s32.totalorder %s16, 0
    %p85 = por %p83, %p84
    %p86 = scmp.ne.s32.totalorder %s72, %s73
    %p87 = scmp.eq.s32.totalorder %s17, 7
    %p88 = por %p86, %p87
    %p90 = scmp.ne.s32.totalorder %s73, %s89
    %p91 = scmp.eq.s32.totalorder %s17, 0
    %p92 = por %p90, %p91
    %s93 = sadd.s32 %s19, 1
    %p94 = scmp.lt.s32.totalorder %s93, 3
    %s95 = scalar_select %p94, %s93, 3
    %s96 = sadd.s32 %s26, 1
    %p97 = scmp.lt.s32.totalorder %s96, 3
    %s98 = scalar_select %p97, %s96, 3
    %s99 = ssub.s32 %s18, %s30
    %s100 = ssub.s32 %s95, %s98
    %s101 = sor.u32 %s99, %s100
    %p102 = scmp.eq.s32.totalorder %s101, 0
    %s104 = sadd.s32 %s103, 1
    %s105 = scalar_select %p102, %s103, %s104
    %p108 = pneg %p102
    %p109 = scmp.eq.s32.totalorder %s11, 7
    %p110 = por %p108, %p109
    %p111 = scmp.ne.s32.totalorder %s103, %s106
    %p112 = scmp.eq.s32.totalorder %s11, 0
    %p113 = por %p111, %p112
    %p114 = scmp.ne.s32.totalorder %s103, %s106
    %p115 = scmp.eq.s32.totalorder %s16, 7
    %p116 = por %p114, %p115
    %p117 = scmp.ne.s32.totalorder %s106, %s107
    %p118 = scmp.eq.s32.totalorder %s16, 0
    %p119 = por %p117, %p118
    %p120 = scmp.ne.s32.totalorder %s106, %s107
    %p121 = scmp.eq.s32.totalorder %s17, 7
    %p122 = por %p120, %p121
    %p124 = scmp.ne.s32.totalorder %s107, %s123
    %p125 = scmp.eq.s32.totalorder %s17, 0
    %p126 = por %p124, %p125
    %s128 = sadd.s32 %s127, 1
    %p131 = scmp.eq.s32.totalorder %s11, 7
    %p132 = scmp.ne.s32.totalorder %s127, %s129
    %p133 = scmp.eq.s32.totalorder %s11, 0
    %p134 = por %p132, %p133
    %p135 = scmp.ne.s32.totalorder %s127, %s129
    %p136 = scmp.eq.s32.totalorder %s16, 7
    %p137 = por %p135, %p136
    %p138 = scmp.ne.s32.totalorder %s129, %s130
    %p139 = scmp.eq.s32.totalorder %s16, 0
    %p140 = por %p138, %p139
    %p141 = scmp.ne.s32.totalorder %s129, %s130
    %p142 = scmp.eq.s32.totalorder %s17, 7
    %p143 = por %p141, %p142
    %p145 = scmp.ne.s32.totalorder %s130, %s144
    %p146 = scmp.eq.s32.totalorder %s17, 0
    %p147 = por %p145, %p146
    %s149 = sadd.s32 %s148, 1
    %p152 = scmp.eq.s32.totalorder %s11, 7
    %p153 = scmp.ne.s32.totalorder %s148, %s150
    %p154 = scmp.eq.s32.totalorder %s11, 0
    %p155 = por %p153, %p154
    %p156 = scmp.ne.s32.totalorder %s148, %s150
    %p157 = scmp.eq.s32.totalorder %s16, 7
    %p158 = por %p156, %p157
    %p159 = scmp.ne.s32.totalorder %s150, %s151
    %p160 = scmp.eq.s32.totalorder %s16, 0
    %p161 = por %p159, %p160
    %p162 = scmp.ne.s32.totalorder %s150, %s151
    %p163 = scmp.eq.s32.totalorder %s17, 7
    %p164 = por %p162, %p163
    %p166 = scmp.ne.s32.totalorder %s151, %s165
    %p167 = scmp.eq.s32.totalorder %s17, 0
    %p168 = por %p166, %p167
    %s169 = ssub.s32 %s18, %s30
    %s170 = ssub.s32 %s19, %s26
    %s171 = sor.u32 %s169, %s170
    %p172 = scmp.eq.s32.totalorder %s171, 0
    %s174 = sadd.s32 %s173, 1
    %s175 = scalar_select %p172, %s173, %s174
    %p178 = pneg %p172
    %p179 = scmp.eq.s32.totalorder %s11, 7
    %p180 = por %p178, %p179
    %p181 = scmp.ne.s32.totalorder %s173, %s176
    %p182 = scmp.eq.s32.totalorder %s11, 0
    %p183 = por %p181, %p182
    %p184 = scmp.ne.s32.totalorder %s173, %s176
    %p185 = scmp.eq.s32.totalorder %s16, 7
    %p186 = por %p184, %p185
    %p187 = scmp.ne.s32.totalorder %s176, %s177
    %p188 = scmp.eq.s32.totalorder %s16, 0
    %p189 = por %p187, %p188
    %p190 = scmp.ne.s32.totalorder %s176, %s177
    %p191 = scmp.eq.s32.totalorder %s17, 7
    %p192 = por %p190, %p191
    %p194 = scmp.ne.s32.totalorder %s177, %s193
    %p195 = scmp.eq.s32.totalorder %s17, 0
    %p196 = por %p194, %p195
    %p197 = scmp.le.s32.totalorder 1, %s11
    %p198 = scmp.lt.s32.totalorder %s11, 9
    %p199 = pnand %p197, %p198
    %p200 = pneg %p199
    // Predicated region
    $region9: #{forward.5} parent=5 // pred_check
      _
    $region10: #{forward.5} parent=5 // pred_check_branch
      %202 = sbr.rel (%p199) target = $region12
    $region11: #{forward.5} parent=5 // pred_region
      %s203 = ssub.s32 %s11, 1
      // Predicated region
      $region13: #{forward.5} parent=11 // pred_check
        %p204 = pneg %p140
      $region14: #{forward.5} parent=11 // pred_check_branch
        %206 = sbr.rel (%p204) target = $region16
      $region15: #{forward.5} parent=11 // pred_region
        _
      $region16: #{forward.5} parent=11 // pred_fallthru
        _
      // Predicated region
      $region17: #{forward.5} parent=11 // pred_check
        %p207 = pneg %p161
      $region18: #{forward.5} parent=11 // pred_check_branch
        %209 = sbr.rel (%p207) target = $region20
      $region19: #{forward.5} parent=11 // pred_region
        _
      $region20: #{forward.5} parent=11 // pred_fallthru
        _
    $region12: #{forward.5} parent=5 // pred_fallthru
      _
    %p210 = scmp.lt.s32.totalorder %s11, 8
    // Predicated region
    $region21: #{forward.5} parent=5 // pred_check
      %p211 = pneg %p210
    $region22: #{forward.5} parent=5 // pred_check_branch
      %213 = sbr.rel (%p211) target = $region24
    $region23: #{forward.5} parent=5 // pred_region
      // Predicated region
      $region25: #{forward.5} parent=23 // pred_check
        %p214 = pneg %p51
      $region26: #{forward.5} parent=23 // pred_check_branch
        %216 = sbr.rel (%p214) target = $region28
      $region27: #{forward.5} parent=23 // pred_region
        %s217 = ssub.s32 %s19, 1
        %p218 = scmp.gt.s32.totalorder %s217, 0
        %s219 = scalar_select %p218, %s217, 0
        %p220 = scmp.lt.s32.totalorder %s18, 1
        %s221 = scalar_select %p220, %s18, 1
        %p222 = scmp.lt.s32.totalorder %s219, 3
        %s223 = scalar_select %p222, %s219, 3
        %s224 = smul.addr %s223, 6
        %s225 = smul.addr %s221, 24
        %s226 = sadd.s32 %s224, %s225
        %s227 = smul.addr %s226, 4
        %s228 = scalar_lea.vmem %s0, %s227
        %s229 = ssub.s32 %s19, 1
        %p230 = scmp.gt.s32.totalorder %s229, 0
        %s231 = scalar_select %p230, %s229, 0
      $region28: #{forward.5} parent=23 // pred_fallthru
        _
      // Predicated region
      $region29: #{forward.5} parent=23 // pred_check
        %p232 = pneg %p79
      $region30: #{forward.5} parent=23 // pred_check_branch
        %234 = sbr.rel (%p232) target = $region32
      $region31: #{forward.5} parent=23 // pred_region
        %p235 = scmp.lt.s32.totalorder %s18, 1
        %s236 = scalar_select %p235, %s18, 1
        %p237 = scmp.lt.s32.totalorder %s19, 3
        %s238 = scalar_select %p237, %s19, 3
        %s239 = smul.addr %s238, 6
        %s240 = smul.addr %s236, 24
        %s241 = sadd.s32 %s239, %s240
        %s242 = smul.addr %s241, 4
        %s243 = scalar_lea.vmem %s1, %s242
      $region32: #{forward.5} parent=23 // pred_fallthru
        _
      // Predicated region
      $region33: #{forward.5} parent=23 // pred_check
        %p244 = pneg %p113
      $region34: #{forward.5} parent=23 // pred_check_branch
        %246 = sbr.rel (%p244) target = $region36
      $region35: #{forward.5} parent=23 // pred_region
        %s247 = sadd.s32 %s19, 1
        %p248 = scmp.lt.s32.totalorder %s247, 3
        %s249 = scalar_select %p248, %s247, 3
        %p250 = scmp.lt.s32.totalorder %s18, 1
        %s251 = scalar_select %p250, %s18, 1
        %p252 = scmp.lt.s32.totalorder %s249, 3
        %s253 = scalar_select %p252, %s249, 3
        %s254 = smul.addr %s253, 6
        %s255 = smul.addr %s251, 24
        %s256 = sadd.s32 %s254, %s255
        %s257 = smul.addr %s256, 4
        %s258 = scalar_lea.vmem %s2, %s257
        %s259 = sadd.s32 %s19, 1
        %p260 = scmp.lt.s32.totalorder %s259, 3
        %s261 = scalar_select %p260, %s259, 3
      $region36: #{forward.5} parent=23 // pred_fallthru
        _
    $region24: #{forward.5} parent=5 // pred_fallthru
      _
    %p262 = scmp.le.s32.totalorder 1, %s11
    %p263 = scmp.lt.s32.totalorder %s11, 9
    %p264 = pnand %p262, %p263
    %p265 = pneg %p264
    // Predicated region
    $region37: #{forward.5} parent=5 // pred_check
      _
    $region38: #{forward.5} parent=5 // pred_check_branch
      %267 = sbr.rel (%p264) target = $region40
    $region39: #{forward.5} parent=5 // pred_region
      %s268 = ssub.s32 %s11, 1
      %s269 = ssub.s32 %s21, 1
      %p270 = scmp.gt.s32.totalorder %s269, 0
      %s271 = scalar_select %p270, %s269, 0
      %p272 = scmp.lt.s32.totalorder %s20, 1
      %s273 = scalar_select %p272, %s20, 1
      %p274 = scmp.lt.s32.totalorder %s271, 3
      %s275 = scalar_select %p274, %s271, 3
      %s276 = smul.addr %s275, 6
      %s277 = smul.addr %s273, 24
      %s278 = sadd.s32 %s276, %s277
      %s279 = smul.addr %s278, 4
      %s280 = scalar_lea.vmem %s0, %s279
      %p281 = pneg %p57
      %p282 = pneg %p54
      %p283 = scmp.lt.s32.totalorder %s20, 1
      %s284 = scalar_select %p283, %s20, 1
      %p285 = scmp.lt.s32.totalorder %s21, 3
      %s286 = scalar_select %p285, %s21, 3
      %s287 = smul.addr %s286, 6
      %s288 = smul.addr %s284, 24
      %s289 = sadd.s32 %s287, %s288
      %s290 = smul.addr %s289, 4
      %s291 = scalar_lea.vmem %s1, %s290
      %p292 = pneg %p85
      %p293 = pneg %p82
      %s294 = sadd.s32 %s21, 1
      %p295 = scmp.lt.s32.totalorder %s294, 3
      %s296 = scalar_select %p295, %s294, 3
      %p297 = scmp.lt.s32.totalorder %s20, 1
      %s298 = scalar_select %p297, %s20, 1
      %p299 = scmp.lt.s32.totalorder %s296, 3
      %s300 = scalar_select %p299, %s296, 3
      %s301 = smul.addr %s300, 6
      %s302 = smul.addr %s298, 24
      %s303 = sadd.s32 %s301, %s302
      %s304 = smul.addr %s303, 4
      %s305 = scalar_lea.vmem %s2, %s304
      %p306 = pneg %p119
      %p307 = pneg %p116
      %p308 = pneg %p140
      %p309 = pneg %p137
      %p310 = pneg %p161
      %p311 = pneg %p158
      %p312 = pneg %p189
      %p313 = pneg %p186
      %p314 = scmp.lt.s32.totalorder %s20, 1
      %s315 = scalar_select %p314, %s20, 1
      %p316 = scmp.lt.s32.totalorder %s21, 3
      %s317 = scalar_select %p316, %s21, 3
      %s318 = smul.addr %s317, 6
      %s319 = smul.addr %s315, 24
      %s320 = sadd.s32 %s318, %s319
      %s321 = smul.addr %s320, 4
      %s322 = scalar_lea.vmem %s5, %s321
      %s323 = ssub.s32 %s21, 1
      %p324 = scmp.gt.s32.totalorder %s323, 0
      %s325 = scalar_select %p324, %s323, 0
      %p326 = scmp.lt.s32.totalorder %s20, 1
      %s327 = scalar_select %p326, %s20, 1
      %p328 = scmp.lt.s32.totalorder %s325, 3
      %s329 = scalar_select %p328, %s325, 3
      %s330 = smul.addr %s329, 6
      %s331 = smul.addr %s327, 24
      %s332 = sadd.s32 %s330, %s331
      %s333 = smul.addr %s332, 4
      %s334 = scalar_lea.vmem %s0, %s333
      %s335 = ssub.s32 %s21, 1
      %p336 = scmp.gt.s32.totalorder %s335, 0
      %s337 = scalar_select %p336, %s335, 0
      %p338 = scmp.lt.s32.totalorder %s20, 1
      %s339 = scalar_select %p338, %s20, 1
      %p340 = scmp.lt.s32.totalorder %s21, 3
      %s341 = scalar_select %p340, %s21, 3
      %s342 = smul.addr %s341, 6
      %s343 = smul.addr %s339, 24
      %s344 = sadd.s32 %s342, %s343
      %s345 = smul.addr %s344, 4
      %s346 = scalar_lea.vmem %s1, %s345
      %s347 = sadd.s32 %s21, 1
      %p348 = scmp.lt.s32.totalorder %s347, 3
      %s349 = scalar_select %p348, %s347, 3
      %p350 = scmp.lt.s32.totalorder %s20, 1
      %s351 = scalar_select %p350, %s20, 1
      %p352 = scmp.lt.s32.totalorder %s349, 3
      %s353 = scalar_select %p352, %s349, 3
      %s354 = smul.addr %s353, 6
      %s355 = smul.addr %s351, 24
      %s356 = sadd.s32 %s354, %s355
      %s357 = smul.addr %s356, 4
      %s358 = scalar_lea.vmem %s2, %s357
      %s359 = sadd.s32 %s21, 1
      %p360 = scmp.lt.s32.totalorder %s359, 3
      %s361 = scalar_select %p360, %s359, 3
      %p362 = scmp.lt.s32.totalorder %s20, 1
      %s363 = scalar_select %p362, %s20, 1
      %p364 = scmp.lt.s32.totalorder %s21, 3
      %s365 = scalar_select %p364, %s21, 3
      %s366 = smul.addr %s365, 6
      %s367 = smul.addr %s363, 24
      %s368 = sadd.s32 %s366, %s367
      %s369 = smul.addr %s368, 4
      %s370 = scalar_lea.vmem %s5, %s369
      %v372 = vld [vmem:[%s346] sm:$0xf]
      %v373 = vld [vmem:[%s346 + $0x4] sm:$0xf]
      %v374 = vld [vmem:[%s346 + $0x8] sm:$0xf]
      %v375 = vld [vmem:[%s346 + $0xc] sm:$0x1]
      %v376 = vld [vmem:[%s346] sm:$0xe]
      %v377 = vld [vmem:[%s346] sm:$0x8]
      %v378 = vld [vmem:[%s346 + $0xc] sm:$0x7]
      %v379 = vld [vmem:[%s346 + $0xc] sm:$0xf]
      %v380 = vld [vmem:[%s346 + $0x4] sm:$0xc]
      %v381 = vld [vmem:[%s346 + $0x10] sm:$0x3]
      %v382 = vld [vmem:[%s346 + $0x10] sm:$0x7]
      %v383 = vld [vmem:[%s346 + $0x4] sm:$0x8]
      %v387 = vunpack.c.l.b16 %v372
      %v388 = vunpack.c.l.b16 %v373
      %v389 = vunpack.c.l.b16 %v374
      %v390 = vpack.c.b16 %v388, %v387
      %v391 = vpack.c.b16 %v389, %v389
      %v395 = vunpack.c.l.b16 %v375
      %v396 = vpack.c.b16 %v395, %v389
      %vm397 = vsmask.f32 7424
      %v399 = vshrl.u32 %v390, 16
      %v401 = vshll.u32 %v390, 16
      %v403 = vrot.slane %v401, 1
      %v404 = vor.u32 %v399, %v403
      %v406 = vshll.u32 %v396, 16
      %v408 = vrot.slane %v406, 1
      %v409 = vsel %vm397, %v404, %v408
      %v410 = vshrl.u32 %v396, 16
      %v412 = vor.u32 %v410, %v408
      %v416 = vunpack.c.l.b16 %v376
      %v417 = vpack.c.b16 %v388, %v416
      %vm418 = vcmask 1046528
      %v419 = vrot.slane %v417, 1
      %v420 = vrot.slane %v396, 1
      %v421 = vsel %vm418, %v419, %v420
      %v426 = vunpack.c.l.b16 %v377
      %v427 = vunpack.c.l.b16 %v378
      %v428 = vpack.c.b16 %v388, %v426
      %v429 = vpack.c.b16 %v427, %v389
      %vm430 = vcmask 1044480
      %v431 = vrot.slane %v428, 3
      %v432 = vrot.slane %v429, 3
      %v433 = vsel %vm430, %v431, %v432
      %v437 = vunpack.c.l.b16 %v379
      %v438 = vpack.c.b16 %v437, %v389
      %vm439 = vsmask.f32 4352
      %v441 = vshrl.u32 %v428, 16
      %v443 = vrot.slane %v441, 3
      %v444 = vshll.u32 %v428, 16
      %v446 = vrot.slane %v444, 4
      %v447 = vor.u32 %v443, %v446
      %v449 = vshrl.u32 %v438, 16
      %v451 = vrot.slane %v449, 3
      %v452 = vshll.u32 %v438, 16
      %v454 = vrot.slane %v452, 4
      %v455 = vor.u32 %v451, %v454
      %v456 = vsel %vm439, %v447, %v455
      %v459 = vpack.c.b16 %v389, %v388
      %v460 = vpack.c.b16 %v437, %v437
      %v465 = vunpack.c.l.b16 %v380
      %v466 = vunpack.c.l.b16 %v381
      %v467 = vpack.c.b16 %v389, %v465
      %v468 = vpack.c.b16 %v466, %v437
      %vm469 = vcmask 1045504
      %v470 = vrot.slane %v467, 2
      %v471 = vrot.slane %v468, 2
      %v472 = vsel %vm469, %v470, %v471
      %v476 = vunpack.c.l.b16 %v382
      %v477 = vpack.c.b16 %v476, %v437
      %vm478 = vsmask.f32 5376
      %v480 = vshrl.u32 %v467, 16
      %v482 = vrot.slane %v480, 2
      %v483 = vshll.u32 %v467, 16
      %v485 = vrot.slane %v483, 3
      %v486 = vor.u32 %v482, %v485
      %v488 = vshrl.u32 %v477, 16
      %v490 = vrot.slane %v488, 2
      %v491 = vshll.u32 %v477, 16
      %v493 = vrot.slane %v491, 3
      %v494 = vor.u32 %v490, %v493
      %v495 = vsel %vm478, %v486, %v494
      %v499 = vunpack.c.l.b16 %v383
      %v500 = vpack.c.b16 %v389, %v499
      %v501 = vrot.slane %v500, 3
      %v502 = vrot.slane %v477, 3
      %v503 = vsel %vm430, %v501, %v502
      %s506 = scalar_lea.vmem %s3, 576
      %v507 = vld [vmem:[%s506] sm:$0xf]
      %v508 = vld [vmem:[%s506 + $0x4] sm:$0xf]
      %v509 = vld [vmem:[%s506 + $0x8] sm:$0xf]
      %v510 = vld [vmem:[%s506 + $0xc] sm:$0xf]
      %v511 = vld [vmem:[%s506 + $0x10] sm:$0xf]
      %v512 = vld [vmem:[%s506 + $0x14] sm:$0xf]
      %v513 = vld [vmem:[%s506 + $0x18] sm:$0xf]
      %v514 = vld [vmem:[%s506 + $0x1c] sm:$0xf]
      %v515 = vld [vmem:[%s506 + $0x20] sm:$0xf]
      %v516 = vld [vmem:[%s506 + $0x24] sm:$0xf]
      %v517 = vld [vmem:[%s506 + $0x28] sm:$0xf]
      %v518 = vld [vmem:[%s506 + $0x2c] sm:$0xf]
      %v519 = vld [vmem:[%s506 + $0x30] sm:$0xf]
      %v520 = vld [vmem:[%s506 + $0x34] sm:$0xf]
      %v521 = vld [vmem:[%s506 + $0x38] sm:$0xf]
      %v522 = vld [vmem:[%s506 + $0x3c] sm:$0xf]
      %v523 = vld [vmem:[%s506 + $0x40] sm:$0xf]
      %v524 = vld [vmem:[%s506 + $0x44] sm:$0xf]
      %v525 = vld [vmem:[%s506 + $0x48] sm:$0xf]
      %v526 = vld [vmem:[%s506 + $0x4c] sm:$0xf]
      %v527 = vld [vmem:[%s506 + $0x50] sm:$0xf]
      %v528 = vld [vmem:[%s506 + $0x54] sm:$0xf]
      %v529 = vld [vmem:[%s506 + $0x58] sm:$0xf]
      %v530 = vld [vmem:[%s506 + $0x5c] sm:$0xf]
      %v531 = vld [vmem:[%s506 + $0x60] sm:$0xf]
      %v532 = vld [vmem:[%s506 + $0x64] sm:$0xf]
      %v533 = vld [vmem:[%s506 + $0x68] sm:$0xf]
      %v534 = vld [vmem:[%s506 + $0x6c] sm:$0xf]
      %v535 = vld [vmem:[%s506 + $0x70] sm:$0xf]
      %v536 = vld [vmem:[%s506 + $0x74] sm:$0xf]
      %v537 = vld [vmem:[%s506 + $0x78] sm:$0xf]
      %v538 = vld [vmem:[%s506 + $0x7c] sm:$0xf]
      %v539 = vld [vmem:[%s506 + $0x80] sm:$0xf]
      %v540 = vld [vmem:[%s506 + $0x84] sm:$0xf]
      %v541 = vld [vmem:[%s506 + $0x88] sm:$0xf]
      %v542 = vld [vmem:[%s506 + $0x8c] sm:$0xf]
      %v543 = vld [vmem:[%s506 + $0x90] sm:$0xf]
      %v544 = vld [vmem:[%s506 + $0x94] sm:$0xf]
      %v545 = vld [vmem:[%s506 + $0x98] sm:$0xf]
      %v546 = vld [vmem:[%s506 + $0x9c] sm:$0xf]
      %v547 = vld [vmem:[%s506 + $0xa0] sm:$0xf]
      %v548 = vld [vmem:[%s506 + $0xa4] sm:$0xf]
      %v549 = vld [vmem:[%s506 + $0xa8] sm:$0xf]
      %v550 = vld [vmem:[%s506 + $0xac] sm:$0xf]
      %v551 = vld [vmem:[%s506 + $0xb0] sm:$0xf]
      %v552 = vld [vmem:[%s506 + $0xb4] sm:$0xf]
      %v553 = vld [vmem:[%s506 + $0xb8] sm:$0xf]
      %v554 = vld [vmem:[%s506 + $0xbc] sm:$0xf]
      %v555 = vld [vmem:[%s506 + $0xc0] sm:$0xf]
      %v556 = vld [vmem:[%s506 + $0xc4] sm:$0xf]
      %v557 = vld [vmem:[%s506 + $0xc8] sm:$0xf]
      %v558 = vld [vmem:[%s506 + $0xcc] sm:$0xf]
      %v559 = vld [vmem:[%s506 + $0xd0] sm:$0xf]
      %v560 = vld [vmem:[%s506 + $0xd4] sm:$0xf]
      %v561 = vld [vmem:[%s506 + $0xd8] sm:$0xf]
      %v562 = vld [vmem:[%s506 + $0xdc] sm:$0xf]
      %v563 = vld [vmem:[%s506 + $0xe0] sm:$0xf]
      %v564 = vld [vmem:[%s506 + $0xe4] sm:$0xf]
      %v565 = vld [vmem:[%s506 + $0xe8] sm:$0xf]
      %v566 = vld [vmem:[%s506 + $0xec] sm:$0xf]
      %v567 = vld [vmem:[%s506 + $0xf0] sm:$0xf]
      %v568 = vld [vmem:[%s506 + $0xf4] sm:$0xf]
      %v569 = vld [vmem:[%s506 + $0xf8] sm:$0xf]
      %v570 = vld [vmem:[%s506 + $0xfc] sm:$0xf]
      %v571 = vld [vmem:[%s506 + $0x100] sm:$0xf]
      %v572 = vld [vmem:[%s506 + $0x104] sm:$0xf]
      %v573 = vld [vmem:[%s506 + $0x108] sm:$0xf]
      %v574 = vld [vmem:[%s506 + $0x10c] sm:$0xf]
      %v575 = vld [vmem:[%s506 + $0x110] sm:$0xf]
      %v576 = vld [vmem:[%s506 + $0x114] sm:$0xf]
      %v577 = vld [vmem:[%s506 + $0x118] sm:$0xf]
      %v578 = vld [vmem:[%s506 + $0x11c] sm:$0xf]
      %v579 = vld [vmem:[%s506 + $0x120] sm:$0xf]
      %v580 = vld [vmem:[%s506 + $0x124] sm:$0xf]
      %v581 = vld [vmem:[%s506 + $0x128] sm:$0xf]
      %v582 = vld [vmem:[%s506 + $0x12c] sm:$0xf]
      %v583 = vld [vmem:[%s506 + $0x130] sm:$0xf]
      %v584 = vld [vmem:[%s506 + $0x134] sm:$0xf]
      %v585 = vld [vmem:[%s506 + $0x138] sm:$0xf]
      %v586 = vld [vmem:[%s506 + $0x13c] sm:$0xf]
      %v587 = vld [vmem:[%s506 + $0x140] sm:$0xf]
      %v588 = vld [vmem:[%s506 + $0x144] sm:$0xf]
      %v589 = vld [vmem:[%s506 + $0x148] sm:$0xf]
      %v590 = vld [vmem:[%s506 + $0x14c] sm:$0xf]
      %v591 = vld [vmem:[%s506 + $0x150] sm:$0xf]
      %v592 = vld [vmem:[%s506 + $0x154] sm:$0xf]
      %v593 = vld [vmem:[%s506 + $0x158] sm:$0xf]
      %v594 = vld [vmem:[%s506 + $0x15c] sm:$0xf]
      %v595 = vld [vmem:[%s506 + $0x160] sm:$0xf]
      %v596 = vld [vmem:[%s506 + $0x164] sm:$0xf]
      %v597 = vld [vmem:[%s506 + $0x168] sm:$0xf]
      %v598 = vld [vmem:[%s506 + $0x16c] sm:$0xf]
      %v599 = vld [vmem:[%s506 + $0x170] sm:$0xf]
      %v600 = vld [vmem:[%s506 + $0x174] sm:$0xf]
      %v601 = vld [vmem:[%s506 + $0x178] sm:$0xf]
      %v602 = vld [vmem:[%s506 + $0x17c] sm:$0xf]
      %v603 = vld [vmem:[%s506 + $0x180] sm:$0xf]
      %v604 = vld [vmem:[%s506 + $0x184] sm:$0xf]
      %v605 = vld [vmem:[%s506 + $0x188] sm:$0xf]
      %v606 = vld [vmem:[%s506 + $0x18c] sm:$0xf]
      %v607 = vld [vmem:[%s506 + $0x190] sm:$0xf]
      %v608 = vld [vmem:[%s506 + $0x194] sm:$0xf]
      %v609 = vld [vmem:[%s506 + $0x198] sm:$0xf]
      %v610 = vld [vmem:[%s506 + $0x19c] sm:$0xf]
      %v611 = vld [vmem:[%s506 + $0x1a0] sm:$0xf]
      %v612 = vld [vmem:[%s506 + $0x1a4] sm:$0xf]
      %v613 = vld [vmem:[%s506 + $0x1a8] sm:$0xf]
      %v614 = vld [vmem:[%s506 + $0x1ac] sm:$0xf]
      %v615 = vld [vmem:[%s506 + $0x1b0] sm:$0xf]
      %v616 = vld [vmem:[%s506 + $0x1b4] sm:$0xf]
      %v617 = vld [vmem:[%s506 + $0x1b8] sm:$0xf]
      %v618 = vld [vmem:[%s506 + $0x1bc] sm:$0xf]
      %v619 = vld [vmem:[%s506 + $0x1c0] sm:$0xf]
      %v620 = vld [vmem:[%s506 + $0x1c4] sm:$0xf]
      %v621 = vld [vmem:[%s506 + $0x1c8] sm:$0xf]
      %v622 = vld [vmem:[%s506 + $0x1cc] sm:$0xf]
      %v623 = vld [vmem:[%s506 + $0x1d0] sm:$0xf]
      %v624 = vld [vmem:[%s506 + $0x1d4] sm:$0xf]
      %v625 = vld [vmem:[%s506 + $0x1d8] sm:$0xf]
      %v626 = vld [vmem:[%s506 + $0x1dc] sm:$0xf]
      %v627 = vld [vmem:[%s506 + $0x1e0] sm:$0xf]
      %v628 = vld [vmem:[%s506 + $0x1e4] sm:$0xf]
      %v629 = vld [vmem:[%s506 + $0x1e8] sm:$0xf]
      %v630 = vld [vmem:[%s506 + $0x1ec] sm:$0xf]
      %v631 = vld [vmem:[%s506 + $0x1f0] sm:$0xf]
      %v632 = vld [vmem:[%s506 + $0x1f4] sm:$0xf]
      %v633 = vld [vmem:[%s506 + $0x1f8] sm:$0xf]
      %v634 = vld [vmem:[%s506 + $0x1fc] sm:$0xf]
      %v635 = vld [vmem:[%s506 + $0x200] sm:$0xf]
      %v636 = vld [vmem:[%s506 + $0x204] sm:$0xf]
      %v637 = vld [vmem:[%s506 + $0x208] sm:$0xf]
      %v638 = vld [vmem:[%s506 + $0x20c] sm:$0xf]
      %v639 = vld [vmem:[%s506 + $0x210] sm:$0xf]
      %v640 = vld [vmem:[%s506 + $0x214] sm:$0xf]
      %v641 = vld [vmem:[%s506 + $0x218] sm:$0xf]
      %v642 = vld [vmem:[%s506 + $0x21c] sm:$0xf]
      %v643 = vld [vmem:[%s506 + $0x220] sm:$0xf]
      %v644 = vld [vmem:[%s506 + $0x224] sm:$0xf]
      %v645 = vld [vmem:[%s506 + $0x228] sm:$0xf]
      %v646 = vld [vmem:[%s506 + $0x22c] sm:$0xf]
      %v647 = vld [vmem:[%s506 + $0x230] sm:$0xf]
      %v648 = vld [vmem:[%s506 + $0x234] sm:$0xf]
      %v649 = vld [vmem:[%s506 + $0x238] sm:$0xf]
      %v650 = vld [vmem:[%s506 + $0x23c] sm:$0xf]
      %v795 = vunpack.c.l.b16 %v507
      %v796 = vunpack.c.l.b16 %v508
      %v797 = vunpack.c.l.b16 %v509
      %v798 = vunpack.c.l.b16 %v510
      %v799 = vunpack.c.l.b16 %v511
      %v800 = vunpack.c.l.b16 %v512
      %v801 = vunpack.c.l.b16 %v513
      %v802 = vunpack.c.l.b16 %v514
      %v803 = vunpack.c.l.b16 %v515
      %v804 = vunpack.c.l.b16 %v516
      %v805 = vunpack.c.l.b16 %v517
      %v806 = vunpack.c.l.b16 %v518
      %v807 = vunpack.c.l.b16 %v519
      %v808 = vunpack.c.l.b16 %v520
      %v809 = vunpack.c.l.b16 %v521
      %v810 = vunpack.c.l.b16 %v522
      %v811 = vunpack.c.l.b16 %v523
      %v812 = vunpack.c.l.b16 %v524
      %v813 = vunpack.c.l.b16 %v525
      %v814 = vunpack.c.l.b16 %v526
      %v815 = vunpack.c.l.b16 %v527
      %v816 = vunpack.c.l.b16 %v528
      %v817 = vunpack.c.l.b16 %v529
      %v818 = vunpack.c.l.b16 %v530
      %v819 = vunpack.c.l.b16 %v531
      %v820 = vunpack.c.l.b16 %v532
      %v821 = vunpack.c.l.b16 %v533
      %v822 = vunpack.c.l.b16 %v534
      %v823 = vunpack.c.l.b16 %v535
      %v824 = vunpack.c.l.b16 %v536
      %v825 = vunpack.c.l.b16 %v537
      %v826 = vunpack.c.l.b16 %v538
      %v827 = vunpack.c.l.b16 %v539
      %v828 = vunpack.c.l.b16 %v540
      %v829 = vunpack.c.l.b16 %v541
      %v830 = vunpack.c.l.b16 %v542
      %v831 = vunpack.c.l.b16 %v543
      %v832 = vunpack.c.l.b16 %v544
      %v833 = vunpack.c.l.b16 %v545
      %v834 = vunpack.c.l.b16 %v546
      %v835 = vunpack.c.l.b16 %v547
      %v836 = vunpack.c.l.b16 %v548
      %v837 = vunpack.c.l.b16 %v549
      %v838 = vunpack.c.l.b16 %v550
      %v839 = vunpack.c.l.b16 %v551
      %v840 = vunpack.c.l.b16 %v552
      %v841 = vunpack.c.l.b16 %v553
      %v842 = vunpack.c.l.b16 %v554
      %v843 = vunpack.c.l.b16 %v555
      %v844 = vunpack.c.l.b16 %v556
      %v845 = vunpack.c.l.b16 %v557
      %v846 = vunpack.c.l.b16 %v558
      %v847 = vunpack.c.l.b16 %v559
      %v848 = vunpack.c.l.b16 %v560
      %v849 = vunpack.c.l.b16 %v561
      %v850 = vunpack.c.l.b16 %v562
      %v851 = vunpack.c.l.b16 %v563
      %v852 = vunpack.c.l.b16 %v564
      %v853 = vunpack.c.l.b16 %v565
      %v854 = vunpack.c.l.b16 %v566
      %v855 = vunpack.c.l.b16 %v567
      %v856 = vunpack.c.l.b16 %v568
      %v857 = vunpack.c.l.b16 %v569
      %v858 = vunpack.c.l.b16 %v570
      %v859 = vunpack.c.l.b16 %v571
      %v860 = vunpack.c.l.b16 %v572
      %v861 = vunpack.c.l.b16 %v573
      %v862 = vunpack.c.l.b16 %v574
      %v863 = vunpack.c.l.b16 %v575
      %v864 = vunpack.c.l.b16 %v576
      %v865 = vunpack.c.l.b16 %v577
      %v866 = vunpack.c.l.b16 %v578
      %v867 = vunpack.c.l.b16 %v579
      %v868 = vunpack.c.l.b16 %v580
      %v869 = vunpack.c.l.b16 %v581
      %v870 = vunpack.c.l.b16 %v582
      %v871 = vunpack.c.l.b16 %v583
      %v872 = vunpack.c.l.b16 %v584
      %v873 = vunpack.c.l.b16 %v585
      %v874 = vunpack.c.l.b16 %v586
      %v875 = vunpack.c.l.b16 %v587
      %v876 = vunpack.c.l.b16 %v588
      %v877 = vunpack.c.l.b16 %v589
      %v878 = vunpack.c.l.b16 %v590
      %v879 = vunpack.c.l.b16 %v591
      %v880 = vunpack.c.l.b16 %v592
      %v881 = vunpack.c.l.b16 %v593
      %v882 = vunpack.c.l.b16 %v594
      %v883 = vunpack.c.l.b16 %v595
      %v884 = vunpack.c.l.b16 %v596
      %v885 = vunpack.c.l.b16 %v597
      %v886 = vunpack.c.l.b16 %v598
      %v887 = vunpack.c.l.b16 %v599
      %v888 = vunpack.c.l.b16 %v600
      %v889 = vunpack.c.l.b16 %v601
      %v890 = vunpack.c.l.b16 %v602
      %v891 = vunpack.c.l.b16 %v603
      %v892 = vunpack.c.l.b16 %v604
      %v893 = vunpack.c.l.b16 %v605
      %v894 = vunpack.c.l.b16 %v606
      %v895 = vunpack.c.l.b16 %v607
      %v896 = vunpack.c.l.b16 %v608
      %v897 = vunpack.c.l.b16 %v609
      %v898 = vunpack.c.l.b16 %v610
      %v899 = vunpack.c.l.b16 %v611
      %v900 = vunpack.c.l.b16 %v612
      %v901 = vunpack.c.l.b16 %v613
      %v902 = vunpack.c.l.b16 %v614
      %v903 = vunpack.c.l.b16 %v615
      %v904 = vunpack.c.l.b16 %v616
      %v905 = vunpack.c.l.b16 %v617
      %v906 = vunpack.c.l.b16 %v618
      %v907 = vunpack.c.l.b16 %v619
      %v908 = vunpack.c.l.b16 %v620
      %v909 = vunpack.c.l.b16 %v621
      %v910 = vunpack.c.l.b16 %v622
      %v911 = vunpack.c.l.b16 %v623
      %v912 = vunpack.c.l.b16 %v624
      %v913 = vunpack.c.l.b16 %v625
      %v914 = vunpack.c.l.b16 %v626
      %v915 = vunpack.c.l.b16 %v627
      %v916 = vunpack.c.l.b16 %v628
      %v917 = vunpack.c.l.b16 %v629
      %v918 = vunpack.c.l.b16 %v630
      %v919 = vunpack.c.l.b16 %v631
      %v920 = vunpack.c.l.b16 %v632
      %v921 = vunpack.c.l.b16 %v633
      %v922 = vunpack.c.l.b16 %v634
      %v923 = vunpack.c.l.b16 %v635
      %v924 = vunpack.c.l.b16 %v636
      %v925 = vunpack.c.l.b16 %v637
      %v926 = vunpack.c.l.b16 %v638
      %v927 = vunpack.c.l.b16 %v639
      %v928 = vunpack.c.l.b16 %v640
      %v929 = vunpack.c.l.b16 %v641
      %v930 = vunpack.c.l.b16 %v642
      %v931 = vunpack.c.l.b16 %v643
      %v932 = vunpack.c.l.b16 %v644
      %v933 = vunpack.c.l.b16 %v645
      %v934 = vunpack.c.l.b16 %v646
      %v935 = vunpack.c.l.b16 %v647
      %v936 = vunpack.c.l.b16 %v648
      %v937 = vunpack.c.l.b16 %v649
      %v938 = vunpack.c.l.b16 %v650
      %v939 = vpack.c.b16 %v796, %v795
      %v940 = vpack.c.b16 %v798, %v797
      %v941 = vpack.c.b16 %v800, %v799
      %v942 = vpack.c.b16 %v802, %v801
      %v943 = vpack.c.b16 %v804, %v803
      %v944 = vpack.c.b16 %v806, %v805
      %v945 = vpack.c.b16 %v808, %v807
      %v946 = vpack.c.b16 %v810, %v809
      %v947 = vpack.c.b16 %v812, %v811
      %v948 = vpack.c.b16 %v814, %v813
      %v949 = vpack.c.b16 %v816, %v815
      %v950 = vpack.c.b16 %v818, %v817
      %v951 = vpack.c.b16 %v820, %v819
      %v952 = vpack.c.b16 %v822, %v821
      %v953 = vpack.c.b16 %v824, %v823
      %v954 = vpack.c.b16 %v826, %v825
      %v955 = vpack.c.b16 %v828, %v827
      %v956 = vpack.c.b16 %v830, %v829
      %v957 = vpack.c.b16 %v832, %v831
      %v958 = vpack.c.b16 %v834, %v833
      %v959 = vpack.c.b16 %v836, %v835
      %v960 = vpack.c.b16 %v838, %v837
      %v961 = vpack.c.b16 %v840, %v839
      %v962 = vpack.c.b16 %v842, %v841
      %v963 = vpack.c.b16 %v844, %v843
      %v964 = vpack.c.b16 %v846, %v845
      %v965 = vpack.c.b16 %v848, %v847
      %v966 = vpack.c.b16 %v850, %v849
      %v967 = vpack.c.b16 %v852, %v851
      %v968 = vpack.c.b16 %v854, %v853
      %v969 = vpack.c.b16 %v856, %v855
      %v970 = vpack.c.b16 %v858, %v857
      %v971 = vpack.c.b16 %v860, %v859
      %v972 = vpack.c.b16 %v862, %v861
      %v973 = vpack.c.b16 %v864, %v863
      %v974 = vpack.c.b16 %v866, %v865
      %v975 = vpack.c.b16 %v868, %v867
      %v976 = vpack.c.b16 %v870, %v869
      %v977 = vpack.c.b16 %v872, %v871
      %v978 = vpack.c.b16 %v874, %v873
      %v979 = vpack.c.b16 %v876, %v875
      %v980 = vpack.c.b16 %v878, %v877
      %v981 = vpack.c.b16 %v880, %v879
      %v982 = vpack.c.b16 %v882, %v881
      %v983 = vpack.c.b16 %v884, %v883
      %v984 = vpack.c.b16 %v886, %v885
      %v985 = vpack.c.b16 %v888, %v887
      %v986 = vpack.c.b16 %v890, %v889
      %v987 = vpack.c.b16 %v892, %v891
      %v988 = vpack.c.b16 %v894, %v893
      %v989 = vpack.c.b16 %v896, %v895
      %v990 = vpack.c.b16 %v898, %v897
      %v991 = vpack.c.b16 %v900, %v899
      %v992 = vpack.c.b16 %v902, %v901
      %v993 = vpack.c.b16 %v904, %v903
      %v994 = vpack.c.b16 %v906, %v905
      %v995 = vpack.c.b16 %v908, %v907
      %v996 = vpack.c.b16 %v910, %v909
      %v997 = vpack.c.b16 %v912, %v911
      %v998 = vpack.c.b16 %v914, %v913
      %v999 = vpack.c.b16 %v916, %v915
      %v1000 = vpack.c.b16 %v918, %v917
      %v1001 = vpack.c.b16 %v920, %v919
      %v1002 = vpack.c.b16 %v922, %v921
      %v1003 = vpack.c.b16 %v924, %v923
      %v1004 = vpack.c.b16 %v926, %v925
      %v1005 = vpack.c.b16 %v928, %v927
      %v1006 = vpack.c.b16 %v930, %v929
      %v1007 = vpack.c.b16 %v932, %v931
      %v1008 = vpack.c.b16 %v934, %v933
      %v1009 = vpack.c.b16 %v936, %v935
      %v1010 = vpack.c.b16 %v938, %v937
      %1083 = vmatprep.subr.bf16.mxu0 0
      %1084 = vmatpush1.bf16.msra.mxu0 %v946
      %1085 = vmatprep.subr.bf16.mxu0 0
      %1086 = vmatpush1.bf16.msra.mxu0 %v945
      %1087 = vmatprep.subr.bf16.mxu0 0
      %1088 = vmatpush1.bf16.msra.mxu0 %v944
      %1089 = vmatprep.subr.bf16.mxu0 0
      %1090 = vmatpush1.bf16.msra.mxu0 %v943
      %1091 = vmatprep.subr.bf16.mxu0 0
      %1092 = vmatpush1.bf16.msra.mxu0 %v942
      %1093 = vmatprep.subr.bf16.mxu0 0
      %1094 = vmatpush1.bf16.msra.mxu0 %v941
      %1095 = vmatprep.subr.bf16.mxu0 0
      %1096 = vmatpush1.bf16.msra.mxu0 %v940
      %1097 = vmatprep.subr.bf16.mxu0 0
      %1098 = vmatpush1.bf16.msra.mxu0 %v939
      %1099 = vmatprep.subr.bf16.mxu0 0
      %1100 = vmatpush2.bf16.msra.mxu0 %v954
      %1101 = vmatprep.subr.bf16.mxu0 0
      %1102 = vmatpush2.bf16.msra.mxu0 %v953
      %1103 = vmatprep.subr.bf16.mxu0 0
      %1104 = vmatpush2.bf16.msra.mxu0 %v952
      %1105 = vmatprep.subr.bf16.mxu0 0
      %1106 = vmatpush2.bf16.msra.mxu0 %v951
      %1107 = vmatprep.subr.bf16.mxu0 0
      %1108 = vmatpush2.bf16.msra.mxu0 %v950
      %1109 = vmatprep.subr.bf16.mxu0 0
      %1110 = vmatpush2.bf16.msra.mxu0 %v949
      %1111 = vmatprep.subr.bf16.mxu0 0
      %1112 = vmatpush2.bf16.msra.mxu0 %v948
      %1113 = vmatprep.subr.bf16.mxu0 0
      %1114 = vmatpush2.bf16.msra.mxu0 %v947
      %1115 = vmatprep.mubr.bf16.mxu0 %v409
      %1116 = vmatmul.mubr.bf16.gmra.mxu0 %v390
      %v1117 = vpop.f32.mrf.mxu0
      %v1118 = vadd.f32 0.0, %v1117
      %v1119 = vpop.f32.mrf.mxu0
      %v1120 = vpop.f32.mrf.mxu0
      %v1121 = vadd.f32 0.0, %v1120
      %v1122 = vpop.f32.mrf.mxu0
      %1123 = vmatprep.mubr.bf16.mxu0 %v412
      %1124 = vmatmul.mubr.bf16.gmra.mxu0 %v391
      %v1125 = vpop.f32.mrf.mxu0
      %v1126 = vadd.f32 0.0, %v1125
      %v1127 = vpop.f32.mrf.mxu0
      %v1128 = vpop.f32.mrf.mxu0
      %v1129 = vpop.f32.mrf.mxu0
      %1130 = vdwg.mxu0
      %1131 = vmatprep.subr.bf16.mxu0 0
      %1132 = vmatpush1.bf16.msra.mxu0 %v962
      %1133 = vmatprep.subr.bf16.mxu0 0
      %1134 = vmatpush1.bf16.msra.mxu0 %v961
      %1135 = vmatprep.subr.bf16.mxu0 0
      %1136 = vmatpush1.bf16.msra.mxu0 %v960
      %1137 = vmatprep.subr.bf16.mxu0 0
      %1138 = vmatpush1.bf16.msra.mxu0 %v959
      %1139 = vmatprep.subr.bf16.mxu0 0
      %1140 = vmatpush1.bf16.msra.mxu0 %v958
      %1141 = vmatprep.subr.bf16.mxu0 0
      %1142 = vmatpush1.bf16.msra.mxu0 %v957
      %1143 = vmatprep.subr.bf16.mxu0 0
      %1144 = vmatpush1.bf16.msra.mxu0 %v956
      %1145 = vmatprep.subr.bf16.mxu0 0
      %1146 = vmatpush1.bf16.msra.mxu0 %v955
      %1147 = vmatprep.subr.bf16.mxu0 0
      %1148 = vmatpush2.bf16.msra.mxu0 %v970
      %1149 = vmatprep.subr.bf16.mxu0 0
      %1150 = vmatpush2.bf16.msra.mxu0 %v969
      %1151 = vmatprep.subr.bf16.mxu0 0
      %1152 = vmatpush2.bf16.msra.mxu0 %v968
      %1153 = vmatprep.subr.bf16.mxu0 0
      %1154 = vmatpush2.bf16.msra.mxu0 %v967
      %1155 = vmatprep.subr.bf16.mxu0 0
      %1156 = vmatpush2.bf16.msra.mxu0 %v966
      %1157 = vmatprep.subr.bf16.mxu0 0
      %1158 = vmatpush2.bf16.msra.mxu0 %v965
      %1159 = vmatprep.subr.bf16.mxu0 0
      %1160 = vmatpush2.bf16.msra.mxu0 %v964
      %1161 = vmatprep.subr.bf16.mxu0 0
      %1162 = vmatpush2.bf16.msra.mxu0 %v963
      %1163 = vmatprep.mubr.bf16.mxu0 %v433
      %1164 = vmatmul.mubr.bf16.gmra.mxu0 %v421
      %v1165 = vpop.f32.mrf.mxu0
      %v1166 = vadd.f32 %v1118, %v1165
      %v1167 = vpop.f32.mrf.mxu0
      %v1168 = vpop.f32.mrf.mxu0
      %v1169 = vadd.f32 %v1121, %v1168
      %v1170 = vpop.f32.mrf.mxu0
      %1171 = vmatprep.mubr.bf16.mxu0 %v432
      %1172 = vmatmul.mubr.bf16.gmra.mxu0 %v420
      %v1173 = vpop.f32.mrf.mxu0
      %v1174 = vadd.f32 %v1126, %v1173
      %v1175 = vpop.f32.mrf.mxu0
      %v1176 = vpop.f32.mrf.mxu0
      %v1177 = vpop.f32.mrf.mxu0
      %1178 = vdwg.mxu0
      %1179 = vmatprep.subr.bf16.mxu0 0
      %1180 = vmatpush1.bf16.msra.mxu0 %v978
      %1181 = vmatprep.subr.bf16.mxu0 0
      %1182 = vmatpush1.bf16.msra.mxu0 %v977
      %1183 = vmatprep.subr.bf16.mxu0 0
      %1184 = vmatpush1.bf16.msra.mxu0 %v976
      %1185 = vmatprep.subr.bf16.mxu0 0
      %1186 = vmatpush1.bf16.msra.mxu0 %v975
      %1187 = vmatprep.subr.bf16.mxu0 0
      %1188 = vmatpush1.bf16.msra.mxu0 %v974
      %1189 = vmatprep.subr.bf16.mxu0 0
      %1190 = vmatpush1.bf16.msra.mxu0 %v973
      %1191 = vmatprep.subr.bf16.mxu0 0
      %1192 = vmatpush1.bf16.msra.mxu0 %v972
      %1193 = vmatprep.subr.bf16.mxu0 0
      %1194 = vmatpush1.bf16.msra.mxu0 %v971
      %1195 = vmatprep.subr.bf16.mxu0 0
      %1196 = vmatpush2.bf16.msra.mxu0 %v986
      %1197 = vmatprep.subr.bf16.mxu0 0
      %1198 = vmatpush2.bf16.msra.mxu0 %v985
      %1199 = vmatprep.subr.bf16.mxu0 0
      %1200 = vmatpush2.bf16.msra.mxu0 %v984
      %1201 = vmatprep.subr.bf16.mxu0 0
      %1202 = vmatpush2.bf16.msra.mxu0 %v983
      %1203 = vmatprep.subr.bf16.mxu0 0
      %1204 = vmatpush2.bf16.msra.mxu0 %v982
      %1205 = vmatprep.subr.bf16.mxu0 0
      %1206 = vmatpush2.bf16.msra.mxu0 %v981
      %1207 = vmatprep.subr.bf16.mxu0 0
      %1208 = vmatpush2.bf16.msra.mxu0 %v980
      %1209 = vmatprep.subr.bf16.mxu0 0
      %1210 = vmatpush2.bf16.msra.mxu0 %v979
      %1211 = vmatprep.mubr.bf16.mxu0 %v459
      %1212 = vmatmul.mubr.bf16.gmra.mxu0 %v456
      %v1213 = vpop.f32.mrf.mxu0
      %v1214 = vadd.f32 %v1166, %v1213
      %v1215 = vpop.f32.mrf.mxu0
      %v1216 = vpop.f32.mrf.mxu0
      %v1217 = vadd.f32 %v1169, %v1216
      %v1218 = vpop.f32.mrf.mxu0
      %1219 = vmatprep.mubr.bf16.mxu0 %v460
      %1220 = vmatmul.mubr.bf16.gmra.mxu0 %v455
      %v1221 = vpop.f32.mrf.mxu0
      %v1222 = vadd.f32 %v1174, %v1221
      %v1223 = vpop.f32.mrf.mxu0
      %v1224 = vpop.f32.mrf.mxu0
      %v1225 = vpop.f32.mrf.mxu0
      %1226 = vdwg.mxu0
      %1227 = vmatprep.subr.bf16.mxu0 0
      %1228 = vmatpush1.bf16.msra.mxu0 %v994
      %1229 = vmatprep.subr.bf16.mxu0 0
      %1230 = vmatpush1.bf16.msra.mxu0 %v993
      %1231 = vmatprep.subr.bf16.mxu0 0
      %1232 = vmatpush1.bf16.msra.mxu0 %v992
      %1233 = vmatprep.subr.bf16.mxu0 0
      %1234 = vmatpush1.bf16.msra.mxu0 %v991
      %1235 = vmatprep.subr.bf16.mxu0 0
      %1236 = vmatpush1.bf16.msra.mxu0 %v990
      %1237 = vmatprep.subr.bf16.mxu0 0
      %1238 = vmatpush1.bf16.msra.mxu0 %v989
      %1239 = vmatprep.subr.bf16.mxu0 0
      %1240 = vmatpush1.bf16.msra.mxu0 %v988
      %1241 = vmatprep.subr.bf16.mxu0 0
      %1242 = vmatpush1.bf16.msra.mxu0 %v987
      %1243 = vmatprep.subr.bf16.mxu0 0
      %1244 = vmatpush2.bf16.msra.mxu0 %v1002
      %1245 = vmatprep.subr.bf16.mxu0 0
      %1246 = vmatpush2.bf16.msra.mxu0 %v1001
      %1247 = vmatprep.subr.bf16.mxu0 0
      %1248 = vmatpush2.bf16.msra.mxu0 %v1000
      %1249 = vmatprep.subr.bf16.mxu0 0
      %1250 = vmatpush2.bf16.msra.mxu0 %v999
      %1251 = vmatprep.subr.bf16.mxu0 0
      %1252 = vmatpush2.bf16.msra.mxu0 %v998
      %1253 = vmatprep.subr.bf16.mxu0 0
      %1254 = vmatpush2.bf16.msra.mxu0 %v997
      %1255 = vmatprep.subr.bf16.mxu0 0
      %1256 = vmatpush2.bf16.msra.mxu0 %v996
      %1257 = vmatprep.subr.bf16.mxu0 0
      %1258 = vmatpush2.bf16.msra.mxu0 %v995
      %1259 = vmatprep.mubr.bf16.mxu0 %v495
      %1260 = vmatmul.mubr.bf16.gmra.mxu0 %v472
      %v1261 = vpop.f32.mrf.mxu0
      %v1262 = vadd.f32 %v1214, %v1261
      %v1263 = vpop.f32.mrf.mxu0
      %v1264 = vpop.f32.mrf.mxu0
      %v1265 = vadd.f32 %v1217, %v1264
      %v1266 = vpop.f32.mrf.mxu0
      %1267 = vmatprep.mubr.bf16.mxu0 %v494
      %1268 = vmatmul.mubr.bf16.gmra.mxu0 %v471
      %v1269 = vpop.f32.mrf.mxu0
      %v1270 = vadd.f32 %v1222, %v1269
      %v1271 = vpop.f32.mrf.mxu0
      %v1272 = vpop.f32.mrf.mxu0
      %v1273 = vpop.f32.mrf.mxu0
      %1274 = vdwg.mxu0
      %1275 = vmatprep.subr.bf16.mxu0 0
      %1276 = vmatpush1.bf16.msra.mxu0 %v1010
      %1277 = vmatprep.subr.bf16.mxu0 0
      %1278 = vmatpush1.bf16.msra.mxu0 %v1009
      %1279 = vmatprep.subr.bf16.mxu0 0
      %1280 = vmatpush1.bf16.msra.mxu0 %v1008
      %1281 = vmatprep.subr.bf16.mxu0 0
      %1282 = vmatpush1.bf16.msra.mxu0 %v1007
      %1283 = vmatprep.subr.bf16.mxu0 0
      %1284 = vmatpush1.bf16.msra.mxu0 %v1006
      %1285 = vmatprep.subr.bf16.mxu0 0
      %1286 = vmatpush1.bf16.msra.mxu0 %v1005
      %1287 = vmatprep.subr.bf16.mxu0 0
      %1288 = vmatpush1.bf16.msra.mxu0 %v1004
      %1289 = vmatprep.subr.bf16.mxu0 0
      %1290 = vmatpush1.bf16.msra.mxu0 %v1003
      %1291 = vmatprep.subr.bf16.mxu0 0
      %1292 = vmatpush2.bf16.msra.mxu0 0
      %1293 = vmatprep.subr.bf16.mxu0 0
      %1294 = vmatpush2.bf16.msra.mxu0 0
      %1295 = vmatprep.subr.bf16.mxu0 0
      %1296 = vmatpush2.bf16.msra.mxu0 0
      %1297 = vmatprep.subr.bf16.mxu0 0
      %1298 = vmatpush2.bf16.msra.mxu0 0
      %1299 = vmatprep.subr.bf16.mxu0 0
      %1300 = vmatpush2.bf16.msra.mxu0 0
      %1301 = vmatprep.subr.bf16.mxu0 0
      %1302 = vmatpush2.bf16.msra.mxu0 0
      %1303 = vmatprep.subr.bf16.mxu0 0
      %1304 = vmatpush2.bf16.msra.mxu0 0
      %1305 = vmatprep.subr.bf16.mxu0 0
      %1306 = vmatpush2.bf16.msra.mxu0 0
      %1307 = vmatprep.mubr.bf16.mxu0 0
      %1308 = vmatmul.mubr.bf16.gmra.mxu0 %v503
      %v1309 = vpop.f32.mrf.mxu0
      %v1310 = vadd.f32 %v1262, %v1309
      %v1311 = vpop.f32.mrf.mxu0
      %v1312 = vpop.f32.mrf.mxu0
      %v1313 = vadd.f32 %v1265, %v1312
      %v1314 = vpop.f32.mrf.mxu0
      %1315 = vmatprep.mubr.bf16.mxu0 0
      %1316 = vmatmul.mubr.bf16.gmra.mxu0 %v502
      %v1317 = vpop.f32.mrf.mxu0
      %v1318 = vadd.f32 %v1270, %v1317
      %v1319 = vpop.f32.mrf.mxu0
      %v1320 = vpop.f32.mrf.mxu0
      %v1321 = vpop.f32.mrf.mxu0
      %1322 = vdwg.mxu0
      %1323 = vst [vmem:[#allocation2] sm:$0xff] %v1310
      %1324 = vst [vmem:[#allocation2 + $0x8] sm:$0xff] %v1313
      %1325 = vst [vmem:[#allocation2 + $0x10] sm:$0xff] %v1318
      %p1326 = scmp.gt.s32.totalorder %s21, 0
      // Predicated region
      $region41: #{forward.5} parent=39 // pred_check
        %p1327 = pneg %p1326
      $region42: #{forward.5} parent=39 // pred_check_branch
        %1329 = sbr.rel (%p1327) target = $region44
      $region43: #{forward.5} parent=39 // pred_region
        %v1330 = vld [vmem:[#allocation2] sm:$0xff]
        %v1331 = vld [vmem:[#allocation2 + $0x8] sm:$0xff]
        %v1332 = vld [vmem:[#allocation2 + $0x10] sm:$0xff]
        %v1333 = vld [vmem:[%s334] sm:$0xf]
        %v1334 = vld [vmem:[%s334 + $0x4] sm:$0xf]
        %v1335 = vld [vmem:[%s334 + $0x8] sm:$0xf]
        %v1336 = vld [vmem:[%s334 + $0xc] sm:$0x1]
        %v1337 = vld [vmem:[%s334] sm:$0xe]
        %v1338 = vld [vmem:[%s334] sm:$0x8]
        %v1339 = vld [vmem:[%s334 + $0xc] sm:$0x7]
        %v1340 = vld [vmem:[%s334 + $0xc] sm:$0xf]
        %v1341 = vld [vmem:[%s334 + $0x4] sm:$0xc]
        %v1342 = vld [vmem:[%s334 + $0x10] sm:$0x3]
        %v1343 = vld [vmem:[%s334 + $0x10] sm:$0x7]
        %v1344 = vld [vmem:[%s334 + $0x4] sm:$0x8]
        %v1348 = vunpack.c.l.b16 %v1333
        %v1349 = vunpack.c.l.b16 %v1334
        %v1350 = vunpack.c.l.b16 %v1335
        %v1351 = vpack.c.b16 %v1349, %v1348
        %v1352 = vpack.c.b16 %v1350, %v1350
        %v1356 = vunpack.c.l.b16 %v1336
        %v1357 = vpack.c.b16 %v1356, %v1350
        %v1359 = vshrl.u32 %v1351, 16
        %v1361 = vshll.u32 %v1351, 16
        %v1363 = vrot.slane %v1361, 1
        %v1364 = vor.u32 %v1359, %v1363
        %v1366 = vshll.u32 %v1357, 16
        %v1368 = vrot.slane %v1366, 1
        %v1369 = vsel %vm397, %v1364, %v1368
        %v1370 = vshrl.u32 %v1357, 16
        %v1372 = vor.u32 %v1370, %v1368
        %v1376 = vunpack.c.l.b16 %v1337
        %v1377 = vpack.c.b16 %v1349, %v1376
        %v1378 = vrot.slane %v1377, 1
        %v1379 = vrot.slane %v1357, 1
        %v1380 = vsel %vm418, %v1378, %v1379
        %v1385 = vunpack.c.l.b16 %v1338
        %v1386 = vunpack.c.l.b16 %v1339
        %v1387 = vpack.c.b16 %v1349, %v1385
        %v1388 = vpack.c.b16 %v1386, %v1350
        %v1389 = vrot.slane %v1387, 3
        %v1390 = vrot.slane %v1388, 3
        %v1391 = vsel %vm430, %v1389, %v1390
        %v1395 = vunpack.c.l.b16 %v1340
        %v1396 = vpack.c.b16 %v1395, %v1350
        %v1398 = vshrl.u32 %v1387, 16
        %v1400 = vrot.slane %v1398, 3
        %v1401 = vshll.u32 %v1387, 16
        %v1403 = vrot.slane %v1401, 4
        %v1404 = vor.u32 %v1400, %v1403
        %v1406 = vshrl.u32 %v1396, 16
        %v1408 = vrot.slane %v1406, 3
        %v1409 = vshll.u32 %v1396, 16
        %v1411 = vrot.slane %v1409, 4
        %v1412 = vor.u32 %v1408, %v1411
        %v1413 = vsel %vm439, %v1404, %v1412
        %v1416 = vpack.c.b16 %v1350, %v1349
        %v1417 = vpack.c.b16 %v1395, %v1395
        %v1422 = vunpack.c.l.b16 %v1341
        %v1423 = vunpack.c.l.b16 %v1342
        %v1424 = vpack.c.b16 %v1350, %v1422
        %v1425 = vpack.c.b16 %v1423, %v1395
        %v1426 = vrot.slane %v1424, 2
        %v1427 = vrot.slane %v1425, 2
        %v1428 = vsel %vm469, %v1426, %v1427
        %v1432 = vunpack.c.l.b16 %v1343
        %v1433 = vpack.c.b16 %v1432, %v1395
        %v1435 = vshrl.u32 %v1424, 16
        %v1437 = vrot.slane %v1435, 2
        %v1438 = vshll.u32 %v1424, 16
        %v1440 = vrot.slane %v1438, 3
        %v1441 = vor.u32 %v1437, %v1440
        %v1443 = vshrl.u32 %v1433, 16
        %v1445 = vrot.slane %v1443, 2
        %v1446 = vshll.u32 %v1433, 16
        %v1448 = vrot.slane %v1446, 3
        %v1449 = vor.u32 %v1445, %v1448
        %v1450 = vsel %vm478, %v1441, %v1449
        %v1454 = vunpack.c.l.b16 %v1344
        %v1455 = vpack.c.b16 %v1350, %v1454
        %v1456 = vrot.slane %v1455, 3
        %v1457 = vrot.slane %v1433, 3
        %v1458 = vsel %vm430, %v1456, %v1457
        %v1461 = vld [vmem:[%s3] sm:$0xf]
        %v1462 = vld [vmem:[%s3 + $0x4] sm:$0xf]
        %v1463 = vld [vmem:[%s3 + $0x8] sm:$0xf]
        %v1464 = vld [vmem:[%s3 + $0xc] sm:$0xf]
        %v1465 = vld [vmem:[%s3 + $0x10] sm:$0xf]
        %v1466 = vld [vmem:[%s3 + $0x14] sm:$0xf]
        %v1467 = vld [vmem:[%s3 + $0x18] sm:$0xf]
        %v1468 = vld [vmem:[%s3 + $0x1c] sm:$0xf]
        %v1469 = vld [vmem:[%s3 + $0x20] sm:$0xf]
        %v1470 = vld [vmem:[%s3 + $0x24] sm:$0xf]
        %v1471 = vld [vmem:[%s3 + $0x28] sm:$0xf]
        %v1472 = vld [vmem:[%s3 + $0x2c] sm:$0xf]
        %v1473 = vld [vmem:[%s3 + $0x30] sm:$0xf]
        %v1474 = vld [vmem:[%s3 + $0x34] sm:$0xf]
        %v1475 = vld [vmem:[%s3 + $0x38] sm:$0xf]
        %v1476 = vld [vmem:[%s3 + $0x3c] sm:$0xf]
        %v1477 = vld [vmem:[%s3 + $0x40] sm:$0xf]
        %v1478 = vld [vmem:[%s3 + $0x44] sm:$0xf]
        %v1479 = vld [vmem:[%s3 + $0x48] sm:$0xf]
        %v1480 = vld [vmem:[%s3 + $0x4c] sm:$0xf]
        %v1481 = vld [vmem:[%s3 + $0x50] sm:$0xf]
        %v1482 = vld [vmem:[%s3 + $0x54] sm:$0xf]
        %v1483 = vld [vmem:[%s3 + $0x58] sm:$0xf]
        %v1484 = vld [vmem:[%s3 + $0x5c] sm:$0xf]
        %v1485 = vld [vmem:[%s3 + $0x60] sm:$0xf]
        %v1486 = vld [vmem:[%s3 + $0x64] sm:$0xf]
        %v1487 = vld [vmem:[%s3 + $0x68] sm:$0xf]
        %v1488 = vld [vmem:[%s3 + $0x6c] sm:$0xf]
        %v1489 = vld [vmem:[%s3 + $0x70] sm:$0xf]
        %v1490 = vld [vmem:[%s3 + $0x74] sm:$0xf]
        %v1491 = vld [vmem:[%s3 + $0x78] sm:$0xf]
        %v1492 = vld [vmem:[%s3 + $0x7c] sm:$0xf]
        %v1493 = vld [vmem:[%s3 + $0x80] sm:$0xf]
        %v1494 = vld [vmem:[%s3 + $0x84] sm:$0xf]
        %v1495 = vld [vmem:[%s3 + $0x88] sm:$0xf]
        %v1496 = vld [vmem:[%s3 + $0x8c] sm:$0xf]
        %v1497 = vld [vmem:[%s3 + $0x90] sm:$0xf]
        %v1498 = vld [vmem:[%s3 + $0x94] sm:$0xf]
        %v1499 = vld [vmem:[%s3 + $0x98] sm:$0xf]
        %v1500 = vld [vmem:[%s3 + $0x9c] sm:$0xf]
        %v1501 = vld [vmem:[%s3 + $0xa0] sm:$0xf]
        %v1502 = vld [vmem:[%s3 + $0xa4] sm:$0xf]
        %v1503 = vld [vmem:[%s3 + $0xa8] sm:$0xf]
        %v1504 = vld [vmem:[%s3 + $0xac] sm:$0xf]
        %v1505 = vld [vmem:[%s3 + $0xb0] sm:$0xf]
        %v1506 = vld [vmem:[%s3 + $0xb4] sm:$0xf]
        %v1507 = vld [vmem:[%s3 + $0xb8] sm:$0xf]
        %v1508 = vld [vmem:[%s3 + $0xbc] sm:$0xf]
        %v1509 = vld [vmem:[%s3 + $0xc0] sm:$0xf]
        %v1510 = vld [vmem:[%s3 + $0xc4] sm:$0xf]
        %v1511 = vld [vmem:[%s3 + $0xc8] sm:$0xf]
        %v1512 = vld [vmem:[%s3 + $0xcc] sm:$0xf]
        %v1513 = vld [vmem:[%s3 + $0xd0] sm:$0xf]
        %v1514 = vld [vmem:[%s3 + $0xd4] sm:$0xf]
        %v1515 = vld [vmem:[%s3 + $0xd8] sm:$0xf]
        %v1516 = vld [vmem:[%s3 + $0xdc] sm:$0xf]
        %v1517 = vld [vmem:[%s3 + $0xe0] sm:$0xf]
        %v1518 = vld [vmem:[%s3 + $0xe4] sm:$0xf]
        %v1519 = vld [vmem:[%s3 + $0xe8] sm:$0xf]
        %v1520 = vld [vmem:[%s3 + $0xec] sm:$0xf]
        %v1521 = vld [vmem:[%s3 + $0xf0] sm:$0xf]
        %v1522 = vld [vmem:[%s3 + $0xf4] sm:$0xf]
        %v1523 = vld [vmem:[%s3 + $0xf8] sm:$0xf]
        %v1524 = vld [vmem:[%s3 + $0xfc] sm:$0xf]
        %v1525 = vld [vmem:[%s3 + $0x100] sm:$0xf]
        %v1526 = vld [vmem:[%s3 + $0x104] sm:$0xf]
        %v1527 = vld [vmem:[%s3 + $0x108] sm:$0xf]
        %v1528 = vld [vmem:[%s3 + $0x10c] sm:$0xf]
        %v1529 = vld [vmem:[%s3 + $0x110] sm:$0xf]
        %v1530 = vld [vmem:[%s3 + $0x114] sm:$0xf]
        %v1531 = vld [vmem:[%s3 + $0x118] sm:$0xf]
        %v1532 = vld [vmem:[%s3 + $0x11c] sm:$0xf]
        %v1533 = vld [vmem:[%s3 + $0x120] sm:$0xf]
        %v1534 = vld [vmem:[%s3 + $0x124] sm:$0xf]
        %v1535 = vld [vmem:[%s3 + $0x128] sm:$0xf]
        %v1536 = vld [vmem:[%s3 + $0x12c] sm:$0xf]
        %v1537 = vld [vmem:[%s3 + $0x130] sm:$0xf]
        %v1538 = vld [vmem:[%s3 + $0x134] sm:$0xf]
        %v1539 = vld [vmem:[%s3 + $0x138] sm:$0xf]
        %v1540 = vld [vmem:[%s3 + $0x13c] sm:$0xf]
        %v1541 = vld [vmem:[%s3 + $0x140] sm:$0xf]
        %v1542 = vld [vmem:[%s3 + $0x144] sm:$0xf]
        %v1543 = vld [vmem:[%s3 + $0x148] sm:$0xf]
        %v1544 = vld [vmem:[%s3 + $0x14c] sm:$0xf]
        %v1545 = vld [vmem:[%s3 + $0x150] sm:$0xf]
        %v1546 = vld [vmem:[%s3 + $0x154] sm:$0xf]
        %v1547 = vld [vmem:[%s3 + $0x158] sm:$0xf]
        %v1548 = vld [vmem:[%s3 + $0x15c] sm:$0xf]
        %v1549 = vld [vmem:[%s3 + $0x160] sm:$0xf]
        %v1550 = vld [vmem:[%s3 + $0x164] sm:$0xf]
        %v1551 = vld [vmem:[%s3 + $0x168] sm:$0xf]
        %v1552 = vld [vmem:[%s3 + $0x16c] sm:$0xf]
        %v1553 = vld [vmem:[%s3 + $0x170] sm:$0xf]
        %v1554 = vld [vmem:[%s3 + $0x174] sm:$0xf]
        %v1555 = vld [vmem:[%s3 + $0x178] sm:$0xf]
        %v1556 = vld [vmem:[%s3 + $0x17c] sm:$0xf]
        %v1557 = vld [vmem:[%s3 + $0x180] sm:$0xf]
        %v1558 = vld [vmem:[%s3 + $0x184] sm:$0xf]
        %v1559 = vld [vmem:[%s3 + $0x188] sm:$0xf]
        %v1560 = vld [vmem:[%s3 + $0x18c] sm:$0xf]
        %v1561 = vld [vmem:[%s3 + $0x190] sm:$0xf]
        %v1562 = vld [vmem:[%s3 + $0x194] sm:$0xf]
        %v1563 = vld [vmem:[%s3 + $0x198] sm:$0xf]
        %v1564 = vld [vmem:[%s3 + $0x19c] sm:$0xf]
        %v1565 = vld [vmem:[%s3 + $0x1a0] sm:$0xf]
        %v1566 = vld [vmem:[%s3 + $0x1a4] sm:$0xf]
        %v1567 = vld [vmem:[%s3 + $0x1a8] sm:$0xf]
        %v1568 = vld [vmem:[%s3 + $0x1ac] sm:$0xf]
        %v1569 = vld [vmem:[%s3 + $0x1b0] sm:$0xf]
        %v1570 = vld [vmem:[%s3 + $0x1b4] sm:$0xf]
        %v1571 = vld [vmem:[%s3 + $0x1b8] sm:$0xf]
        %v1572 = vld [vmem:[%s3 + $0x1bc] sm:$0xf]
        %v1573 = vld [vmem:[%s3 + $0x1c0] sm:$0xf]
        %v1574 = vld [vmem:[%s3 + $0x1c4] sm:$0xf]
        %v1575 = vld [vmem:[%s3 + $0x1c8] sm:$0xf]
        %v1576 = vld [vmem:[%s3 + $0x1cc] sm:$0xf]
        %v1577 = vld [vmem:[%s3 + $0x1d0] sm:$0xf]
        %v1578 = vld [vmem:[%s3 + $0x1d4] sm:$0xf]
        %v1579 = vld [vmem:[%s3 + $0x1d8] sm:$0xf]
        %v1580 = vld [vmem:[%s3 + $0x1dc] sm:$0xf]
        %v1581 = vld [vmem:[%s3 + $0x1e0] sm:$0xf]
        %v1582 = vld [vmem:[%s3 + $0x1e4] sm:$0xf]
        %v1583 = vld [vmem:[%s3 + $0x1e8] sm:$0xf]
        %v1584 = vld [vmem:[%s3 + $0x1ec] sm:$0xf]
        %v1585 = vld [vmem:[%s3 + $0x1f0] sm:$0xf]
        %v1586 = vld [vmem:[%s3 + $0x1f4] sm:$0xf]
        %v1587 = vld [vmem:[%s3 + $0x1f8] sm:$0xf]
        %v1588 = vld [vmem:[%s3 + $0x1fc] sm:$0xf]
        %v1589 = vld [vmem:[%s3 + $0x200] sm:$0xf]
        %v1590 = vld [vmem:[%s3 + $0x204] sm:$0xf]
        %v1591 = vld [vmem:[%s3 + $0x208] sm:$0xf]
        %v1592 = vld [vmem:[%s3 + $0x20c] sm:$0xf]
        %v1593 = vld [vmem:[%s3 + $0x210] sm:$0xf]
        %v1594 = vld [vmem:[%s3 + $0x214] sm:$0xf]
        %v1595 = vld [vmem:[%s3 + $0x218] sm:$0xf]
        %v1596 = vld [vmem:[%s3 + $0x21c] sm:$0xf]
        %v1597 = vld [vmem:[%s3 + $0x220] sm:$0xf]
        %v1598 = vld [vmem:[%s3 + $0x224] sm:$0xf]
        %v1599 = vld [vmem:[%s3 + $0x228] sm:$0xf]
        %v1600 = vld [vmem:[%s3 + $0x22c] sm:$0xf]
        %v1601 = vld [vmem:[%s3 + $0x230] sm:$0xf]
        %v1602 = vld [vmem:[%s3 + $0x234] sm:$0xf]
        %v1603 = vld [vmem:[%s3 + $0x238] sm:$0xf]
        %v1604 = vld [vmem:[%s3 + $0x23c] sm:$0xf]
        %v1749 = vunpack.c.l.b16 %v1461
        %v1750 = vunpack.c.l.b16 %v1462
        %v1751 = vunpack.c.l.b16 %v1463
        %v1752 = vunpack.c.l.b16 %v1464
        %v1753 = vunpack.c.l.b16 %v1465
        %v1754 = vunpack.c.l.b16 %v1466
        %v1755 = vunpack.c.l.b16 %v1467
        %v1756 = vunpack.c.l.b16 %v1468
        %v1757 = vunpack.c.l.b16 %v1469
        %v1758 = vunpack.c.l.b16 %v1470
        %v1759 = vunpack.c.l.b16 %v1471
        %v1760 = vunpack.c.l.b16 %v1472
        %v1761 = vunpack.c.l.b16 %v1473
        %v1762 = vunpack.c.l.b16 %v1474
        %v1763 = vunpack.c.l.b16 %v1475
        %v1764 = vunpack.c.l.b16 %v1476
        %v1765 = vunpack.c.l.b16 %v1477
        %v1766 = vunpack.c.l.b16 %v1478
        %v1767 = vunpack.c.l.b16 %v1479
        %v1768 = vunpack.c.l.b16 %v1480
        %v1769 = vunpack.c.l.b16 %v1481
        %v1770 = vunpack.c.l.b16 %v1482
        %v1771 = vunpack.c.l.b16 %v1483
        %v1772 = vunpack.c.l.b16 %v1484
        %v1773 = vunpack.c.l.b16 %v1485
        %v1774 = vunpack.c.l.b16 %v1486
        %v1775 = vunpack.c.l.b16 %v1487
        %v1776 = vunpack.c.l.b16 %v1488
        %v1777 = vunpack.c.l.b16 %v1489
        %v1778 = vunpack.c.l.b16 %v1490
        %v1779 = vunpack.c.l.b16 %v1491
        %v1780 = vunpack.c.l.b16 %v1492
        %v1781 = vunpack.c.l.b16 %v1493
        %v1782 = vunpack.c.l.b16 %v1494
        %v1783 = vunpack.c.l.b16 %v1495
        %v1784 = vunpack.c.l.b16 %v1496
        %v1785 = vunpack.c.l.b16 %v1497
        %v1786 = vunpack.c.l.b16 %v1498
        %v1787 = vunpack.c.l.b16 %v1499
        %v1788 = vunpack.c.l.b16 %v1500
        %v1789 = vunpack.c.l.b16 %v1501
        %v1790 = vunpack.c.l.b16 %v1502
        %v1791 = vunpack.c.l.b16 %v1503
        %v1792 = vunpack.c.l.b16 %v1504
        %v1793 = vunpack.c.l.b16 %v1505
        %v1794 = vunpack.c.l.b16 %v1506
        %v1795 = vunpack.c.l.b16 %v1507
        %v1796 = vunpack.c.l.b16 %v1508
        %v1797 = vunpack.c.l.b16 %v1509
        %v1798 = vunpack.c.l.b16 %v1510
        %v1799 = vunpack.c.l.b16 %v1511
        %v1800 = vunpack.c.l.b16 %v1512
        %v1801 = vunpack.c.l.b16 %v1513
        %v1802 = vunpack.c.l.b16 %v1514
        %v1803 = vunpack.c.l.b16 %v1515
        %v1804 = vunpack.c.l.b16 %v1516
        %v1805 = vunpack.c.l.b16 %v1517
        %v1806 = vunpack.c.l.b16 %v1518
        %v1807 = vunpack.c.l.b16 %v1519
        %v1808 = vunpack.c.l.b16 %v1520
        %v1809 = vunpack.c.l.b16 %v1521
        %v1810 = vunpack.c.l.b16 %v1522
        %v1811 = vunpack.c.l.b16 %v1523
        %v1812 = vunpack.c.l.b16 %v1524
        %v1813 = vunpack.c.l.b16 %v1525
        %v1814 = vunpack.c.l.b16 %v1526
        %v1815 = vunpack.c.l.b16 %v1527
        %v1816 = vunpack.c.l.b16 %v1528
        %v1817 = vunpack.c.l.b16 %v1529
        %v1818 = vunpack.c.l.b16 %v1530
        %v1819 = vunpack.c.l.b16 %v1531
        %v1820 = vunpack.c.l.b16 %v1532
        %v1821 = vunpack.c.l.b16 %v1533
        %v1822 = vunpack.c.l.b16 %v1534
        %v1823 = vunpack.c.l.b16 %v1535
        %v1824 = vunpack.c.l.b16 %v1536
        %v1825 = vunpack.c.l.b16 %v1537
        %v1826 = vunpack.c.l.b16 %v1538
        %v1827 = vunpack.c.l.b16 %v1539
        %v1828 = vunpack.c.l.b16 %v1540
        %v1829 = vunpack.c.l.b16 %v1541
        %v1830 = vunpack.c.l.b16 %v1542
        %v1831 = vunpack.c.l.b16 %v1543
        %v1832 = vunpack.c.l.b16 %v1544
        %v1833 = vunpack.c.l.b16 %v1545
        %v1834 = vunpack.c.l.b16 %v1546
        %v1835 = vunpack.c.l.b16 %v1547
        %v1836 = vunpack.c.l.b16 %v1548
        %v1837 = vunpack.c.l.b16 %v1549
        %v1838 = vunpack.c.l.b16 %v1550
        %v1839 = vunpack.c.l.b16 %v1551
        %v1840 = vunpack.c.l.b16 %v1552
        %v1841 = vunpack.c.l.b16 %v1553
        %v1842 = vunpack.c.l.b16 %v1554
        %v1843 = vunpack.c.l.b16 %v1555
        %v1844 = vunpack.c.l.b16 %v1556
        %v1845 = vunpack.c.l.b16 %v1557
        %v1846 = vunpack.c.l.b16 %v1558
        %v1847 = vunpack.c.l.b16 %v1559
        %v1848 = vunpack.c.l.b16 %v1560
        %v1849 = vunpack.c.l.b16 %v1561
        %v1850 = vunpack.c.l.b16 %v1562
        %v1851 = vunpack.c.l.b16 %v1563
        %v1852 = vunpack.c.l.b16 %v1564
        %v1853 = vunpack.c.l.b16 %v1565
        %v1854 = vunpack.c.l.b16 %v1566
        %v1855 = vunpack.c.l.b16 %v1567
        %v1856 = vunpack.c.l.b16 %v1568
        %v1857 = vunpack.c.l.b16 %v1569
        %v1858 = vunpack.c.l.b16 %v1570
        %v1859 = vunpack.c.l.b16 %v1571
        %v1860 = vunpack.c.l.b16 %v1572
        %v1861 = vunpack.c.l.b16 %v1573
        %v1862 = vunpack.c.l.b16 %v1574
        %v1863 = vunpack.c.l.b16 %v1575
        %v1864 = vunpack.c.l.b16 %v1576
        %v1865 = vunpack.c.l.b16 %v1577
        %v1866 = vunpack.c.l.b16 %v1578
        %v1867 = vunpack.c.l.b16 %v1579
        %v1868 = vunpack.c.l.b16 %v1580
        %v1869 = vunpack.c.l.b16 %v1581
        %v1870 = vunpack.c.l.b16 %v1582
        %v1871 = vunpack.c.l.b16 %v1583
        %v1872 = vunpack.c.l.b16 %v1584
        %v1873 = vunpack.c.l.b16 %v1585
        %v1874 = vunpack.c.l.b16 %v1586
        %v1875 = vunpack.c.l.b16 %v1587
        %v1876 = vunpack.c.l.b16 %v1588
        %v1877 = vunpack.c.l.b16 %v1589
        %v1878 = vunpack.c.l.b16 %v1590
        %v1879 = vunpack.c.l.b16 %v1591
        %v1880 = vunpack.c.l.b16 %v1592
        %v1881 = vunpack.c.l.b16 %v1593
        %v1882 = vunpack.c.l.b16 %v1594
        %v1883 = vunpack.c.l.b16 %v1595
        %v1884 = vunpack.c.l.b16 %v1596
        %v1885 = vunpack.c.l.b16 %v1597
        %v1886 = vunpack.c.l.b16 %v1598
        %v1887 = vunpack.c.l.b16 %v1599
        %v1888 = vunpack.c.l.b16 %v1600
        %v1889 = vunpack.c.l.b16 %v1601
        %v1890 = vunpack.c.l.b16 %v1602
        %v1891 = vunpack.c.l.b16 %v1603
        %v1892 = vunpack.c.l.b16 %v1604
        %v1893 = vpack.c.b16 %v1750, %v1749
        %v1894 = vpack.c.b16 %v1752, %v1751
        %v1895 = vpack.c.b16 %v1754, %v1753
        %v1896 = vpack.c.b16 %v1756, %v1755
        %v1897 = vpack.c.b16 %v1758, %v1757
        %v1898 = vpack.c.b16 %v1760, %v1759
        %v1899 = vpack.c.b16 %v1762, %v1761
        %v1900 = vpack.c.b16 %v1764, %v1763
        %v1901 = vpack.c.b16 %v1766, %v1765
        %v1902 = vpack.c.b16 %v1768, %v1767
        %v1903 = vpack.c.b16 %v1770, %v1769
        %v1904 = vpack.c.b16 %v1772, %v1771
        %v1905 = vpack.c.b16 %v1774, %v1773
        %v1906 = vpack.c.b16 %v1776, %v1775
        %v1907 = vpack.c.b16 %v1778, %v1777
        %v1908 = vpack.c.b16 %v1780, %v1779
        %v1909 = vpack.c.b16 %v1782, %v1781
        %v1910 = vpack.c.b16 %v1784, %v1783
        %v1911 = vpack.c.b16 %v1786, %v1785
        %v1912 = vpack.c.b16 %v1788, %v1787
        %v1913 = vpack.c.b16 %v1790, %v1789
        %v1914 = vpack.c.b16 %v1792, %v1791
        %v1915 = vpack.c.b16 %v1794, %v1793
        %v1916 = vpack.c.b16 %v1796, %v1795
        %v1917 = vpack.c.b16 %v1798, %v1797
        %v1918 = vpack.c.b16 %v1800, %v1799
        %v1919 = vpack.c.b16 %v1802, %v1801
        %v1920 = vpack.c.b16 %v1804, %v1803
        %v1921 = vpack.c.b16 %v1806, %v1805
        %v1922 = vpack.c.b16 %v1808, %v1807
        %v1923 = vpack.c.b16 %v1810, %v1809
        %v1924 = vpack.c.b16 %v1812, %v1811
        %v1925 = vpack.c.b16 %v1814, %v1813
        %v1926 = vpack.c.b16 %v1816, %v1815
        %v1927 = vpack.c.b16 %v1818, %v1817
        %v1928 = vpack.c.b16 %v1820, %v1819
        %v1929 = vpack.c.b16 %v1822, %v1821
        %v1930 = vpack.c.b16 %v1824, %v1823
        %v1931 = vpack.c.b16 %v1826, %v1825
        %v1932 = vpack.c.b16 %v1828, %v1827
        %v1933 = vpack.c.b16 %v1830, %v1829
        %v1934 = vpack.c.b16 %v1832, %v1831
        %v1935 = vpack.c.b16 %v1834, %v1833
        %v1936 = vpack.c.b16 %v1836, %v1835
        %v1937 = vpack.c.b16 %v1838, %v1837
        %v1938 = vpack.c.b16 %v1840, %v1839
        %v1939 = vpack.c.b16 %v1842, %v1841
        %v1940 = vpack.c.b16 %v1844, %v1843
        %v1941 = vpack.c.b16 %v1846, %v1845
        %v1942 = vpack.c.b16 %v1848, %v1847
        %v1943 = vpack.c.b16 %v1850, %v1849
        %v1944 = vpack.c.b16 %v1852, %v1851
        %v1945 = vpack.c.b16 %v1854, %v1853
        %v1946 = vpack.c.b16 %v1856, %v1855
        %v1947 = vpack.c.b16 %v1858, %v1857
        %v1948 = vpack.c.b16 %v1860, %v1859
        %v1949 = vpack.c.b16 %v1862, %v1861
        %v1950 = vpack.c.b16 %v1864, %v1863
        %v1951 = vpack.c.b16 %v1866, %v1865
        %v1952 = vpack.c.b16 %v1868, %v1867
        %v1953 = vpack.c.b16 %v1870, %v1869
        %v1954 = vpack.c.b16 %v1872, %v1871
        %v1955 = vpack.c.b16 %v1874, %v1873
        %v1956 = vpack.c.b16 %v1876, %v1875
        %v1957 = vpack.c.b16 %v1878, %v1877
        %v1958 = vpack.c.b16 %v1880, %v1879
        %v1959 = vpack.c.b16 %v1882, %v1881
        %v1960 = vpack.c.b16 %v1884, %v1883
        %v1961 = vpack.c.b16 %v1886, %v1885
        %v1962 = vpack.c.b16 %v1888, %v1887
        %v1963 = vpack.c.b16 %v1890, %v1889
        %v1964 = vpack.c.b16 %v1892, %v1891
        %2037 = vmatprep.subr.bf16.mxu0 0
        %2038 = vmatpush1.bf16.msra.mxu0 %v1900
        %2039 = vmatprep.subr.bf16.mxu0 0
        %2040 = vmatpush1.bf16.msra.mxu0 %v1899
        %2041 = vmatprep.subr.bf16.mxu0 0
        %2042 = vmatpush1.bf16.msra.mxu0 %v1898
        %2043 = vmatprep.subr.bf16.mxu0 0
        %2044 = vmatpush1.bf16.msra.mxu0 %v1897
        %2045 = vmatprep.subr.bf16.mxu0 0
        %2046 = vmatpush1.bf16.msra.mxu0 %v1896
        %2047 = vmatprep.subr.bf16.mxu0 0
        %2048 = vmatpush1.bf16.msra.mxu0 %v1895
        %2049 = vmatprep.subr.bf16.mxu0 0
        %2050 = vmatpush1.bf16.msra.mxu0 %v1894
        %2051 = vmatprep.subr.bf16.mxu0 0
        %2052 = vmatpush1.bf16.msra.mxu0 %v1893
        %2053 = vmatprep.subr.bf16.mxu0 0
        %2054 = vmatpush2.bf16.msra.mxu0 %v1908
        %2055 = vmatprep.subr.bf16.mxu0 0
        %2056 = vmatpush2.bf16.msra.mxu0 %v1907
        %2057 = vmatprep.subr.bf16.mxu0 0
        %2058 = vmatpush2.bf16.msra.mxu0 %v1906
        %2059 = vmatprep.subr.bf16.mxu0 0
        %2060 = vmatpush2.bf16.msra.mxu0 %v1905
        %2061 = vmatprep.subr.bf16.mxu0 0
        %2062 = vmatpush2.bf16.msra.mxu0 %v1904
        %2063 = vmatprep.subr.bf16.mxu0 0
        %2064 = vmatpush2.bf16.msra.mxu0 %v1903
        %2065 = vmatprep.subr.bf16.mxu0 0
        %2066 = vmatpush2.bf16.msra.mxu0 %v1902
        %2067 = vmatprep.subr.bf16.mxu0 0
        %2068 = vmatpush2.bf16.msra.mxu0 %v1901
        %2069 = vmatprep.mubr.bf16.mxu0 %v1369
        %2070 = vmatmul.mubr.bf16.gmra.mxu0 %v1351
        %v2071 = vpop.f32.mrf.mxu0
        %v2072 = vadd.f32 0.0, %v2071
        %v2073 = vpop.f32.mrf.mxu0
        %v2074 = vpop.f32.mrf.mxu0
        %v2075 = vadd.f32 0.0, %v2074
        %v2076 = vpop.f32.mrf.mxu0
        %2077 = vmatprep.mubr.bf16.mxu0 %v1372
        %2078 = vmatmul.mubr.bf16.gmra.mxu0 %v1352
        %v2079 = vpop.f32.mrf.mxu0
        %v2080 = vadd.f32 0.0, %v2079
        %v2081 = vpop.f32.mrf.mxu0
        %v2082 = vpop.f32.mrf.mxu0
        %v2083 = vpop.f32.mrf.mxu0
        %2084 = vdwg.mxu0
        %2085 = vmatprep.subr.bf16.mxu0 0
        %2086 = vmatpush1.bf16.msra.mxu0 %v1916
        %2087 = vmatprep.subr.bf16.mxu0 0
        %2088 = vmatpush1.bf16.msra.mxu0 %v1915
        %2089 = vmatprep.subr.bf16.mxu0 0
        %2090 = vmatpush1.bf16.msra.mxu0 %v1914
        %2091 = vmatprep.subr.bf16.mxu0 0
        %2092 = vmatpush1.bf16.msra.mxu0 %v1913
        %2093 = vmatprep.subr.bf16.mxu0 0
        %2094 = vmatpush1.bf16.msra.mxu0 %v1912
        %2095 = vmatprep.subr.bf16.mxu0 0
        %2096 = vmatpush1.bf16.msra.mxu0 %v1911
        %2097 = vmatprep.subr.bf16.mxu0 0
        %2098 = vmatpush1.bf16.msra.mxu0 %v1910
        %2099 = vmatprep.subr.bf16.mxu0 0
        %2100 = vmatpush1.bf16.msra.mxu0 %v1909
        %2101 = vmatprep.subr.bf16.mxu0 0
        %2102 = vmatpush2.bf16.msra.mxu0 %v1924
        %2103 = vmatprep.subr.bf16.mxu0 0
        %2104 = vmatpush2.bf16.msra.mxu0 %v1923
        %2105 = vmatprep.subr.bf16.mxu0 0
        %2106 = vmatpush2.bf16.msra.mxu0 %v1922
        %2107 = vmatprep.subr.bf16.mxu0 0
        %2108 = vmatpush2.bf16.msra.mxu0 %v1921
        %2109 = vmatprep.subr.bf16.mxu0 0
        %2110 = vmatpush2.bf16.msra.mxu0 %v1920
        %2111 = vmatprep.subr.bf16.mxu0 0
        %2112 = vmatpush2.bf16.msra.mxu0 %v1919
        %2113 = vmatprep.subr.bf16.mxu0 0
        %2114 = vmatpush2.bf16.msra.mxu0 %v1918
        %2115 = vmatprep.subr.bf16.mxu0 0
        %2116 = vmatpush2.bf16.msra.mxu0 %v1917
        %2117 = vmatprep.mubr.bf16.mxu0 %v1391
        %2118 = vmatmul.mubr.bf16.gmra.mxu0 %v1380
        %v2119 = vpop.f32.mrf.mxu0
        %v2120 = vadd.f32 %v2072, %v2119
        %v2121 = vpop.f32.mrf.mxu0
        %v2122 = vpop.f32.mrf.mxu0
        %v2123 = vadd.f32 %v2075, %v2122
        %v2124 = vpop.f32.mrf.mxu0
        %2125 = vmatprep.mubr.bf16.mxu0 %v1390
        %2126 = vmatmul.mubr.bf16.gmra.mxu0 %v1379
        %v2127 = vpop.f32.mrf.mxu0
        %v2128 = vadd.f32 %v2080, %v2127
        %v2129 = vpop.f32.mrf.mxu0
        %v2130 = vpop.f32.mrf.mxu0
        %v2131 = vpop.f32.mrf.mxu0
        %2132 = vdwg.mxu0
        %2133 = vmatprep.subr.bf16.mxu0 0
        %2134 = vmatpush1.bf16.msra.mxu0 %v1932
        %2135 = vmatprep.subr.bf16.mxu0 0
        %2136 = vmatpush1.bf16.msra.mxu0 %v1931
        %2137 = vmatprep.subr.bf16.mxu0 0
        %2138 = vmatpush1.bf16.msra.mxu0 %v1930
        %2139 = vmatprep.subr.bf16.mxu0 0
        %2140 = vmatpush1.bf16.msra.mxu0 %v1929
        %2141 = vmatprep.subr.bf16.mxu0 0
        %2142 = vmatpush1.bf16.msra.mxu0 %v1928
        %2143 = vmatprep.subr.bf16.mxu0 0
        %2144 = vmatpush1.bf16.msra.mxu0 %v1927
        %2145 = vmatprep.subr.bf16.mxu0 0
        %2146 = vmatpush1.bf16.msra.mxu0 %v1926
        %2147 = vmatprep.subr.bf16.mxu0 0
        %2148 = vmatpush1.bf16.msra.mxu0 %v1925
        %2149 = vmatprep.subr.bf16.mxu0 0
        %2150 = vmatpush2.bf16.msra.mxu0 %v1940
        %2151 = vmatprep.subr.bf16.mxu0 0
        %2152 = vmatpush2.bf16.msra.mxu0 %v1939
        %2153 = vmatprep.subr.bf16.mxu0 0
        %2154 = vmatpush2.bf16.msra.mxu0 %v1938
        %2155 = vmatprep.subr.bf16.mxu0 0
        %2156 = vmatpush2.bf16.msra.mxu0 %v1937
        %2157 = vmatprep.subr.bf16.mxu0 0
        %2158 = vmatpush2.bf16.msra.mxu0 %v1936
        %2159 = vmatprep.subr.bf16.mxu0 0
        %2160 = vmatpush2.bf16.msra.mxu0 %v1935
        %2161 = vmatprep.subr.bf16.mxu0 0
        %2162 = vmatpush2.bf16.msra.mxu0 %v1934
        %2163 = vmatprep.subr.bf16.mxu0 0
        %2164 = vmatpush2.bf16.msra.mxu0 %v1933
        %2165 = vmatprep.mubr.bf16.mxu0 %v1416
        %2166 = vmatmul.mubr.bf16.gmra.mxu0 %v1413
        %v2167 = vpop.f32.mrf.mxu0
        %v2168 = vadd.f32 %v2120, %v2167
        %v2169 = vpop.f32.mrf.mxu0
        %v2170 = vpop.f32.mrf.mxu0
        %v2171 = vadd.f32 %v2123, %v2170
        %v2172 = vpop.f32.mrf.mxu0
        %2173 = vmatprep.mubr.bf16.mxu0 %v1417
        %2174 = vmatmul.mubr.bf16.gmra.mxu0 %v1412
        %v2175 = vpop.f32.mrf.mxu0
        %v2176 = vadd.f32 %v2128, %v2175
        %v2177 = vpop.f32.mrf.mxu0
        %v2178 = vpop.f32.mrf.mxu0
        %v2179 = vpop.f32.mrf.mxu0
        %2180 = vdwg.mxu0
        %2181 = vmatprep.subr.bf16.mxu0 0
        %2182 = vmatpush1.bf16.msra.mxu0 %v1948
        %2183 = vmatprep.subr.bf16.mxu0 0
        %2184 = vmatpush1.bf16.msra.mxu0 %v1947
        %2185 = vmatprep.subr.bf16.mxu0 0
        %2186 = vmatpush1.bf16.msra.mxu0 %v1946
        %2187 = vmatprep.subr.bf16.mxu0 0
        %2188 = vmatpush1.bf16.msra.mxu0 %v1945
        %2189 = vmatprep.subr.bf16.mxu0 0
        %2190 = vmatpush1.bf16.msra.mxu0 %v1944
        %2191 = vmatprep.subr.bf16.mxu0 0
        %2192 = vmatpush1.bf16.msra.mxu0 %v1943
        %2193 = vmatprep.subr.bf16.mxu0 0
        %2194 = vmatpush1.bf16.msra.mxu0 %v1942
        %2195 = vmatprep.subr.bf16.mxu0 0
        %2196 = vmatpush1.bf16.msra.mxu0 %v1941
        %2197 = vmatprep.subr.bf16.mxu0 0
        %2198 = vmatpush2.bf16.msra.mxu0 %v1956
        %2199 = vmatprep.subr.bf16.mxu0 0
        %2200 = vmatpush2.bf16.msra.mxu0 %v1955
        %2201 = vmatprep.subr.bf16.mxu0 0
        %2202 = vmatpush2.bf16.msra.mxu0 %v1954
        %2203 = vmatprep.subr.bf16.mxu0 0
        %2204 = vmatpush2.bf16.msra.mxu0 %v1953
        %2205 = vmatprep.subr.bf16.mxu0 0
        %2206 = vmatpush2.bf16.msra.mxu0 %v1952
        %2207 = vmatprep.subr.bf16.mxu0 0
        %2208 = vmatpush2.bf16.msra.mxu0 %v1951
        %2209 = vmatprep.subr.bf16.mxu0 0
        %2210 = vmatpush2.bf16.msra.mxu0 %v1950
        %2211 = vmatprep.subr.bf16.mxu0 0
        %2212 = vmatpush2.bf16.msra.mxu0 %v1949
        %2213 = vmatprep.mubr.bf16.mxu0 %v1450
        %2214 = vmatmul.mubr.bf16.gmra.mxu0 %v1428
        %v2215 = vpop.f32.mrf.mxu0
        %v2216 = vadd.f32 %v2168, %v2215
        %v2217 = vpop.f32.mrf.mxu0
        %v2218 = vpop.f32.mrf.mxu0
        %v2219 = vadd.f32 %v2171, %v2218
        %v2220 = vpop.f32.mrf.mxu0
        %2221 = vmatprep.mubr.bf16.mxu0 %v1449
        %2222 = vmatmul.mubr.bf16.gmra.mxu0 %v1427
        %v2223 = vpop.f32.mrf.mxu0
        %v2224 = vadd.f32 %v2176, %v2223
        %v2225 = vpop.f32.mrf.mxu0
        %v2226 = vpop.f32.mrf.mxu0
        %v2227 = vpop.f32.mrf.mxu0
        %2228 = vdwg.mxu0
        %2229 = vmatprep.subr.bf16.mxu0 0
        %2230 = vmatpush1.bf16.msra.mxu0 %v1964
        %2231 = vmatprep.subr.bf16.mxu0 0
        %2232 = vmatpush1.bf16.msra.mxu0 %v1963
        %2233 = vmatprep.subr.bf16.mxu0 0
        %2234 = vmatpush1.bf16.msra.mxu0 %v1962
        %2235 = vmatprep.subr.bf16.mxu0 0
        %2236 = vmatpush1.bf16.msra.mxu0 %v1961
        %2237 = vmatprep.subr.bf16.mxu0 0
        %2238 = vmatpush1.bf16.msra.mxu0 %v1960
        %2239 = vmatprep.subr.bf16.mxu0 0
        %2240 = vmatpush1.bf16.msra.mxu0 %v1959
        %2241 = vmatprep.subr.bf16.mxu0 0
        %2242 = vmatpush1.bf16.msra.mxu0 %v1958
        %2243 = vmatprep.subr.bf16.mxu0 0
        %2244 = vmatpush1.bf16.msra.mxu0 %v1957
        %2245 = vmatprep.subr.bf16.mxu0 0
        %2246 = vmatpush2.bf16.msra.mxu0 0
        %2247 = vmatprep.subr.bf16.mxu0 0
        %2248 = vmatpush2.bf16.msra.mxu0 0
        %2249 = vmatprep.subr.bf16.mxu0 0
        %2250 = vmatpush2.bf16.msra.mxu0 0
        %2251 = vmatprep.subr.bf16.mxu0 0
        %2252 = vmatpush2.bf16.msra.mxu0 0
        %2253 = vmatprep.subr.bf16.mxu0 0
        %2254 = vmatpush2.bf16.msra.mxu0 0
        %2255 = vmatprep.subr.bf16.mxu0 0
        %2256 = vmatpush2.bf16.msra.mxu0 0
        %2257 = vmatprep.subr.bf16.mxu0 0
        %2258 = vmatpush2.bf16.msra.mxu0 0
        %2259 = vmatprep.subr.bf16.mxu0 0
        %2260 = vmatpush2.bf16.msra.mxu0 0
        %2261 = vmatprep.mubr.bf16.mxu0 0
        %2262 = vmatmul.mubr.bf16.gmra.mxu0 %v1458
        %v2263 = vpop.f32.mrf.mxu0
        %v2264 = vadd.f32 %v2216, %v2263
        %v2265 = vpop.f32.mrf.mxu0
        %v2266 = vpop.f32.mrf.mxu0
        %v2267 = vadd.f32 %v2219, %v2266
        %v2268 = vpop.f32.mrf.mxu0
        %2269 = vmatprep.mubr.bf16.mxu0 0
        %2270 = vmatmul.mubr.bf16.gmra.mxu0 %v1457
        %v2271 = vpop.f32.mrf.mxu0
        %v2272 = vadd.f32 %v2224, %v2271
        %v2273 = vpop.f32.mrf.mxu0
        %v2274 = vpop.f32.mrf.mxu0
        %v2275 = vpop.f32.mrf.mxu0
        %2276 = vdwg.mxu0
        %v2277 = vadd.f32 %v1330, %v2264
        %v2278 = vadd.f32 %v1331, %v2267
        %v2279 = vadd.f32 %v1332, %v2272
        %2280 = vst [vmem:[#allocation2] sm:$0xff] %v2277
        %2281 = vst [vmem:[#allocation2 + $0x8] sm:$0xff] %v2278
        %2282 = vst [vmem:[#allocation2 + $0x10] sm:$0xff] %v2279
      $region44: #{forward.5} parent=39 // pred_fallthru
        _
      %p2283 = scmp.lt.s32.totalorder %s21, 3
      // Predicated region
      $region45: #{forward.5} parent=39 // pred_check
        %p2284 = pneg %p2283
      $region46: #{forward.5} parent=39 // pred_check_branch
        %2286 = sbr.rel (%p2284) target = $region48
      $region47: #{forward.5} parent=39 // pred_region
        %v2287 = vld [vmem:[#allocation2] sm:$0xff]
        %v2288 = vld [vmem:[#allocation2 + $0x8] sm:$0xff]
        %v2289 = vld [vmem:[#allocation2 + $0x10] sm:$0xff]
        %v2290 = vld [vmem:[%s358] sm:$0xf]
        %v2291 = vld [vmem:[%s358 + $0x4] sm:$0xf]
        %v2292 = vld [vmem:[%s358 + $0x8] sm:$0xf]
        %v2293 = vld [vmem:[%s358 + $0xc] sm:$0x1]
        %v2294 = vld [vmem:[%s358] sm:$0xe]
        %v2295 = vld [vmem:[%s358] sm:$0x8]
        %v2296 = vld [vmem:[%s358 + $0xc] sm:$0x7]
        %v2297 = vld [vmem:[%s358 + $0xc] sm:$0xf]
        %v2298 = vld [vmem:[%s358 + $0x4] sm:$0xc]
        %v2299 = vld [vmem:[%s358 + $0x10] sm:$0x3]
        %v2300 = vld [vmem:[%s358 + $0x10] sm:$0x7]
        %v2301 = vld [vmem:[%s358 + $0x4] sm:$0x8]
        %v2305 = vunpack.c.l.b16 %v2290
        %v2306 = vunpack.c.l.b16 %v2291
        %v2307 = vunpack.c.l.b16 %v2292
        %v2308 = vpack.c.b16 %v2306, %v2305
        %v2309 = vpack.c.b16 %v2307, %v2307
        %v2313 = vunpack.c.l.b16 %v2293
        %v2314 = vpack.c.b16 %v2313, %v2307
        %v2316 = vshrl.u32 %v2308, 16
        %v2318 = vshll.u32 %v2308, 16
        %v2320 = vrot.slane %v2318, 1
        %v2321 = vor.u32 %v2316, %v2320
        %v2323 = vshll.u32 %v2314, 16
        %v2325 = vrot.slane %v2323, 1
        %v2326 = vsel %vm397, %v2321, %v2325
        %v2327 = vshrl.u32 %v2314, 16
        %v2329 = vor.u32 %v2327, %v2325
        %v2333 = vunpack.c.l.b16 %v2294
        %v2334 = vpack.c.b16 %v2306, %v2333
        %v2335 = vrot.slane %v2334, 1
        %v2336 = vrot.slane %v2314, 1
        %v2337 = vsel %vm418, %v2335, %v2336
        %v2342 = vunpack.c.l.b16 %v2295
        %v2343 = vunpack.c.l.b16 %v2296
        %v2344 = vpack.c.b16 %v2306, %v2342
        %v2345 = vpack.c.b16 %v2343, %v2307
        %v2346 = vrot.slane %v2344, 3
        %v2347 = vrot.slane %v2345, 3
        %v2348 = vsel %vm430, %v2346, %v2347
        %v2352 = vunpack.c.l.b16 %v2297
        %v2353 = vpack.c.b16 %v2352, %v2307
        %v2355 = vshrl.u32 %v2344, 16
        %v2357 = vrot.slane %v2355, 3
        %v2358 = vshll.u32 %v2344, 16
        %v2360 = vrot.slane %v2358, 4
        %v2361 = vor.u32 %v2357, %v2360
        %v2363 = vshrl.u32 %v2353, 16
        %v2365 = vrot.slane %v2363, 3
        %v2366 = vshll.u32 %v2353, 16
        %v2368 = vrot.slane %v2366, 4
        %v2369 = vor.u32 %v2365, %v2368
        %v2370 = vsel %vm439, %v2361, %v2369
        %v2373 = vpack.c.b16 %v2307, %v2306
        %v2374 = vpack.c.b16 %v2352, %v2352
        %v2379 = vunpack.c.l.b16 %v2298
        %v2380 = vunpack.c.l.b16 %v2299
        %v2381 = vpack.c.b16 %v2307, %v2379
        %v2382 = vpack.c.b16 %v2380, %v2352
        %v2383 = vrot.slane %v2381, 2
        %v2384 = vrot.slane %v2382, 2
        %v2385 = vsel %vm469, %v2383, %v2384
        %v2389 = vunpack.c.l.b16 %v2300
        %v2390 = vpack.c.b16 %v2389, %v2352
        %v2392 = vshrl.u32 %v2381, 16
        %v2394 = vrot.slane %v2392, 2
        %v2395 = vshll.u32 %v2381, 16
        %v2397 = vrot.slane %v2395, 3
        %v2398 = vor.u32 %v2394, %v2397
        %v2400 = vshrl.u32 %v2390, 16
        %v2402 = vrot.slane %v2400, 2
        %v2403 = vshll.u32 %v2390, 16
        %v2405 = vrot.slane %v2403, 3
        %v2406 = vor.u32 %v2402, %v2405
        %v2407 = vsel %vm478, %v2398, %v2406
        %v2411 = vunpack.c.l.b16 %v2301
        %v2412 = vpack.c.b16 %v2307, %v2411
        %v2413 = vrot.slane %v2412, 3
        %v2414 = vrot.slane %v2390, 3
        %v2415 = vsel %vm430, %v2413, %v2414
        %s2418 = scalar_lea.vmem %s3, 1152
        %v2419 = vld [vmem:[%s2418] sm:$0xf]
        %v2420 = vld [vmem:[%s2418 + $0x4] sm:$0xf]
        %v2421 = vld [vmem:[%s2418 + $0x8] sm:$0xf]
        %v2422 = vld [vmem:[%s2418 + $0xc] sm:$0xf]
        %v2423 = vld [vmem:[%s2418 + $0x10] sm:$0xf]
        %v2424 = vld [vmem:[%s2418 + $0x14] sm:$0xf]
        %v2425 = vld [vmem:[%s2418 + $0x18] sm:$0xf]
        %v2426 = vld [vmem:[%s2418 + $0x1c] sm:$0xf]
        %v2427 = vld [vmem:[%s2418 + $0x20] sm:$0xf]
        %v2428 = vld [vmem:[%s2418 + $0x24] sm:$0xf]
        %v2429 = vld [vmem:[%s2418 + $0x28] sm:$0xf]
        %v2430 = vld [vmem:[%s2418 + $0x2c] sm:$0xf]
        %v2431 = vld [vmem:[%s2418 + $0x30] sm:$0xf]
        %v2432 = vld [vmem:[%s2418 + $0x34] sm:$0xf]
        %v2433 = vld [vmem:[%s2418 + $0x38] sm:$0xf]
        %v2434 = vld [vmem:[%s2418 + $0x3c] sm:$0xf]
        %v2435 = vld [vmem:[%s2418 + $0x40] sm:$0xf]
        %v2436 = vld [vmem:[%s2418 + $0x44] sm:$0xf]
        %v2437 = vld [vmem:[%s2418 + $0x48] sm:$0xf]
        %v2438 = vld [vmem:[%s2418 + $0x4c] sm:$0xf]
        %v2439 = vld [vmem:[%s2418 + $0x50] sm:$0xf]
        %v2440 = vld [vmem:[%s2418 + $0x54] sm:$0xf]
        %v2441 = vld [vmem:[%s2418 + $0x58] sm:$0xf]
        %v2442 = vld [vmem:[%s2418 + $0x5c] sm:$0xf]
        %v2443 = vld [vmem:[%s2418 + $0x60] sm:$0xf]
        %v2444 = vld [vmem:[%s2418 + $0x64] sm:$0xf]
        %v2445 = vld [vmem:[%s2418 + $0x68] sm:$0xf]
        %v2446 = vld [vmem:[%s2418 + $0x6c] sm:$0xf]
        %v2447 = vld [vmem:[%s2418 + $0x70] sm:$0xf]
        %v2448 = vld [vmem:[%s2418 + $0x74] sm:$0xf]
        %v2449 = vld [vmem:[%s2418 + $0x78] sm:$0xf]
        %v2450 = vld [vmem:[%s2418 + $0x7c] sm:$0xf]
        %v2451 = vld [vmem:[%s2418 + $0x80] sm:$0xf]
        %v2452 = vld [vmem:[%s2418 + $0x84] sm:$0xf]
        %v2453 = vld [vmem:[%s2418 + $0x88] sm:$0xf]
        %v2454 = vld [vmem:[%s2418 + $0x8c] sm:$0xf]
        %v2455 = vld [vmem:[%s2418 + $0x90] sm:$0xf]
        %v2456 = vld [vmem:[%s2418 + $0x94] sm:$0xf]
        %v2457 = vld [vmem:[%s2418 + $0x98] sm:$0xf]
        %v2458 = vld [vmem:[%s2418 + $0x9c] sm:$0xf]
        %v2459 = vld [vmem:[%s2418 + $0xa0] sm:$0xf]
        %v2460 = vld [vmem:[%s2418 + $0xa4] sm:$0xf]
        %v2461 = vld [vmem:[%s2418 + $0xa8] sm:$0xf]
        %v2462 = vld [vmem:[%s2418 + $0xac] sm:$0xf]
        %v2463 = vld [vmem:[%s2418 + $0xb0] sm:$0xf]
        %v2464 = vld [vmem:[%s2418 + $0xb4] sm:$0xf]
        %v2465 = vld [vmem:[%s2418 + $0xb8] sm:$0xf]
        %v2466 = vld [vmem:[%s2418 + $0xbc] sm:$0xf]
        %v2467 = vld [vmem:[%s2418 + $0xc0] sm:$0xf]
        %v2468 = vld [vmem:[%s2418 + $0xc4] sm:$0xf]
        %v2469 = vld [vmem:[%s2418 + $0xc8] sm:$0xf]
        %v2470 = vld [vmem:[%s2418 + $0xcc] sm:$0xf]
        %v2471 = vld [vmem:[%s2418 + $0xd0] sm:$0xf]
        %v2472 = vld [vmem:[%s2418 + $0xd4] sm:$0xf]
        %v2473 = vld [vmem:[%s2418 + $0xd8] sm:$0xf]
        %v2474 = vld [vmem:[%s2418 + $0xdc] sm:$0xf]
        %v2475 = vld [vmem:[%s2418 + $0xe0] sm:$0xf]
        %v2476 = vld [vmem:[%s2418 + $0xe4] sm:$0xf]
        %v2477 = vld [vmem:[%s2418 + $0xe8] sm:$0xf]
        %v2478 = vld [vmem:[%s2418 + $0xec] sm:$0xf]
        %v2479 = vld [vmem:[%s2418 + $0xf0] sm:$0xf]
        %v2480 = vld [vmem:[%s2418 + $0xf4] sm:$0xf]
        %v2481 = vld [vmem:[%s2418 + $0xf8] sm:$0xf]
        %v2482 = vld [vmem:[%s2418 + $0xfc] sm:$0xf]
        %v2483 = vld [vmem:[%s2418 + $0x100] sm:$0xf]
        %v2484 = vld [vmem:[%s2418 + $0x104] sm:$0xf]
        %v2485 = vld [vmem:[%s2418 + $0x108] sm:$0xf]
        %v2486 = vld [vmem:[%s2418 + $0x10c] sm:$0xf]
        %v2487 = vld [vmem:[%s2418 + $0x110] sm:$0xf]
        %v2488 = vld [vmem:[%s2418 + $0x114] sm:$0xf]
        %v2489 = vld [vmem:[%s2418 + $0x118] sm:$0xf]
        %v2490 = vld [vmem:[%s2418 + $0x11c] sm:$0xf]
        %v2491 = vld [vmem:[%s2418 + $0x120] sm:$0xf]
        %v2492 = vld [vmem:[%s2418 + $0x124] sm:$0xf]
        %v2493 = vld [vmem:[%s2418 + $0x128] sm:$0xf]
        %v2494 = vld [vmem:[%s2418 + $0x12c] sm:$0xf]
        %v2495 = vld [vmem:[%s2418 + $0x130] sm:$0xf]
        %v2496 = vld [vmem:[%s2418 + $0x134] sm:$0xf]
        %v2497 = vld [vmem:[%s2418 + $0x138] sm:$0xf]
        %v2498 = vld [vmem:[%s2418 + $0x13c] sm:$0xf]
        %v2499 = vld [vmem:[%s2418 + $0x140] sm:$0xf]
        %v2500 = vld [vmem:[%s2418 + $0x144] sm:$0xf]
        %v2501 = vld [vmem:[%s2418 + $0x148] sm:$0xf]
        %v2502 = vld [vmem:[%s2418 + $0x14c] sm:$0xf]
        %v2503 = vld [vmem:[%s2418 + $0x150] sm:$0xf]
        %v2504 = vld [vmem:[%s2418 + $0x154] sm:$0xf]
        %v2505 = vld [vmem:[%s2418 + $0x158] sm:$0xf]
        %v2506 = vld [vmem:[%s2418 + $0x15c] sm:$0xf]
        %v2507 = vld [vmem:[%s2418 + $0x160] sm:$0xf]
        %v2508 = vld [vmem:[%s2418 + $0x164] sm:$0xf]
        %v2509 = vld [vmem:[%s2418 + $0x168] sm:$0xf]
        %v2510 = vld [vmem:[%s2418 + $0x16c] sm:$0xf]
        %v2511 = vld [vmem:[%s2418 + $0x170] sm:$0xf]
        %v2512 = vld [vmem:[%s2418 + $0x174] sm:$0xf]
        %v2513 = vld [vmem:[%s2418 + $0x178] sm:$0xf]
        %v2514 = vld [vmem:[%s2418 + $0x17c] sm:$0xf]
        %v2515 = vld [vmem:[%s2418 + $0x180] sm:$0xf]
        %v2516 = vld [vmem:[%s2418 + $0x184] sm:$0xf]
        %v2517 = vld [vmem:[%s2418 + $0x188] sm:$0xf]
        %v2518 = vld [vmem:[%s2418 + $0x18c] sm:$0xf]
        %v2519 = vld [vmem:[%s2418 + $0x190] sm:$0xf]
        %v2520 = vld [vmem:[%s2418 + $0x194] sm:$0xf]
        %v2521 = vld [vmem:[%s2418 + $0x198] sm:$0xf]
        %v2522 = vld [vmem:[%s2418 + $0x19c] sm:$0xf]
        %v2523 = vld [vmem:[%s2418 + $0x1a0] sm:$0xf]
        %v2524 = vld [vmem:[%s2418 + $0x1a4] sm:$0xf]
        %v2525 = vld [vmem:[%s2418 + $0x1a8] sm:$0xf]
        %v2526 = vld [vmem:[%s2418 + $0x1ac] sm:$0xf]
        %v2527 = vld [vmem:[%s2418 + $0x1b0] sm:$0xf]
        %v2528 = vld [vmem:[%s2418 + $0x1b4] sm:$0xf]
        %v2529 = vld [vmem:[%s2418 + $0x1b8] sm:$0xf]
        %v2530 = vld [vmem:[%s2418 + $0x1bc] sm:$0xf]
        %v2531 = vld [vmem:[%s2418 + $0x1c0] sm:$0xf]
        %v2532 = vld [vmem:[%s2418 + $0x1c4] sm:$0xf]
        %v2533 = vld [vmem:[%s2418 + $0x1c8] sm:$0xf]
        %v2534 = vld [vmem:[%s2418 + $0x1cc] sm:$0xf]
        %v2535 = vld [vmem:[%s2418 + $0x1d0] sm:$0xf]
        %v2536 = vld [vmem:[%s2418 + $0x1d4] sm:$0xf]
        %v2537 = vld [vmem:[%s2418 + $0x1d8] sm:$0xf]
        %v2538 = vld [vmem:[%s2418 + $0x1dc] sm:$0xf]
        %v2539 = vld [vmem:[%s2418 + $0x1e0] sm:$0xf]
        %v2540 = vld [vmem:[%s2418 + $0x1e4] sm:$0xf]
        %v2541 = vld [vmem:[%s2418 + $0x1e8] sm:$0xf]
        %v2542 = vld [vmem:[%s2418 + $0x1ec] sm:$0xf]
        %v2543 = vld [vmem:[%s2418 + $0x1f0] sm:$0xf]
        %v2544 = vld [vmem:[%s2418 + $0x1f4] sm:$0xf]
        %v2545 = vld [vmem:[%s2418 + $0x1f8] sm:$0xf]
        %v2546 = vld [vmem:[%s2418 + $0x1fc] sm:$0xf]
        %v2547 = vld [vmem:[%s2418 + $0x200] sm:$0xf]
        %v2548 = vld [vmem:[%s2418 + $0x204] sm:$0xf]
        %v2549 = vld [vmem:[%s2418 + $0x208] sm:$0xf]
        %v2550 = vld [vmem:[%s2418 + $0x20c] sm:$0xf]
        %v2551 = vld [vmem:[%s2418 + $0x210] sm:$0xf]
        %v2552 = vld [vmem:[%s2418 + $0x214] sm:$0xf]
        %v2553 = vld [vmem:[%s2418 + $0x218] sm:$0xf]
        %v2554 = vld [vmem:[%s2418 + $0x21c] sm:$0xf]
        %v2555 = vld [vmem:[%s2418 + $0x220] sm:$0xf]
        %v2556 = vld [vmem:[%s2418 + $0x224] sm:$0xf]
        %v2557 = vld [vmem:[%s2418 + $0x228] sm:$0xf]
        %v2558 = vld [vmem:[%s2418 + $0x22c] sm:$0xf]
        %v2559 = vld [vmem:[%s2418 + $0x230] sm:$0xf]
        %v2560 = vld [vmem:[%s2418 + $0x234] sm:$0xf]
        %v2561 = vld [vmem:[%s2418 + $0x238] sm:$0xf]
        %v2562 = vld [vmem:[%s2418 + $0x23c] sm:$0xf]
        %v2707 = vunpack.c.l.b16 %v2419
        %v2708 = vunpack.c.l.b16 %v2420
        %v2709 = vunpack.c.l.b16 %v2421
        %v2710 = vunpack.c.l.b16 %v2422
        %v2711 = vunpack.c.l.b16 %v2423
        %v2712 = vunpack.c.l.b16 %v2424
        %v2713 = vunpack.c.l.b16 %v2425
        %v2714 = vunpack.c.l.b16 %v2426
        %v2715 = vunpack.c.l.b16 %v2427
        %v2716 = vunpack.c.l.b16 %v2428
        %v2717 = vunpack.c.l.b16 %v2429
        %v2718 = vunpack.c.l.b16 %v2430
        %v2719 = vunpack.c.l.b16 %v2431
        %v2720 = vunpack.c.l.b16 %v2432
        %v2721 = vunpack.c.l.b16 %v2433
        %v2722 = vunpack.c.l.b16 %v2434
        %v2723 = vunpack.c.l.b16 %v2435
        %v2724 = vunpack.c.l.b16 %v2436
        %v2725 = vunpack.c.l.b16 %v2437
        %v2726 = vunpack.c.l.b16 %v2438
        %v2727 = vunpack.c.l.b16 %v2439
        %v2728 = vunpack.c.l.b16 %v2440
        %v2729 = vunpack.c.l.b16 %v2441
        %v2730 = vunpack.c.l.b16 %v2442
        %v2731 = vunpack.c.l.b16 %v2443
        %v2732 = vunpack.c.l.b16 %v2444
        %v2733 = vunpack.c.l.b16 %v2445
        %v2734 = vunpack.c.l.b16 %v2446
        %v2735 = vunpack.c.l.b16 %v2447
        %v2736 = vunpack.c.l.b16 %v2448
        %v2737 = vunpack.c.l.b16 %v2449
        %v2738 = vunpack.c.l.b16 %v2450
        %v2739 = vunpack.c.l.b16 %v2451
        %v2740 = vunpack.c.l.b16 %v2452
        %v2741 = vunpack.c.l.b16 %v2453
        %v2742 = vunpack.c.l.b16 %v2454
        %v2743 = vunpack.c.l.b16 %v2455
        %v2744 = vunpack.c.l.b16 %v2456
        %v2745 = vunpack.c.l.b16 %v2457
        %v2746 = vunpack.c.l.b16 %v2458
        %v2747 = vunpack.c.l.b16 %v2459
        %v2748 = vunpack.c.l.b16 %v2460
        %v2749 = vunpack.c.l.b16 %v2461
        %v2750 = vunpack.c.l.b16 %v2462
        %v2751 = vunpack.c.l.b16 %v2463
        %v2752 = vunpack.c.l.b16 %v2464
        %v2753 = vunpack.c.l.b16 %v2465
        %v2754 = vunpack.c.l.b16 %v2466
        %v2755 = vunpack.c.l.b16 %v2467
        %v2756 = vunpack.c.l.b16 %v2468
        %v2757 = vunpack.c.l.b16 %v2469
        %v2758 = vunpack.c.l.b16 %v2470
        %v2759 = vunpack.c.l.b16 %v2471
        %v2760 = vunpack.c.l.b16 %v2472
        %v2761 = vunpack.c.l.b16 %v2473
        %v2762 = vunpack.c.l.b16 %v2474
        %v2763 = vunpack.c.l.b16 %v2475
        %v2764 = vunpack.c.l.b16 %v2476
        %v2765 = vunpack.c.l.b16 %v2477
        %v2766 = vunpack.c.l.b16 %v2478
        %v2767 = vunpack.c.l.b16 %v2479
        %v2768 = vunpack.c.l.b16 %v2480
        %v2769 = vunpack.c.l.b16 %v2481
        %v2770 = vunpack.c.l.b16 %v2482
        %v2771 = vunpack.c.l.b16 %v2483
        %v2772 = vunpack.c.l.b16 %v2484
        %v2773 = vunpack.c.l.b16 %v2485
        %v2774 = vunpack.c.l.b16 %v2486
        %v2775 = vunpack.c.l.b16 %v2487
        %v2776 = vunpack.c.l.b16 %v2488
        %v2777 = vunpack.c.l.b16 %v2489
        %v2778 = vunpack.c.l.b16 %v2490
        %v2779 = vunpack.c.l.b16 %v2491
        %v2780 = vunpack.c.l.b16 %v2492
        %v2781 = vunpack.c.l.b16 %v2493
        %v2782 = vunpack.c.l.b16 %v2494
        %v2783 = vunpack.c.l.b16 %v2495
        %v2784 = vunpack.c.l.b16 %v2496
        %v2785 = vunpack.c.l.b16 %v2497
        %v2786 = vunpack.c.l.b16 %v2498
        %v2787 = vunpack.c.l.b16 %v2499
        %v2788 = vunpack.c.l.b16 %v2500
        %v2789 = vunpack.c.l.b16 %v2501
        %v2790 = vunpack.c.l.b16 %v2502
        %v2791 = vunpack.c.l.b16 %v2503
        %v2792 = vunpack.c.l.b16 %v2504
        %v2793 = vunpack.c.l.b16 %v2505
        %v2794 = vunpack.c.l.b16 %v2506
        %v2795 = vunpack.c.l.b16 %v2507
        %v2796 = vunpack.c.l.b16 %v2508
        %v2797 = vunpack.c.l.b16 %v2509
        %v2798 = vunpack.c.l.b16 %v2510
        %v2799 = vunpack.c.l.b16 %v2511
        %v2800 = vunpack.c.l.b16 %v2512
        %v2801 = vunpack.c.l.b16 %v2513
        %v2802 = vunpack.c.l.b16 %v2514
        %v2803 = vunpack.c.l.b16 %v2515
        %v2804 = vunpack.c.l.b16 %v2516
        %v2805 = vunpack.c.l.b16 %v2517
        %v2806 = vunpack.c.l.b16 %v2518
        %v2807 = vunpack.c.l.b16 %v2519
        %v2808 = vunpack.c.l.b16 %v2520
        %v2809 = vunpack.c.l.b16 %v2521
        %v2810 = vunpack.c.l.b16 %v2522
        %v2811 = vunpack.c.l.b16 %v2523
        %v2812 = vunpack.c.l.b16 %v2524
        %v2813 = vunpack.c.l.b16 %v2525
        %v2814 = vunpack.c.l.b16 %v2526
        %v2815 = vunpack.c.l.b16 %v2527
        %v2816 = vunpack.c.l.b16 %v2528
        %v2817 = vunpack.c.l.b16 %v2529
        %v2818 = vunpack.c.l.b16 %v2530
        %v2819 = vunpack.c.l.b16 %v2531
        %v2820 = vunpack.c.l.b16 %v2532
        %v2821 = vunpack.c.l.b16 %v2533
        %v2822 = vunpack.c.l.b16 %v2534
        %v2823 = vunpack.c.l.b16 %v2535
        %v2824 = vunpack.c.l.b16 %v2536
        %v2825 = vunpack.c.l.b16 %v2537
        %v2826 = vunpack.c.l.b16 %v2538
        %v2827 = vunpack.c.l.b16 %v2539
        %v2828 = vunpack.c.l.b16 %v2540
        %v2829 = vunpack.c.l.b16 %v2541
        %v2830 = vunpack.c.l.b16 %v2542
        %v2831 = vunpack.c.l.b16 %v2543
        %v2832 = vunpack.c.l.b16 %v2544
        %v2833 = vunpack.c.l.b16 %v2545
        %v2834 = vunpack.c.l.b16 %v2546
        %v2835 = vunpack.c.l.b16 %v2547
        %v2836 = vunpack.c.l.b16 %v2548
        %v2837 = vunpack.c.l.b16 %v2549
        %v2838 = vunpack.c.l.b16 %v2550
        %v2839 = vunpack.c.l.b16 %v2551
        %v2840 = vunpack.c.l.b16 %v2552
        %v2841 = vunpack.c.l.b16 %v2553
        %v2842 = vunpack.c.l.b16 %v2554
        %v2843 = vunpack.c.l.b16 %v2555
        %v2844 = vunpack.c.l.b16 %v2556
        %v2845 = vunpack.c.l.b16 %v2557
        %v2846 = vunpack.c.l.b16 %v2558
        %v2847 = vunpack.c.l.b16 %v2559
        %v2848 = vunpack.c.l.b16 %v2560
        %v2849 = vunpack.c.l.b16 %v2561
        %v2850 = vunpack.c.l.b16 %v2562
        %v2851 = vpack.c.b16 %v2708, %v2707
        %v2852 = vpack.c.b16 %v2710, %v2709
        %v2853 = vpack.c.b16 %v2712, %v2711
        %v2854 = vpack.c.b16 %v2714, %v2713
        %v2855 = vpack.c.b16 %v2716, %v2715
        %v2856 = vpack.c.b16 %v2718, %v2717
        %v2857 = vpack.c.b16 %v2720, %v2719
        %v2858 = vpack.c.b16 %v2722, %v2721
        %v2859 = vpack.c.b16 %v2724, %v2723
        %v2860 = vpack.c.b16 %v2726, %v2725
        %v2861 = vpack.c.b16 %v2728, %v2727
        %v2862 = vpack.c.b16 %v2730, %v2729
        %v2863 = vpack.c.b16 %v2732, %v2731
        %v2864 = vpack.c.b16 %v2734, %v2733
        %v2865 = vpack.c.b16 %v2736, %v2735
        %v2866 = vpack.c.b16 %v2738, %v2737
        %v2867 = vpack.c.b16 %v2740, %v2739
        %v2868 = vpack.c.b16 %v2742, %v2741
        %v2869 = vpack.c.b16 %v2744, %v2743
        %v2870 = vpack.c.b16 %v2746, %v2745
        %v2871 = vpack.c.b16 %v2748, %v2747
        %v2872 = vpack.c.b16 %v2750, %v2749
        %v2873 = vpack.c.b16 %v2752, %v2751
        %v2874 = vpack.c.b16 %v2754, %v2753
        %v2875 = vpack.c.b16 %v2756, %v2755
        %v2876 = vpack.c.b16 %v2758, %v2757
        %v2877 = vpack.c.b16 %v2760, %v2759
        %v2878 = vpack.c.b16 %v2762, %v2761
        %v2879 = vpack.c.b16 %v2764, %v2763
        %v2880 = vpack.c.b16 %v2766, %v2765
        %v2881 = vpack.c.b16 %v2768, %v2767
        %v2882 = vpack.c.b16 %v2770, %v2769
        %v2883 = vpack.c.b16 %v2772, %v2771
        %v2884 = vpack.c.b16 %v2774, %v2773
        %v2885 = vpack.c.b16 %v2776, %v2775
        %v2886 = vpack.c.b16 %v2778, %v2777
        %v2887 = vpack.c.b16 %v2780, %v2779
        %v2888 = vpack.c.b16 %v2782, %v2781
        %v2889 = vpack.c.b16 %v2784, %v2783
        %v2890 = vpack.c.b16 %v2786, %v2785
        %v2891 = vpack.c.b16 %v2788, %v2787
        %v2892 = vpack.c.b16 %v2790, %v2789
        %v2893 = vpack.c.b16 %v2792, %v2791
        %v2894 = vpack.c.b16 %v2794, %v2793
        %v2895 = vpack.c.b16 %v2796, %v2795
        %v2896 = vpack.c.b16 %v2798, %v2797
        %v2897 = vpack.c.b16 %v2800, %v2799
        %v2898 = vpack.c.b16 %v2802, %v2801
        %v2899 = vpack.c.b16 %v2804, %v2803
        %v2900 = vpack.c.b16 %v2806, %v2805
        %v2901 = vpack.c.b16 %v2808, %v2807
        %v2902 = vpack.c.b16 %v2810, %v2809
        %v2903 = vpack.c.b16 %v2812, %v2811
        %v2904 = vpack.c.b16 %v2814, %v2813
        %v2905 = vpack.c.b16 %v2816, %v2815
        %v2906 = vpack.c.b16 %v2818, %v2817
        %v2907 = vpack.c.b16 %v2820, %v2819
        %v2908 = vpack.c.b16 %v2822, %v2821
        %v2909 = vpack.c.b16 %v2824, %v2823
        %v2910 = vpack.c.b16 %v2826, %v2825
        %v2911 = vpack.c.b16 %v2828, %v2827
        %v2912 = vpack.c.b16 %v2830, %v2829
        %v2913 = vpack.c.b16 %v2832, %v2831
        %v2914 = vpack.c.b16 %v2834, %v2833
        %v2915 = vpack.c.b16 %v2836, %v2835
        %v2916 = vpack.c.b16 %v2838, %v2837
        %v2917 = vpack.c.b16 %v2840, %v2839
        %v2918 = vpack.c.b16 %v2842, %v2841
        %v2919 = vpack.c.b16 %v2844, %v2843
        %v2920 = vpack.c.b16 %v2846, %v2845
        %v2921 = vpack.c.b16 %v2848, %v2847
        %v2922 = vpack.c.b16 %v2850, %v2849
        %2995 = vmatprep.subr.bf16.mxu0 0
        %2996 = vmatpush1.bf16.msra.mxu0 %v2858
        %2997 = vmatprep.subr.bf16.mxu0 0
        %2998 = vmatpush1.bf16.msra.mxu0 %v2857
        %2999 = vmatprep.subr.bf16.mxu0 0
        %3000 = vmatpush1.bf16.msra.mxu0 %v2856
        %3001 = vmatprep.subr.bf16.mxu0 0
        %3002 = vmatpush1.bf16.msra.mxu0 %v2855
        %3003 = vmatprep.subr.bf16.mxu0 0
        %3004 = vmatpush1.bf16.msra.mxu0 %v2854
        %3005 = vmatprep.subr.bf16.mxu0 0
        %3006 = vmatpush1.bf16.msra.mxu0 %v2853
        %3007 = vmatprep.subr.bf16.mxu0 0
        %3008 = vmatpush1.bf16.msra.mxu0 %v2852
        %3009 = vmatprep.subr.bf16.mxu0 0
        %3010 = vmatpush1.bf16.msra.mxu0 %v2851
        %3011 = vmatprep.subr.bf16.mxu0 0
        %3012 = vmatpush2.bf16.msra.mxu0 %v2866
        %3013 = vmatprep.subr.bf16.mxu0 0
        %3014 = vmatpush2.bf16.msra.mxu0 %v2865
        %3015 = vmatprep.subr.bf16.mxu0 0
        %3016 = vmatpush2.bf16.msra.mxu0 %v2864
        %3017 = vmatprep.subr.bf16.mxu0 0
        %3018 = vmatpush2.bf16.msra.mxu0 %v2863
        %3019 = vmatprep.subr.bf16.mxu0 0
        %3020 = vmatpush2.bf16.msra.mxu0 %v2862
        %3021 = vmatprep.subr.bf16.mxu0 0
        %3022 = vmatpush2.bf16.msra.mxu0 %v2861
        %3023 = vmatprep.subr.bf16.mxu0 0
        %3024 = vmatpush2.bf16.msra.mxu0 %v2860
        %3025 = vmatprep.subr.bf16.mxu0 0
        %3026 = vmatpush2.bf16.msra.mxu0 %v2859
        %3027 = vmatprep.mubr.bf16.mxu0 %v2326
        %3028 = vmatmul.mubr.bf16.gmra.mxu0 %v2308
        %v3029 = vpop.f32.mrf.mxu0
        %v3030 = vadd.f32 0.0, %v3029
        %v3031 = vpop.f32.mrf.mxu0
        %v3032 = vpop.f32.mrf.mxu0
        %v3033 = vadd.f32 0.0, %v3032
        %v3034 = vpop.f32.mrf.mxu0
        %3035 = vmatprep.mubr.bf16.mxu0 %v2329
        %3036 = vmatmul.mubr.bf16.gmra.mxu0 %v2309
        %v3037 = vpop.f32.mrf.mxu0
        %v3038 = vadd.f32 0.0, %v3037
        %v3039 = vpop.f32.mrf.mxu0
        %v3040 = vpop.f32.mrf.mxu0
        %v3041 = vpop.f32.mrf.mxu0
        %3042 = vdwg.mxu0
        %3043 = vmatprep.subr.bf16.mxu0 0
        %3044 = vmatpush1.bf16.msra.mxu0 %v2874
        %3045 = vmatprep.subr.bf16.mxu0 0
        %3046 = vmatpush1.bf16.msra.mxu0 %v2873
        %3047 = vmatprep.subr.bf16.mxu0 0
        %3048 = vmatpush1.bf16.msra.mxu0 %v2872
        %3049 = vmatprep.subr.bf16.mxu0 0
        %3050 = vmatpush1.bf16.msra.mxu0 %v2871
        %3051 = vmatprep.subr.bf16.mxu0 0
        %3052 = vmatpush1.bf16.msra.mxu0 %v2870
        %3053 = vmatprep.subr.bf16.mxu0 0
        %3054 = vmatpush1.bf16.msra.mxu0 %v2869
        %3055 = vmatprep.subr.bf16.mxu0 0
        %3056 = vmatpush1.bf16.msra.mxu0 %v2868
        %3057 = vmatprep.subr.bf16.mxu0 0
        %3058 = vmatpush1.bf16.msra.mxu0 %v2867
        %3059 = vmatprep.subr.bf16.mxu0 0
        %3060 = vmatpush2.bf16.msra.mxu0 %v2882
        %3061 = vmatprep.subr.bf16.mxu0 0
        %3062 = vmatpush2.bf16.msra.mxu0 %v2881
        %3063 = vmatprep.subr.bf16.mxu0 0
        %3064 = vmatpush2.bf16.msra.mxu0 %v2880
        %3065 = vmatprep.subr.bf16.mxu0 0
        %3066 = vmatpush2.bf16.msra.mxu0 %v2879
        %3067 = vmatprep.subr.bf16.mxu0 0
        %3068 = vmatpush2.bf16.msra.mxu0 %v2878
        %3069 = vmatprep.subr.bf16.mxu0 0
        %3070 = vmatpush2.bf16.msra.mxu0 %v2877
        %3071 = vmatprep.subr.bf16.mxu0 0
        %3072 = vmatpush2.bf16.msra.mxu0 %v2876
        %3073 = vmatprep.subr.bf16.mxu0 0
        %3074 = vmatpush2.bf16.msra.mxu0 %v2875
        %3075 = vmatprep.mubr.bf16.mxu0 %v2348
        %3076 = vmatmul.mubr.bf16.gmra.mxu0 %v2337
        %v3077 = vpop.f32.mrf.mxu0
        %v3078 = vadd.f32 %v3030, %v3077
        %v3079 = vpop.f32.mrf.mxu0
        %v3080 = vpop.f32.mrf.mxu0
        %v3081 = vadd.f32 %v3033, %v3080
        %v3082 = vpop.f32.mrf.mxu0
        %3083 = vmatprep.mubr.bf16.mxu0 %v2347
        %3084 = vmatmul.mubr.bf16.gmra.mxu0 %v2336
        %v3085 = vpop.f32.mrf.mxu0
        %v3086 = vadd.f32 %v3038, %v3085
        %v3087 = vpop.f32.mrf.mxu0
        %v3088 = vpop.f32.mrf.mxu0
        %v3089 = vpop.f32.mrf.mxu0
        %3090 = vdwg.mxu0
        %3091 = vmatprep.subr.bf16.mxu0 0
        %3092 = vmatpush1.bf16.msra.mxu0 %v2890
        %3093 = vmatprep.subr.bf16.mxu0 0
        %3094 = vmatpush1.bf16.msra.mxu0 %v2889
        %3095 = vmatprep.subr.bf16.mxu0 0
        %3096 = vmatpush1.bf16.msra.mxu0 %v2888
        %3097 = vmatprep.subr.bf16.mxu0 0
        %3098 = vmatpush1.bf16.msra.mxu0 %v2887
        %3099 = vmatprep.subr.bf16.mxu0 0
        %3100 = vmatpush1.bf16.msra.mxu0 %v2886
        %3101 = vmatprep.subr.bf16.mxu0 0
        %3102 = vmatpush1.bf16.msra.mxu0 %v2885
        %3103 = vmatprep.subr.bf16.mxu0 0
        %3104 = vmatpush1.bf16.msra.mxu0 %v2884
        %3105 = vmatprep.subr.bf16.mxu0 0
        %3106 = vmatpush1.bf16.msra.mxu0 %v2883
        %3107 = vmatprep.subr.bf16.mxu0 0
        %3108 = vmatpush2.bf16.msra.mxu0 %v2898
        %3109 = vmatprep.subr.bf16.mxu0 0
        %3110 = vmatpush2.bf16.msra.mxu0 %v2897
        %3111 = vmatprep.subr.bf16.mxu0 0
        %3112 = vmatpush2.bf16.msra.mxu0 %v2896
        %3113 = vmatprep.subr.bf16.mxu0 0
        %3114 = vmatpush2.bf16.msra.mxu0 %v2895
        %3115 = vmatprep.subr.bf16.mxu0 0
        %3116 = vmatpush2.bf16.msra.mxu0 %v2894
        %3117 = vmatprep.subr.bf16.mxu0 0
        %3118 = vmatpush2.bf16.msra.mxu0 %v2893
        %3119 = vmatprep.subr.bf16.mxu0 0
        %3120 = vmatpush2.bf16.msra.mxu0 %v2892
        %3121 = vmatprep.subr.bf16.mxu0 0
        %3122 = vmatpush2.bf16.msra.mxu0 %v2891
        %3123 = vmatprep.mubr.bf16.mxu0 %v2373
        %3124 = vmatmul.mubr.bf16.gmra.mxu0 %v2370
        %v3125 = vpop.f32.mrf.mxu0
        %v3126 = vadd.f32 %v3078, %v3125
        %v3127 = vpop.f32.mrf.mxu0
        %v3128 = vpop.f32.mrf.mxu0
        %v3129 = vadd.f32 %v3081, %v3128
        %v3130 = vpop.f32.mrf.mxu0
        %3131 = vmatprep.mubr.bf16.mxu0 %v2374
        %3132 = vmatmul.mubr.bf16.gmra.mxu0 %v2369
        %v3133 = vpop.f32.mrf.mxu0
        %v3134 = vadd.f32 %v3086, %v3133
        %v3135 = vpop.f32.mrf.mxu0
        %v3136 = vpop.f32.mrf.mxu0
        %v3137 = vpop.f32.mrf.mxu0
        %3138 = vdwg.mxu0
        %3139 = vmatprep.subr.bf16.mxu0 0
        %3140 = vmatpush1.bf16.msra.mxu0 %v2906
        %3141 = vmatprep.subr.bf16.mxu0 0
        %3142 = vmatpush1.bf16.msra.mxu0 %v2905
        %3143 = vmatprep.subr.bf16.mxu0 0
        %3144 = vmatpush1.bf16.msra.mxu0 %v2904
        %3145 = vmatprep.subr.bf16.mxu0 0
        %3146 = vmatpush1.bf16.msra.mxu0 %v2903
        %3147 = vmatprep.subr.bf16.mxu0 0
        %3148 = vmatpush1.bf16.msra.mxu0 %v2902
        %3149 = vmatprep.subr.bf16.mxu0 0
        %3150 = vmatpush1.bf16.msra.mxu0 %v2901
        %3151 = vmatprep.subr.bf16.mxu0 0
        %3152 = vmatpush1.bf16.msra.mxu0 %v2900
        %3153 = vmatprep.subr.bf16.mxu0 0
        %3154 = vmatpush1.bf16.msra.mxu0 %v2899
        %3155 = vmatprep.subr.bf16.mxu0 0
        %3156 = vmatpush2.bf16.msra.mxu0 %v2914
        %3157 = vmatprep.subr.bf16.mxu0 0
        %3158 = vmatpush2.bf16.msra.mxu0 %v2913
        %3159 = vmatprep.subr.bf16.mxu0 0
        %3160 = vmatpush2.bf16.msra.mxu0 %v2912
        %3161 = vmatprep.subr.bf16.mxu0 0
        %3162 = vmatpush2.bf16.msra.mxu0 %v2911
        %3163 = vmatprep.subr.bf16.mxu0 0
        %3164 = vmatpush2.bf16.msra.mxu0 %v2910
        %3165 = vmatprep.subr.bf16.mxu0 0
        %3166 = vmatpush2.bf16.msra.mxu0 %v2909
        %3167 = vmatprep.subr.bf16.mxu0 0
        %3168 = vmatpush2.bf16.msra.mxu0 %v2908
        %3169 = vmatprep.subr.bf16.mxu0 0
        %3170 = vmatpush2.bf16.msra.mxu0 %v2907
        %3171 = vmatprep.mubr.bf16.mxu0 %v2407
        %3172 = vmatmul.mubr.bf16.gmra.mxu0 %v2385
        %v3173 = vpop.f32.mrf.mxu0
        %v3174 = vadd.f32 %v3126, %v3173
        %v3175 = vpop.f32.mrf.mxu0
        %v3176 = vpop.f32.mrf.mxu0
        %v3177 = vadd.f32 %v3129, %v3176
        %v3178 = vpop.f32.mrf.mxu0
        %3179 = vmatprep.mubr.bf16.mxu0 %v2406
        %3180 = vmatmul.mubr.bf16.gmra.mxu0 %v2384
        %v3181 = vpop.f32.mrf.mxu0
        %v3182 = vadd.f32 %v3134, %v3181
        %v3183 = vpop.f32.mrf.mxu0
        %v3184 = vpop.f32.mrf.mxu0
        %v3185 = vpop.f32.mrf.mxu0
        %3186 = vdwg.mxu0
        %3187 = vmatprep.subr.bf16.mxu0 0
        %3188 = vmatpush1.bf16.msra.mxu0 %v2922
        %3189 = vmatprep.subr.bf16.mxu0 0
        %3190 = vmatpush1.bf16.msra.mxu0 %v2921
        %3191 = vmatprep.subr.bf16.mxu0 0
        %3192 = vmatpush1.bf16.msra.mxu0 %v2920
        %3193 = vmatprep.subr.bf16.mxu0 0
        %3194 = vmatpush1.bf16.msra.mxu0 %v2919
        %3195 = vmatprep.subr.bf16.mxu0 0
        %3196 = vmatpush1.bf16.msra.mxu0 %v2918
        %3197 = vmatprep.subr.bf16.mxu0 0
        %3198 = vmatpush1.bf16.msra.mxu0 %v2917
        %3199 = vmatprep.subr.bf16.mxu0 0
        %3200 = vmatpush1.bf16.msra.mxu0 %v2916
        %3201 = vmatprep.subr.bf16.mxu0 0
        %3202 = vmatpush1.bf16.msra.mxu0 %v2915
        %3203 = vmatprep.subr.bf16.mxu0 0
        %3204 = vmatpush2.bf16.msra.mxu0 0
        %3205 = vmatprep.subr.bf16.mxu0 0
        %3206 = vmatpush2.bf16.msra.mxu0 0
        %3207 = vmatprep.subr.bf16.mxu0 0
        %3208 = vmatpush2.bf16.msra.mxu0 0
        %3209 = vmatprep.subr.bf16.mxu0 0
        %3210 = vmatpush2.bf16.msra.mxu0 0
        %3211 = vmatprep.subr.bf16.mxu0 0
        %3212 = vmatpush2.bf16.msra.mxu0 0
        %3213 = vmatprep.subr.bf16.mxu0 0
        %3214 = vmatpush2.bf16.msra.mxu0 0
        %3215 = vmatprep.subr.bf16.mxu0 0
        %3216 = vmatpush2.bf16.msra.mxu0 0
        %3217 = vmatprep.subr.bf16.mxu0 0
        %3218 = vmatpush2.bf16.msra.mxu0 0
        %3219 = vmatprep.mubr.bf16.mxu0 0
        %3220 = vmatmul.mubr.bf16.gmra.mxu0 %v2415
        %v3221 = vpop.f32.mrf.mxu0
        %v3222 = vadd.f32 %v3174, %v3221
        %v3223 = vpop.f32.mrf.mxu0
        %v3224 = vpop.f32.mrf.mxu0
        %v3225 = vadd.f32 %v3177, %v3224
        %v3226 = vpop.f32.mrf.mxu0
        %3227 = vmatprep.mubr.bf16.mxu0 0
        %3228 = vmatmul.mubr.bf16.gmra.mxu0 %v2414
        %v3229 = vpop.f32.mrf.mxu0
        %v3230 = vadd.f32 %v3182, %v3229
        %v3231 = vpop.f32.mrf.mxu0
        %v3232 = vpop.f32.mrf.mxu0
        %v3233 = vpop.f32.mrf.mxu0
        %3234 = vdwg.mxu0
        %v3235 = vadd.f32 %v2287, %v3222
        %v3236 = vadd.f32 %v2288, %v3225
        %v3237 = vadd.f32 %v2289, %v3230
        %3238 = vst [vmem:[#allocation2] sm:$0xff] %v3235
        %3239 = vst [vmem:[#allocation2 + $0x8] sm:$0xff] %v3236
        %3240 = vst [vmem:[#allocation2 + $0x10] sm:$0xff] %v3237
      $region48: #{forward.5} parent=39 // pred_fallthru
        _
      %v3241 = vld [vmem:[#allocation2] sm:$0xff]
      %v3242 = vld [vmem:[#allocation2 + $0x8] sm:$0xff]
      %v3243 = vld [vmem:[#allocation2 + $0x10] sm:$0xff]
      %v3244 = vld [vmem:[%s4] sm:$0x1]
      %v3246 = vlaneseq
      %v3247 = vshrl.u32 %v3246, 7
      %v3248 = vsub.s32 0, %v3247
      %v3249 = vrot.slane %v3244, %v3248
      %v3251 = vadd.f32 %v3241, %v3249
      %v3252 = vadd.f32 %v3242, %v3249
      %v3253 = vadd.f32 %v3243, %v3249
      %vm3254 = vcmp.gt.f32.partialorder %v3251, 0.0
      %vm3255 = vcmp.gt.f32.partialorder %v3252, 0.0
      %vm3256 = vcmp.gt.f32.partialorder %v3253, 0.0
      %v3257 = vmin.f32 %v3251, 0.0
      %v3258 = vmin.f32 %v3252, 0.0
      %v3259 = vmin.f32 %v3253, 0.0
      %v3260 = vmul.f32 %v3257, 1.442695
      %v3261 = vpow.pop %v3260
      %v3262 = vmul.f32 %v3258, 1.442695
      %v3263 = vpow.pop %v3262
      %v3264 = vmul.f32 %v3259, 1.442695
      %v3265 = vpow.pop %v3264
      %v3266 = vsub.f32 %v3261, 1.0
      %v3267 = vsub.f32 %v3263, 1.0
      %v3268 = vsub.f32 %v3265, 1.0
      %v3269 = vsel %vm3254, %v3251, %v3266
      %v3270 = vsel %vm3255, %v3252, %v3267
      %v3271 = vsel %vm3256, %v3253, %v3268
      %v3272 = vlaneseq
      %v3273 = vshrl.u32 %v3272, 7
      %v3274 = vadd.s32 %v3273, 8
      %v3275 = vadd.s32 %v3273, 16
      %vm3276 = vcmp.lt.s32.totalorder %v3273, 0
      %v3277 = vsub.s32 0, %v3273
      %v3278 = vsel %vm3276, %v3277, %v3273
      %v3279 = vmul.u32.u64.compose %v3278, 2863311531
      %v3280 = vextract.low.u32 %v3279
      %v3281 = vextract.high.u32 %v3279
      %v3282 = vshrl.u32 %v3281, 2
      %v3283 = vmul.u32 %v3282, 6
      %v3284 = vsub.s32 %v3278, %v3283
      %v3285 = vsub.s32 0, %v3284
      %v3286 = vsel %vm3276, %v3285, %v3284
      %vm3287 = vcmp.lt.s32.totalorder %v3274, 0
      %v3288 = vsub.s32 0, %v3274
      %v3289 = vsel %vm3287, %v3288, %v3274
      %v3290 = vmul.u32.u64.compose %v3289, 2863311531
      %v3291 = vextract.low.u32 %v3290
      %v3292 = vextract.high.u32 %v3290
      %v3293 = vshrl.u32 %v3292, 2
      %v3294 = vmul.u32 %v3293, 6
      %v3295 = vsub.s32 %v3289, %v3294
      %v3296 = vsub.s32 0, %v3295
      %v3297 = vsel %vm3287, %v3296, %v3295
      %vm3298 = vcmp.lt.s32.totalorder %v3275, 0
      %v3299 = vsub.s32 0, %v3275
      %v3300 = vsel %vm3298, %v3299, %v3275
      %v3301 = vmul.u32.u64.compose %v3300, 2863311531
      %v3302 = vextract.low.u32 %v3301
      %v3303 = vextract.high.u32 %v3301
      %v3304 = vshrl.u32 %v3303, 2
      %v3305 = vmul.u32 %v3304, 6
      %v3306 = vsub.s32 %v3300, %v3305
      %v3307 = vsub.s32 0, %v3306
      %v3308 = vsel %vm3298, %v3307, %v3306
      %vm3309 = vcmp.ne.s32.totalorder %v3286, 0
      %vm3310 = vcmp.ne.s32.totalorder %v3297, 0
      %vm3311 = vcmp.ne.s32.totalorder %v3308, 0
      %vm3312 = vcmp.lt.s32.totalorder %v3286, 0
      %vm3313 = vcmp.lt.s32.totalorder %v3297, 0
      %vm3314 = vcmp.lt.s32.totalorder %v3308, 0
      %vm3315 = vmand %vm3312, %vm3309
      %vm3316 = vmand %vm3313, %vm3310
      %vm3317 = vmand %vm3314, %vm3311
      %v3318 = vadd.s32 %v3286, 6
      %v3319 = vadd.s32 %v3297, 6
      %v3320 = vadd.s32 %v3308, 6
      %v3321 = vsel %vm3315, %v3318, %v3286
      %v3322 = vsel %vm3316, %v3319, %v3297
      %v3323 = vsel %vm3317, %v3320, %v3308
      %vm3324 = vcmp.lt.s32.totalorder %v3321, 4
      %vm3325 = vcmp.lt.s32.totalorder %v3322, 4
      %vm3326 = vcmp.lt.s32.totalorder %v3323, 4
      %v3327 = vsel %vm3324, %v3269, 0.0
      %v3328 = vsel %vm3325, %v3270, 0.0
      %v3329 = vsel %vm3326, %v3271, 0.0
      %v3330 = vpack.c.bf16 %v3328, %v3327
      %v3331 = vpack.c.bf16 %v3329, %v3329
      %vm3332 = vsmask.f32 3328
      %v3334 = vshrl.u32 %v3330, 16
      %v3336 = vrot.slane %v3334, 4
      %v3337 = vshll.u32 %v3330, 16
      %v3339 = vrot.slane %v3337, 5
      %v3340 = vor.u32 %v3336, %v3339
      %v3342 = vshrl.u32 %v3331, 16
      %v3344 = vrot.slane %v3342, 4
      %v3345 = vshll.u32 %v3331, 16
      %v3347 = vrot.slane %v3345, 5
      %v3348 = vor.u32 %v3344, %v3347
      %v3349 = vsel %vm3332, %v3340, %v3348
      %vm3352 = vcmask 1043456
      %vm3353 = vmand %vm3352, %vm3332
      %v3354 = vsel %vm3353, 0, %v3340
      %vm3355 = vcmask 1047552
      %vm3356 = vmand %vm3355, %vm397
      %v3357 = vsel %vm3356, %v3349, 0
      %v3361 = vunpack.c.l.b16 %v3354
      %v3362 = vunpack.c.h.b16 %v3354
      %v3363 = vunpack.c.l.b16 %v3357
      %v3364 = vunpack.c.h.b16 %v3357
      %v3365 = vunpack.c.l.b16 0
      %v3366 = vunpack.c.h.b16 0
      %v3367 = vpack.c.b16 %v3361, %v3361
      %v3368 = vpack.c.b16 %v3362, %v3362
      %v3369 = vpack.c.b16 %v3363, %v3363
      %v3370 = vpack.c.b16 %v3364, %v3364
      %v3371 = vpack.c.b16 %v3365, %v3365
      %v3372 = vpack.c.b16 %v3366, %v3366
      %3379 = vst [vmem:[%s370] sm:$0xf] %v3367
      %3380 = vst [vmem:[%s370 + $0x4] sm:$0xf] %v3368
      %3381 = vst [vmem:[%s370 + $0x8] sm:$0xf] %v3369
      %3382 = vst [vmem:[%s370 + $0xc] sm:$0xf] %v3370
      %3383 = vst [vmem:[%s370 + $0x10] sm:$0xf] %v3371
      %3384 = vst [vmem:[%s370 + $0x14] sm:$0x1] %v3372
      %p3385 = scmp.lt.s32.totalorder %s20, 1
      %s3386 = scalar_select %p3385, %s20, 1
      %p3387 = scmp.lt.s32.totalorder %s21, 3
      %s3388 = scalar_select %p3387, %s21, 3
      %s3389 = smul.addr %s3388, 6
      %s3390 = smul.addr %s3386, 24
      %s3391 = sadd.s32 %s3389, %s3390
      %s3392 = smul.addr %s3391, 4
      %s3393 = scalar_lea.vmem %s5, %s3392
      // Predicated region
      $region49: #{forward.5} parent=39 // pred_check
        %p3394 = pneg %p186
      $region50: #{forward.5} parent=39 // pred_check_branch
        %3396 = sbr.rel (%p3394) target = $region52
      $region51: #{forward.5} parent=39 // pred_region
        _
      $region52: #{forward.5} parent=39 // pred_fallthru
        _
    $region40: #{forward.5} parent=5 // pred_fallthru
      _
    %p3397 = scmp.le.s32.totalorder 2, %s11
    // Predicated region
    $region53: #{forward.5} parent=5 // pred_check
      %p3398 = pneg %p3397
    $region54: #{forward.5} parent=5 // pred_check_branch
      %3400 = sbr.rel (%p3398) target = $region56
    $region55: #{forward.5} parent=5 // pred_region
      %s3401 = ssub.s32 %s11, 2
      // Predicated region
      $region57: #{forward.5} parent=55 // pred_check
        %p3402 = pneg %p192
      $region58: #{forward.5} parent=55 // pred_check_branch
        %3404 = sbr.rel (%p3402) target = $region60
      $region59: #{forward.5} parent=55 // pred_region
        %p3405 = scmp.lt.s32.totalorder %s22, 1
        %s3406 = scalar_select %p3405, %s22, 1
        %p3407 = scmp.lt.s32.totalorder %s23, 3
        %s3408 = scalar_select %p3407, %s23, 3
        %s3409 = smul.addr %s3408, 6
        %s3410 = smul.addr %s3406, 24
        %s3411 = sadd.s32 %s3409, %s3410
        %s3412 = smul.addr %s3411, 4
        %s3413 = scalar_lea.vmem %s5, %s3412
      $region60: #{forward.5} parent=55 // pred_fallthru
        _
    $region56: #{forward.5} parent=5 // pred_fallthru
      _
  $region6: #{forward.5} parent=0 // loop_footer
    %s15 = sadd.s32 1, %s11
  $region7: #{forward.5} parent=0 // loop_footer_branch
    %10 = sbr.rel target = $region3
  $region8: #{forward.5} parent=0 // loop_exit
    _

// kernel: forward.7
$region0: #{forward.7}
  #allocation0 [shape = 'u32[]', space=smem, size = 0x4, offset = 0x4, fixed_abs, tag = 'smem constant byte address 0x4 - core index']
  #allocation1 [shape = 'u32[144,128]{1,0:T(1,128)}', space=vmem, size = 0x12000, scoped, tag = 'internal scratch']
  #allocation2 [shape = 'f32[2,32]{1,0:T(2,128)}', space=vmem, size = 0x400, scoped, tag = 'scratch operand']
  %s0 = inlined_call_operand.vmem [shape: bf16[2,256], index: 0, kind: input, shape index: {}]
  %s1 = inlined_call_operand.vmem [shape: bf16[256,32], index: 1, kind: input, shape index: {}]
  %s2 = inlined_call_operand.vmem [shape: f32[1,32], index: 2, kind: input, shape index: {}]
  %s3 = inlined_call_operand.vmem [shape: f32[32,2], index: 3, kind: input, shape index: {}]
  %s4 = inlined_call_operand.vmem [shape: f32[1,2], index: 4, kind: input, shape index: {}]
  %s5 = inlined_call_operand.hbm [shape: f32[2,2], index: 5, kind: output, shape index: {}]
  %s6 = sld [smem:[#allocation0]]
  $region38: #{forward.7} parent=0
    _
  %s8 = ssub.s32 1, %s6
  %s9 = scalar_select 0, %s8, %s6
  $region1: #{forward.7} parent=0
    #allocation3 [shape = 'u8[1024]{0}', space=vmem, size = 0x400, scoped, tag = 'output window, operand 0, single buffered']
    #allocation4 [shape = 's32[1]{0}', space=sflag, size = 0x4, scoped, tag = 'scoped memory for forward.7']
    %10 = vsyncpa [#allocation4], 0
    // Predicated region
    $region2: #{forward.7} parent=1 // pred_check
      _
    $region3: #{forward.7} parent=1 // pred_check_branch
      %12 = sbr.rel (0) target = $region5
    $region4: #{forward.7} parent=1 // pred_region
      _
    $region5: #{forward.7} parent=1 // pred_fallthru
      _
    // Predicated region
    $region6: #{forward.7} parent=1 // pred_check
      _
    $region7: #{forward.7} parent=1 // pred_check_branch
      %14 = sbr.rel (0) target = $region9
    $region8: #{forward.7} parent=1 // pred_region
      _
    $region9: #{forward.7} parent=1 // pred_fallthru
      _
    // Predicated region
    $region10: #{forward.7} parent=1 // pred_check
      _
    $region11: #{forward.7} parent=1 // pred_check_branch
      %16 = sbr.rel (0) target = $region13
    $region12: #{forward.7} parent=1 // pred_region
      _
    $region13: #{forward.7} parent=1 // pred_fallthru
      _
    // Predicated region
    $region14: #{forward.7} parent=1 // pred_check
      _
    $region15: #{forward.7} parent=1 // pred_check_branch
      %18 = sbr.rel (0) target = $region17
    $region16: #{forward.7} parent=1 // pred_region
      _
    $region17: #{forward.7} parent=1 // pred_fallthru
      _
    // Predicated region
    $region18: #{forward.7} parent=1 // pred_check
      _
    $region19: #{forward.7} parent=1 // pred_check_branch
      %20 = sbr.rel (0) target = $region21
    $region20: #{forward.7} parent=1 // pred_region
      _
    $region21: #{forward.7} parent=1 // pred_fallthru
      _
    %p22 = scmp.eq.s32.totalorder 0, 0
    // Predicated region
    $region22: #{forward.7} parent=1 // pred_check
      %p23 = pneg %p22
    $region23: #{forward.7} parent=1 // pred_check_branch
      %25 = sbr.rel (%p23) target = $region25
    $region24: #{forward.7} parent=1 // pred_region
      %vm26 = vcmask 254976
      %27 = vst.msk [vmem:[#allocation2] sm:$0x3] %vm26, 0.0
    $region25: #{forward.7} parent=1 // pred_fallthru
      _
    %v28 = vld [vmem:[#allocation2] sm:$0x3]
    %v29 = vld [vmem:[%s0] sm:$0x3]
    %v30 = vld [vmem:[%s1] sm:$0xf]
    %v31 = vld [vmem:[%s1 + $0x4] sm:$0xf]
    %v32 = vld [vmem:[%s1 + $0x8] sm:$0xf]
    %v33 = vld [vmem:[%s1 + $0xc] sm:$0xf]
    %v34 = vld [vmem:[%s1 + $0x10] sm:$0xf]
    %v35 = vld [vmem:[%s1 + $0x14] sm:$0xf]
    %v36 = vld [vmem:[%s1 + $0x18] sm:$0xf]
    %v37 = vld [vmem:[%s1 + $0x1c] sm:$0xf]
    %v38 = vld [vmem:[%s1 + $0x20] sm:$0xf]
    %v39 = vld [vmem:[%s1 + $0x24] sm:$0xf]
    %v40 = vld [vmem:[%s1 + $0x28] sm:$0xf]
    %v41 = vld [vmem:[%s1 + $0x2c] sm:$0xf]
    %v42 = vld [vmem:[%s1 + $0x30] sm:$0xf]
    %v43 = vld [vmem:[%s1 + $0x34] sm:$0xf]
    %v44 = vld [vmem:[%s1 + $0x38] sm:$0xf]
    %v45 = vld [vmem:[%s1 + $0x3c] sm:$0xf]
    %v46 = vld [vmem:[%s1 + $0x40] sm:$0xf]
    %v47 = vld [vmem:[%s1 + $0x44] sm:$0xf]
    %v48 = vld [vmem:[%s1 + $0x48] sm:$0xf]
    %v49 = vld [vmem:[%s1 + $0x4c] sm:$0xf]
    %v50 = vld [vmem:[%s1 + $0x50] sm:$0xf]
    %v51 = vld [vmem:[%s1 + $0x54] sm:$0xf]
    %v52 = vld [vmem:[%s1 + $0x58] sm:$0xf]
    %v53 = vld [vmem:[%s1 + $0x5c] sm:$0xf]
    %v54 = vld [vmem:[%s1 + $0x60] sm:$0xf]
    %v55 = vld [vmem:[%s1 + $0x64] sm:$0xf]
    %v56 = vld [vmem:[%s1 + $0x68] sm:$0xf]
    %v57 = vld [vmem:[%s1 + $0x6c] sm:$0xf]
    %v58 = vld [vmem:[%s1 + $0x70] sm:$0xf]
    %v59 = vld [vmem:[%s1 + $0x74] sm:$0xf]
    %v60 = vld [vmem:[%s1 + $0x78] sm:$0xf]
    %v61 = vld [vmem:[%s1 + $0x7c] sm:$0xf]
    %v64 = vunpack.c.l.s4 1966171168
    %v65 = vunpack.c.0.s8 %v64
    %v66 = vlaneseq
    %v67 = vshrl.u32 %v66, 7
    %v68 = vsub.s32 %v65, %v67
    %v69 = vrot.slane %v29, %v68
    %v70 = vcombine.high %v69, %v69
    %v72 = vunpack.c.l.s4 1966171168
    %v73 = vunpack.c.0.s8 %v72
    %v74 = vlaneseq
    %v75 = vshrl.u32 %v74, 7
    %v76 = vsub.s32 %v73, %v75
    %v77 = vrot.slane %v69, %v76
    %v79 = vunpack.c.l.s4 1966171168
    %v80 = vunpack.c.0.s8 %v79
    %v81 = vlaneseq
    %v82 = vshrl.u32 %v81, 7
    %v83 = vsub.s32 %v80, %v82
    %v84 = vrot.slane %v70, %v83
    %v119 = vunpack.c.l.b16 %v30
    %v120 = vunpack.c.l.b16 %v31
    %v121 = vunpack.c.l.b16 %v32
    %v122 = vunpack.c.l.b16 %v33
    %v123 = vunpack.c.l.b16 %v34
    %v124 = vunpack.c.l.b16 %v35
    %v125 = vunpack.c.l.b16 %v36
    %v126 = vunpack.c.l.b16 %v37
    %v127 = vunpack.c.l.b16 %v38
    %v128 = vunpack.c.l.b16 %v39
    %v129 = vunpack.c.l.b16 %v40
    %v130 = vunpack.c.l.b16 %v41
    %v131 = vunpack.c.l.b16 %v42
    %v132 = vunpack.c.l.b16 %v43
    %v133 = vunpack.c.l.b16 %v44
    %v134 = vunpack.c.l.b16 %v45
    %v135 = vunpack.c.l.b16 %v46
    %v136 = vunpack.c.l.b16 %v47
    %v137 = vunpack.c.l.b16 %v48
    %v138 = vunpack.c.l.b16 %v49
    %v139 = vunpack.c.l.b16 %v50
    %v140 = vunpack.c.l.b16 %v51
    %v141 = vunpack.c.l.b16 %v52
    %v142 = vunpack.c.l.b16 %v53
    %v143 = vunpack.c.l.b16 %v54
    %v144 = vunpack.c.l.b16 %v55
    %v145 = vunpack.c.l.b16 %v56
    %v146 = vunpack.c.l.b16 %v57
    %v147 = vunpack.c.l.b16 %v58
    %v148 = vunpack.c.l.b16 %v59
    %v149 = vunpack.c.l.b16 %v60
    %v150 = vunpack.c.l.b16 %v61
    %v151 = vpack.c.b16 %v120, %v119
    %v152 = vpack.c.b16 %v122, %v121
    %v153 = vpack.c.b16 %v124, %v123
    %v154 = vpack.c.b16 %v126, %v125
    %v155 = vpack.c.b16 %v128, %v127
    %v156 = vpack.c.b16 %v130, %v129
    %v157 = vpack.c.b16 %v132, %v131
    %v158 = vpack.c.b16 %v134, %v133
    %v159 = vpack.c.b16 %v136, %v135
    %v160 = vpack.c.b16 %v138, %v137
    %v161 = vpack.c.b16 %v140, %v139
    %v162 = vpack.c.b16 %v142, %v141
    %v163 = vpack.c.b16 %v144, %v143
    %v164 = vpack.c.b16 %v146, %v145
    %v165 = vpack.c.b16 %v148, %v147
    %v166 = vpack.c.b16 %v150, %v149
    %183 = vmatprep.subr.bf16.mxu0 0
    %184 = vmatpush1.bf16.msra.mxu0 %v158
    %185 = vmatprep.subr.bf16.mxu0 0
    %186 = vmatpush1.bf16.msra.mxu0 %v157
    %187 = vmatprep.subr.bf16.mxu0 0
    %188 = vmatpush1.bf16.msra.mxu0 %v156
    %189 = vmatprep.subr.bf16.mxu0 0
    %190 = vmatpush1.bf16.msra.mxu0 %v155
    %191 = vmatprep.subr.bf16.mxu0 0
    %192 = vmatpush1.bf16.msra.mxu0 %v154
    %193 = vmatprep.subr.bf16.mxu0 0
    %194 = vmatpush1.bf16.msra.mxu0 %v153
    %195 = vmatprep.subr.bf16.mxu0 0
    %196 = vmatpush1.bf16.msra.mxu0 %v152
    %197 = vmatprep.subr.bf16.mxu0 0
    %198 = vmatpush1.bf16.msra.mxu0 %v151
    %199 = vmatprep.subr.bf16.mxu0 0
    %200 = vmatpush2.bf16.msra.mxu0 %v166
    %201 = vmatprep.subr.bf16.mxu0 0
    %202 = vmatpush2.bf16.msra.mxu0 %v165
    %203 = vmatprep.subr.bf16.mxu0 0
    %204 = vmatpush2.bf16.msra.mxu0 %v164
    %205 = vmatprep.subr.bf16.mxu0 0
    %206 = vmatpush2.bf16.msra.mxu0 %v163
    %207 = vmatprep.subr.bf16.mxu0 0
    %208 = vmatpush2.bf16.msra.mxu0 %v162
    %209 = vmatprep.subr.bf16.mxu0 0
    %210 = vmatpush2.bf16.msra.mxu0 %v161
    %211 = vmatprep.subr.bf16.mxu0 0
    %212 = vmatpush2.bf16.msra.mxu0 %v160
    %213 = vmatprep.subr.bf16.mxu0 0
    %214 = vmatpush2.bf16.msra.mxu0 %v159
    %215 = vmatprep.mubr.bf16.mxu0 %v84
    %216 = vmatmul.mubr.bf16.gmra.mxu0 %v77
    %v217 = vpop.f32.mrf.mxu0
    %v218 = vadd.f32 0.0, %v217
    %v219 = vpop.f32.mrf.mxu0
    %v220 = vpop.f32.mrf.mxu0
    %v221 = vpop.f32.mrf.mxu0
    %222 = vdwg.mxu0
    %v223 = vadd.f32 %v28, %v218
    %vm224 = vcmask 254976
    %225 = vst.msk [vmem:[#allocation2] sm:$0x3] %vm224, %v223
    // Predicated region
    $region26: #{forward.7} parent=1 // pred_check
      %p226 = pneg %p22
    $region27: #{forward.7} parent=1 // pred_check_branch
      %228 = sbr.rel (%p226) target = $region29
    $region28: #{forward.7} parent=1 // pred_region
      %v229 = vld [vmem:[#allocation2] sm:$0x3]
      %v230 = vld [vmem:[%s2] sm:$0x1]
      %v232 = vlaneseq
      %v233 = vshrl.u32 %v232, 7
      %v234 = vsub.s32 0, %v233
      %v235 = vrot.slane %v230, %v234
      %v237 = vadd.f32 %v229, %v235
      %vm238 = vcmp.gt.f32.partialorder %v237, 0.0
      %v239 = vmin.f32 %v237, 0.0
      %v240 = vmul.f32 %v239, 1.442695
      %v241 = vpow.pop %v240
      %v242 = vsub.f32 %v241, 1.0
      %v243 = vsel %vm238, %v237, %v242
      %v244 = vld [vmem:[%s3] sm:$0xff]
      %v245 = vld [vmem:[%s3 + $0x8] sm:$0xff]
      %v246 = vld [vmem:[%s3 + $0x10] sm:$0xff]
      %v247 = vld [vmem:[%s3 + $0x18] sm:$0xff]
      %v248 = vld [vmem:[%s4] sm:$0x1]
      %v250 = vlaneseq
      %v251 = vshrl.u32 %v250, 7
      %v252 = vsub.s32 0, %v251
      %v253 = vrot.slane %v248, %v252
      %vm255 = vcmask 261120
      %v257 = vsel %vm255, %v243, 0
      %259 = vmatprep.subr.mxu0 0.0
      %260 = vmatpush1.msra.mxu0 0.0
      %261 = vmatprep.subr.mxu0 0.0
      %262 = vmatpush1.msra.mxu0 0.0
      %263 = vmatprep.subr.mxu0 0.0
      %264 = vmatpush1.msra.mxu0 0.0
      %265 = vmatprep.subr.mxu0 0.0
      %266 = vmatpush1.msra.mxu0 0.0
      %267 = vmatprep.subr.mxu0 0.0
      %268 = vmatpush1.msra.mxu0 0.0
      %269 = vmatprep.subr.mxu0 0.0
      %270 = vmatpush1.msra.mxu0 0.0
      %271 = vmatprep.subr.mxu0 0.0
      %272 = vmatpush1.msra.mxu0 0.0
      %273 = vmatprep.subr.mxu0 0.0
      %274 = vmatpush1.msra.mxu0 0.0
      %275 = vmatprep.subr.mxu0 0.0
      %276 = vmatpush1.msra.mxu0 0.0
      %277 = vmatprep.subr.mxu0 0.0
      %278 = vmatpush1.msra.mxu0 0.0
      %279 = vmatprep.subr.mxu0 0.0
      %280 = vmatpush1.msra.mxu0 0.0
      %281 = vmatprep.subr.mxu0 0.0
      %282 = vmatpush1.msra.mxu0 0.0
      %283 = vmatprep.subr.mxu0 0.0
      %284 = vmatpush1.msra.mxu0 %v247
      %285 = vmatprep.subr.mxu0 0.0
      %286 = vmatpush1.msra.mxu0 %v246
      %287 = vmatprep.subr.mxu0 0.0
      %288 = vmatpush1.msra.mxu0 %v245
      %289 = vmatprep.subr.mxu0 0.0
      %290 = vmatpush1.msra.mxu0 %v244
      %291 = vmatprep.subr.mxu0 0.0
      %292 = vmatpush2.msra.mxu0 0.0
      %293 = vmatprep.subr.mxu0 0.0
      %294 = vmatpush2.msra.mxu0 0.0
      %295 = vmatprep.subr.mxu0 0.0
      %296 = vmatpush2.msra.mxu0 0.0
      %297 = vmatprep.subr.mxu0 0.0
      %298 = vmatpush2.msra.mxu0 0.0
      %299 = vmatprep.subr.mxu0 0.0
      %300 = vmatpush2.msra.mxu0 0.0
      %301 = vmatprep.subr.mxu0 0.0
      %302 = vmatpush2.msra.mxu0 0.0
      %303 = vmatprep.subr.mxu0 0.0
      %304 = vmatpush2.msra.mxu0 0.0
      %305 = vmatprep.subr.mxu0 0.0
      %306 = vmatpush2.msra.mxu0 0.0
      %307 = vmatprep.subr.mxu0 0.0
      %308 = vmatpush2.msra.mxu0 0.0
      %309 = vmatprep.subr.mxu0 0.0
      %310 = vmatpush2.msra.mxu0 0.0
      %311 = vmatprep.subr.mxu0 0.0
      %312 = vmatpush2.msra.mxu0 0.0
      %313 = vmatprep.subr.mxu0 0.0
      %314 = vmatpush2.msra.mxu0 0.0
      %315 = vmatprep.subr.mxu0 0.0
      %316 = vmatpush2.msra.mxu0 0.0
      %317 = vmatprep.subr.mxu0 0.0
      %318 = vmatpush2.msra.mxu0 0.0
      %319 = vmatprep.subr.mxu0 0.0
      %320 = vmatpush2.msra.mxu0 0.0
      %321 = vmatprep.subr.mxu0 0.0
      %322 = vmatpush2.msra.mxu0 0.0
      %323 = vmatprep.mubr.f32.mxu0 0.0
      %324 = vmatmul.mubr.f32.gmra.mxu0 %v257
      %v325 = vpop.f32.mrf.mxu0
      %v326 = vadd.f32 %v253, %v325
      %v327 = vpop.f32.mrf.mxu0
      %328 = vdwg.mxu0
      %v329 = vsub.f32 0.0, %v326
      %v330 = vmul.f32 %v329, 1.442695
      %v331 = vpow.pop %v330
      %v332 = vadd.f32 %v331, 1.0
      %v333 = vrcp.pop %v332
      %v334 = vmul.f32 1.0, %v333
      %vm335 = vcmask 9216
      %336 = vst.msk [vmem:[#allocation3] sm:$0x3] %vm335, %v334
    $region29: #{forward.7} parent=1 // pred_fallthru
      _
    // Predicated region
    $region30: #{forward.7} parent=1 // pred_check
      _
    $region31: #{forward.7} parent=1 // pred_check_branch
      %338 = sbr.rel (0) target = $region33
    $region32: #{forward.7} parent=1 // pred_region
      %s340 = ssub.s32 32, 32
      %341 = vsyncadd [#allocation4], %s340
      %s343 = sshll.u32 [#allocation3], 4
      %s344 = int_to_ptr.vmem [resolvable:$true] %s343
      %346 = dma.vmem_to_hbm [thread:$0]  %s344, 32, %s5, [#allocation4]
    $region33: #{forward.7} parent=1 // pred_fallthru
      _
    // Predicated region
    $region34: #{forward.7} parent=1 // pred_check
      _
    $region35: #{forward.7} parent=1 // pred_check_branch
      %348 = sbr.rel (0) target = $region37
    $region36: #{forward.7} parent=1 // pred_region
      %349 = dma.done [#allocation4], 32
    $region37: #{forward.7} parent=1 // pred_fallthru
      _
    %350 = vsyncpa [#allocation4], 1

// kernel: forward.6
$region0: #{forward.6}
  #allocation0 [shape = 'u32[]', space=smem, size = 0x4, offset = 0x4, fixed_abs, tag = 'smem constant byte address 0x4 - core index']
  #allocation1 [shape = 'u32[144,128]{1,0:T(1,128)}', space=vmem, size = 0x12000, scoped, tag = 'internal scratch']
  #allocation2 [shape = 'f32[24,32]{1,0:T(8,128)}', space=vmem, size = 0x3000, scoped, tag = 'scratch operand']
  %s0 = inlined_call_operand.vmem [shape: bf16[2,4,42,128], index: 0, kind: input, shape index: {}, may-alias: {0,1,2}]
  %s1 = inlined_call_operand.vmem [shape: bf16[2,4,42,128], index: 1, kind: input, shape index: {}, may-alias: {0,1,2}]
  %s2 = inlined_call_operand.vmem [shape: bf16[2,4,42,128], index: 2, kind: input, shape index: {}, may-alias: {0,1,2}]
  %s3 = inlined_call_operand.vmem [shape: bf16[3,1152,32], index: 3, kind: input, shape index: {}]
  %s4 = inlined_call_operand.vmem [shape: f32[1,32], index: 4, kind: input, shape index: {}]
  %s5 = inlined_call_operand.vmem [shape: bf16[2,4,24,32], index: 5, kind: output, shape index: {}]
  %s6 = sld [smem:[#allocation0]]
  $region61: #{forward.6} parent=0
    _
  %s8 = ssub.s32 1, %s6
  %s9 = scalar_select 0, %s8, %s6
  loop: start=0, step=1, limit=10
  $region2: #{forward.6} parent=0 // loop_pre_header
    _
  $region3: #{forward.6} parent=0 // loop_header
    %s11 = sphi 0, %s15
    %p12 = scmp.ge.s32.totalorder %s11, 10
    %s18 = sphi 0, %s30
    %s19 = sphi 0, %s26
    %s20 = sphi 0, %s18
    %s21 = sphi 0, %s19
    %s22 = sphi 0, %s20
    %s23 = sphi 0, %s21
    %s41 = sphi 0, %s43
    %s44 = sphi 0, %s41
    %s45 = sphi 0, %s44
    %s61 = sphi 0, %s45
    %s69 = sphi 0, %s71
    %s72 = sphi 0, %s69
    %s73 = sphi 0, %s72
    %s89 = sphi 0, %s73
    %s103 = sphi 0, %s105
    %s106 = sphi 0, %s103
    %s107 = sphi 0, %s106
    %s123 = sphi 0, %s107
    %s127 = sphi 0, %s127
    %s129 = sphi 0, %s127
    %s130 = sphi 0, %s129
    %s144 = sphi 0, %s130
    %s148 = sphi 0, %s148
    %s150 = sphi 0, %s148
    %s151 = sphi 0, %s150
    %s165 = sphi 0, %s151
    %s173 = sphi 0, %s175
    %s176 = sphi 0, %s173
    %s177 = sphi 0, %s176
    %s193 = sphi 0, %s177
  $region4: #{forward.6} parent=0 // loop_header_branch
    %14 = sbr.rel (%p12) target = $region8
  $region5: #{forward.6} parent=0 // loop_body
    %s16 = ssub.s32 %s11, 1
    %s17 = ssub.s32 %s11, 2
    %s24 = sadd.s32 1, %s19
    %p25 = scmp.ge.s32.totalorder %s24, 4
    %s26 = scalar_select %p25, 0, %s24
    %s27 = sadd.s32 1, %s18
    %s28 = scalar_select %p25, %s27, %s18
    %p29 = scmp.ge.s32.totalorder %s28, 2
    %s30 = scalar_select %p29, 0, %s28
    %s31 = ssub.s32 %s19, 1
    %p32 = scmp.gt.s32.totalorder %s31, 0
    %s33 = scalar_select %p32, %s31, 0
    %s34 = ssub.s32 %s26, 1
    %p35 = scmp.gt.s32.totalorder %s34, 0
    %s36 = scalar_select %p35, %s34, 0
    %s37 = ssub.s32 %s18, %s30
    %s38 = ssub.s32 %s33, %s36
    %s39 = sor.u32 %s37, %s38
    %p40 = scmp.eq.s32.totalorder %s39, 0
    %s42 = sadd.s32 %s41, 1
    %s43 = scalar_select %p40, %s41, %s42
    %p46 = pneg %p40
    %p47 = scmp.eq.s32.totalorder %s11, 7
    %p48 = por %p46, %p47
    %p49 = scmp.ne.s32.totalorder %s41, %s44
    %p50 = scmp.eq.s32.totalorder %s11, 0
    %p51 = por %p49, %p50
    %p52 = scmp.ne.s32.totalorder %s41, %s44
    %p53 = scmp.eq.s32.totalorder %s16, 7
    %p54 = por %p52, %p53
    %p55 = scmp.ne.s32.totalorder %s44, %s45
    %p56 = scmp.eq.s32.totalorder %s16, 0
    %p57 = por %p55, %p56
    %p58 = scmp.ne.s32.totalorder %s44, %s45
    %p59 = scmp.eq.s32.totalorder %s17, 7
    %p60 = por %p58, %p59
    %p62 = scmp.ne.s32.totalorder %s45, %s61
    %p63 = scmp.eq.s32.totalorder %s17, 0
    %p64 = por %p62, %p63
    %s65 = ssub.s32 %s18, %s30
    %s66 = ssub.s32 %s19, %s26
    %s67 = sor.u32 %s65, %s66
    %p68 = scmp.eq.s32.totalorder %s67, 0
    %s70 = sadd.s32 %s69, 1
    %s71 = scalar_select %p68, %s69, %s70
    %p74 = pneg %p68
    %p75 = scmp.eq.s32.totalorder %s11, 7
    %p76 = por %p74, %p75
    %p77 = scmp.ne.s32.totalorder %s69, %s72
    %p78 = scmp.eq.s32.totalorder %s11, 0
    %p79 = por %p77, %p78
    %p80 = scmp.ne.s32.totalorder %s69, %s72
    %p81 = scmp.eq.s32.totalorder %s16, 7
    %p82 = por %p80, %p81
    %p83 = scmp.ne.s32.totalorder %s72, %s73
    %p84 = scmp.eq.s32.totalorder %s16, 0
    %p85 = por %p83, %p84
    %p86 = scmp.ne.s32.totalorder %s72, %s73
    %p87 = scmp.eq.s32.totalorder %s17, 7
    %p88 = por %p86, %p87
    %p90 = scmp.ne.s32.totalorder %s73, %s89
    %p91 = scmp.eq.s32.totalorder %s17, 0
    %p92 = por %p90, %p91
    %s93 = sadd.s32 %s19, 1
    %p94 = scmp.lt.s32.totalorder %s93, 3
    %s95 = scalar_select %p94, %s93, 3
    %s96 = sadd.s32 %s26, 1
    %p97 = scmp.lt.s32.totalorder %s96, 3
    %s98 = scalar_select %p97, %s96, 3
    %s99 = ssub.s32 %s18, %s30
    %s100 = ssub.s32 %s95, %s98
    %s101 = sor.u32 %s99, %s100
    %p102 = scmp.eq.s32.totalorder %s101, 0
    %s104 = sadd.s32 %s103, 1
    %s105 = scalar_select %p102, %s103, %s104
    %p108 = pneg %p102
    %p109 = scmp.eq.s32.totalorder %s11, 7
    %p110 = por %p108, %p109
    %p111 = scmp.ne.s32.totalorder %s103, %s106
    %p112 = scmp.eq.s32.totalorder %s11, 0
    %p113 = por %p111, %p112
    %p114 = scmp.ne.s32.totalorder %s103, %s106
    %p115 = scmp.eq.s32.totalorder %s16, 7
    %p116 = por %p114, %p115
    %p117 = scmp.ne.s32.totalorder %s106, %s107
    %p118 = scmp.eq.s32.totalorder %s16, 0
    %p119 = por %p117, %p118
    %p120 = scmp.ne.s32.totalorder %s106, %s107
    %p121 = scmp.eq.s32.totalorder %s17, 7
    %p122 = por %p120, %p121
    %p124 = scmp.ne.s32.totalorder %s107, %s123
    %p125 = scmp.eq.s32.totalorder %s17, 0
    %p126 = por %p124, %p125
    %s128 = sadd.s32 %s127, 1
    %p131 = scmp.eq.s32.totalorder %s11, 7
    %p132 = scmp.ne.s32.totalorder %s127, %s129
    %p133 = scmp.eq.s32.totalorder %s11, 0
    %p134 = por %p132, %p133
    %p135 = scmp.ne.s32.totalorder %s127, %s129
    %p136 = scmp.eq.s32.totalorder %s16, 7
    %p137 = por %p135, %p136
    %p138 = scmp.ne.s32.totalorder %s129, %s130
    %p139 = scmp.eq.s32.totalorder %s16, 0
    %p140 = por %p138, %p139
    %p141 = scmp.ne.s32.totalorder %s129, %s130
    %p142 = scmp.eq.s32.totalorder %s17, 7
    %p143 = por %p141, %p142
    %p145 = scmp.ne.s32.totalorder %s130, %s144
    %p146 = scmp.eq.s32.totalorder %s17, 0
    %p147 = por %p145, %p146
    %s149 = sadd.s32 %s148, 1
    %p152 = scmp.eq.s32.totalorder %s11, 7
    %p153 = scmp.ne.s32.totalorder %s148, %s150
    %p154 = scmp.eq.s32.totalorder %s11, 0
    %p155 = por %p153, %p154
    %p156 = scmp.ne.s32.totalorder %s148, %s150
    %p157 = scmp.eq.s32.totalorder %s16, 7
    %p158 = por %p156, %p157
    %p159 = scmp.ne.s32.totalorder %s150, %s151
    %p160 = scmp.eq.s32.totalorder %s16, 0
    %p161 = por %p159, %p160
    %p162 = scmp.ne.s32.totalorder %s150, %s151
    %p163 = scmp.eq.s32.totalorder %s17, 7
    %p164 = por %p162, %p163
    %p166 = scmp.ne.s32.totalorder %s151, %s165
    %p167 = scmp.eq.s32.totalorder %s17, 0
    %p168 = por %p166, %p167
    %s169 = ssub.s32 %s18, %s30
    %s170 = ssub.s32 %s19, %s26
    %s171 = sor.u32 %s169, %s170
    %p172 = scmp.eq.s32.totalorder %s171, 0
    %s174 = sadd.s32 %s173, 1
    %s175 = scalar_select %p172, %s173, %s174
    %p178 = pneg %p172
    %p179 = scmp.eq.s32.totalorder %s11, 7
    %p180 = por %p178, %p179
    %p181 = scmp.ne.s32.totalorder %s173, %s176
    %p182 = scmp.eq.s32.totalorder %s11, 0
    %p183 = por %p181, %p182
    %p184 = scmp.ne.s32.totalorder %s173, %s176
    %p185 = scmp.eq.s32.totalorder %s16, 7
    %p186 = por %p184, %p185
    %p187 = scmp.ne.s32.totalorder %s176, %s177
    %p188 = scmp.eq.s32.totalorder %s16, 0
    %p189 = por %p187, %p188
    %p190 = scmp.ne.s32.totalorder %s176, %s177
    %p191 = scmp.eq.s32.totalorder %s17, 7
    %p192 = por %p190, %p191
    %p194 = scmp.ne.s32.totalorder %s177, %s193
    %p195 = scmp.eq.s32.totalorder %s17, 0
    %p196 = por %p194, %p195
    %p197 = scmp.le.s32.totalorder 1, %s11
    %p198 = scmp.lt.s32.totalorder %s11, 9
    %p199 = pnand %p197, %p198
    %p200 = pneg %p199
    // Predicated region
    $region9: #{forward.6} parent=5 // pred_check
      _
    $region10: #{forward.6} parent=5 // pred_check_branch
      %202 = sbr.rel (%p199) target = $region12
    $region11: #{forward.6} parent=5 // pred_region
      %s203 = ssub.s32 %s11, 1
      // Predicated region
      $region13: #{forward.6} parent=11 // pred_check
        %p204 = pneg %p140
      $region14: #{forward.6} parent=11 // pred_check_branch
        %206 = sbr.rel (%p204) target = $region16
      $region15: #{forward.6} parent=11 // pred_region
        _
      $region16: #{forward.6} parent=11 // pred_fallthru
        _
      // Predicated region
      $region17: #{forward.6} parent=11 // pred_check
        %p207 = pneg %p161
      $region18: #{forward.6} parent=11 // pred_check_branch
        %209 = sbr.rel (%p207) target = $region20
      $region19: #{forward.6} parent=11 // pred_region
        _
      $region20: #{forward.6} parent=11 // pred_fallthru
        _
    $region12: #{forward.6} parent=5 // pred_fallthru
      _
    %p210 = scmp.lt.s32.totalorder %s11, 8
    // Predicated region
    $region21: #{forward.6} parent=5 // pred_check
      %p211 = pneg %p210
    $region22: #{forward.6} parent=5 // pred_check_branch
      %213 = sbr.rel (%p211) target = $region24
    $region23: #{forward.6} parent=5 // pred_region
      // Predicated region
      $region25: #{forward.6} parent=23 // pred_check
        %p214 = pneg %p51
      $region26: #{forward.6} parent=23 // pred_check_branch
        %216 = sbr.rel (%p214) target = $region28
      $region27: #{forward.6} parent=23 // pred_region
        %s217 = ssub.s32 %s19, 1
        %p218 = scmp.gt.s32.totalorder %s217, 0
        %s219 = scalar_select %p218, %s217, 0
        %p220 = scmp.lt.s32.totalorder %s18, 1
        %s221 = scalar_select %p220, %s18, 1
        %p222 = scmp.lt.s32.totalorder %s219, 3
        %s223 = scalar_select %p222, %s219, 3
        %s224 = smul.addr %s223, 6
        %s225 = smul.addr %s221, 24
        %s226 = sadd.s32 %s224, %s225
        %s227 = smul.addr %s226, 4
        %s228 = scalar_lea.vmem %s0, %s227
        %s229 = ssub.s32 %s19, 1
        %p230 = scmp.gt.s32.totalorder %s229, 0
        %s231 = scalar_select %p230, %s229, 0
      $region28: #{forward.6} parent=23 // pred_fallthru
        _
      // Predicated region
      $region29: #{forward.6} parent=23 // pred_check
        %p232 = pneg %p79
      $region30: #{forward.6} parent=23 // pred_check_branch
        %234 = sbr.rel (%p232) target = $region32
      $region31: #{forward.6} parent=23 // pred_region
        %p235 = scmp.lt.s32.totalorder %s18, 1
        %s236 = scalar_select %p235, %s18, 1
        %p237 = scmp.lt.s32.totalorder %s19, 3
        %s238 = scalar_select %p237, %s19, 3
        %s239 = smul.addr %s238, 6
        %s240 = smul.addr %s236, 24
        %s241 = sadd.s32 %s239, %s240
        %s242 = smul.addr %s241, 4
        %s243 = scalar_lea.vmem %s1, %s242
      $region32: #{forward.6} parent=23 // pred_fallthru
        _
      // Predicated region
      $region33: #{forward.6} parent=23 // pred_check
        %p244 = pneg %p113
      $region34: #{forward.6} parent=23 // pred_check_branch
        %246 = sbr.rel (%p244) target = $region36
      $region35: #{forward.6} parent=23 // pred_region
        %s247 = sadd.s32 %s19, 1
        %p248 = scmp.lt.s32.totalorder %s247, 3
        %s249 = scalar_select %p248, %s247, 3
        %p250 = scmp.lt.s32.totalorder %s18, 1
        %s251 = scalar_select %p250, %s18, 1
        %p252 = scmp.lt.s32.totalorder %s249, 3
        %s253 = scalar_select %p252, %s249, 3
        %s254 = smul.addr %s253, 6
        %s255 = smul.addr %s251, 24
        %s256 = sadd.s32 %s254, %s255
        %s257 = smul.addr %s256, 4
        %s258 = scalar_lea.vmem %s2, %s257
        %s259 = sadd.s32 %s19, 1
        %p260 = scmp.lt.s32.totalorder %s259, 3
        %s261 = scalar_select %p260, %s259, 3
      $region36: #{forward.6} parent=23 // pred_fallthru
        _
    $region24: #{forward.6} parent=5 // pred_fallthru
      _
    %p262 = scmp.le.s32.totalorder 1, %s11
    %p263 = scmp.lt.s32.totalorder %s11, 9
    %p264 = pnand %p262, %p263
    %p265 = pneg %p264
    // Predicated region
    $region37: #{forward.6} parent=5 // pred_check
      _
    $region38: #{forward.6} parent=5 // pred_check_branch
      %267 = sbr.rel (%p264) target = $region40
    $region39: #{forward.6} parent=5 // pred_region
      %s268 = ssub.s32 %s11, 1
      %s269 = ssub.s32 %s21, 1
      %p270 = scmp.gt.s32.totalorder %s269, 0
      %s271 = scalar_select %p270, %s269, 0
      %p272 = scmp.lt.s32.totalorder %s20, 1
      %s273 = scalar_select %p272, %s20, 1
      %p274 = scmp.lt.s32.totalorder %s271, 3
      %s275 = scalar_select %p274, %s271, 3
      %s276 = smul.addr %s275, 6
      %s277 = smul.addr %s273, 24
      %s278 = sadd.s32 %s276, %s277
      %s279 = smul.addr %s278, 4
      %s280 = scalar_lea.vmem %s0, %s279
      %p281 = pneg %p57
      %p282 = pneg %p54
      %p283 = scmp.lt.s32.totalorder %s20, 1
      %s284 = scalar_select %p283, %s20, 1
      %p285 = scmp.lt.s32.totalorder %s21, 3
      %s286 = scalar_select %p285, %s21, 3
      %s287 = smul.addr %s286, 6
      %s288 = smul.addr %s284, 24
      %s289 = sadd.s32 %s287, %s288
      %s290 = smul.addr %s289, 4
      %s291 = scalar_lea.vmem %s1, %s290
      %p292 = pneg %p85
      %p293 = pneg %p82
      %s294 = sadd.s32 %s21, 1
      %p295 = scmp.lt.s32.totalorder %s294, 3
      %s296 = scalar_select %p295, %s294, 3
      %p297 = scmp.lt.s32.totalorder %s20, 1
      %s298 = scalar_select %p297, %s20, 1
      %p299 = scmp.lt.s32.totalorder %s296, 3
      %s300 = scalar_select %p299, %s296, 3
      %s301 = smul.addr %s300, 6
      %s302 = smul.addr %s298, 24
      %s303 = sadd.s32 %s301, %s302
      %s304 = smul.addr %s303, 4
      %s305 = scalar_lea.vmem %s2, %s304
      %p306 = pneg %p119
      %p307 = pneg %p116
      %p308 = pneg %p140
      %p309 = pneg %p137
      %p310 = pneg %p161
      %p311 = pneg %p158
      %p312 = pneg %p189
      %p313 = pneg %p186
      %p314 = scmp.lt.s32.totalorder %s20, 1
      %s315 = scalar_select %p314, %s20, 1
      %p316 = scmp.lt.s32.totalorder %s21, 3
      %s317 = scalar_select %p316, %s21, 3
      %s318 = smul.addr %s317, 3
      %s319 = smul.addr %s315, 12
      %s320 = sadd.s32 %s318, %s319
      %s321 = smul.addr %s320, 4
      %s322 = scalar_lea.vmem %s5, %s321
      %s323 = ssub.s32 %s21, 1
      %p324 = scmp.gt.s32.totalorder %s323, 0
      %s325 = scalar_select %p324, %s323, 0
      %p326 = scmp.lt.s32.totalorder %s20, 1
      %s327 = scalar_select %p326, %s20, 1
      %p328 = scmp.lt.s32.totalorder %s325, 3
      %s329 = scalar_select %p328, %s325, 3
      %s330 = smul.addr %s329, 6
      %s331 = smul.addr %s327, 24
      %s332 = sadd.s32 %s330, %s331
      %s333 = smul.addr %s332, 4
      %s334 = scalar_lea.vmem %s0, %s333
      %s335 = ssub.s32 %s21, 1
      %p336 = scmp.gt.s32.totalorder %s335, 0
      %s337 = scalar_select %p336, %s335, 0
      %p338 = scmp.lt.s32.totalorder %s20, 1
      %s339 = scalar_select %p338, %s20, 1
      %p340 = scmp.lt.s32.totalorder %s21, 3
      %s341 = scalar_select %p340, %s21, 3
      %s342 = smul.addr %s341, 6
      %s343 = smul.addr %s339, 24
      %s344 = sadd.s32 %s342, %s343
      %s345 = smul.addr %s344, 4
      %s346 = scalar_lea.vmem %s1, %s345
      %s347 = sadd.s32 %s21, 1
      %p348 = scmp.lt.s32.totalorder %s347, 3
      %s349 = scalar_select %p348, %s347, 3
      %p350 = scmp.lt.s32.totalorder %s20, 1
      %s351 = scalar_select %p350, %s20, 1
      %p352 = scmp.lt.s32.totalorder %s349, 3
      %s353 = scalar_select %p352, %s349, 3
      %s354 = smul.addr %s353, 6
      %s355 = smul.addr %s351, 24
      %s356 = sadd.s32 %s354, %s355
      %s357 = smul.addr %s356, 4
      %s358 = scalar_lea.vmem %s2, %s357
      %s359 = sadd.s32 %s21, 1
      %p360 = scmp.lt.s32.totalorder %s359, 3
      %s361 = scalar_select %p360, %s359, 3
      %p362 = scmp.lt.s32.totalorder %s20, 1
      %s363 = scalar_select %p362, %s20, 1
      %p364 = scmp.lt.s32.totalorder %s21, 3
      %s365 = scalar_select %p364, %s21, 3
      %s366 = smul.addr %s365, 3
      %s367 = smul.addr %s363, 12
      %s368 = sadd.s32 %s366, %s367
      %s369 = smul.addr %s368, 4
      %s370 = scalar_lea.vmem %s5, %s369
      %v372 = vld [vmem:[%s346] sm:$0xf]
      %v373 = vld [vmem:[%s346 + $0x4] sm:$0xf]
      %v374 = vld [vmem:[%s346 + $0x8] sm:$0xf]
      %v375 = vld [vmem:[%s346 + $0xc] sm:$0x1]
      %v376 = vld [vmem:[%s346] sm:$0xe]
      %v377 = vld [vmem:[%s346] sm:$0x8]
      %v378 = vld [vmem:[%s346 + $0xc] sm:$0x7]
      %v379 = vld [vmem:[%s346 + $0xc] sm:$0xf]
      %v380 = vld [vmem:[%s346 + $0x4] sm:$0xc]
      %v381 = vld [vmem:[%s346 + $0x10] sm:$0x3]
      %v382 = vld [vmem:[%s346 + $0x10] sm:$0x7]
      %v383 = vld [vmem:[%s346 + $0x4] sm:$0x8]
      %v387 = vunpack.c.l.b16 %v372
      %v388 = vunpack.c.l.b16 %v373
      %v389 = vunpack.c.l.b16 %v374
      %v390 = vpack.c.b16 %v388, %v387
      %v391 = vpack.c.b16 %v389, %v389
      %v395 = vunpack.c.l.b16 %v375
      %v396 = vpack.c.b16 %v395, %v389
      %vm397 = vsmask.f32 7424
      %v399 = vshrl.u32 %v390, 16
      %v401 = vshll.u32 %v390, 16
      %v403 = vrot.slane %v401, 1
      %v404 = vor.u32 %v399, %v403
      %v406 = vshll.u32 %v396, 16
      %v408 = vrot.slane %v406, 1
      %v409 = vsel %vm397, %v404, %v408
      %v410 = vshrl.u32 %v396, 16
      %v412 = vor.u32 %v410, %v408
      %v416 = vunpack.c.l.b16 %v376
      %v417 = vpack.c.b16 %v388, %v416
      %vm418 = vcmask 1046528
      %v419 = vrot.slane %v417, 1
      %v420 = vrot.slane %v396, 1
      %v421 = vsel %vm418, %v419, %v420
      %v426 = vunpack.c.l.b16 %v377
      %v427 = vunpack.c.l.b16 %v378
      %v428 = vpack.c.b16 %v388, %v426
      %v429 = vpack.c.b16 %v427, %v389
      %vm430 = vcmask 1044480
      %v431 = vrot.slane %v428, 3
      %v432 = vrot.slane %v429, 3
      %v433 = vsel %vm430, %v431, %v432
      %v437 = vunpack.c.l.b16 %v379
      %v438 = vpack.c.b16 %v437, %v389
      %vm439 = vsmask.f32 4352
      %v441 = vshrl.u32 %v428, 16
      %v443 = vrot.slane %v441, 3
      %v444 = vshll.u32 %v428, 16
      %v446 = vrot.slane %v444, 4
      %v447 = vor.u32 %v443, %v446
      %v449 = vshrl.u32 %v438, 16
      %v451 = vrot.slane %v449, 3
      %v452 = vshll.u32 %v438, 16
      %v454 = vrot.slane %v452, 4
      %v455 = vor.u32 %v451, %v454
      %v456 = vsel %vm439, %v447, %v455
      %v459 = vpack.c.b16 %v389, %v388
      %v460 = vpack.c.b16 %v437, %v437
      %v465 = vunpack.c.l.b16 %v380
      %v466 = vunpack.c.l.b16 %v381
      %v467 = vpack.c.b16 %v389, %v465
      %v468 = vpack.c.b16 %v466, %v437
      %vm469 = vcmask 1045504
      %v470 = vrot.slane %v467, 2
      %v471 = vrot.slane %v468, 2
      %v472 = vsel %vm469, %v470, %v471
      %v476 = vunpack.c.l.b16 %v382
      %v477 = vpack.c.b16 %v476, %v437
      %vm478 = vsmask.f32 5376
      %v480 = vshrl.u32 %v467, 16
      %v482 = vrot.slane %v480, 2
      %v483 = vshll.u32 %v467, 16
      %v485 = vrot.slane %v483, 3
      %v486 = vor.u32 %v482, %v485
      %v488 = vshrl.u32 %v477, 16
      %v490 = vrot.slane %v488, 2
      %v491 = vshll.u32 %v477, 16
      %v493 = vrot.slane %v491, 3
      %v494 = vor.u32 %v490, %v493
      %v495 = vsel %vm478, %v486, %v494
      %v499 = vunpack.c.l.b16 %v383
      %v500 = vpack.c.b16 %v389, %v499
      %v501 = vrot.slane %v500, 3
      %v502 = vrot.slane %v477, 3
      %v503 = vsel %vm430, %v501, %v502
      %s506 = scalar_lea.vmem %s3, 576
      %v507 = vld [vmem:[%s506] sm:$0xf]
      %v508 = vld [vmem:[%s506 + $0x4] sm:$0xf]
      %v509 = vld [vmem:[%s506 + $0x8] sm:$0xf]
      %v510 = vld [vmem:[%s506 + $0xc] sm:$0xf]
      %v511 = vld [vmem:[%s506 + $0x10] sm:$0xf]
      %v512 = vld [vmem:[%s506 + $0x14] sm:$0xf]
      %v513 = vld [vmem:[%s506 + $0x18] sm:$0xf]
      %v514 = vld [vmem:[%s506 + $0x1c] sm:$0xf]
      %v515 = vld [vmem:[%s506 + $0x20] sm:$0xf]
      %v516 = vld [vmem:[%s506 + $0x24] sm:$0xf]
      %v517 = vld [vmem:[%s506 + $0x28] sm:$0xf]
      %v518 = vld [vmem:[%s506 + $0x2c] sm:$0xf]
      %v519 = vld [vmem:[%s506 + $0x30] sm:$0xf]
      %v520 = vld [vmem:[%s506 + $0x34] sm:$0xf]
      %v521 = vld [vmem:[%s506 + $0x38] sm:$0xf]
      %v522 = vld [vmem:[%s506 + $0x3c] sm:$0xf]
      %v523 = vld [vmem:[%s506 + $0x40] sm:$0xf]
      %v524 = vld [vmem:[%s506 + $0x44] sm:$0xf]
      %v525 = vld [vmem:[%s506 + $0x48] sm:$0xf]
      %v526 = vld [vmem:[%s506 + $0x4c] sm:$0xf]
      %v527 = vld [vmem:[%s506 + $0x50] sm:$0xf]
      %v528 = vld [vmem:[%s506 + $0x54] sm:$0xf]
      %v529 = vld [vmem:[%s506 + $0x58] sm:$0xf]
      %v530 = vld [vmem:[%s506 + $0x5c] sm:$0xf]
      %v531 = vld [vmem:[%s506 + $0x60] sm:$0xf]
      %v532 = vld [vmem:[%s506 + $0x64] sm:$0xf]
      %v533 = vld [vmem:[%s506 + $0x68] sm:$0xf]
      %v534 = vld [vmem:[%s506 + $0x6c] sm:$0xf]
      %v535 = vld [vmem:[%s506 + $0x70] sm:$0xf]
      %v536 = vld [vmem:[%s506 + $0x74] sm:$0xf]
      %v537 = vld [vmem:[%s506 + $0x78] sm:$0xf]
      %v538 = vld [vmem:[%s506 + $0x7c] sm:$0xf]
      %v539 = vld [vmem:[%s506 + $0x80] sm:$0xf]
      %v540 = vld [vmem:[%s506 + $0x84] sm:$0xf]
      %v541 = vld [vmem:[%s506 + $0x88] sm:$0xf]
      %v542 = vld [vmem:[%s506 + $0x8c] sm:$0xf]
      %v543 = vld [vmem:[%s506 + $0x90] sm:$0xf]
      %v544 = vld [vmem:[%s506 + $0x94] sm:$0xf]
      %v545 = vld [vmem:[%s506 + $0x98] sm:$0xf]
      %v546 = vld [vmem:[%s506 + $0x9c] sm:$0xf]
      %v547 = vld [vmem:[%s506 + $0xa0] sm:$0xf]
      %v548 = vld [vmem:[%s506 + $0xa4] sm:$0xf]
      %v549 = vld [vmem:[%s506 + $0xa8] sm:$0xf]
      %v550 = vld [vmem:[%s506 + $0xac] sm:$0xf]
      %v551 = vld [vmem:[%s506 + $0xb0] sm:$0xf]
      %v552 = vld [vmem:[%s506 + $0xb4] sm:$0xf]
      %v553 = vld [vmem:[%s506 + $0xb8] sm:$0xf]
      %v554 = vld [vmem:[%s506 + $0xbc] sm:$0xf]
      %v555 = vld [vmem:[%s506 + $0xc0] sm:$0xf]
      %v556 = vld [vmem:[%s506 + $0xc4] sm:$0xf]
      %v557 = vld [vmem:[%s506 + $0xc8] sm:$0xf]
      %v558 = vld [vmem:[%s506 + $0xcc] sm:$0xf]
      %v559 = vld [vmem:[%s506 + $0xd0] sm:$0xf]
      %v560 = vld [vmem:[%s506 + $0xd4] sm:$0xf]
      %v561 = vld [vmem:[%s506 + $0xd8] sm:$0xf]
      %v562 = vld [vmem:[%s506 + $0xdc] sm:$0xf]
      %v563 = vld [vmem:[%s506 + $0xe0] sm:$0xf]
      %v564 = vld [vmem:[%s506 + $0xe4] sm:$0xf]
      %v565 = vld [vmem:[%s506 + $0xe8] sm:$0xf]
      %v566 = vld [vmem:[%s506 + $0xec] sm:$0xf]
      %v567 = vld [vmem:[%s506 + $0xf0] sm:$0xf]
      %v568 = vld [vmem:[%s506 + $0xf4] sm:$0xf]
      %v569 = vld [vmem:[%s506 + $0xf8] sm:$0xf]
      %v570 = vld [vmem:[%s506 + $0xfc] sm:$0xf]
      %v571 = vld [vmem:[%s506 + $0x100] sm:$0xf]
      %v572 = vld [vmem:[%s506 + $0x104] sm:$0xf]
      %v573 = vld [vmem:[%s506 + $0x108] sm:$0xf]
      %v574 = vld [vmem:[%s506 + $0x10c] sm:$0xf]
      %v575 = vld [vmem:[%s506 + $0x110] sm:$0xf]
      %v576 = vld [vmem:[%s506 + $0x114] sm:$0xf]
      %v577 = vld [vmem:[%s506 + $0x118] sm:$0xf]
      %v578 = vld [vmem:[%s506 + $0x11c] sm:$0xf]
      %v579 = vld [vmem:[%s506 + $0x120] sm:$0xf]
      %v580 = vld [vmem:[%s506 + $0x124] sm:$0xf]
      %v581 = vld [vmem:[%s506 + $0x128] sm:$0xf]
      %v582 = vld [vmem:[%s506 + $0x12c] sm:$0xf]
      %v583 = vld [vmem:[%s506 + $0x130] sm:$0xf]
      %v584 = vld [vmem:[%s506 + $0x134] sm:$0xf]
      %v585 = vld [vmem:[%s506 + $0x138] sm:$0xf]
      %v586 = vld [vmem:[%s506 + $0x13c] sm:$0xf]
      %v587 = vld [vmem:[%s506 + $0x140] sm:$0xf]
      %v588 = vld [vmem:[%s506 + $0x144] sm:$0xf]
      %v589 = vld [vmem:[%s506 + $0x148] sm:$0xf]
      %v590 = vld [vmem:[%s506 + $0x14c] sm:$0xf]
      %v591 = vld [vmem:[%s506 + $0x150] sm:$0xf]
      %v592 = vld [vmem:[%s506 + $0x154] sm:$0xf]
      %v593 = vld [vmem:[%s506 + $0x158] sm:$0xf]
      %v594 = vld [vmem:[%s506 + $0x15c] sm:$0xf]
      %v595 = vld [vmem:[%s506 + $0x160] sm:$0xf]
      %v596 = vld [vmem:[%s506 + $0x164] sm:$0xf]
      %v597 = vld [vmem:[%s506 + $0x168] sm:$0xf]
      %v598 = vld [vmem:[%s506 + $0x16c] sm:$0xf]
      %v599 = vld [vmem:[%s506 + $0x170] sm:$0xf]
      %v600 = vld [vmem:[%s506 + $0x174] sm:$0xf]
      %v601 = vld [vmem:[%s506 + $0x178] sm:$0xf]
      %v602 = vld [vmem:[%s506 + $0x17c] sm:$0xf]
      %v603 = vld [vmem:[%s506 + $0x180] sm:$0xf]
      %v604 = vld [vmem:[%s506 + $0x184] sm:$0xf]
      %v605 = vld [vmem:[%s506 + $0x188] sm:$0xf]
      %v606 = vld [vmem:[%s506 + $0x18c] sm:$0xf]
      %v607 = vld [vmem:[%s506 + $0x190] sm:$0xf]
      %v608 = vld [vmem:[%s506 + $0x194] sm:$0xf]
      %v609 = vld [vmem:[%s506 + $0x198] sm:$0xf]
      %v610 = vld [vmem:[%s506 + $0x19c] sm:$0xf]
      %v611 = vld [vmem:[%s506 + $0x1a0] sm:$0xf]
      %v612 = vld [vmem:[%s506 + $0x1a4] sm:$0xf]
      %v613 = vld [vmem:[%s506 + $0x1a8] sm:$0xf]
      %v614 = vld [vmem:[%s506 + $0x1ac] sm:$0xf]
      %v615 = vld [vmem:[%s506 + $0x1b0] sm:$0xf]
      %v616 = vld [vmem:[%s506 + $0x1b4] sm:$0xf]
      %v617 = vld [vmem:[%s506 + $0x1b8] sm:$0xf]
      %v618 = vld [vmem:[%s506 + $0x1bc] sm:$0xf]
      %v619 = vld [vmem:[%s506 + $0x1c0] sm:$0xf]
      %v620 = vld [vmem:[%s506 + $0x1c4] sm:$0xf]
      %v621 = vld [vmem:[%s506 + $0x1c8] sm:$0xf]
      %v622 = vld [vmem:[%s506 + $0x1cc] sm:$0xf]
      %v623 = vld [vmem:[%s506 + $0x1d0] sm:$0xf]
      %v624 = vld [vmem:[%s506 + $0x1d4] sm:$0xf]
      %v625 = vld [vmem:[%s506 + $0x1d8] sm:$0xf]
      %v626 = vld [vmem:[%s506 + $0x1dc] sm:$0xf]
      %v627 = vld [vmem:[%s506 + $0x1e0] sm:$0xf]
      %v628 = vld [vmem:[%s506 + $0x1e4] sm:$0xf]
      %v629 = vld [vmem:[%s506 + $0x1e8] sm:$0xf]
      %v630 = vld [vmem:[%s506 + $0x1ec] sm:$0xf]
      %v631 = vld [vmem:[%s506 + $0x1f0] sm:$0xf]
      %v632 = vld [vmem:[%s506 + $0x1f4] sm:$0xf]
      %v633 = vld [vmem:[%s506 + $0x1f8] sm:$0xf]
      %v634 = vld [vmem:[%s506 + $0x1fc] sm:$0xf]
      %v635 = vld [vmem:[%s506 + $0x200] sm:$0xf]
      %v636 = vld [vmem:[%s506 + $0x204] sm:$0xf]
      %v637 = vld [vmem:[%s506 + $0x208] sm:$0xf]
      %v638 = vld [vmem:[%s506 + $0x20c] sm:$0xf]
      %v639 = vld [vmem:[%s506 + $0x210] sm:$0xf]
      %v640 = vld [vmem:[%s506 + $0x214] sm:$0xf]
      %v641 = vld [vmem:[%s506 + $0x218] sm:$0xf]
      %v642 = vld [vmem:[%s506 + $0x21c] sm:$0xf]
      %v643 = vld [vmem:[%s506 + $0x220] sm:$0xf]
      %v644 = vld [vmem:[%s506 + $0x224] sm:$0xf]
      %v645 = vld [vmem:[%s506 + $0x228] sm:$0xf]
      %v646 = vld [vmem:[%s506 + $0x22c] sm:$0xf]
      %v647 = vld [vmem:[%s506 + $0x230] sm:$0xf]
      %v648 = vld [vmem:[%s506 + $0x234] sm:$0xf]
      %v649 = vld [vmem:[%s506 + $0x238] sm:$0xf]
      %v650 = vld [vmem:[%s506 + $0x23c] sm:$0xf]
      %v795 = vunpack.c.l.b16 %v507
      %v796 = vunpack.c.l.b16 %v508
      %v797 = vunpack.c.l.b16 %v509
      %v798 = vunpack.c.l.b16 %v510
      %v799 = vunpack.c.l.b16 %v511
      %v800 = vunpack.c.l.b16 %v512
      %v801 = vunpack.c.l.b16 %v513
      %v802 = vunpack.c.l.b16 %v514
      %v803 = vunpack.c.l.b16 %v515
      %v804 = vunpack.c.l.b16 %v516
      %v805 = vunpack.c.l.b16 %v517
      %v806 = vunpack.c.l.b16 %v518
      %v807 = vunpack.c.l.b16 %v519
      %v808 = vunpack.c.l.b16 %v520
      %v809 = vunpack.c.l.b16 %v521
      %v810 = vunpack.c.l.b16 %v522
      %v811 = vunpack.c.l.b16 %v523
      %v812 = vunpack.c.l.b16 %v524
      %v813 = vunpack.c.l.b16 %v525
      %v814 = vunpack.c.l.b16 %v526
      %v815 = vunpack.c.l.b16 %v527
      %v816 = vunpack.c.l.b16 %v528
      %v817 = vunpack.c.l.b16 %v529
      %v818 = vunpack.c.l.b16 %v530
      %v819 = vunpack.c.l.b16 %v531
      %v820 = vunpack.c.l.b16 %v532
      %v821 = vunpack.c.l.b16 %v533
      %v822 = vunpack.c.l.b16 %v534
      %v823 = vunpack.c.l.b16 %v535
      %v824 = vunpack.c.l.b16 %v536
      %v825 = vunpack.c.l.b16 %v537
      %v826 = vunpack.c.l.b16 %v538
      %v827 = vunpack.c.l.b16 %v539
      %v828 = vunpack.c.l.b16 %v540
      %v829 = vunpack.c.l.b16 %v541
      %v830 = vunpack.c.l.b16 %v542
      %v831 = vunpack.c.l.b16 %v543
      %v832 = vunpack.c.l.b16 %v544
      %v833 = vunpack.c.l.b16 %v545
      %v834 = vunpack.c.l.b16 %v546
      %v835 = vunpack.c.l.b16 %v547
      %v836 = vunpack.c.l.b16 %v548
      %v837 = vunpack.c.l.b16 %v549
      %v838 = vunpack.c.l.b16 %v550
      %v839 = vunpack.c.l.b16 %v551
      %v840 = vunpack.c.l.b16 %v552
      %v841 = vunpack.c.l.b16 %v553
      %v842 = vunpack.c.l.b16 %v554
      %v843 = vunpack.c.l.b16 %v555
      %v844 = vunpack.c.l.b16 %v556
      %v845 = vunpack.c.l.b16 %v557
      %v846 = vunpack.c.l.b16 %v558
      %v847 = vunpack.c.l.b16 %v559
      %v848 = vunpack.c.l.b16 %v560
      %v849 = vunpack.c.l.b16 %v561
      %v850 = vunpack.c.l.b16 %v562
      %v851 = vunpack.c.l.b16 %v563
      %v852 = vunpack.c.l.b16 %v564
      %v853 = vunpack.c.l.b16 %v565
      %v854 = vunpack.c.l.b16 %v566
      %v855 = vunpack.c.l.b16 %v567
      %v856 = vunpack.c.l.b16 %v568
      %v857 = vunpack.c.l.b16 %v569
      %v858 = vunpack.c.l.b16 %v570
      %v859 = vunpack.c.l.b16 %v571
      %v860 = vunpack.c.l.b16 %v572
      %v861 = vunpack.c.l.b16 %v573
      %v862 = vunpack.c.l.b16 %v574
      %v863 = vunpack.c.l.b16 %v575
      %v864 = vunpack.c.l.b16 %v576
      %v865 = vunpack.c.l.b16 %v577
      %v866 = vunpack.c.l.b16 %v578
      %v867 = vunpack.c.l.b16 %v579
      %v868 = vunpack.c.l.b16 %v580
      %v869 = vunpack.c.l.b16 %v581
      %v870 = vunpack.c.l.b16 %v582
      %v871 = vunpack.c.l.b16 %v583
      %v872 = vunpack.c.l.b16 %v584
      %v873 = vunpack.c.l.b16 %v585
      %v874 = vunpack.c.l.b16 %v586
      %v875 = vunpack.c.l.b16 %v587
      %v876 = vunpack.c.l.b16 %v588
      %v877 = vunpack.c.l.b16 %v589
      %v878 = vunpack.c.l.b16 %v590
      %v879 = vunpack.c.l.b16 %v591
      %v880 = vunpack.c.l.b16 %v592
      %v881 = vunpack.c.l.b16 %v593
      %v882 = vunpack.c.l.b16 %v594
      %v883 = vunpack.c.l.b16 %v595
      %v884 = vunpack.c.l.b16 %v596
      %v885 = vunpack.c.l.b16 %v597
      %v886 = vunpack.c.l.b16 %v598
      %v887 = vunpack.c.l.b16 %v599
      %v888 = vunpack.c.l.b16 %v600
      %v889 = vunpack.c.l.b16 %v601
      %v890 = vunpack.c.l.b16 %v602
      %v891 = vunpack.c.l.b16 %v603
      %v892 = vunpack.c.l.b16 %v604
      %v893 = vunpack.c.l.b16 %v605
      %v894 = vunpack.c.l.b16 %v606
      %v895 = vunpack.c.l.b16 %v607
      %v896 = vunpack.c.l.b16 %v608
      %v897 = vunpack.c.l.b16 %v609
      %v898 = vunpack.c.l.b16 %v610
      %v899 = vunpack.c.l.b16 %v611
      %v900 = vunpack.c.l.b16 %v612
      %v901 = vunpack.c.l.b16 %v613
      %v902 = vunpack.c.l.b16 %v614
      %v903 = vunpack.c.l.b16 %v615
      %v904 = vunpack.c.l.b16 %v616
      %v905 = vunpack.c.l.b16 %v617
      %v906 = vunpack.c.l.b16 %v618
      %v907 = vunpack.c.l.b16 %v619
      %v908 = vunpack.c.l.b16 %v620
      %v909 = vunpack.c.l.b16 %v621
      %v910 = vunpack.c.l.b16 %v622
      %v911 = vunpack.c.l.b16 %v623
      %v912 = vunpack.c.l.b16 %v624
      %v913 = vunpack.c.l.b16 %v625
      %v914 = vunpack.c.l.b16 %v626
      %v915 = vunpack.c.l.b16 %v627
      %v916 = vunpack.c.l.b16 %v628
      %v917 = vunpack.c.l.b16 %v629
      %v918 = vunpack.c.l.b16 %v630
      %v919 = vunpack.c.l.b16 %v631
      %v920 = vunpack.c.l.b16 %v632
      %v921 = vunpack.c.l.b16 %v633
      %v922 = vunpack.c.l.b16 %v634
      %v923 = vunpack.c.l.b16 %v635
      %v924 = vunpack.c.l.b16 %v636
      %v925 = vunpack.c.l.b16 %v637
      %v926 = vunpack.c.l.b16 %v638
      %v927 = vunpack.c.l.b16 %v639
      %v928 = vunpack.c.l.b16 %v640
      %v929 = vunpack.c.l.b16 %v641
      %v930 = vunpack.c.l.b16 %v642
      %v931 = vunpack.c.l.b16 %v643
      %v932 = vunpack.c.l.b16 %v644
      %v933 = vunpack.c.l.b16 %v645
      %v934 = vunpack.c.l.b16 %v646
      %v935 = vunpack.c.l.b16 %v647
      %v936 = vunpack.c.l.b16 %v648
      %v937 = vunpack.c.l.b16 %v649
      %v938 = vunpack.c.l.b16 %v650
      %v939 = vpack.c.b16 %v796, %v795
      %v940 = vpack.c.b16 %v798, %v797
      %v941 = vpack.c.b16 %v800, %v799
      %v942 = vpack.c.b16 %v802, %v801
      %v943 = vpack.c.b16 %v804, %v803
      %v944 = vpack.c.b16 %v806, %v805
      %v945 = vpack.c.b16 %v808, %v807
      %v946 = vpack.c.b16 %v810, %v809
      %v947 = vpack.c.b16 %v812, %v811
      %v948 = vpack.c.b16 %v814, %v813
      %v949 = vpack.c.b16 %v816, %v815
      %v950 = vpack.c.b16 %v818, %v817
      %v951 = vpack.c.b16 %v820, %v819
      %v952 = vpack.c.b16 %v822, %v821
      %v953 = vpack.c.b16 %v824, %v823
      %v954 = vpack.c.b16 %v826, %v825
      %v955 = vpack.c.b16 %v828, %v827
      %v956 = vpack.c.b16 %v830, %v829
      %v957 = vpack.c.b16 %v832, %v831
      %v958 = vpack.c.b16 %v834, %v833
      %v959 = vpack.c.b16 %v836, %v835
      %v960 = vpack.c.b16 %v838, %v837
      %v961 = vpack.c.b16 %v840, %v839
      %v962 = vpack.c.b16 %v842, %v841
      %v963 = vpack.c.b16 %v844, %v843
      %v964 = vpack.c.b16 %v846, %v845
      %v965 = vpack.c.b16 %v848, %v847
      %v966 = vpack.c.b16 %v850, %v849
      %v967 = vpack.c.b16 %v852, %v851
      %v968 = vpack.c.b16 %v854, %v853
      %v969 = vpack.c.b16 %v856, %v855
      %v970 = vpack.c.b16 %v858, %v857
      %v971 = vpack.c.b16 %v860, %v859
      %v972 = vpack.c.b16 %v862, %v861
      %v973 = vpack.c.b16 %v864, %v863
      %v974 = vpack.c.b16 %v866, %v865
      %v975 = vpack.c.b16 %v868, %v867
      %v976 = vpack.c.b16 %v870, %v869
      %v977 = vpack.c.b16 %v872, %v871
      %v978 = vpack.c.b16 %v874, %v873
      %v979 = vpack.c.b16 %v876, %v875
      %v980 = vpack.c.b16 %v878, %v877
      %v981 = vpack.c.b16 %v880, %v879
      %v982 = vpack.c.b16 %v882, %v881
      %v983 = vpack.c.b16 %v884, %v883
      %v984 = vpack.c.b16 %v886, %v885
      %v985 = vpack.c.b16 %v888, %v887
      %v986 = vpack.c.b16 %v890, %v889
      %v987 = vpack.c.b16 %v892, %v891
      %v988 = vpack.c.b16 %v894, %v893
      %v989 = vpack.c.b16 %v896, %v895
      %v990 = vpack.c.b16 %v898, %v897
      %v991 = vpack.c.b16 %v900, %v899
      %v992 = vpack.c.b16 %v902, %v901
      %v993 = vpack.c.b16 %v904, %v903
      %v994 = vpack.c.b16 %v906, %v905
      %v995 = vpack.c.b16 %v908, %v907
      %v996 = vpack.c.b16 %v910, %v909
      %v997 = vpack.c.b16 %v912, %v911
      %v998 = vpack.c.b16 %v914, %v913
      %v999 = vpack.c.b16 %v916, %v915
      %v1000 = vpack.c.b16 %v918, %v917
      %v1001 = vpack.c.b16 %v920, %v919
      %v1002 = vpack.c.b16 %v922, %v921
      %v1003 = vpack.c.b16 %v924, %v923
      %v1004 = vpack.c.b16 %v926, %v925
      %v1005 = vpack.c.b16 %v928, %v927
      %v1006 = vpack.c.b16 %v930, %v929
      %v1007 = vpack.c.b16 %v932, %v931
      %v1008 = vpack.c.b16 %v934, %v933
      %v1009 = vpack.c.b16 %v936, %v935
      %v1010 = vpack.c.b16 %v938, %v937
      %1083 = vmatprep.subr.bf16.mxu0 0
      %1084 = vmatpush1.bf16.msra.mxu0 %v946
      %1085 = vmatprep.subr.bf16.mxu0 0
      %1086 = vmatpush1.bf16.msra.mxu0 %v945
      %1087 = vmatprep.subr.bf16.mxu0 0
      %1088 = vmatpush1.bf16.msra.mxu0 %v944
      %1089 = vmatprep.subr.bf16.mxu0 0
      %1090 = vmatpush1.bf16.msra.mxu0 %v943
      %1091 = vmatprep.subr.bf16.mxu0 0
      %1092 = vmatpush1.bf16.msra.mxu0 %v942
      %1093 = vmatprep.subr.bf16.mxu0 0
      %1094 = vmatpush1.bf16.msra.mxu0 %v941
      %1095 = vmatprep.subr.bf16.mxu0 0
      %1096 = vmatpush1.bf16.msra.mxu0 %v940
      %1097 = vmatprep.subr.bf16.mxu0 0
      %1098 = vmatpush1.bf16.msra.mxu0 %v939
      %1099 = vmatprep.subr.bf16.mxu0 0
      %1100 = vmatpush2.bf16.msra.mxu0 %v954
      %1101 = vmatprep.subr.bf16.mxu0 0
      %1102 = vmatpush2.bf16.msra.mxu0 %v953
      %1103 = vmatprep.subr.bf16.mxu0 0
      %1104 = vmatpush2.bf16.msra.mxu0 %v952
      %1105 = vmatprep.subr.bf16.mxu0 0
      %1106 = vmatpush2.bf16.msra.mxu0 %v951
      %1107 = vmatprep.subr.bf16.mxu0 0
      %1108 = vmatpush2.bf16.msra.mxu0 %v950
      %1109 = vmatprep.subr.bf16.mxu0 0
      %1110 = vmatpush2.bf16.msra.mxu0 %v949
      %1111 = vmatprep.subr.bf16.mxu0 0
      %1112 = vmatpush2.bf16.msra.mxu0 %v948
      %1113 = vmatprep.subr.bf16.mxu0 0
      %1114 = vmatpush2.bf16.msra.mxu0 %v947
      %1115 = vmatprep.mubr.bf16.mxu0 %v409
      %1116 = vmatmul.mubr.bf16.gmra.mxu0 %v390
      %v1117 = vpop.f32.mrf.mxu0
      %v1118 = vadd.f32 0.0, %v1117
      %v1119 = vpop.f32.mrf.mxu0
      %v1120 = vpop.f32.mrf.mxu0
      %v1121 = vadd.f32 0.0, %v1120
      %v1122 = vpop.f32.mrf.mxu0
      %1123 = vmatprep.mubr.bf16.mxu0 %v412
      %1124 = vmatmul.mubr.bf16.gmra.mxu0 %v391
      %v1125 = vpop.f32.mrf.mxu0
      %v1126 = vadd.f32 0.0, %v1125
      %v1127 = vpop.f32.mrf.mxu0
      %v1128 = vpop.f32.mrf.mxu0
      %v1129 = vpop.f32.mrf.mxu0
      %1130 = vdwg.mxu0
      %1131 = vmatprep.subr.bf16.mxu0 0
      %1132 = vmatpush1.bf16.msra.mxu0 %v962
      %1133 = vmatprep.subr.bf16.mxu0 0
      %1134 = vmatpush1.bf16.msra.mxu0 %v961
      %1135 = vmatprep.subr.bf16.mxu0 0
      %1136 = vmatpush1.bf16.msra.mxu0 %v960
      %1137 = vmatprep.subr.bf16.mxu0 0
      %1138 = vmatpush1.bf16.msra.mxu0 %v959
      %1139 = vmatprep.subr.bf16.mxu0 0
      %1140 = vmatpush1.bf16.msra.mxu0 %v958
      %1141 = vmatprep.subr.bf16.mxu0 0
      %1142 = vmatpush1.bf16.msra.mxu0 %v957
      %1143 = vmatprep.subr.bf16.mxu0 0
      %1144 = vmatpush1.bf16.msra.mxu0 %v956
      %1145 = vmatprep.subr.bf16.mxu0 0
      %1146 = vmatpush1.bf16.msra.mxu0 %v955
      %1147 = vmatprep.subr.bf16.mxu0 0
      %1148 = vmatpush2.bf16.msra.mxu0 %v970
      %1149 = vmatprep.subr.bf16.mxu0 0
      %1150 = vmatpush2.bf16.msra.mxu0 %v969
      %1151 = vmatprep.subr.bf16.mxu0 0
      %1152 = vmatpush2.bf16.msra.mxu0 %v968
      %1153 = vmatprep.subr.bf16.mxu0 0
      %1154 = vmatpush2.bf16.msra.mxu0 %v967
      %1155 = vmatprep.subr.bf16.mxu0 0
      %1156 = vmatpush2.bf16.msra.mxu0 %v966
      %1157 = vmatprep.subr.bf16.mxu0 0
      %1158 = vmatpush2.bf16.msra.mxu0 %v965
      %1159 = vmatprep.subr.bf16.mxu0 0
      %1160 = vmatpush2.bf16.msra.mxu0 %v964
      %1161 = vmatprep.subr.bf16.mxu0 0
      %1162 = vmatpush2.bf16.msra.mxu0 %v963
      %1163 = vmatprep.mubr.bf16.mxu0 %v433
      %1164 = vmatmul.mubr.bf16.gmra.mxu0 %v421
      %v1165 = vpop.f32.mrf.mxu0
      %v1166 = vadd.f32 %v1118, %v1165
      %v1167 = vpop.f32.mrf.mxu0
      %v1168 = vpop.f32.mrf.mxu0
      %v1169 = vadd.f32 %v1121, %v1168
      %v1170 = vpop.f32.mrf.mxu0
      %1171 = vmatprep.mubr.bf16.mxu0 %v432
      %1172 = vmatmul.mubr.bf16.gmra.mxu0 %v420
      %v1173 = vpop.f32.mrf.mxu0
      %v1174 = vadd.f32 %v1126, %v1173
      %v1175 = vpop.f32.mrf.mxu0
      %v1176 = vpop.f32.mrf.mxu0
      %v1177 = vpop.f32.mrf.mxu0
      %1178 = vdwg.mxu0
      %1179 = vmatprep.subr.bf16.mxu0 0
      %1180 = vmatpush1.bf16.msra.mxu0 %v978
      %1181 = vmatprep.subr.bf16.mxu0 0
      %1182 = vmatpush1.bf16.msra.mxu0 %v977
      %1183 = vmatprep.subr.bf16.mxu0 0
      %1184 = vmatpush1.bf16.msra.mxu0 %v976
      %1185 = vmatprep.subr.bf16.mxu0 0
      %1186 = vmatpush1.bf16.msra.mxu0 %v975
      %1187 = vmatprep.subr.bf16.mxu0 0
      %1188 = vmatpush1.bf16.msra.mxu0 %v974
      %1189 = vmatprep.subr.bf16.mxu0 0
      %1190 = vmatpush1.bf16.msra.mxu0 %v973
      %1191 = vmatprep.subr.bf16.mxu0 0
      %1192 = vmatpush1.bf16.msra.mxu0 %v972
      %1193 = vmatprep.subr.bf16.mxu0 0
      %1194 = vmatpush1.bf16.msra.mxu0 %v971
      %1195 = vmatprep.subr.bf16.mxu0 0
      %1196 = vmatpush2.bf16.msra.mxu0 %v986
      %1197 = vmatprep.subr.bf16.mxu0 0
      %1198 = vmatpush2.bf16.msra.mxu0 %v985
      %1199 = vmatprep.subr.bf16.mxu0 0
      %1200 = vmatpush2.bf16.msra.mxu0 %v984
      %1201 = vmatprep.subr.bf16.mxu0 0
      %1202 = vmatpush2.bf16.msra.mxu0 %v983
      %1203 = vmatprep.subr.bf16.mxu0 0
      %1204 = vmatpush2.bf16.msra.mxu0 %v982
      %1205 = vmatprep.subr.bf16.mxu0 0
      %1206 = vmatpush2.bf16.msra.mxu0 %v981
      %1207 = vmatprep.subr.bf16.mxu0 0
      %1208 = vmatpush2.bf16.msra.mxu0 %v980
      %1209 = vmatprep.subr.bf16.mxu0 0
      %1210 = vmatpush2.bf16.msra.mxu0 %v979
      %1211 = vmatprep.mubr.bf16.mxu0 %v459
      %1212 = vmatmul.mubr.bf16.gmra.mxu0 %v456
      %v1213 = vpop.f32.mrf.mxu0
      %v1214 = vadd.f32 %v1166, %v1213
      %v1215 = vpop.f32.mrf.mxu0
      %v1216 = vpop.f32.mrf.mxu0
      %v1217 = vadd.f32 %v1169, %v1216
      %v1218 = vpop.f32.mrf.mxu0
      %1219 = vmatprep.mubr.bf16.mxu0 %v460
      %1220 = vmatmul.mubr.bf16.gmra.mxu0 %v455
      %v1221 = vpop.f32.mrf.mxu0
      %v1222 = vadd.f32 %v1174, %v1221
      %v1223 = vpop.f32.mrf.mxu0
      %v1224 = vpop.f32.mrf.mxu0
      %v1225 = vpop.f32.mrf.mxu0
      %1226 = vdwg.mxu0
      %1227 = vmatprep.subr.bf16.mxu0 0
      %1228 = vmatpush1.bf16.msra.mxu0 %v994
      %1229 = vmatprep.subr.bf16.mxu0 0
      %1230 = vmatpush1.bf16.msra.mxu0 %v993
      %1231 = vmatprep.subr.bf16.mxu0 0
      %1232 = vmatpush1.bf16.msra.mxu0 %v992
      %1233 = vmatprep.subr.bf16.mxu0 0
      %1234 = vmatpush1.bf16.msra.mxu0 %v991
      %1235 = vmatprep.subr.bf16.mxu0 0
      %1236 = vmatpush1.bf16.msra.mxu0 %v990
      %1237 = vmatprep.subr.bf16.mxu0 0
      %1238 = vmatpush1.bf16.msra.mxu0 %v989
      %1239 = vmatprep.subr.bf16.mxu0 0
      %1240 = vmatpush1.bf16.msra.mxu0 %v988
      %1241 = vmatprep.subr.bf16.mxu0 0
      %1242 = vmatpush1.bf16.msra.mxu0 %v987
      %1243 = vmatprep.subr.bf16.mxu0 0
      %1244 = vmatpush2.bf16.msra.mxu0 %v1002
      %1245 = vmatprep.subr.bf16.mxu0 0
      %1246 = vmatpush2.bf16.msra.mxu0 %v1001
      %1247 = vmatprep.subr.bf16.mxu0 0
      %1248 = vmatpush2.bf16.msra.mxu0 %v1000
      %1249 = vmatprep.subr.bf16.mxu0 0
      %1250 = vmatpush2.bf16.msra.mxu0 %v999
      %1251 = vmatprep.subr.bf16.mxu0 0
      %1252 = vmatpush2.bf16.msra.mxu0 %v998
      %1253 = vmatprep.subr.bf16.mxu0 0
      %1254 = vmatpush2.bf16.msra.mxu0 %v997
      %1255 = vmatprep.subr.bf16.mxu0 0
      %1256 = vmatpush2.bf16.msra.mxu0 %v996
      %1257 = vmatprep.subr.bf16.mxu0 0
      %1258 = vmatpush2.bf16.msra.mxu0 %v995
      %1259 = vmatprep.mubr.bf16.mxu0 %v495
      %1260 = vmatmul.mubr.bf16.gmra.mxu0 %v472
      %v1261 = vpop.f32.mrf.mxu0
      %v1262 = vadd.f32 %v1214, %v1261
      %v1263 = vpop.f32.mrf.mxu0
      %v1264 = vpop.f32.mrf.mxu0
      %v1265 = vadd.f32 %v1217, %v1264
      %v1266 = vpop.f32.mrf.mxu0
      %1267 = vmatprep.mubr.bf16.mxu0 %v494
      %1268 = vmatmul.mubr.bf16.gmra.mxu0 %v471
      %v1269 = vpop.f32.mrf.mxu0
      %v1270 = vadd.f32 %v1222, %v1269
      %v1271 = vpop.f32.mrf.mxu0
      %v1272 = vpop.f32.mrf.mxu0
      %v1273 = vpop.f32.mrf.mxu0
      %1274 = vdwg.mxu0
      %1275 = vmatprep.subr.bf16.mxu0 0
      %1276 = vmatpush1.bf16.msra.mxu0 %v1010
      %1277 = vmatprep.subr.bf16.mxu0 0
      %1278 = vmatpush1.bf16.msra.mxu0 %v1009
      %1279 = vmatprep.subr.bf16.mxu0 0
      %1280 = vmatpush1.bf16.msra.mxu0 %v1008
      %1281 = vmatprep.subr.bf16.mxu0 0
      %1282 = vmatpush1.bf16.msra.mxu0 %v1007
      %1283 = vmatprep.subr.bf16.mxu0 0
      %1284 = vmatpush1.bf16.msra.mxu0 %v1006
      %1285 = vmatprep.subr.bf16.mxu0 0
      %1286 = vmatpush1.bf16.msra.mxu0 %v1005
      %1287 = vmatprep.subr.bf16.mxu0 0
      %1288 = vmatpush1.bf16.msra.mxu0 %v1004
      %1289 = vmatprep.subr.bf16.mxu0 0
      %1290 = vmatpush1.bf16.msra.mxu0 %v1003
      %1291 = vmatprep.subr.bf16.mxu0 0
      %1292 = vmatpush2.bf16.msra.mxu0 0
      %1293 = vmatprep.subr.bf16.mxu0 0
      %1294 = vmatpush2.bf16.msra.mxu0 0
      %1295 = vmatprep.subr.bf16.mxu0 0
      %1296 = vmatpush2.bf16.msra.mxu0 0
      %1297 = vmatprep.subr.bf16.mxu0 0
      %1298 = vmatpush2.bf16.msra.mxu0 0
      %1299 = vmatprep.subr.bf16.mxu0 0
      %1300 = vmatpush2.bf16.msra.mxu0 0
      %1301 = vmatprep.subr.bf16.mxu0 0
      %1302 = vmatpush2.bf16.msra.mxu0 0
      %1303 = vmatprep.subr.bf16.mxu0 0
      %1304 = vmatpush2.bf16.msra.mxu0 0
      %1305 = vmatprep.subr.bf16.mxu0 0
      %1306 = vmatpush2.bf16.msra.mxu0 0
      %1307 = vmatprep.mubr.bf16.mxu0 0
      %1308 = vmatmul.mubr.bf16.gmra.mxu0 %v503
      %v1309 = vpop.f32.mrf.mxu0
      %v1310 = vadd.f32 %v1262, %v1309
      %v1311 = vpop.f32.mrf.mxu0
      %v1312 = vpop.f32.mrf.mxu0
      %v1313 = vadd.f32 %v1265, %v1312
      %v1314 = vpop.f32.mrf.mxu0
      %1315 = vmatprep.mubr.bf16.mxu0 0
      %1316 = vmatmul.mubr.bf16.gmra.mxu0 %v502
      %v1317 = vpop.f32.mrf.mxu0
      %v1318 = vadd.f32 %v1270, %v1317
      %v1319 = vpop.f32.mrf.mxu0
      %v1320 = vpop.f32.mrf.mxu0
      %v1321 = vpop.f32.mrf.mxu0
      %1322 = vdwg.mxu0
      %vm1323 = vcmask 261120
      %1324 = vst.msk [vmem:[#allocation2] sm:$0xff] %vm1323, %v1310
      %1325 = vst.msk [vmem:[#allocation2 + $0x8] sm:$0xff] %vm1323, %v1313
      %1326 = vst.msk [vmem:[#allocation2 + $0x10] sm:$0xff] %vm1323, %v1318
      %p1327 = scmp.gt.s32.totalorder %s21, 0
      // Predicated region
      $region41: #{forward.6} parent=39 // pred_check
        %p1328 = pneg %p1327
      $region42: #{forward.6} parent=39 // pred_check_branch
        %1330 = sbr.rel (%p1328) target = $region44
      $region43: #{forward.6} parent=39 // pred_region
        %v1331 = vld [vmem:[#allocation2] sm:$0xff]
        %v1332 = vld [vmem:[#allocation2 + $0x8] sm:$0xff]
        %v1333 = vld [vmem:[#allocation2 + $0x10] sm:$0xff]
        %v1334 = vld [vmem:[%s334] sm:$0xf]
        %v1335 = vld [vmem:[%s334 + $0x4] sm:$0xf]
        %v1336 = vld [vmem:[%s334 + $0x8] sm:$0xf]
        %v1337 = vld [vmem:[%s334 + $0xc] sm:$0x1]
        %v1338 = vld [vmem:[%s334] sm:$0xe]
        %v1339 = vld [vmem:[%s334] sm:$0x8]
        %v1340 = vld [vmem:[%s334 + $0xc] sm:$0x7]
        %v1341 = vld [vmem:[%s334 + $0xc] sm:$0xf]
        %v1342 = vld [vmem:[%s334 + $0x4] sm:$0xc]
        %v1343 = vld [vmem:[%s334 + $0x10] sm:$0x3]
        %v1344 = vld [vmem:[%s334 + $0x10] sm:$0x7]
        %v1345 = vld [vmem:[%s334 + $0x4] sm:$0x8]
        %v1349 = vunpack.c.l.b16 %v1334
        %v1350 = vunpack.c.l.b16 %v1335
        %v1351 = vunpack.c.l.b16 %v1336
        %v1352 = vpack.c.b16 %v1350, %v1349
        %v1353 = vpack.c.b16 %v1351, %v1351
        %v1357 = vunpack.c.l.b16 %v1337
        %v1358 = vpack.c.b16 %v1357, %v1351
        %v1360 = vshrl.u32 %v1352, 16
        %v1362 = vshll.u32 %v1352, 16
        %v1364 = vrot.slane %v1362, 1
        %v1365 = vor.u32 %v1360, %v1364
        %v1367 = vshll.u32 %v1358, 16
        %v1369 = vrot.slane %v1367, 1
        %v1370 = vsel %vm397, %v1365, %v1369
        %v1371 = vshrl.u32 %v1358, 16
        %v1373 = vor.u32 %v1371, %v1369
        %v1377 = vunpack.c.l.b16 %v1338
        %v1378 = vpack.c.b16 %v1350, %v1377
        %v1379 = vrot.slane %v1378, 1
        %v1380 = vrot.slane %v1358, 1
        %v1381 = vsel %vm418, %v1379, %v1380
        %v1386 = vunpack.c.l.b16 %v1339
        %v1387 = vunpack.c.l.b16 %v1340
        %v1388 = vpack.c.b16 %v1350, %v1386
        %v1389 = vpack.c.b16 %v1387, %v1351
        %v1390 = vrot.slane %v1388, 3
        %v1391 = vrot.slane %v1389, 3
        %v1392 = vsel %vm430, %v1390, %v1391
        %v1396 = vunpack.c.l.b16 %v1341
        %v1397 = vpack.c.b16 %v1396, %v1351
        %v1399 = vshrl.u32 %v1388, 16
        %v1401 = vrot.slane %v1399, 3
        %v1402 = vshll.u32 %v1388, 16
        %v1404 = vrot.slane %v1402, 4
        %v1405 = vor.u32 %v1401, %v1404
        %v1407 = vshrl.u32 %v1397, 16
        %v1409 = vrot.slane %v1407, 3
        %v1410 = vshll.u32 %v1397, 16
        %v1412 = vrot.slane %v1410, 4
        %v1413 = vor.u32 %v1409, %v1412
        %v1414 = vsel %vm439, %v1405, %v1413
        %v1417 = vpack.c.b16 %v1351, %v1350
        %v1418 = vpack.c.b16 %v1396, %v1396
        %v1423 = vunpack.c.l.b16 %v1342
        %v1424 = vunpack.c.l.b16 %v1343
        %v1425 = vpack.c.b16 %v1351, %v1423
        %v1426 = vpack.c.b16 %v1424, %v1396
        %v1427 = vrot.slane %v1425, 2
        %v1428 = vrot.slane %v1426, 2
        %v1429 = vsel %vm469, %v1427, %v1428
        %v1433 = vunpack.c.l.b16 %v1344
        %v1434 = vpack.c.b16 %v1433, %v1396
        %v1436 = vshrl.u32 %v1425, 16
        %v1438 = vrot.slane %v1436, 2
        %v1439 = vshll.u32 %v1425, 16
        %v1441 = vrot.slane %v1439, 3
        %v1442 = vor.u32 %v1438, %v1441
        %v1444 = vshrl.u32 %v1434, 16
        %v1446 = vrot.slane %v1444, 2
        %v1447 = vshll.u32 %v1434, 16
        %v1449 = vrot.slane %v1447, 3
        %v1450 = vor.u32 %v1446, %v1449
        %v1451 = vsel %vm478, %v1442, %v1450
        %v1455 = vunpack.c.l.b16 %v1345
        %v1456 = vpack.c.b16 %v1351, %v1455
        %v1457 = vrot.slane %v1456, 3
        %v1458 = vrot.slane %v1434, 3
        %v1459 = vsel %vm430, %v1457, %v1458
        %v1462 = vld [vmem:[%s3] sm:$0xf]
        %v1463 = vld [vmem:[%s3 + $0x4] sm:$0xf]
        %v1464 = vld [vmem:[%s3 + $0x8] sm:$0xf]
        %v1465 = vld [vmem:[%s3 + $0xc] sm:$0xf]
        %v1466 = vld [vmem:[%s3 + $0x10] sm:$0xf]
        %v1467 = vld [vmem:[%s3 + $0x14] sm:$0xf]
        %v1468 = vld [vmem:[%s3 + $0x18] sm:$0xf]
        %v1469 = vld [vmem:[%s3 + $0x1c] sm:$0xf]
        %v1470 = vld [vmem:[%s3 + $0x20] sm:$0xf]
        %v1471 = vld [vmem:[%s3 + $0x24] sm:$0xf]
        %v1472 = vld [vmem:[%s3 + $0x28] sm:$0xf]
        %v1473 = vld [vmem:[%s3 + $0x2c] sm:$0xf]
        %v1474 = vld [vmem:[%s3 + $0x30] sm:$0xf]
        %v1475 = vld [vmem:[%s3 + $0x34] sm:$0xf]
        %v1476 = vld [vmem:[%s3 + $0x38] sm:$0xf]
        %v1477 = vld [vmem:[%s3 + $0x3c] sm:$0xf]
        %v1478 = vld [vmem:[%s3 + $0x40] sm:$0xf]
        %v1479 = vld [vmem:[%s3 + $0x44] sm:$0xf]
        %v1480 = vld [vmem:[%s3 + $0x48] sm:$0xf]
        %v1481 = vld [vmem:[%s3 + $0x4c] sm:$0xf]
        %v1482 = vld [vmem:[%s3 + $0x50] sm:$0xf]
        %v1483 = vld [vmem:[%s3 + $0x54] sm:$0xf]
        %v1484 = vld [vmem:[%s3 + $0x58] sm:$0xf]
        %v1485 = vld [vmem:[%s3 + $0x5c] sm:$0xf]
        %v1486 = vld [vmem:[%s3 + $0x60] sm:$0xf]
        %v1487 = vld [vmem:[%s3 + $0x64] sm:$0xf]
        %v1488 = vld [vmem:[%s3 + $0x68] sm:$0xf]
        %v1489 = vld [vmem:[%s3 + $0x6c] sm:$0xf]
        %v1490 = vld [vmem:[%s3 + $0x70] sm:$0xf]
        %v1491 = vld [vmem:[%s3 + $0x74] sm:$0xf]
        %v1492 = vld [vmem:[%s3 + $0x78] sm:$0xf]
        %v1493 = vld [vmem:[%s3 + $0x7c] sm:$0xf]
        %v1494 = vld [vmem:[%s3 + $0x80] sm:$0xf]
        %v1495 = vld [vmem:[%s3 + $0x84] sm:$0xf]
        %v1496 = vld [vmem:[%s3 + $0x88] sm:$0xf]
        %v1497 = vld [vmem:[%s3 + $0x8c] sm:$0xf]
        %v1498 = vld [vmem:[%s3 + $0x90] sm:$0xf]
        %v1499 = vld [vmem:[%s3 + $0x94] sm:$0xf]
        %v1500 = vld [vmem:[%s3 + $0x98] sm:$0xf]
        %v1501 = vld [vmem:[%s3 + $0x9c] sm:$0xf]
        %v1502 = vld [vmem:[%s3 + $0xa0] sm:$0xf]
        %v1503 = vld [vmem:[%s3 + $0xa4] sm:$0xf]
        %v1504 = vld [vmem:[%s3 + $0xa8] sm:$0xf]
        %v1505 = vld [vmem:[%s3 + $0xac] sm:$0xf]
        %v1506 = vld [vmem:[%s3 + $0xb0] sm:$0xf]
        %v1507 = vld [vmem:[%s3 + $0xb4] sm:$0xf]
        %v1508 = vld [vmem:[%s3 + $0xb8] sm:$0xf]
        %v1509 = vld [vmem:[%s3 + $0xbc] sm:$0xf]
        %v1510 = vld [vmem:[%s3 + $0xc0] sm:$0xf]
        %v1511 = vld [vmem:[%s3 + $0xc4] sm:$0xf]
        %v1512 = vld [vmem:[%s3 + $0xc8] sm:$0xf]
        %v1513 = vld [vmem:[%s3 + $0xcc] sm:$0xf]
        %v1514 = vld [vmem:[%s3 + $0xd0] sm:$0xf]
        %v1515 = vld [vmem:[%s3 + $0xd4] sm:$0xf]
        %v1516 = vld [vmem:[%s3 + $0xd8] sm:$0xf]
        %v1517 = vld [vmem:[%s3 + $0xdc] sm:$0xf]
        %v1518 = vld [vmem:[%s3 + $0xe0] sm:$0xf]
        %v1519 = vld [vmem:[%s3 + $0xe4] sm:$0xf]
        %v1520 = vld [vmem:[%s3 + $0xe8] sm:$0xf]
        %v1521 = vld [vmem:[%s3 + $0xec] sm:$0xf]
        %v1522 = vld [vmem:[%s3 + $0xf0] sm:$0xf]
        %v1523 = vld [vmem:[%s3 + $0xf4] sm:$0xf]
        %v1524 = vld [vmem:[%s3 + $0xf8] sm:$0xf]
        %v1525 = vld [vmem:[%s3 + $0xfc] sm:$0xf]
        %v1526 = vld [vmem:[%s3 + $0x100] sm:$0xf]
        %v1527 = vld [vmem:[%s3 + $0x104] sm:$0xf]
        %v1528 = vld [vmem:[%s3 + $0x108] sm:$0xf]
        %v1529 = vld [vmem:[%s3 + $0x10c] sm:$0xf]
        %v1530 = vld [vmem:[%s3 + $0x110] sm:$0xf]
        %v1531 = vld [vmem:[%s3 + $0x114] sm:$0xf]
        %v1532 = vld [vmem:[%s3 + $0x118] sm:$0xf]
        %v1533 = vld [vmem:[%s3 + $0x11c] sm:$0xf]
        %v1534 = vld [vmem:[%s3 + $0x120] sm:$0xf]
        %v1535 = vld [vmem:[%s3 + $0x124] sm:$0xf]
        %v1536 = vld [vmem:[%s3 + $0x128] sm:$0xf]
        %v1537 = vld [vmem:[%s3 + $0x12c] sm:$0xf]
        %v1538 = vld [vmem:[%s3 + $0x130] sm:$0xf]
        %v1539 = vld [vmem:[%s3 + $0x134] sm:$0xf]
        %v1540 = vld [vmem:[%s3 + $0x138] sm:$0xf]
        %v1541 = vld [vmem:[%s3 + $0x13c] sm:$0xf]
        %v1542 = vld [vmem:[%s3 + $0x140] sm:$0xf]
        %v1543 = vld [vmem:[%s3 + $0x144] sm:$0xf]
        %v1544 = vld [vmem:[%s3 + $0x148] sm:$0xf]
        %v1545 = vld [vmem:[%s3 + $0x14c] sm:$0xf]
        %v1546 = vld [vmem:[%s3 + $0x150] sm:$0xf]
        %v1547 = vld [vmem:[%s3 + $0x154] sm:$0xf]
        %v1548 = vld [vmem:[%s3 + $0x158] sm:$0xf]
        %v1549 = vld [vmem:[%s3 + $0x15c] sm:$0xf]
        %v1550 = vld [vmem:[%s3 + $0x160] sm:$0xf]
        %v1551 = vld [vmem:[%s3 + $0x164] sm:$0xf]
        %v1552 = vld [vmem:[%s3 + $0x168] sm:$0xf]
        %v1553 = vld [vmem:[%s3 + $0x16c] sm:$0xf]
        %v1554 = vld [vmem:[%s3 + $0x170] sm:$0xf]
        %v1555 = vld [vmem:[%s3 + $0x174] sm:$0xf]
        %v1556 = vld [vmem:[%s3 + $0x178] sm:$0xf]
        %v1557 = vld [vmem:[%s3 + $0x17c] sm:$0xf]
        %v1558 = vld [vmem:[%s3 + $0x180] sm:$0xf]
        %v1559 = vld [vmem:[%s3 + $0x184] sm:$0xf]
        %v1560 = vld [vmem:[%s3 + $0x188] sm:$0xf]
        %v1561 = vld [vmem:[%s3 + $0x18c] sm:$0xf]
        %v1562 = vld [vmem:[%s3 + $0x190] sm:$0xf]
        %v1563 = vld [vmem:[%s3 + $0x194] sm:$0xf]
        %v1564 = vld [vmem:[%s3 + $0x198] sm:$0xf]
        %v1565 = vld [vmem:[%s3 + $0x19c] sm:$0xf]
        %v1566 = vld [vmem:[%s3 + $0x1a0] sm:$0xf]
        %v1567 = vld [vmem:[%s3 + $0x1a4] sm:$0xf]
        %v1568 = vld [vmem:[%s3 + $0x1a8] sm:$0xf]
        %v1569 = vld [vmem:[%s3 + $0x1ac] sm:$0xf]
        %v1570 = vld [vmem:[%s3 + $0x1b0] sm:$0xf]
        %v1571 = vld [vmem:[%s3 + $0x1b4] sm:$0xf]
        %v1572 = vld [vmem:[%s3 + $0x1b8] sm:$0xf]
        %v1573 = vld [vmem:[%s3 + $0x1bc] sm:$0xf]
        %v1574 = vld [vmem:[%s3 + $0x1c0] sm:$0xf]
        %v1575 = vld [vmem:[%s3 + $0x1c4] sm:$0xf]
        %v1576 = vld [vmem:[%s3 + $0x1c8] sm:$0xf]
        %v1577 = vld [vmem:[%s3 + $0x1cc] sm:$0xf]
        %v1578 = vld [vmem:[%s3 + $0x1d0] sm:$0xf]
        %v1579 = vld [vmem:[%s3 + $0x1d4] sm:$0xf]
        %v1580 = vld [vmem:[%s3 + $0x1d8] sm:$0xf]
        %v1581 = vld [vmem:[%s3 + $0x1dc] sm:$0xf]
        %v1582 = vld [vmem:[%s3 + $0x1e0] sm:$0xf]
        %v1583 = vld [vmem:[%s3 + $0x1e4] sm:$0xf]
        %v1584 = vld [vmem:[%s3 + $0x1e8] sm:$0xf]
        %v1585 = vld [vmem:[%s3 + $0x1ec] sm:$0xf]
        %v1586 = vld [vmem:[%s3 + $0x1f0] sm:$0xf]
        %v1587 = vld [vmem:[%s3 + $0x1f4] sm:$0xf]
        %v1588 = vld [vmem:[%s3 + $0x1f8] sm:$0xf]
        %v1589 = vld [vmem:[%s3 + $0x1fc] sm:$0xf]
        %v1590 = vld [vmem:[%s3 + $0x200] sm:$0xf]
        %v1591 = vld [vmem:[%s3 + $0x204] sm:$0xf]
        %v1592 = vld [vmem:[%s3 + $0x208] sm:$0xf]
        %v1593 = vld [vmem:[%s3 + $0x20c] sm:$0xf]
        %v1594 = vld [vmem:[%s3 + $0x210] sm:$0xf]
        %v1595 = vld [vmem:[%s3 + $0x214] sm:$0xf]
        %v1596 = vld [vmem:[%s3 + $0x218] sm:$0xf]
        %v1597 = vld [vmem:[%s3 + $0x21c] sm:$0xf]
        %v1598 = vld [vmem:[%s3 + $0x220] sm:$0xf]
        %v1599 = vld [vmem:[%s3 + $0x224] sm:$0xf]
        %v1600 = vld [vmem:[%s3 + $0x228] sm:$0xf]
        %v1601 = vld [vmem:[%s3 + $0x22c] sm:$0xf]
        %v1602 = vld [vmem:[%s3 + $0x230] sm:$0xf]
        %v1603 = vld [vmem:[%s3 + $0x234] sm:$0xf]
        %v1604 = vld [vmem:[%s3 + $0x238] sm:$0xf]
        %v1605 = vld [vmem:[%s3 + $0x23c] sm:$0xf]
        %v1750 = vunpack.c.l.b16 %v1462
        %v1751 = vunpack.c.l.b16 %v1463
        %v1752 = vunpack.c.l.b16 %v1464
        %v1753 = vunpack.c.l.b16 %v1465
        %v1754 = vunpack.c.l.b16 %v1466
        %v1755 = vunpack.c.l.b16 %v1467
        %v1756 = vunpack.c.l.b16 %v1468
        %v1757 = vunpack.c.l.b16 %v1469
        %v1758 = vunpack.c.l.b16 %v1470
        %v1759 = vunpack.c.l.b16 %v1471
        %v1760 = vunpack.c.l.b16 %v1472
        %v1761 = vunpack.c.l.b16 %v1473
        %v1762 = vunpack.c.l.b16 %v1474
        %v1763 = vunpack.c.l.b16 %v1475
        %v1764 = vunpack.c.l.b16 %v1476
        %v1765 = vunpack.c.l.b16 %v1477
        %v1766 = vunpack.c.l.b16 %v1478
        %v1767 = vunpack.c.l.b16 %v1479
        %v1768 = vunpack.c.l.b16 %v1480
        %v1769 = vunpack.c.l.b16 %v1481
        %v1770 = vunpack.c.l.b16 %v1482
        %v1771 = vunpack.c.l.b16 %v1483
        %v1772 = vunpack.c.l.b16 %v1484
        %v1773 = vunpack.c.l.b16 %v1485
        %v1774 = vunpack.c.l.b16 %v1486
        %v1775 = vunpack.c.l.b16 %v1487
        %v1776 = vunpack.c.l.b16 %v1488
        %v1777 = vunpack.c.l.b16 %v1489
        %v1778 = vunpack.c.l.b16 %v1490
        %v1779 = vunpack.c.l.b16 %v1491
        %v1780 = vunpack.c.l.b16 %v1492
        %v1781 = vunpack.c.l.b16 %v1493
        %v1782 = vunpack.c.l.b16 %v1494
        %v1783 = vunpack.c.l.b16 %v1495
        %v1784 = vunpack.c.l.b16 %v1496
        %v1785 = vunpack.c.l.b16 %v1497
        %v1786 = vunpack.c.l.b16 %v1498
        %v1787 = vunpack.c.l.b16 %v1499
        %v1788 = vunpack.c.l.b16 %v1500
        %v1789 = vunpack.c.l.b16 %v1501
        %v1790 = vunpack.c.l.b16 %v1502
        %v1791 = vunpack.c.l.b16 %v1503
        %v1792 = vunpack.c.l.b16 %v1504
        %v1793 = vunpack.c.l.b16 %v1505
        %v1794 = vunpack.c.l.b16 %v1506
        %v1795 = vunpack.c.l.b16 %v1507
        %v1796 = vunpack.c.l.b16 %v1508
        %v1797 = vunpack.c.l.b16 %v1509
        %v1798 = vunpack.c.l.b16 %v1510
        %v1799 = vunpack.c.l.b16 %v1511
        %v1800 = vunpack.c.l.b16 %v1512
        %v1801 = vunpack.c.l.b16 %v1513
        %v1802 = vunpack.c.l.b16 %v1514
        %v1803 = vunpack.c.l.b16 %v1515
        %v1804 = vunpack.c.l.b16 %v1516
        %v1805 = vunpack.c.l.b16 %v1517
        %v1806 = vunpack.c.l.b16 %v1518
        %v1807 = vunpack.c.l.b16 %v1519
        %v1808 = vunpack.c.l.b16 %v1520
        %v1809 = vunpack.c.l.b16 %v1521
        %v1810 = vunpack.c.l.b16 %v1522
        %v1811 = vunpack.c.l.b16 %v1523
        %v1812 = vunpack.c.l.b16 %v1524
        %v1813 = vunpack.c.l.b16 %v1525
        %v1814 = vunpack.c.l.b16 %v1526
        %v1815 = vunpack.c.l.b16 %v1527
        %v1816 = vunpack.c.l.b16 %v1528
        %v1817 = vunpack.c.l.b16 %v1529
        %v1818 = vunpack.c.l.b16 %v1530
        %v1819 = vunpack.c.l.b16 %v1531
        %v1820 = vunpack.c.l.b16 %v1532
        %v1821 = vunpack.c.l.b16 %v1533
        %v1822 = vunpack.c.l.b16 %v1534
        %v1823 = vunpack.c.l.b16 %v1535
        %v1824 = vunpack.c.l.b16 %v1536
        %v1825 = vunpack.c.l.b16 %v1537
        %v1826 = vunpack.c.l.b16 %v1538
        %v1827 = vunpack.c.l.b16 %v1539
        %v1828 = vunpack.c.l.b16 %v1540
        %v1829 = vunpack.c.l.b16 %v1541
        %v1830 = vunpack.c.l.b16 %v1542
        %v1831 = vunpack.c.l.b16 %v1543
        %v1832 = vunpack.c.l.b16 %v1544
        %v1833 = vunpack.c.l.b16 %v1545
        %v1834 = vunpack.c.l.b16 %v1546
        %v1835 = vunpack.c.l.b16 %v1547
        %v1836 = vunpack.c.l.b16 %v1548
        %v1837 = vunpack.c.l.b16 %v1549
        %v1838 = vunpack.c.l.b16 %v1550
        %v1839 = vunpack.c.l.b16 %v1551
        %v1840 = vunpack.c.l.b16 %v1552
        %v1841 = vunpack.c.l.b16 %v1553
        %v1842 = vunpack.c.l.b16 %v1554
        %v1843 = vunpack.c.l.b16 %v1555
        %v1844 = vunpack.c.l.b16 %v1556
        %v1845 = vunpack.c.l.b16 %v1557
        %v1846 = vunpack.c.l.b16 %v1558
        %v1847 = vunpack.c.l.b16 %v1559
        %v1848 = vunpack.c.l.b16 %v1560
        %v1849 = vunpack.c.l.b16 %v1561
        %v1850 = vunpack.c.l.b16 %v1562
        %v1851 = vunpack.c.l.b16 %v1563
        %v1852 = vunpack.c.l.b16 %v1564
        %v1853 = vunpack.c.l.b16 %v1565
        %v1854 = vunpack.c.l.b16 %v1566
        %v1855 = vunpack.c.l.b16 %v1567
        %v1856 = vunpack.c.l.b16 %v1568
        %v1857 = vunpack.c.l.b16 %v1569
        %v1858 = vunpack.c.l.b16 %v1570
        %v1859 = vunpack.c.l.b16 %v1571
        %v1860 = vunpack.c.l.b16 %v1572
        %v1861 = vunpack.c.l.b16 %v1573
        %v1862 = vunpack.c.l.b16 %v1574
        %v1863 = vunpack.c.l.b16 %v1575
        %v1864 = vunpack.c.l.b16 %v1576
        %v1865 = vunpack.c.l.b16 %v1577
        %v1866 = vunpack.c.l.b16 %v1578
        %v1867 = vunpack.c.l.b16 %v1579
        %v1868 = vunpack.c.l.b16 %v1580
        %v1869 = vunpack.c.l.b16 %v1581
        %v1870 = vunpack.c.l.b16 %v1582
        %v1871 = vunpack.c.l.b16 %v1583
        %v1872 = vunpack.c.l.b16 %v1584
        %v1873 = vunpack.c.l.b16 %v1585
        %v1874 = vunpack.c.l.b16 %v1586
        %v1875 = vunpack.c.l.b16 %v1587
        %v1876 = vunpack.c.l.b16 %v1588
        %v1877 = vunpack.c.l.b16 %v1589
        %v1878 = vunpack.c.l.b16 %v1590
        %v1879 = vunpack.c.l.b16 %v1591
        %v1880 = vunpack.c.l.b16 %v1592
        %v1881 = vunpack.c.l.b16 %v1593
        %v1882 = vunpack.c.l.b16 %v1594
        %v1883 = vunpack.c.l.b16 %v1595
        %v1884 = vunpack.c.l.b16 %v1596
        %v1885 = vunpack.c.l.b16 %v1597
        %v1886 = vunpack.c.l.b16 %v1598
        %v1887 = vunpack.c.l.b16 %v1599
        %v1888 = vunpack.c.l.b16 %v1600
        %v1889 = vunpack.c.l.b16 %v1601
        %v1890 = vunpack.c.l.b16 %v1602
        %v1891 = vunpack.c.l.b16 %v1603
        %v1892 = vunpack.c.l.b16 %v1604
        %v1893 = vunpack.c.l.b16 %v1605
        %v1894 = vpack.c.b16 %v1751, %v1750
        %v1895 = vpack.c.b16 %v1753, %v1752
        %v1896 = vpack.c.b16 %v1755, %v1754
        %v1897 = vpack.c.b16 %v1757, %v1756
        %v1898 = vpack.c.b16 %v1759, %v1758
        %v1899 = vpack.c.b16 %v1761, %v1760
        %v1900 = vpack.c.b16 %v1763, %v1762
        %v1901 = vpack.c.b16 %v1765, %v1764
        %v1902 = vpack.c.b16 %v1767, %v1766
        %v1903 = vpack.c.b16 %v1769, %v1768
        %v1904 = vpack.c.b16 %v1771, %v1770
        %v1905 = vpack.c.b16 %v1773, %v1772
        %v1906 = vpack.c.b16 %v1775, %v1774
        %v1907 = vpack.c.b16 %v1777, %v1776
        %v1908 = vpack.c.b16 %v1779, %v1778
        %v1909 = vpack.c.b16 %v1781, %v1780
        %v1910 = vpack.c.b16 %v1783, %v1782
        %v1911 = vpack.c.b16 %v1785, %v1784
        %v1912 = vpack.c.b16 %v1787, %v1786
        %v1913 = vpack.c.b16 %v1789, %v1788
        %v1914 = vpack.c.b16 %v1791, %v1790
        %v1915 = vpack.c.b16 %v1793, %v1792
        %v1916 = vpack.c.b16 %v1795, %v1794
        %v1917 = vpack.c.b16 %v1797, %v1796
        %v1918 = vpack.c.b16 %v1799, %v1798
        %v1919 = vpack.c.b16 %v1801, %v1800
        %v1920 = vpack.c.b16 %v1803, %v1802
        %v1921 = vpack.c.b16 %v1805, %v1804
        %v1922 = vpack.c.b16 %v1807, %v1806
        %v1923 = vpack.c.b16 %v1809, %v1808
        %v1924 = vpack.c.b16 %v1811, %v1810
        %v1925 = vpack.c.b16 %v1813, %v1812
        %v1926 = vpack.c.b16 %v1815, %v1814
        %v1927 = vpack.c.b16 %v1817, %v1816
        %v1928 = vpack.c.b16 %v1819, %v1818
        %v1929 = vpack.c.b16 %v1821, %v1820
        %v1930 = vpack.c.b16 %v1823, %v1822
        %v1931 = vpack.c.b16 %v1825, %v1824
        %v1932 = vpack.c.b16 %v1827, %v1826
        %v1933 = vpack.c.b16 %v1829, %v1828
        %v1934 = vpack.c.b16 %v1831, %v1830
        %v1935 = vpack.c.b16 %v1833, %v1832
        %v1936 = vpack.c.b16 %v1835, %v1834
        %v1937 = vpack.c.b16 %v1837, %v1836
        %v1938 = vpack.c.b16 %v1839, %v1838
        %v1939 = vpack.c.b16 %v1841, %v1840
        %v1940 = vpack.c.b16 %v1843, %v1842
        %v1941 = vpack.c.b16 %v1845, %v1844
        %v1942 = vpack.c.b16 %v1847, %v1846
        %v1943 = vpack.c.b16 %v1849, %v1848
        %v1944 = vpack.c.b16 %v1851, %v1850
        %v1945 = vpack.c.b16 %v1853, %v1852
        %v1946 = vpack.c.b16 %v1855, %v1854
        %v1947 = vpack.c.b16 %v1857, %v1856
        %v1948 = vpack.c.b16 %v1859, %v1858
        %v1949 = vpack.c.b16 %v1861, %v1860
        %v1950 = vpack.c.b16 %v1863, %v1862
        %v1951 = vpack.c.b16 %v1865, %v1864
        %v1952 = vpack.c.b16 %v1867, %v1866
        %v1953 = vpack.c.b16 %v1869, %v1868
        %v1954 = vpack.c.b16 %v1871, %v1870
        %v1955 = vpack.c.b16 %v1873, %v1872
        %v1956 = vpack.c.b16 %v1875, %v1874
        %v1957 = vpack.c.b16 %v1877, %v1876
        %v1958 = vpack.c.b16 %v1879, %v1878
        %v1959 = vpack.c.b16 %v1881, %v1880
        %v1960 = vpack.c.b16 %v1883, %v1882
        %v1961 = vpack.c.b16 %v1885, %v1884
        %v1962 = vpack.c.b16 %v1887, %v1886
        %v1963 = vpack.c.b16 %v1889, %v1888
        %v1964 = vpack.c.b16 %v1891, %v1890
        %v1965 = vpack.c.b16 %v1893, %v1892
        %2038 = vmatprep.subr.bf16.mxu0 0
        %2039 = vmatpush1.bf16.msra.mxu0 %v1901
        %2040 = vmatprep.subr.bf16.mxu0 0
        %2041 = vmatpush1.bf16.msra.mxu0 %v1900
        %2042 = vmatprep.subr.bf16.mxu0 0
        %2043 = vmatpush1.bf16.msra.mxu0 %v1899
        %2044 = vmatprep.subr.bf16.mxu0 0
        %2045 = vmatpush1.bf16.msra.mxu0 %v1898
        %2046 = vmatprep.subr.bf16.mxu0 0
        %2047 = vmatpush1.bf16.msra.mxu0 %v1897
        %2048 = vmatprep.subr.bf16.mxu0 0
        %2049 = vmatpush1.bf16.msra.mxu0 %v1896
        %2050 = vmatprep.subr.bf16.mxu0 0
        %2051 = vmatpush1.bf16.msra.mxu0 %v1895
        %2052 = vmatprep.subr.bf16.mxu0 0
        %2053 = vmatpush1.bf16.msra.mxu0 %v1894
        %2054 = vmatprep.subr.bf16.mxu0 0
        %2055 = vmatpush2.bf16.msra.mxu0 %v1909
        %2056 = vmatprep.subr.bf16.mxu0 0
        %2057 = vmatpush2.bf16.msra.mxu0 %v1908
        %2058 = vmatprep.subr.bf16.mxu0 0
        %2059 = vmatpush2.bf16.msra.mxu0 %v1907
        %2060 = vmatprep.subr.bf16.mxu0 0
        %2061 = vmatpush2.bf16.msra.mxu0 %v1906
        %2062 = vmatprep.subr.bf16.mxu0 0
        %2063 = vmatpush2.bf16.msra.mxu0 %v1905
        %2064 = vmatprep.subr.bf16.mxu0 0
        %2065 = vmatpush2.bf16.msra.mxu0 %v1904
        %2066 = vmatprep.subr.bf16.mxu0 0
        %2067 = vmatpush2.bf16.msra.mxu0 %v1903
        %2068 = vmatprep.subr.bf16.mxu0 0
        %2069 = vmatpush2.bf16.msra.mxu0 %v1902
        %2070 = vmatprep.mubr.bf16.mxu0 %v1370
        %2071 = vmatmul.mubr.bf16.gmra.mxu0 %v1352
        %v2072 = vpop.f32.mrf.mxu0
        %v2073 = vadd.f32 0.0, %v2072
        %v2074 = vpop.f32.mrf.mxu0
        %v2075 = vpop.f32.mrf.mxu0
        %v2076 = vadd.f32 0.0, %v2075
        %v2077 = vpop.f32.mrf.mxu0
        %2078 = vmatprep.mubr.bf16.mxu0 %v1373
        %2079 = vmatmul.mubr.bf16.gmra.mxu0 %v1353
        %v2080 = vpop.f32.mrf.mxu0
        %v2081 = vadd.f32 0.0, %v2080
        %v2082 = vpop.f32.mrf.mxu0
        %v2083 = vpop.f32.mrf.mxu0
        %v2084 = vpop.f32.mrf.mxu0
        %2085 = vdwg.mxu0
        %2086 = vmatprep.subr.bf16.mxu0 0
        %2087 = vmatpush1.bf16.msra.mxu0 %v1917
        %2088 = vmatprep.subr.bf16.mxu0 0
        %2089 = vmatpush1.bf16.msra.mxu0 %v1916
        %2090 = vmatprep.subr.bf16.mxu0 0
        %2091 = vmatpush1.bf16.msra.mxu0 %v1915
        %2092 = vmatprep.subr.bf16.mxu0 0
        %2093 = vmatpush1.bf16.msra.mxu0 %v1914
        %2094 = vmatprep.subr.bf16.mxu0 0
        %2095 = vmatpush1.bf16.msra.mxu0 %v1913
        %2096 = vmatprep.subr.bf16.mxu0 0
        %2097 = vmatpush1.bf16.msra.mxu0 %v1912
        %2098 = vmatprep.subr.bf16.mxu0 0
        %2099 = vmatpush1.bf16.msra.mxu0 %v1911
        %2100 = vmatprep.subr.bf16.mxu0 0
        %2101 = vmatpush1.bf16.msra.mxu0 %v1910
        %2102 = vmatprep.subr.bf16.mxu0 0
        %2103 = vmatpush2.bf16.msra.mxu0 %v1925
        %2104 = vmatprep.subr.bf16.mxu0 0
        %2105 = vmatpush2.bf16.msra.mxu0 %v1924
        %2106 = vmatprep.subr.bf16.mxu0 0
        %2107 = vmatpush2.bf16.msra.mxu0 %v1923
        %2108 = vmatprep.subr.bf16.mxu0 0
        %2109 = vmatpush2.bf16.msra.mxu0 %v1922
        %2110 = vmatprep.subr.bf16.mxu0 0
        %2111 = vmatpush2.bf16.msra.mxu0 %v1921
        %2112 = vmatprep.subr.bf16.mxu0 0
        %2113 = vmatpush2.bf16.msra.mxu0 %v1920
        %2114 = vmatprep.subr.bf16.mxu0 0
        %2115 = vmatpush2.bf16.msra.mxu0 %v1919
        %2116 = vmatprep.subr.bf16.mxu0 0
        %2117 = vmatpush2.bf16.msra.mxu0 %v1918
        %2118 = vmatprep.mubr.bf16.mxu0 %v1392
        %2119 = vmatmul.mubr.bf16.gmra.mxu0 %v1381
        %v2120 = vpop.f32.mrf.mxu0
        %v2121 = vadd.f32 %v2073, %v2120
        %v2122 = vpop.f32.mrf.mxu0
        %v2123 = vpop.f32.mrf.mxu0
        %v2124 = vadd.f32 %v2076, %v2123
        %v2125 = vpop.f32.mrf.mxu0
        %2126 = vmatprep.mubr.bf16.mxu0 %v1391
        %2127 = vmatmul.mubr.bf16.gmra.mxu0 %v1380
        %v2128 = vpop.f32.mrf.mxu0
        %v2129 = vadd.f32 %v2081, %v2128
        %v2130 = vpop.f32.mrf.mxu0
        %v2131 = vpop.f32.mrf.mxu0
        %v2132 = vpop.f32.mrf.mxu0
        %2133 = vdwg.mxu0
        %2134 = vmatprep.subr.bf16.mxu0 0
        %2135 = vmatpush1.bf16.msra.mxu0 %v1933
        %2136 = vmatprep.subr.bf16.mxu0 0
        %2137 = vmatpush1.bf16.msra.mxu0 %v1932
        %2138 = vmatprep.subr.bf16.mxu0 0
        %2139 = vmatpush1.bf16.msra.mxu0 %v1931
        %2140 = vmatprep.subr.bf16.mxu0 0
        %2141 = vmatpush1.bf16.msra.mxu0 %v1930
        %2142 = vmatprep.subr.bf16.mxu0 0
        %2143 = vmatpush1.bf16.msra.mxu0 %v1929
        %2144 = vmatprep.subr.bf16.mxu0 0
        %2145 = vmatpush1.bf16.msra.mxu0 %v1928
        %2146 = vmatprep.subr.bf16.mxu0 0
        %2147 = vmatpush1.bf16.msra.mxu0 %v1927
        %2148 = vmatprep.subr.bf16.mxu0 0
        %2149 = vmatpush1.bf16.msra.mxu0 %v1926
        %2150 = vmatprep.subr.bf16.mxu0 0
        %2151 = vmatpush2.bf16.msra.mxu0 %v1941
        %2152 = vmatprep.subr.bf16.mxu0 0
        %2153 = vmatpush2.bf16.msra.mxu0 %v1940
        %2154 = vmatprep.subr.bf16.mxu0 0
        %2155 = vmatpush2.bf16.msra.mxu0 %v1939
        %2156 = vmatprep.subr.bf16.mxu0 0
        %2157 = vmatpush2.bf16.msra.mxu0 %v1938
        %2158 = vmatprep.subr.bf16.mxu0 0
        %2159 = vmatpush2.bf16.msra.mxu0 %v1937
        %2160 = vmatprep.subr.bf16.mxu0 0
        %2161 = vmatpush2.bf16.msra.mxu0 %v1936
        %2162 = vmatprep.subr.bf16.mxu0 0
        %2163 = vmatpush2.bf16.msra.mxu0 %v1935
        %2164 = vmatprep.subr.bf16.mxu0 0
        %2165 = vmatpush2.bf16.msra.mxu0 %v1934
        %2166 = vmatprep.mubr.bf16.mxu0 %v1417
        %2167 = vmatmul.mubr.bf16.gmra.mxu0 %v1414
        %v2168 = vpop.f32.mrf.mxu0
        %v2169 = vadd.f32 %v2121, %v2168
        %v2170 = vpop.f32.mrf.mxu0
        %v2171 = vpop.f32.mrf.mxu0
        %v2172 = vadd.f32 %v2124, %v2171
        %v2173 = vpop.f32.mrf.mxu0
        %2174 = vmatprep.mubr.bf16.mxu0 %v1418
        %2175 = vmatmul.mubr.bf16.gmra.mxu0 %v1413
        %v2176 = vpop.f32.mrf.mxu0
        %v2177 = vadd.f32 %v2129, %v2176
        %v2178 = vpop.f32.mrf.mxu0
        %v2179 = vpop.f32.mrf.mxu0
        %v2180 = vpop.f32.mrf.mxu0
        %2181 = vdwg.mxu0
        %2182 = vmatprep.subr.bf16.mxu0 0
        %2183 = vmatpush1.bf16.msra.mxu0 %v1949
        %2184 = vmatprep.subr.bf16.mxu0 0
        %2185 = vmatpush1.bf16.msra.mxu0 %v1948
        %2186 = vmatprep.subr.bf16.mxu0 0
        %2187 = vmatpush1.bf16.msra.mxu0 %v1947
        %2188 = vmatprep.subr.bf16.mxu0 0
        %2189 = vmatpush1.bf16.msra.mxu0 %v1946
        %2190 = vmatprep.subr.bf16.mxu0 0
        %2191 = vmatpush1.bf16.msra.mxu0 %v1945
        %2192 = vmatprep.subr.bf16.mxu0 0
        %2193 = vmatpush1.bf16.msra.mxu0 %v1944
        %2194 = vmatprep.subr.bf16.mxu0 0
        %2195 = vmatpush1.bf16.msra.mxu0 %v1943
        %2196 = vmatprep.subr.bf16.mxu0 0
        %2197 = vmatpush1.bf16.msra.mxu0 %v1942
        %2198 = vmatprep.subr.bf16.mxu0 0
        %2199 = vmatpush2.bf16.msra.mxu0 %v1957
        %2200 = vmatprep.subr.bf16.mxu0 0
        %2201 = vmatpush2.bf16.msra.mxu0 %v1956
        %2202 = vmatprep.subr.bf16.mxu0 0
        %2203 = vmatpush2.bf16.msra.mxu0 %v1955
        %2204 = vmatprep.subr.bf16.mxu0 0
        %2205 = vmatpush2.bf16.msra.mxu0 %v1954
        %2206 = vmatprep.subr.bf16.mxu0 0
        %2207 = vmatpush2.bf16.msra.mxu0 %v1953
        %2208 = vmatprep.subr.bf16.mxu0 0
        %2209 = vmatpush2.bf16.msra.mxu0 %v1952
        %2210 = vmatprep.subr.bf16.mxu0 0
        %2211 = vmatpush2.bf16.msra.mxu0 %v1951
        %2212 = vmatprep.subr.bf16.mxu0 0
        %2213 = vmatpush2.bf16.msra.mxu0 %v1950
        %2214 = vmatprep.mubr.bf16.mxu0 %v1451
        %2215 = vmatmul.mubr.bf16.gmra.mxu0 %v1429
        %v2216 = vpop.f32.mrf.mxu0
        %v2217 = vadd.f32 %v2169, %v2216
        %v2218 = vpop.f32.mrf.mxu0
        %v2219 = vpop.f32.mrf.mxu0
        %v2220 = vadd.f32 %v2172, %v2219
        %v2221 = vpop.f32.mrf.mxu0
        %2222 = vmatprep.mubr.bf16.mxu0 %v1450
        %2223 = vmatmul.mubr.bf16.gmra.mxu0 %v1428
        %v2224 = vpop.f32.mrf.mxu0
        %v2225 = vadd.f32 %v2177, %v2224
        %v2226 = vpop.f32.mrf.mxu0
        %v2227 = vpop.f32.mrf.mxu0
        %v2228 = vpop.f32.mrf.mxu0
        %2229 = vdwg.mxu0
        %2230 = vmatprep.subr.bf16.mxu0 0
        %2231 = vmatpush1.bf16.msra.mxu0 %v1965
        %2232 = vmatprep.subr.bf16.mxu0 0
        %2233 = vmatpush1.bf16.msra.mxu0 %v1964
        %2234 = vmatprep.subr.bf16.mxu0 0
        %2235 = vmatpush1.bf16.msra.mxu0 %v1963
        %2236 = vmatprep.subr.bf16.mxu0 0
        %2237 = vmatpush1.bf16.msra.mxu0 %v1962
        %2238 = vmatprep.subr.bf16.mxu0 0
        %2239 = vmatpush1.bf16.msra.mxu0 %v1961
        %2240 = vmatprep.subr.bf16.mxu0 0
        %2241 = vmatpush1.bf16.msra.mxu0 %v1960
        %2242 = vmatprep.subr.bf16.mxu0 0
        %2243 = vmatpush1.bf16.msra.mxu0 %v1959
        %2244 = vmatprep.subr.bf16.mxu0 0
        %2245 = vmatpush1.bf16.msra.mxu0 %v1958
        %2246 = vmatprep.subr.bf16.mxu0 0
        %2247 = vmatpush2.bf16.msra.mxu0 0
        %2248 = vmatprep.subr.bf16.mxu0 0
        %2249 = vmatpush2.bf16.msra.mxu0 0
        %2250 = vmatprep.subr.bf16.mxu0 0
        %2251 = vmatpush2.bf16.msra.mxu0 0
        %2252 = vmatprep.subr.bf16.mxu0 0
        %2253 = vmatpush2.bf16.msra.mxu0 0
        %2254 = vmatprep.subr.bf16.mxu0 0
        %2255 = vmatpush2.bf16.msra.mxu0 0
        %2256 = vmatprep.subr.bf16.mxu0 0
        %2257 = vmatpush2.bf16.msra.mxu0 0
        %2258 = vmatprep.subr.bf16.mxu0 0
        %2259 = vmatpush2.bf16.msra.mxu0 0
        %2260 = vmatprep.subr.bf16.mxu0 0
        %2261 = vmatpush2.bf16.msra.mxu0 0
        %2262 = vmatprep.mubr.bf16.mxu0 0
        %2263 = vmatmul.mubr.bf16.gmra.mxu0 %v1459
        %v2264 = vpop.f32.mrf.mxu0
        %v2265 = vadd.f32 %v2217, %v2264
        %v2266 = vpop.f32.mrf.mxu0
        %v2267 = vpop.f32.mrf.mxu0
        %v2268 = vadd.f32 %v2220, %v2267
        %v2269 = vpop.f32.mrf.mxu0
        %2270 = vmatprep.mubr.bf16.mxu0 0
        %2271 = vmatmul.mubr.bf16.gmra.mxu0 %v1458
        %v2272 = vpop.f32.mrf.mxu0
        %v2273 = vadd.f32 %v2225, %v2272
        %v2274 = vpop.f32.mrf.mxu0
        %v2275 = vpop.f32.mrf.mxu0
        %v2276 = vpop.f32.mrf.mxu0
        %2277 = vdwg.mxu0
        %v2278 = vadd.f32 %v1331, %v2265
        %v2279 = vadd.f32 %v1332, %v2268
        %v2280 = vadd.f32 %v1333, %v2273
        %2281 = vst.msk [vmem:[#allocation2] sm:$0xff] %vm1323, %v2278
        %2282 = vst.msk [vmem:[#allocation2 + $0x8] sm:$0xff] %vm1323, %v2279
        %2283 = vst.msk [vmem:[#allocation2 + $0x10] sm:$0xff] %vm1323, %v2280
      $region44: #{forward.6} parent=39 // pred_fallthru
        _
      %p2284 = scmp.lt.s32.totalorder %s21, 3
      // Predicated region
      $region45: #{forward.6} parent=39 // pred_check
        %p2285 = pneg %p2284
      $region46: #{forward.6} parent=39 // pred_check_branch
        %2287 = sbr.rel (%p2285) target = $region48
      $region47: #{forward.6} parent=39 // pred_region
        %v2288 = vld [vmem:[#allocation2] sm:$0xff]
        %v2289 = vld [vmem:[#allocation2 + $0x8] sm:$0xff]
        %v2290 = vld [vmem:[#allocation2 + $0x10] sm:$0xff]
        %v2291 = vld [vmem:[%s358] sm:$0xf]
        %v2292 = vld [vmem:[%s358 + $0x4] sm:$0xf]
        %v2293 = vld [vmem:[%s358 + $0x8] sm:$0xf]
        %v2294 = vld [vmem:[%s358 + $0xc] sm:$0x1]
        %v2295 = vld [vmem:[%s358] sm:$0xe]
        %v2296 = vld [vmem:[%s358] sm:$0x8]
        %v2297 = vld [vmem:[%s358 + $0xc] sm:$0x7]
        %v2298 = vld [vmem:[%s358 + $0xc] sm:$0xf]
        %v2299 = vld [vmem:[%s358 + $0x4] sm:$0xc]
        %v2300 = vld [vmem:[%s358 + $0x10] sm:$0x3]
        %v2301 = vld [vmem:[%s358 + $0x10] sm:$0x7]
        %v2302 = vld [vmem:[%s358 + $0x4] sm:$0x8]
        %v2306 = vunpack.c.l.b16 %v2291
        %v2307 = vunpack.c.l.b16 %v2292
        %v2308 = vunpack.c.l.b16 %v2293
        %v2309 = vpack.c.b16 %v2307, %v2306
        %v2310 = vpack.c.b16 %v2308, %v2308
        %v2314 = vunpack.c.l.b16 %v2294
        %v2315 = vpack.c.b16 %v2314, %v2308
        %v2317 = vshrl.u32 %v2309, 16
        %v2319 = vshll.u32 %v2309, 16
        %v2321 = vrot.slane %v2319, 1
        %v2322 = vor.u32 %v2317, %v2321
        %v2324 = vshll.u32 %v2315, 16
        %v2326 = vrot.slane %v2324, 1
        %v2327 = vsel %vm397, %v2322, %v2326
        %v2328 = vshrl.u32 %v2315, 16
        %v2330 = vor.u32 %v2328, %v2326
        %v2334 = vunpack.c.l.b16 %v2295
        %v2335 = vpack.c.b16 %v2307, %v2334
        %v2336 = vrot.slane %v2335, 1
        %v2337 = vrot.slane %v2315, 1
        %v2338 = vsel %vm418, %v2336, %v2337
        %v2343 = vunpack.c.l.b16 %v2296
        %v2344 = vunpack.c.l.b16 %v2297
        %v2345 = vpack.c.b16 %v2307, %v2343
        %v2346 = vpack.c.b16 %v2344, %v2308
        %v2347 = vrot.slane %v2345, 3
        %v2348 = vrot.slane %v2346, 3
        %v2349 = vsel %vm430, %v2347, %v2348
        %v2353 = vunpack.c.l.b16 %v2298
        %v2354 = vpack.c.b16 %v2353, %v2308
        %v2356 = vshrl.u32 %v2345, 16
        %v2358 = vrot.slane %v2356, 3
        %v2359 = vshll.u32 %v2345, 16
        %v2361 = vrot.slane %v2359, 4
        %v2362 = vor.u32 %v2358, %v2361
        %v2364 = vshrl.u32 %v2354, 16
        %v2366 = vrot.slane %v2364, 3
        %v2367 = vshll.u32 %v2354, 16
        %v2369 = vrot.slane %v2367, 4
        %v2370 = vor.u32 %v2366, %v2369
        %v2371 = vsel %vm439, %v2362, %v2370
        %v2374 = vpack.c.b16 %v2308, %v2307
        %v2375 = vpack.c.b16 %v2353, %v2353
        %v2380 = vunpack.c.l.b16 %v2299
        %v2381 = vunpack.c.l.b16 %v2300
        %v2382 = vpack.c.b16 %v2308, %v2380
        %v2383 = vpack.c.b16 %v2381, %v2353
        %v2384 = vrot.slane %v2382, 2
        %v2385 = vrot.slane %v2383, 2
        %v2386 = vsel %vm469, %v2384, %v2385
        %v2390 = vunpack.c.l.b16 %v2301
        %v2391 = vpack.c.b16 %v2390, %v2353
        %v2393 = vshrl.u32 %v2382, 16
        %v2395 = vrot.slane %v2393, 2
        %v2396 = vshll.u32 %v2382, 16
        %v2398 = vrot.slane %v2396, 3
        %v2399 = vor.u32 %v2395, %v2398
        %v2401 = vshrl.u32 %v2391, 16
        %v2403 = vrot.slane %v2401, 2
        %v2404 = vshll.u32 %v2391, 16
        %v2406 = vrot.slane %v2404, 3
        %v2407 = vor.u32 %v2403, %v2406
        %v2408 = vsel %vm478, %v2399, %v2407
        %v2412 = vunpack.c.l.b16 %v2302
        %v2413 = vpack.c.b16 %v2308, %v2412
        %v2414 = vrot.slane %v2413, 3
        %v2415 = vrot.slane %v2391, 3
        %v2416 = vsel %vm430, %v2414, %v2415
        %s2419 = scalar_lea.vmem %s3, 1152
        %v2420 = vld [vmem:[%s2419] sm:$0xf]
        %v2421 = vld [vmem:[%s2419 + $0x4] sm:$0xf]
        %v2422 = vld [vmem:[%s2419 + $0x8] sm:$0xf]
        %v2423 = vld [vmem:[%s2419 + $0xc] sm:$0xf]
        %v2424 = vld [vmem:[%s2419 + $0x10] sm:$0xf]
        %v2425 = vld [vmem:[%s2419 + $0x14] sm:$0xf]
        %v2426 = vld [vmem:[%s2419 + $0x18] sm:$0xf]
        %v2427 = vld [vmem:[%s2419 + $0x1c] sm:$0xf]
        %v2428 = vld [vmem:[%s2419 + $0x20] sm:$0xf]
        %v2429 = vld [vmem:[%s2419 + $0x24] sm:$0xf]
        %v2430 = vld [vmem:[%s2419 + $0x28] sm:$0xf]
        %v2431 = vld [vmem:[%s2419 + $0x2c] sm:$0xf]
        %v2432 = vld [vmem:[%s2419 + $0x30] sm:$0xf]
        %v2433 = vld [vmem:[%s2419 + $0x34] sm:$0xf]
        %v2434 = vld [vmem:[%s2419 + $0x38] sm:$0xf]
        %v2435 = vld [vmem:[%s2419 + $0x3c] sm:$0xf]
        %v2436 = vld [vmem:[%s2419 + $0x40] sm:$0xf]
        %v2437 = vld [vmem:[%s2419 + $0x44] sm:$0xf]
        %v2438 = vld [vmem:[%s2419 + $0x48] sm:$0xf]
        %v2439 = vld [vmem:[%s2419 + $0x4c] sm:$0xf]
        %v2440 = vld [vmem:[%s2419 + $0x50] sm:$0xf]
        %v2441 = vld [vmem:[%s2419 + $0x54] sm:$0xf]
        %v2442 = vld [vmem:[%s2419 + $0x58] sm:$0xf]
        %v2443 = vld [vmem:[%s2419 + $0x5c] sm:$0xf]
        %v2444 = vld [vmem:[%s2419 + $0x60] sm:$0xf]
        %v2445 = vld [vmem:[%s2419 + $0x64] sm:$0xf]
        %v2446 = vld [vmem:[%s2419 + $0x68] sm:$0xf]
        %v2447 = vld [vmem:[%s2419 + $0x6c] sm:$0xf]
        %v2448 = vld [vmem:[%s2419 + $0x70] sm:$0xf]
        %v2449 = vld [vmem:[%s2419 + $0x74] sm:$0xf]
        %v2450 = vld [vmem:[%s2419 + $0x78] sm:$0xf]
        %v2451 = vld [vmem:[%s2419 + $0x7c] sm:$0xf]
        %v2452 = vld [vmem:[%s2419 + $0x80] sm:$0xf]
        %v2453 = vld [vmem:[%s2419 + $0x84] sm:$0xf]
        %v2454 = vld [vmem:[%s2419 + $0x88] sm:$0xf]
        %v2455 = vld [vmem:[%s2419 + $0x8c] sm:$0xf]
        %v2456 = vld [vmem:[%s2419 + $0x90] sm:$0xf]
        %v2457 = vld [vmem:[%s2419 + $0x94] sm:$0xf]
        %v2458 = vld [vmem:[%s2419 + $0x98] sm:$0xf]
        %v2459 = vld [vmem:[%s2419 + $0x9c] sm:$0xf]
        %v2460 = vld [vmem:[%s2419 + $0xa0] sm:$0xf]
        %v2461 = vld [vmem:[%s2419 + $0xa4] sm:$0xf]
        %v2462 = vld [vmem:[%s2419 + $0xa8] sm:$0xf]
        %v2463 = vld [vmem:[%s2419 + $0xac] sm:$0xf]
        %v2464 = vld [vmem:[%s2419 + $0xb0] sm:$0xf]
        %v2465 = vld [vmem:[%s2419 + $0xb4] sm:$0xf]
        %v2466 = vld [vmem:[%s2419 + $0xb8] sm:$0xf]
        %v2467 = vld [vmem:[%s2419 + $0xbc] sm:$0xf]
        %v2468 = vld [vmem:[%s2419 + $0xc0] sm:$0xf]
        %v2469 = vld [vmem:[%s2419 + $0xc4] sm:$0xf]
        %v2470 = vld [vmem:[%s2419 + $0xc8] sm:$0xf]
        %v2471 = vld [vmem:[%s2419 + $0xcc] sm:$0xf]
        %v2472 = vld [vmem:[%s2419 + $0xd0] sm:$0xf]
        %v2473 = vld [vmem:[%s2419 + $0xd4] sm:$0xf]
        %v2474 = vld [vmem:[%s2419 + $0xd8] sm:$0xf]
        %v2475 = vld [vmem:[%s2419 + $0xdc] sm:$0xf]
        %v2476 = vld [vmem:[%s2419 + $0xe0] sm:$0xf]
        %v2477 = vld [vmem:[%s2419 + $0xe4] sm:$0xf]
        %v2478 = vld [vmem:[%s2419 + $0xe8] sm:$0xf]
        %v2479 = vld [vmem:[%s2419 + $0xec] sm:$0xf]
        %v2480 = vld [vmem:[%s2419 + $0xf0] sm:$0xf]
        %v2481 = vld [vmem:[%s2419 + $0xf4] sm:$0xf]
        %v2482 = vld [vmem:[%s2419 + $0xf8] sm:$0xf]
        %v2483 = vld [vmem:[%s2419 + $0xfc] sm:$0xf]
        %v2484 = vld [vmem:[%s2419 + $0x100] sm:$0xf]
        %v2485 = vld [vmem:[%s2419 + $0x104] sm:$0xf]
        %v2486 = vld [vmem:[%s2419 + $0x108] sm:$0xf]
        %v2487 = vld [vmem:[%s2419 + $0x10c] sm:$0xf]
        %v2488 = vld [vmem:[%s2419 + $0x110] sm:$0xf]
        %v2489 = vld [vmem:[%s2419 + $0x114] sm:$0xf]
        %v2490 = vld [vmem:[%s2419 + $0x118] sm:$0xf]
        %v2491 = vld [vmem:[%s2419 + $0x11c] sm:$0xf]
        %v2492 = vld [vmem:[%s2419 + $0x120] sm:$0xf]
        %v2493 = vld [vmem:[%s2419 + $0x124] sm:$0xf]
        %v2494 = vld [vmem:[%s2419 + $0x128] sm:$0xf]
        %v2495 = vld [vmem:[%s2419 + $0x12c] sm:$0xf]
        %v2496 = vld [vmem:[%s2419 + $0x130] sm:$0xf]
        %v2497 = vld [vmem:[%s2419 + $0x134] sm:$0xf]
        %v2498 = vld [vmem:[%s2419 + $0x138] sm:$0xf]
        %v2499 = vld [vmem:[%s2419 + $0x13c] sm:$0xf]
        %v2500 = vld [vmem:[%s2419 + $0x140] sm:$0xf]
        %v2501 = vld [vmem:[%s2419 + $0x144] sm:$0xf]
        %v2502 = vld [vmem:[%s2419 + $0x148] sm:$0xf]
        %v2503 = vld [vmem:[%s2419 + $0x14c] sm:$0xf]
        %v2504 = vld [vmem:[%s2419 + $0x150] sm:$0xf]
        %v2505 = vld [vmem:[%s2419 + $0x154] sm:$0xf]
        %v2506 = vld [vmem:[%s2419 + $0x158] sm:$0xf]
        %v2507 = vld [vmem:[%s2419 + $0x15c] sm:$0xf]
        %v2508 = vld [vmem:[%s2419 + $0x160] sm:$0xf]
        %v2509 = vld [vmem:[%s2419 + $0x164] sm:$0xf]
        %v2510 = vld [vmem:[%s2419 + $0x168] sm:$0xf]
        %v2511 = vld [vmem:[%s2419 + $0x16c] sm:$0xf]
        %v2512 = vld [vmem:[%s2419 + $0x170] sm:$0xf]
        %v2513 = vld [vmem:[%s2419 + $0x174] sm:$0xf]
        %v2514 = vld [vmem:[%s2419 + $0x178] sm:$0xf]
        %v2515 = vld [vmem:[%s2419 + $0x17c] sm:$0xf]
        %v2516 = vld [vmem:[%s2419 + $0x180] sm:$0xf]
        %v2517 = vld [vmem:[%s2419 + $0x184] sm:$0xf]
        %v2518 = vld [vmem:[%s2419 + $0x188] sm:$0xf]
        %v2519 = vld [vmem:[%s2419 + $0x18c] sm:$0xf]
        %v2520 = vld [vmem:[%s2419 + $0x190] sm:$0xf]
        %v2521 = vld [vmem:[%s2419 + $0x194] sm:$0xf]
        %v2522 = vld [vmem:[%s2419 + $0x198] sm:$0xf]
        %v2523 = vld [vmem:[%s2419 + $0x19c] sm:$0xf]
        %v2524 = vld [vmem:[%s2419 + $0x1a0] sm:$0xf]
        %v2525 = vld [vmem:[%s2419 + $0x1a4] sm:$0xf]
        %v2526 = vld [vmem:[%s2419 + $0x1a8] sm:$0xf]
        %v2527 = vld [vmem:[%s2419 + $0x1ac] sm:$0xf]
        %v2528 = vld [vmem:[%s2419 + $0x1b0] sm:$0xf]
        %v2529 = vld [vmem:[%s2419 + $0x1b4] sm:$0xf]
        %v2530 = vld [vmem:[%s2419 + $0x1b8] sm:$0xf]
        %v2531 = vld [vmem:[%s2419 + $0x1bc] sm:$0xf]
        %v2532 = vld [vmem:[%s2419 + $0x1c0] sm:$0xf]
        %v2533 = vld [vmem:[%s2419 + $0x1c4] sm:$0xf]
        %v2534 = vld [vmem:[%s2419 + $0x1c8] sm:$0xf]
        %v2535 = vld [vmem:[%s2419 + $0x1cc] sm:$0xf]
        %v2536 = vld [vmem:[%s2419 + $0x1d0] sm:$0xf]
        %v2537 = vld [vmem:[%s2419 + $0x1d4] sm:$0xf]
        %v2538 = vld [vmem:[%s2419 + $0x1d8] sm:$0xf]
        %v2539 = vld [vmem:[%s2419 + $0x1dc] sm:$0xf]
        %v2540 = vld [vmem:[%s2419 + $0x1e0] sm:$0xf]
        %v2541 = vld [vmem:[%s2419 + $0x1e4] sm:$0xf]
        %v2542 = vld [vmem:[%s2419 + $0x1e8] sm:$0xf]
        %v2543 = vld [vmem:[%s2419 + $0x1ec] sm:$0xf]
        %v2544 = vld [vmem:[%s2419 + $0x1f0] sm:$0xf]
        %v2545 = vld [vmem:[%s2419 + $0x1f4] sm:$0xf]
        %v2546 = vld [vmem:[%s2419 + $0x1f8] sm:$0xf]
        %v2547 = vld [vmem:[%s2419 + $0x1fc] sm:$0xf]
        %v2548 = vld [vmem:[%s2419 + $0x200] sm:$0xf]
        %v2549 = vld [vmem:[%s2419 + $0x204] sm:$0xf]
        %v2550 = vld [vmem:[%s2419 + $0x208] sm:$0xf]
        %v2551 = vld [vmem:[%s2419 + $0x20c] sm:$0xf]
        %v2552 = vld [vmem:[%s2419 + $0x210] sm:$0xf]
        %v2553 = vld [vmem:[%s2419 + $0x214] sm:$0xf]
        %v2554 = vld [vmem:[%s2419 + $0x218] sm:$0xf]
        %v2555 = vld [vmem:[%s2419 + $0x21c] sm:$0xf]
        %v2556 = vld [vmem:[%s2419 + $0x220] sm:$0xf]
        %v2557 = vld [vmem:[%s2419 + $0x224] sm:$0xf]
        %v2558 = vld [vmem:[%s2419 + $0x228] sm:$0xf]
        %v2559 = vld [vmem:[%s2419 + $0x22c] sm:$0xf]
        %v2560 = vld [vmem:[%s2419 + $0x230] sm:$0xf]
        %v2561 = vld [vmem:[%s2419 + $0x234] sm:$0xf]
        %v2562 = vld [vmem:[%s2419 + $0x238] sm:$0xf]
        %v2563 = vld [vmem:[%s2419 + $0x23c] sm:$0xf]
        %v2708 = vunpack.c.l.b16 %v2420
        %v2709 = vunpack.c.l.b16 %v2421
        %v2710 = vunpack.c.l.b16 %v2422
        %v2711 = vunpack.c.l.b16 %v2423
        %v2712 = vunpack.c.l.b16 %v2424
        %v2713 = vunpack.c.l.b16 %v2425
        %v2714 = vunpack.c.l.b16 %v2426
        %v2715 = vunpack.c.l.b16 %v2427
        %v2716 = vunpack.c.l.b16 %v2428
        %v2717 = vunpack.c.l.b16 %v2429
        %v2718 = vunpack.c.l.b16 %v2430
        %v2719 = vunpack.c.l.b16 %v2431
        %v2720 = vunpack.c.l.b16 %v2432
        %v2721 = vunpack.c.l.b16 %v2433
        %v2722 = vunpack.c.l.b16 %v2434
        %v2723 = vunpack.c.l.b16 %v2435
        %v2724 = vunpack.c.l.b16 %v2436
        %v2725 = vunpack.c.l.b16 %v2437
        %v2726 = vunpack.c.l.b16 %v2438
        %v2727 = vunpack.c.l.b16 %v2439
        %v2728 = vunpack.c.l.b16 %v2440
        %v2729 = vunpack.c.l.b16 %v2441
        %v2730 = vunpack.c.l.b16 %v2442
        %v2731 = vunpack.c.l.b16 %v2443
        %v2732 = vunpack.c.l.b16 %v2444
        %v2733 = vunpack.c.l.b16 %v2445
        %v2734 = vunpack.c.l.b16 %v2446
        %v2735 = vunpack.c.l.b16 %v2447
        %v2736 = vunpack.c.l.b16 %v2448
        %v2737 = vunpack.c.l.b16 %v2449
        %v2738 = vunpack.c.l.b16 %v2450
        %v2739 = vunpack.c.l.b16 %v2451
        %v2740 = vunpack.c.l.b16 %v2452
        %v2741 = vunpack.c.l.b16 %v2453
        %v2742 = vunpack.c.l.b16 %v2454
        %v2743 = vunpack.c.l.b16 %v2455
        %v2744 = vunpack.c.l.b16 %v2456
        %v2745 = vunpack.c.l.b16 %v2457
        %v2746 = vunpack.c.l.b16 %v2458
        %v2747 = vunpack.c.l.b16 %v2459
        %v2748 = vunpack.c.l.b16 %v2460
        %v2749 = vunpack.c.l.b16 %v2461
        %v2750 = vunpack.c.l.b16 %v2462
        %v2751 = vunpack.c.l.b16 %v2463
        %v2752 = vunpack.c.l.b16 %v2464
        %v2753 = vunpack.c.l.b16 %v2465
        %v2754 = vunpack.c.l.b16 %v2466
        %v2755 = vunpack.c.l.b16 %v2467
        %v2756 = vunpack.c.l.b16 %v2468
        %v2757 = vunpack.c.l.b16 %v2469
        %v2758 = vunpack.c.l.b16 %v2470
        %v2759 = vunpack.c.l.b16 %v2471
        %v2760 = vunpack.c.l.b16 %v2472
        %v2761 = vunpack.c.l.b16 %v2473
        %v2762 = vunpack.c.l.b16 %v2474
        %v2763 = vunpack.c.l.b16 %v2475
        %v2764 = vunpack.c.l.b16 %v2476
        %v2765 = vunpack.c.l.b16 %v2477
        %v2766 = vunpack.c.l.b16 %v2478
        %v2767 = vunpack.c.l.b16 %v2479
        %v2768 = vunpack.c.l.b16 %v2480
        %v2769 = vunpack.c.l.b16 %v2481
        %v2770 = vunpack.c.l.b16 %v2482
        %v2771 = vunpack.c.l.b16 %v2483
        %v2772 = vunpack.c.l.b16 %v2484
        %v2773 = vunpack.c.l.b16 %v2485
        %v2774 = vunpack.c.l.b16 %v2486
        %v2775 = vunpack.c.l.b16 %v2487
        %v2776 = vunpack.c.l.b16 %v2488
        %v2777 = vunpack.c.l.b16 %v2489
        %v2778 = vunpack.c.l.b16 %v2490
        %v2779 = vunpack.c.l.b16 %v2491
        %v2780 = vunpack.c.l.b16 %v2492
        %v2781 = vunpack.c.l.b16 %v2493
        %v2782 = vunpack.c.l.b16 %v2494
        %v2783 = vunpack.c.l.b16 %v2495
        %v2784 = vunpack.c.l.b16 %v2496
        %v2785 = vunpack.c.l.b16 %v2497
        %v2786 = vunpack.c.l.b16 %v2498
        %v2787 = vunpack.c.l.b16 %v2499
        %v2788 = vunpack.c.l.b16 %v2500
        %v2789 = vunpack.c.l.b16 %v2501
        %v2790 = vunpack.c.l.b16 %v2502
        %v2791 = vunpack.c.l.b16 %v2503
        %v2792 = vunpack.c.l.b16 %v2504
        %v2793 = vunpack.c.l.b16 %v2505
        %v2794 = vunpack.c.l.b16 %v2506
        %v2795 = vunpack.c.l.b16 %v2507
        %v2796 = vunpack.c.l.b16 %v2508
        %v2797 = vunpack.c.l.b16 %v2509
        %v2798 = vunpack.c.l.b16 %v2510
        %v2799 = vunpack.c.l.b16 %v2511
        %v2800 = vunpack.c.l.b16 %v2512
        %v2801 = vunpack.c.l.b16 %v2513
        %v2802 = vunpack.c.l.b16 %v2514
        %v2803 = vunpack.c.l.b16 %v2515
        %v2804 = vunpack.c.l.b16 %v2516
        %v2805 = vunpack.c.l.b16 %v2517
        %v2806 = vunpack.c.l.b16 %v2518
        %v2807 = vunpack.c.l.b16 %v2519
        %v2808 = vunpack.c.l.b16 %v2520
        %v2809 = vunpack.c.l.b16 %v2521
        %v2810 = vunpack.c.l.b16 %v2522
        %v2811 = vunpack.c.l.b16 %v2523
        %v2812 = vunpack.c.l.b16 %v2524
        %v2813 = vunpack.c.l.b16 %v2525
        %v2814 = vunpack.c.l.b16 %v2526
        %v2815 = vunpack.c.l.b16 %v2527
        %v2816 = vunpack.c.l.b16 %v2528
        %v2817 = vunpack.c.l.b16 %v2529
        %v2818 = vunpack.c.l.b16 %v2530
        %v2819 = vunpack.c.l.b16 %v2531
        %v2820 = vunpack.c.l.b16 %v2532
        %v2821 = vunpack.c.l.b16 %v2533
        %v2822 = vunpack.c.l.b16 %v2534
        %v2823 = vunpack.c.l.b16 %v2535
        %v2824 = vunpack.c.l.b16 %v2536
        %v2825 = vunpack.c.l.b16 %v2537
        %v2826 = vunpack.c.l.b16 %v2538
        %v2827 = vunpack.c.l.b16 %v2539
        %v2828 = vunpack.c.l.b16 %v2540
        %v2829 = vunpack.c.l.b16 %v2541
        %v2830 = vunpack.c.l.b16 %v2542
        %v2831 = vunpack.c.l.b16 %v2543
        %v2832 = vunpack.c.l.b16 %v2544
        %v2833 = vunpack.c.l.b16 %v2545
        %v2834 = vunpack.c.l.b16 %v2546
        %v2835 = vunpack.c.l.b16 %v2547
        %v2836 = vunpack.c.l.b16 %v2548
        %v2837 = vunpack.c.l.b16 %v2549
        %v2838 = vunpack.c.l.b16 %v2550
        %v2839 = vunpack.c.l.b16 %v2551
        %v2840 = vunpack.c.l.b16 %v2552
        %v2841 = vunpack.c.l.b16 %v2553
        %v2842 = vunpack.c.l.b16 %v2554
        %v2843 = vunpack.c.l.b16 %v2555
        %v2844 = vunpack.c.l.b16 %v2556
        %v2845 = vunpack.c.l.b16 %v2557
        %v2846 = vunpack.c.l.b16 %v2558
        %v2847 = vunpack.c.l.b16 %v2559
        %v2848 = vunpack.c.l.b16 %v2560
        %v2849 = vunpack.c.l.b16 %v2561
        %v2850 = vunpack.c.l.b16 %v2562
        %v2851 = vunpack.c.l.b16 %v2563
        %v2852 = vpack.c.b16 %v2709, %v2708
        %v2853 = vpack.c.b16 %v2711, %v2710
        %v2854 = vpack.c.b16 %v2713, %v2712
        %v2855 = vpack.c.b16 %v2715, %v2714
        %v2856 = vpack.c.b16 %v2717, %v2716
        %v2857 = vpack.c.b16 %v2719, %v2718
        %v2858 = vpack.c.b16 %v2721, %v2720
        %v2859 = vpack.c.b16 %v2723, %v2722
        %v2860 = vpack.c.b16 %v2725, %v2724
        %v2861 = vpack.c.b16 %v2727, %v2726
        %v2862 = vpack.c.b16 %v2729, %v2728
        %v2863 = vpack.c.b16 %v2731, %v2730
        %v2864 = vpack.c.b16 %v2733, %v2732
        %v2865 = vpack.c.b16 %v2735, %v2734
        %v2866 = vpack.c.b16 %v2737, %v2736
        %v2867 = vpack.c.b16 %v2739, %v2738
        %v2868 = vpack.c.b16 %v2741, %v2740
        %v2869 = vpack.c.b16 %v2743, %v2742
        %v2870 = vpack.c.b16 %v2745, %v2744
        %v2871 = vpack.c.b16 %v2747, %v2746
        %v2872 = vpack.c.b16 %v2749, %v2748
        %v2873 = vpack.c.b16 %v2751, %v2750
        %v2874 = vpack.c.b16 %v2753, %v2752
        %v2875 = vpack.c.b16 %v2755, %v2754
        %v2876 = vpack.c.b16 %v2757, %v2756
        %v2877 = vpack.c.b16 %v2759, %v2758
        %v2878 = vpack.c.b16 %v2761, %v2760
        %v2879 = vpack.c.b16 %v2763, %v2762
        %v2880 = vpack.c.b16 %v2765, %v2764
        %v2881 = vpack.c.b16 %v2767, %v2766
        %v2882 = vpack.c.b16 %v2769, %v2768
        %v2883 = vpack.c.b16 %v2771, %v2770
        %v2884 = vpack.c.b16 %v2773, %v2772
        %v2885 = vpack.c.b16 %v2775, %v2774
        %v2886 = vpack.c.b16 %v2777, %v2776
        %v2887 = vpack.c.b16 %v2779, %v2778
        %v2888 = vpack.c.b16 %v2781, %v2780
        %v2889 = vpack.c.b16 %v2783, %v2782
        %v2890 = vpack.c.b16 %v2785, %v2784
        %v2891 = vpack.c.b16 %v2787, %v2786
        %v2892 = vpack.c.b16 %v2789, %v2788
        %v2893 = vpack.c.b16 %v2791, %v2790
        %v2894 = vpack.c.b16 %v2793, %v2792
        %v2895 = vpack.c.b16 %v2795, %v2794
        %v2896 = vpack.c.b16 %v2797, %v2796
        %v2897 = vpack.c.b16 %v2799, %v2798
        %v2898 = vpack.c.b16 %v2801, %v2800
        %v2899 = vpack.c.b16 %v2803, %v2802
        %v2900 = vpack.c.b16 %v2805, %v2804
        %v2901 = vpack.c.b16 %v2807, %v2806
        %v2902 = vpack.c.b16 %v2809, %v2808
        %v2903 = vpack.c.b16 %v2811, %v2810
        %v2904 = vpack.c.b16 %v2813, %v2812
        %v2905 = vpack.c.b16 %v2815, %v2814
        %v2906 = vpack.c.b16 %v2817, %v2816
        %v2907 = vpack.c.b16 %v2819, %v2818
        %v2908 = vpack.c.b16 %v2821, %v2820
        %v2909 = vpack.c.b16 %v2823, %v2822
        %v2910 = vpack.c.b16 %v2825, %v2824
        %v2911 = vpack.c.b16 %v2827, %v2826
        %v2912 = vpack.c.b16 %v2829, %v2828
        %v2913 = vpack.c.b16 %v2831, %v2830
        %v2914 = vpack.c.b16 %v2833, %v2832
        %v2915 = vpack.c.b16 %v2835, %v2834
        %v2916 = vpack.c.b16 %v2837, %v2836
        %v2917 = vpack.c.b16 %v2839, %v2838
        %v2918 = vpack.c.b16 %v2841, %v2840
        %v2919 = vpack.c.b16 %v2843, %v2842
        %v2920 = vpack.c.b16 %v2845, %v2844
        %v2921 = vpack.c.b16 %v2847, %v2846
        %v2922 = vpack.c.b16 %v2849, %v2848
        %v2923 = vpack.c.b16 %v2851, %v2850
        %2996 = vmatprep.subr.bf16.mxu0 0
        %2997 = vmatpush1.bf16.msra.mxu0 %v2859
        %2998 = vmatprep.subr.bf16.mxu0 0
        %2999 = vmatpush1.bf16.msra.mxu0 %v2858
        %3000 = vmatprep.subr.bf16.mxu0 0
        %3001 = vmatpush1.bf16.msra.mxu0 %v2857
        %3002 = vmatprep.subr.bf16.mxu0 0
        %3003 = vmatpush1.bf16.msra.mxu0 %v2856
        %3004 = vmatprep.subr.bf16.mxu0 0
        %3005 = vmatpush1.bf16.msra.mxu0 %v2855
        %3006 = vmatprep.subr.bf16.mxu0 0
        %3007 = vmatpush1.bf16.msra.mxu0 %v2854
        %3008 = vmatprep.subr.bf16.mxu0 0
        %3009 = vmatpush1.bf16.msra.mxu0 %v2853
        %3010 = vmatprep.subr.bf16.mxu0 0
        %3011 = vmatpush1.bf16.msra.mxu0 %v2852
        %3012 = vmatprep.subr.bf16.mxu0 0
        %3013 = vmatpush2.bf16.msra.mxu0 %v2867
        %3014 = vmatprep.subr.bf16.mxu0 0
        %3015 = vmatpush2.bf16.msra.mxu0 %v2866
        %3016 = vmatprep.subr.bf16.mxu0 0
        %3017 = vmatpush2.bf16.msra.mxu0 %v2865
        %3018 = vmatprep.subr.bf16.mxu0 0
        %3019 = vmatpush2.bf16.msra.mxu0 %v2864
        %3020 = vmatprep.subr.bf16.mxu0 0
        %3021 = vmatpush2.bf16.msra.mxu0 %v2863
        %3022 = vmatprep.subr.bf16.mxu0 0
        %3023 = vmatpush2.bf16.msra.mxu0 %v2862
        %3024 = vmatprep.subr.bf16.mxu0 0
        %3025 = vmatpush2.bf16.msra.mxu0 %v2861
        %3026 = vmatprep.subr.bf16.mxu0 0
        %3027 = vmatpush2.bf16.msra.mxu0 %v2860
        %3028 = vmatprep.mubr.bf16.mxu0 %v2327
        %3029 = vmatmul.mubr.bf16.gmra.mxu0 %v2309
        %v3030 = vpop.f32.mrf.mxu0
        %v3031 = vadd.f32 0.0, %v3030
        %v3032 = vpop.f32.mrf.mxu0
        %v3033 = vpop.f32.mrf.mxu0
        %v3034 = vadd.f32 0.0, %v3033
        %v3035 = vpop.f32.mrf.mxu0
        %3036 = vmatprep.mubr.bf16.mxu0 %v2330
        %3037 = vmatmul.mubr.bf16.gmra.mxu0 %v2310
        %v3038 = vpop.f32.mrf.mxu0
        %v3039 = vadd.f32 0.0, %v3038
        %v3040 = vpop.f32.mrf.mxu0
        %v3041 = vpop.f32.mrf.mxu0
        %v3042 = vpop.f32.mrf.mxu0
        %3043 = vdwg.mxu0
        %3044 = vmatprep.subr.bf16.mxu0 0
        %3045 = vmatpush1.bf16.msra.mxu0 %v2875
        %3046 = vmatprep.subr.bf16.mxu0 0
        %3047 = vmatpush1.bf16.msra.mxu0 %v2874
        %3048 = vmatprep.subr.bf16.mxu0 0
        %3049 = vmatpush1.bf16.msra.mxu0 %v2873
        %3050 = vmatprep.subr.bf16.mxu0 0
        %3051 = vmatpush1.bf16.msra.mxu0 %v2872
        %3052 = vmatprep.subr.bf16.mxu0 0
        %3053 = vmatpush1.bf16.msra.mxu0 %v2871
        %3054 = vmatprep.subr.bf16.mxu0 0
        %3055 = vmatpush1.bf16.msra.mxu0 %v2870
        %3056 = vmatprep.subr.bf16.mxu0 0
        %3057 = vmatpush1.bf16.msra.mxu0 %v2869
        %3058 = vmatprep.subr.bf16.mxu0 0
        %3059 = vmatpush1.bf16.msra.mxu0 %v2868
        %3060 = vmatprep.subr.bf16.mxu0 0
        %3061 = vmatpush2.bf16.msra.mxu0 %v2883
        %3062 = vmatprep.subr.bf16.mxu0 0
        %3063 = vmatpush2.bf16.msra.mxu0 %v2882
        %3064 = vmatprep.subr.bf16.mxu0 0
        %3065 = vmatpush2.bf16.msra.mxu0 %v2881
        %3066 = vmatprep.subr.bf16.mxu0 0
        %3067 = vmatpush2.bf16.msra.mxu0 %v2880
        %3068 = vmatprep.subr.bf16.mxu0 0
        %3069 = vmatpush2.bf16.msra.mxu0 %v2879
        %3070 = vmatprep.subr.bf16.mxu0 0
        %3071 = vmatpush2.bf16.msra.mxu0 %v2878
        %3072 = vmatprep.subr.bf16.mxu0 0
        %3073 = vmatpush2.bf16.msra.mxu0 %v2877
        %3074 = vmatprep.subr.bf16.mxu0 0
        %3075 = vmatpush2.bf16.msra.mxu0 %v2876
        %3076 = vmatprep.mubr.bf16.mxu0 %v2349
        %3077 = vmatmul.mubr.bf16.gmra.mxu0 %v2338
        %v3078 = vpop.f32.mrf.mxu0
        %v3079 = vadd.f32 %v3031, %v3078
        %v3080 = vpop.f32.mrf.mxu0
        %v3081 = vpop.f32.mrf.mxu0
        %v3082 = vadd.f32 %v3034, %v3081
        %v3083 = vpop.f32.mrf.mxu0
        %3084 = vmatprep.mubr.bf16.mxu0 %v2348
        %3085 = vmatmul.mubr.bf16.gmra.mxu0 %v2337
        %v3086 = vpop.f32.mrf.mxu0
        %v3087 = vadd.f32 %v3039, %v3086
        %v3088 = vpop.f32.mrf.mxu0
        %v3089 = vpop.f32.mrf.mxu0
        %v3090 = vpop.f32.mrf.mxu0
        %3091 = vdwg.mxu0
        %3092 = vmatprep.subr.bf16.mxu0 0
        %3093 = vmatpush1.bf16.msra.mxu0 %v2891
        %3094 = vmatprep.subr.bf16.mxu0 0
        %3095 = vmatpush1.bf16.msra.mxu0 %v2890
        %3096 = vmatprep.subr.bf16.mxu0 0
        %3097 = vmatpush1.bf16.msra.mxu0 %v2889
        %3098 = vmatprep.subr.bf16.mxu0 0
        %3099 = vmatpush1.bf16.msra.mxu0 %v2888
        %3100 = vmatprep.subr.bf16.mxu0 0
        %3101 = vmatpush1.bf16.msra.mxu0 %v2887
        %3102 = vmatprep.subr.bf16.mxu0 0
        %3103 = vmatpush1.bf16.msra.mxu0 %v2886
        %3104 = vmatprep.subr.bf16.mxu0 0
        %3105 = vmatpush1.bf16.msra.mxu0 %v2885
        %3106 = vmatprep.subr.bf16.mxu0 0
        %3107 = vmatpush1.bf16.msra.mxu0 %v2884
        %3108 = vmatprep.subr.bf16.mxu0 0
        %3109 = vmatpush2.bf16.msra.mxu0 %v2899
        %3110 = vmatprep.subr.bf16.mxu0 0
        %3111 = vmatpush2.bf16.msra.mxu0 %v2898
        %3112 = vmatprep.subr.bf16.mxu0 0
        %3113 = vmatpush2.bf16.msra.mxu0 %v2897
        %3114 = vmatprep.subr.bf16.mxu0 0
        %3115 = vmatpush2.bf16.msra.mxu0 %v2896
        %3116 = vmatprep.subr.bf16.mxu0 0
        %3117 = vmatpush2.bf16.msra.mxu0 %v2895
        %3118 = vmatprep.subr.bf16.mxu0 0
        %3119 = vmatpush2.bf16.msra.mxu0 %v2894
        %3120 = vmatprep.subr.bf16.mxu0 0
        %3121 = vmatpush2.bf16.msra.mxu0 %v2893
        %3122 = vmatprep.subr.bf16.mxu0 0
        %3123 = vmatpush2.bf16.msra.mxu0 %v2892
        %3124 = vmatprep.mubr.bf16.mxu0 %v2374
        %3125 = vmatmul.mubr.bf16.gmra.mxu0 %v2371
        %v3126 = vpop.f32.mrf.mxu0
        %v3127 = vadd.f32 %v3079, %v3126
        %v3128 = vpop.f32.mrf.mxu0
        %v3129 = vpop.f32.mrf.mxu0
        %v3130 = vadd.f32 %v3082, %v3129
        %v3131 = vpop.f32.mrf.mxu0
        %3132 = vmatprep.mubr.bf16.mxu0 %v2375
        %3133 = vmatmul.mubr.bf16.gmra.mxu0 %v2370
        %v3134 = vpop.f32.mrf.mxu0
        %v3135 = vadd.f32 %v3087, %v3134
        %v3136 = vpop.f32.mrf.mxu0
        %v3137 = vpop.f32.mrf.mxu0
        %v3138 = vpop.f32.mrf.mxu0
        %3139 = vdwg.mxu0
        %3140 = vmatprep.subr.bf16.mxu0 0
        %3141 = vmatpush1.bf16.msra.mxu0 %v2907
        %3142 = vmatprep.subr.bf16.mxu0 0
        %3143 = vmatpush1.bf16.msra.mxu0 %v2906
        %3144 = vmatprep.subr.bf16.mxu0 0
        %3145 = vmatpush1.bf16.msra.mxu0 %v2905
        %3146 = vmatprep.subr.bf16.mxu0 0
        %3147 = vmatpush1.bf16.msra.mxu0 %v2904
        %3148 = vmatprep.subr.bf16.mxu0 0
        %3149 = vmatpush1.bf16.msra.mxu0 %v2903
        %3150 = vmatprep.subr.bf16.mxu0 0
        %3151 = vmatpush1.bf16.msra.mxu0 %v2902
        %3152 = vmatprep.subr.bf16.mxu0 0
        %3153 = vmatpush1.bf16.msra.mxu0 %v2901
        %3154 = vmatprep.subr.bf16.mxu0 0
        %3155 = vmatpush1.bf16.msra.mxu0 %v2900
        %3156 = vmatprep.subr.bf16.mxu0 0
        %3157 = vmatpush2.bf16.msra.mxu0 %v2915
        %3158 = vmatprep.subr.bf16.mxu0 0
        %3159 = vmatpush2.bf16.msra.mxu0 %v2914
        %3160 = vmatprep.subr.bf16.mxu0 0
        %3161 = vmatpush2.bf16.msra.mxu0 %v2913
        %3162 = vmatprep.subr.bf16.mxu0 0
        %3163 = vmatpush2.bf16.msra.mxu0 %v2912
        %3164 = vmatprep.subr.bf16.mxu0 0
        %3165 = vmatpush2.bf16.msra.mxu0 %v2911
        %3166 = vmatprep.subr.bf16.mxu0 0
        %3167 = vmatpush2.bf16.msra.mxu0 %v2910
        %3168 = vmatprep.subr.bf16.mxu0 0
        %3169 = vmatpush2.bf16.msra.mxu0 %v2909
        %3170 = vmatprep.subr.bf16.mxu0 0
        %3171 = vmatpush2.bf16.msra.mxu0 %v2908
        %3172 = vmatprep.mubr.bf16.mxu0 %v2408
        %3173 = vmatmul.mubr.bf16.gmra.mxu0 %v2386
        %v3174 = vpop.f32.mrf.mxu0
        %v3175 = vadd.f32 %v3127, %v3174
        %v3176 = vpop.f32.mrf.mxu0
        %v3177 = vpop.f32.mrf.mxu0
        %v3178 = vadd.f32 %v3130, %v3177
        %v3179 = vpop.f32.mrf.mxu0
        %3180 = vmatprep.mubr.bf16.mxu0 %v2407
        %3181 = vmatmul.mubr.bf16.gmra.mxu0 %v2385
        %v3182 = vpop.f32.mrf.mxu0
        %v3183 = vadd.f32 %v3135, %v3182
        %v3184 = vpop.f32.mrf.mxu0
        %v3185 = vpop.f32.mrf.mxu0
        %v3186 = vpop.f32.mrf.mxu0
        %3187 = vdwg.mxu0
        %3188 = vmatprep.subr.bf16.mxu0 0
        %3189 = vmatpush1.bf16.msra.mxu0 %v2923
        %3190 = vmatprep.subr.bf16.mxu0 0
        %3191 = vmatpush1.bf16.msra.mxu0 %v2922
        %3192 = vmatprep.subr.bf16.mxu0 0
        %3193 = vmatpush1.bf16.msra.mxu0 %v2921
        %3194 = vmatprep.subr.bf16.mxu0 0
        %3195 = vmatpush1.bf16.msra.mxu0 %v2920
        %3196 = vmatprep.subr.bf16.mxu0 0
        %3197 = vmatpush1.bf16.msra.mxu0 %v2919
        %3198 = vmatprep.subr.bf16.mxu0 0
        %3199 = vmatpush1.bf16.msra.mxu0 %v2918
        %3200 = vmatprep.subr.bf16.mxu0 0
        %3201 = vmatpush1.bf16.msra.mxu0 %v2917
        %3202 = vmatprep.subr.bf16.mxu0 0
        %3203 = vmatpush1.bf16.msra.mxu0 %v2916
        %3204 = vmatprep.subr.bf16.mxu0 0
        %3205 = vmatpush2.bf16.msra.mxu0 0
        %3206 = vmatprep.subr.bf16.mxu0 0
        %3207 = vmatpush2.bf16.msra.mxu0 0
        %3208 = vmatprep.subr.bf16.mxu0 0
        %3209 = vmatpush2.bf16.msra.mxu0 0
        %3210 = vmatprep.subr.bf16.mxu0 0
        %3211 = vmatpush2.bf16.msra.mxu0 0
        %3212 = vmatprep.subr.bf16.mxu0 0
        %3213 = vmatpush2.bf16.msra.mxu0 0
        %3214 = vmatprep.subr.bf16.mxu0 0
        %3215 = vmatpush2.bf16.msra.mxu0 0
        %3216 = vmatprep.subr.bf16.mxu0 0
        %3217 = vmatpush2.bf16.msra.mxu0 0
        %3218 = vmatprep.subr.bf16.mxu0 0
        %3219 = vmatpush2.bf16.msra.mxu0 0
        %3220 = vmatprep.mubr.bf16.mxu0 0
        %3221 = vmatmul.mubr.bf16.gmra.mxu0 %v2416
        %v3222 = vpop.f32.mrf.mxu0
        %v3223 = vadd.f32 %v3175, %v3222
        %v3224 = vpop.f32.mrf.mxu0
        %v3225 = vpop.f32.mrf.mxu0
        %v3226 = vadd.f32 %v3178, %v3225
        %v3227 = vpop.f32.mrf.mxu0
        %3228 = vmatprep.mubr.bf16.mxu0 0
        %3229 = vmatmul.mubr.bf16.gmra.mxu0 %v2415
        %v3230 = vpop.f32.mrf.mxu0
        %v3231 = vadd.f32 %v3183, %v3230
        %v3232 = vpop.f32.mrf.mxu0
        %v3233 = vpop.f32.mrf.mxu0
        %v3234 = vpop.f32.mrf.mxu0
        %3235 = vdwg.mxu0
        %v3236 = vadd.f32 %v2288, %v3223
        %v3237 = vadd.f32 %v2289, %v3226
        %v3238 = vadd.f32 %v2290, %v3231
        %3239 = vst.msk [vmem:[#allocation2] sm:$0xff] %vm1323, %v3236
        %3240 = vst.msk [vmem:[#allocation2 + $0x8] sm:$0xff] %vm1323, %v3237
        %3241 = vst.msk [vmem:[#allocation2 + $0x10] sm:$0xff] %vm1323, %v3238
      $region48: #{forward.6} parent=39 // pred_fallthru
        _
      %v3242 = vld [vmem:[#allocation2] sm:$0xff]
      %v3243 = vld [vmem:[#allocation2 + $0x8] sm:$0xff]
      %v3244 = vld [vmem:[#allocation2 + $0x10] sm:$0xff]
      %v3245 = vld [vmem:[%s4] sm:$0x1]
      %v3247 = vlaneseq
      %v3248 = vshrl.u32 %v3247, 7
      %v3249 = vsub.s32 0, %v3248
      %v3250 = vrot.slane %v3245, %v3249
      %v3252 = vadd.f32 %v3242, %v3250
      %v3253 = vadd.f32 %v3243, %v3250
      %v3254 = vadd.f32 %v3244, %v3250
      %vm3255 = vcmp.gt.f32.partialorder %v3252, 0.0
      %vm3256 = vcmp.gt.f32.partialorder %v3253, 0.0
      %vm3257 = vcmp.gt.f32.partialorder %v3254, 0.0
      %v3258 = vmin.f32 %v3252, 0.0
      %v3259 = vmin.f32 %v3253, 0.0
      %v3260 = vmin.f32 %v3254, 0.0
      %v3261 = vmul.f32 %v3258, 1.442695
      %v3262 = vpow.pop %v3261
      %v3263 = vmul.f32 %v3259, 1.442695
      %v3264 = vpow.pop %v3263
      %v3265 = vmul.f32 %v3260, 1.442695
      %v3266 = vpow.pop %v3265
      %v3267 = vsub.f32 %v3262, 1.0
      %v3268 = vsub.f32 %v3264, 1.0
      %v3269 = vsub.f32 %v3266, 1.0
      %v3270 = vsel %vm3255, %v3252, %v3267
      %v3271 = vsel %vm3256, %v3253, %v3268
      %v3272 = vsel %vm3257, %v3254, %v3269
      %v3273 = vlaneseq
      %v3274 = vshrl.u32 %v3273, 7
      %v3275 = vadd.s32 %v3274, 8
      %v3276 = vadd.s32 %v3274, 16
      %vm3277 = vcmp.lt.s32.totalorder %v3274, 0
      %v3278 = vsub.s32 0, %v3274
      %v3279 = vsel %vm3277, %v3278, %v3274
      %v3280 = vmul.u32.u64.compose %v3279, 2863311531
      %v3281 = vextract.low.u32 %v3280
      %v3282 = vextract.high.u32 %v3280
      %v3283 = vshrl.u32 %v3282, 2
      %v3284 = vmul.u32 %v3283, 6
      %v3285 = vsub.s32 %v3279, %v3284
      %v3286 = vsub.s32 0, %v3285
      %v3287 = vsel %vm3277, %v3286, %v3285
      %vm3288 = vcmp.lt.s32.totalorder %v3275, 0
      %v3289 = vsub.s32 0, %v3275
      %v3290 = vsel %vm3288, %v3289, %v3275
      %v3291 = vmul.u32.u64.compose %v3290, 2863311531
      %v3292 = vextract.low.u32 %v3291
      %v3293 = vextract.high.u32 %v3291
      %v3294 = vshrl.u32 %v3293, 2
      %v3295 = vmul.u32 %v3294, 6
      %v3296 = vsub.s32 %v3290, %v3295
      %v3297 = vsub.s32 0, %v3296
      %v3298 = vsel %vm3288, %v3297, %v3296
      %vm3299 = vcmp.lt.s32.totalorder %v3276, 0
      %v3300 = vsub.s32 0, %v3276
      %v3301 = vsel %vm3299, %v3300, %v3276
      %v3302 = vmul.u32.u64.compose %v3301, 2863311531
      %v3303 = vextract.low.u32 %v3302
      %v3304 = vextract.high.u32 %v3302
      %v3305 = vshrl.u32 %v3304, 2
      %v3306 = vmul.u32 %v3305, 6
      %v3307 = vsub.s32 %v3301, %v3306
      %v3308 = vsub.s32 0, %v3307
      %v3309 = vsel %vm3299, %v3308, %v3307
      %vm3310 = vcmp.ne.s32.totalorder %v3287, 0
      %vm3311 = vcmp.ne.s32.totalorder %v3298, 0
      %vm3312 = vcmp.ne.s32.totalorder %v3309, 0
      %vm3313 = vcmp.lt.s32.totalorder %v3287, 0
      %vm3314 = vcmp.lt.s32.totalorder %v3298, 0
      %vm3315 = vcmp.lt.s32.totalorder %v3309, 0
      %vm3316 = vmand %vm3313, %vm3310
      %vm3317 = vmand %vm3314, %vm3311
      %vm3318 = vmand %vm3315, %vm3312
      %v3319 = vadd.s32 %v3287, 6
      %v3320 = vadd.s32 %v3298, 6
      %v3321 = vadd.s32 %v3309, 6
      %v3322 = vsel %vm3316, %v3319, %v3287
      %v3323 = vsel %vm3317, %v3320, %v3298
      %v3324 = vsel %vm3318, %v3321, %v3309
      %vm3325 = vcmp.lt.s32.totalorder %v3322, 4
      %vm3326 = vcmp.lt.s32.totalorder %v3323, 4
      %vm3327 = vcmp.lt.s32.totalorder %v3324, 4
      %v3328 = vsel %vm3325, %v3270, 0.0
      %v3329 = vsel %vm3326, %v3271, 0.0
      %v3330 = vsel %vm3327, %v3272, 0.0
      %v3331 = vpack.c.bf16 %v3329, %v3328
      %v3332 = vpack.c.bf16 %v3330, %v3330
      %v3335 = vunpack.c.l.b16 %v3331
      %v3336 = vunpack.c.h.b16 %v3331
      %v3337 = vunpack.c.l.b16 %v3332
      %v3338 = vpack.c.b16 %v3335, %v3335
      %v3339 = vpack.c.b16 %v3336, %v3336
      %v3340 = vpack.c.b16 %v3337, %v3337
      %vm3344 = vcmask 257024
      %3345 = vst.msk [vmem:[%s370] sm:$0xf] %vm3344, %v3338
      %3346 = vst.msk [vmem:[%s370 + $0x4] sm:$0xf] %vm3344, %v3339
      %3347 = vst.msk [vmem:[%s370 + $0x8] sm:$0xf] %vm3344, %v3340
      %p3348 = scmp.lt.s32.totalorder %s20, 1
      %s3349 = scalar_select %p3348, %s20, 1
      %p3350 = scmp.lt.s32.totalorder %s21, 3
      %s3351 = scalar_select %p3350, %s21, 3
      %s3352 = smul.addr %s3351, 3
      %s3353 = smul.addr %s3349, 12
      %s3354 = sadd.s32 %s3352, %s3353
      %s3355 = smul.addr %s3354, 4
      %s3356 = scalar_lea.vmem %s5, %s3355
      // Predicated region
      $region49: #{forward.6} parent=39 // pred_check
        %p3357 = pneg %p186
      $region50: #{forward.6} parent=39 // pred_check_branch
        %3359 = sbr.rel (%p3357) target = $region52
      $region51: #{forward.6} parent=39 // pred_region
        _
      $region52: #{forward.6} parent=39 // pred_fallthru
        _
    $region40: #{forward.6} parent=5 // pred_fallthru
      _
    %p3360 = scmp.le.s32.totalorder 2, %s11
    // Predicated region
    $region53: #{forward.6} parent=5 // pred_check
      %p3361 = pneg %p3360
    $region54: #{forward.6} parent=5 // pred_check_branch
      %3363 = sbr.rel (%p3361) target = $region56
    $region55: #{forward.6} parent=5 // pred_region
      %s3364 = ssub.s32 %s11, 2
      // Predicated region
      $region57: #{forward.6} parent=55 // pred_check
        %p3365 = pneg %p192
      $region58: #{forward.6} parent=55 // pred_check_branch
        %3367 = sbr.rel (%p3365) target = $region60
      $region59: #{forward.6} parent=55 // pred_region
        %p3368 = scmp.lt.s32.totalorder %s22, 1
        %s3369 = scalar_select %p3368, %s22, 1
        %p3370 = scmp.lt.s32.totalorder %s23, 3
        %s3371 = scalar_select %p3370, %s23, 3
        %s3372 = smul.addr %s3371, 3
        %s3373 = smul.addr %s3369, 12
        %s3374 = sadd.s32 %s3372, %s3373
        %s3375 = smul.addr %s3374, 4
        %s3376 = scalar_lea.vmem %s5, %s3375
      $region60: #{forward.6} parent=55 // pred_fallthru
        _
    $region56: #{forward.6} parent=5 // pred_fallthru
      _
  $region6: #{forward.6} parent=0 // loop_footer
    %s15 = sadd.s32 1, %s11
  $region7: #{forward.6} parent=0 // loop_footer_branch
    %10 = sbr.rel target = $region3
  $region8: #{forward.6} parent=0 // loop_exit
    _

</llo_original>
